<compile_context>
chip_gen: v7x
topology: tpu7x:2x2x1
jax: 0.10.0
libtpu: 0.0.40
codegen_flags: <defaults>
</compile_context>

<pallas_src>
import jax
import jax.numpy as jnp
import numpy as np
from jax.experimental import pallas as pl
from jax.experimental.pallas import tpu as pltpu

FACTORS = 43   # factor_numbers (input channels)
SEQ = 200      # conv "height"; fc expects 4 * 200 features
BATCH = 4      # small synthetic batch


def cnn_kernel(x_ref, w1_ref, b1_ref, w2_ref, b2_ref, w3_ref, b3_ref,
               v_ref, bias_ref, out_ref):
    m = x_ref.shape[0]              # B * SEQ (static)
    batch = m // SEQ

    # Per-row keep masks for the shifted taps: zero the rows that wrapped
    # across a sequence/batch boundary after the sublane roll.
    row = jax.lax.broadcasted_iota(jnp.int32, (m, 1), 0)          # (M, 1)
    rmod = row % SEQ
    keep_prev = rmod != 0                                         # l == 0 rows
    keep_next = rmod != (SEQ - 1)                                 # l == L-1 rows

    def conv3x1_relu(h, w_ref, b_ref):
        # h: (M, Cin) f32.  w_ref: (3*Cin, Cout) bf16, row index = tap*Cin + c
        # with tap 0 -> x[l-1], tap 1 -> x[l], tap 2 -> x[l+1].
        h_prev = jnp.where(keep_prev, pltpu.roll(h, 1, 0), 0.0)       # h[l-1]
        h_next = jnp.where(keep_next, pltpu.roll(h, m - 1, 0), 0.0)   # h[l+1]
        h_cat = jnp.concatenate([h_prev, h, h_next], axis=1)          # (M, 3*Cin)
        y = jnp.dot(h_cat.astype(jnp.bfloat16), w_ref[...],
                    preferred_element_type=jnp.float32)               # one MXU matmul
        return jnp.maximum(y + b_ref[...], 0.0)

    h = conv3x1_relu(x_ref[...], w1_ref, b1_ref)                  # (M, 16)
    h = conv3x1_relu(h, w2_ref, b2_ref)                           # (M, 32)
    h = conv3x1_relu(h, w3_ref, b3_ref)                           # (M, 64)

    # Folded 1x1-conv + Linear(800->1) tail:
    #   out[b] = sum_{l,c} h[b*SEQ + l, c] * V[l, c] + const  (const in bias_ref)
    c_out = h.shape[1]
    prod = h.reshape(batch, SEQ, c_out) * v_ref[...]              # (B, SEQ, 64) f32
    s = jnp.sum(prod, axis=1)                                     # (B, 64)
    out_ref[...] = jnp.sum(s, axis=1, keepdims=True) + bias_ref[0]   # (B, 1)


def init_params(key):
    ks = jax.random.split(key, 10)

    def u(k, shape, fan_in):
        bound = 1.0 / np.sqrt(fan_in)
        return jax.random.uniform(k, shape, jnp.float32, -bound, bound)

    p = {}
    p["w1"] = u(ks[0], (3, FACTORS, 16), 3 * FACTORS)   # (tap, Cin, Cout)
    p["b1"] = u(ks[1], (16,), 3 * FACTORS)
    p["w2"] = u(ks[2], (3, 16, 32), 3 * 16)
    p["b2"] = u(ks[3], (32,), 3 * 16)
    p["w3"] = u(ks[4], (3, 32, 64), 3 * 32)
    p["b3"] = u(ks[5], (64,), 3 * 32)
    p["w6"] = u(ks[6], (64, 4), 64)                      # 1x1 conv as (Cin, Cout)
    p["b6"] = u(ks[7], (4,), 64)
    p["fc_w"] = u(ks[8], (1, 4 * SEQ), 4 * SEQ)          # torch Linear weight layout
    p["fc_b"] = u(ks[9], (1,), 4 * SEQ)
    return p


def cnn_forward_pallas(x_nchw, p):
    B, C, L, W = x_nchw.shape
    assert (C, L, W) == (FACTORS, SEQ, 1)
    M = B * L

    # channels-last, width-squeezed, batch fused into rows: (B*L, C) f32.
    x_mc = (jnp.transpose(x_nchw[:, :, :, 0], (0, 2, 1))
            .reshape(M, C).astype(jnp.float32))

    def fuse_w(w):      # (3, Cin, Cout) -> (3*Cin, Cout); K index = tap*Cin + c
        return w.reshape(-1, w.shape[-1]).astype(jnp.bfloat16)

    # Fold 1x1 conv + fc.  torch flatten of (B, 4, 200, 1) is index k*200 + l,
    # so fcw_k[l, k] = fc_w[0, k*200 + l] and V[l, c] = sum_k fcw_k[l, k] w6[c, k].
    fcw_k = jnp.transpose(p["fc_w"].reshape(4, SEQ), (1, 0))          # (SEQ, 4)
    v = (fcw_k @ p["w6"].T).astype(jnp.float32)                       # (SEQ, 64)
    bias_total = (jnp.sum(fcw_k @ p["b6"]) + p["fc_b"][0]).astype(jnp.float32)

    args = (
        x_mc,
        fuse_w(p["w1"]), p["b1"].reshape(1, -1),
        fuse_w(p["w2"]), p["b2"].reshape(1, -1),
        fuse_w(p["w3"]), p["b3"].reshape(1, -1),
        v, bias_total.reshape(1),
    )
    vmem = pl.BlockSpec(memory_space=pltpu.MemorySpace.VMEM)
    smem = pl.BlockSpec(memory_space=pltpu.MemorySpace.SMEM)
    in_specs = [vmem] * (len(args) - 1) + [smem]

    k_work = 3 * FACTORS * 16 + 3 * 16 * 32 + 3 * 32 * 64
    flops = 2 * M * k_work + 3 * M * 64
    bytes_accessed = (M * C * 4            # x
                      + k_work * 2         # bf16 conv weights
                      + (16 + 32 + 64) * 4  # biases
                      + SEQ * 64 * 4       # V
                      + 4 + B * 4)         # scalar bias + output

    return pl.pallas_call(
        cnn_kernel,
        out_shape=jax.ShapeDtypeStruct((B, 1), jnp.float32),
        in_specs=in_specs,
        out_specs=vmem,
        cost_estimate=pl.CostEstimate(flops=flops, transcendentals=0,
                                      bytes_accessed=bytes_accessed),
    )(*args)


def cnn_forward_reference(x_nchw, p):
    """Pure-JAX reference mirroring the PyTorch forward exactly (NCHW)."""
    def conv_k3(x, w_kio, b):
        w_oihw = jnp.transpose(w_kio, (2, 1, 0))[:, :, :, None]   # (Cout, Cin, 3, 1)
        y = jax.lax.conv_general_dilated(
            x, w_oihw, window_strides=(1, 1), padding=((1, 1), (0, 0)),
            dimension_numbers=("NCHW", "OIHW", "NCHW"),
            precision=jax.lax.Precision.HIGHEST)
        return y + b[None, :, None, None]

    h = jax.nn.relu(conv_k3(x_nchw, p["w1"], p["b1"]))
    h = jax.nn.relu(conv_k3(h, p["w2"], p["b2"]))
    h = jax.nn.relu(conv_k3(h, p["w3"], p["b3"]))
    w6_oihw = jnp.transpose(p["w6"], (1, 0))[:, :, None, None]    # (4, 64, 1, 1)
    h = jax.lax.conv_general_dilated(
        h, w6_oihw, (1, 1), ((0, 0), (0, 0)),
        dimension_numbers=("NCHW", "OIHW", "NCHW"),
        precision=jax.lax.Precision.HIGHEST) + p["b6"][None, :, None, None]
    flat = h.reshape(h.shape[0], -1)                              # (B, 800) NCHW order
    return flat @ p["fc_w"].T + p["fc_b"]


if __name__ == "__main__":
    key = jax.random.PRNGKey(0)
    k_x, k_p = jax.random.split(key)
    params = init_params(k_p)
    # Input shape implied by the module: NCHW [B, 43, 200, 1]
    x = jax.random.normal(k_x, (BATCH, FACTORS, SEQ, 1), jnp.float32)

    fwd = jax.jit(cnn_forward_pallas)
    out = jax.block_until_ready(fwd(x, params))
    assert out.shape == (BATCH, 1)

    ref = cnn_forward_reference(x, params)
    np.testing.assert_allclose(np.asarray(out), np.asarray(ref), rtol=2e-2, atol=2e-2)

    print("KERNEL_OK")
</pallas_src>

<mosaic_0001>
module attributes {stable_mosaic.version = 11 : i64} {
  func.func @cnn_kernel(%arg0: memref<800x43xf32, #tpu.memory_space<vmem>>, %arg1: memref<129x16xbf16, #tpu.memory_space<vmem>>, %arg2: memref<1x16xf32, #tpu.memory_space<vmem>>, %arg3: memref<48x32xbf16, #tpu.memory_space<vmem>>, %arg4: memref<1x32xf32, #tpu.memory_space<vmem>>, %arg5: memref<96x64xbf16, #tpu.memory_space<vmem>>, %arg6: memref<1x64xf32, #tpu.memory_space<vmem>>, %arg7: memref<200x64xf32, #tpu.memory_space<vmem>>, %arg8: memref<1xf32, #tpu.memory_space<smem>>, %arg9: memref<4x1xf32, #tpu.memory_space<vmem>>) attributes {dimension_semantics = [], scalar_prefetch = 0 : i64, scratch_operands = 0 : i64, tpu.core_type = #tpu.core_type<tc>} {
    %0 = tpu.iota {dimensions = array<i32: 0>} : vector<800x1xi32>
    %c200_i32 = arith.constant 200 : i32
    %c0_i32 = arith.constant 0 : i32
    %1 = arith.cmpi eq, %c200_i32, %c0_i32 : i32
    %c1_i32 = arith.constant 1 : i32
    %2 = arith.select %1, %c1_i32, %c200_i32 : i32
    %3 = vector.broadcast %2 : i32 to vector<800x1xi32>
    %4 = arith.remsi %0, %3 : vector<800x1xi32>
    %c0_i32_0 = arith.constant 0 : i32
    %5 = vector.broadcast %c0_i32_0 : i32 to vector<800x1xi32>
    %6 = arith.cmpi ne, %4, %5 : vector<800x1xi32>
    %c0_i32_1 = arith.constant 0 : i32
    %7 = vector.broadcast %c0_i32_1 : i32 to vector<800x1xi32>
    %8 = arith.cmpi slt, %4, %7 : vector<800x1xi32>
    %c0_i32_2 = arith.constant 0 : i32
    %9 = arith.cmpi slt, %2, %c0_i32_2 : i32
    %10 = vector.broadcast %9 : i1 to vector<800x1xi1>
    %11 = vector.broadcast %10 : vector<800x1xi1> to vector<800x1xi1>
    %12 = arith.xori %8, %11 : vector<800x1xi1>
    %13 = arith.andi %12, %6 : vector<800x1xi1>
    %14 = vector.broadcast %2 : i32 to vector<800x1xi32>
    %15 = arith.addi %4, %14 : vector<800x1xi32>
    %16 = arith.select %13, %15, %4 : vector<800x1xi1>, vector<800x1xi32>
    %c0_i32_3 = arith.constant 0 : i32
    %17 = vector.broadcast %c0_i32_3 : i32 to vector<800x1xi32>
    %18 = arith.cmpi ne, %16, %17 : vector<800x1xi32>
    %c199_i32 = arith.constant 199 : i32
    %19 = vector.broadcast %c199_i32 : i32 to vector<800x1xi32>
    %20 = arith.cmpi ne, %16, %19 : vector<800x1xi32>
    %c0 = arith.constant 0 : index
    %c0_4 = arith.constant 0 : index
    %21 = vector.load %arg0[%c0, %c0_4] : memref<800x43xf32, #tpu.memory_space<vmem>>, vector<800x43xf32>
    %c1_i32_5 = arith.constant 1 : i32
    %22 = tpu.dynamic_rotate %21 by %c1_i32_5 dim 0 : vector<800x43xf32>, i32 -> vector<800x43xf32>
    %cst = arith.constant 0.000000e+00 : f32
    %23 = vector.shape_cast %18 : vector<800x1xi1> to vector<800x1xi1>
    %24 = vector.broadcast %23 : vector<800x1xi1> to vector<800x43xi1>
    %25 = vector.broadcast %cst : f32 to vector<800x43xf32>
    %26 = arith.select %24, %22, %25 : vector<800x43xi1>, vector<800x43xf32>
    %c799_i32 = arith.constant 799 : i32
    %27 = tpu.dynamic_rotate %21 by %c799_i32 dim 0 : vector<800x43xf32>, i32 -> vector<800x43xf32>
    %cst_6 = arith.constant 0.000000e+00 : f32
    %28 = vector.shape_cast %20 : vector<800x1xi1> to vector<800x1xi1>
    %29 = vector.broadcast %28 : vector<800x1xi1> to vector<800x43xi1>
    %30 = vector.broadcast %cst_6 : f32 to vector<800x43xf32>
    %31 = arith.select %29, %27, %30 : vector<800x43xi1>, vector<800x43xf32>
    %32 = tpu.concatenate %26, %21, %31 in 1 : vector<800x43xf32>, vector<800x43xf32>, vector<800x43xf32> -> vector<800x129xf32>
    %33 = arith.truncf %32 : vector<800x129xf32> to vector<800x129xbf16>
    %c0_7 = arith.constant 0 : index
    %c0_8 = arith.constant 0 : index
    %34 = vector.load %arg1[%c0_7, %c0_8] : memref<129x16xbf16, #tpu.memory_space<vmem>>, vector<129x16xbf16>
    %cst_9 = arith.constant dense<0.000000e+00> : vector<800x16xf32>
    %35 = tpu.matmul %33, %34, %cst_9 {dimension_numbers = #tpu.dot_dimension_numbers<[1], [0], [0], [1], [0, 0, 1, 1], [], []>} : vector<800x129xbf16>, vector<129x16xbf16>, vector<800x16xf32> -> vector<800x16xf32>
    %c0_10 = arith.constant 0 : index
    %c0_11 = arith.constant 0 : index
    %36 = vector.load %arg2[%c0_10, %c0_11] : memref<1x16xf32, #tpu.memory_space<vmem>>, vector<1x16xf32>
    %37 = vector.broadcast %36 : vector<1x16xf32> to vector<800x16xf32>
    %38 = arith.addf %35, %37 : vector<800x16xf32>
    %cst_12 = arith.constant 0.000000e+00 : f32
    %39 = vector.broadcast %cst_12 : f32 to vector<800x16xf32>
    %40 = arith.maximumf %38, %39 : vector<800x16xf32>
    %c1_i32_13 = arith.constant 1 : i32
    %41 = tpu.dynamic_rotate %40 by %c1_i32_13 dim 0 : vector<800x16xf32>, i32 -> vector<800x16xf32>
    %cst_14 = arith.constant 0.000000e+00 : f32
    %42 = vector.shape_cast %18 : vector<800x1xi1> to vector<800x1xi1>
    %43 = vector.broadcast %42 : vector<800x1xi1> to vector<800x16xi1>
    %44 = vector.broadcast %cst_14 : f32 to vector<800x16xf32>
    %45 = arith.select %43, %41, %44 : vector<800x16xi1>, vector<800x16xf32>
    %c799_i32_15 = arith.constant 799 : i32
    %46 = tpu.dynamic_rotate %40 by %c799_i32_15 dim 0 : vector<800x16xf32>, i32 -> vector<800x16xf32>
    %cst_16 = arith.constant 0.000000e+00 : f32
    %47 = vector.shape_cast %20 : vector<800x1xi1> to vector<800x1xi1>
    %48 = vector.broadcast %47 : vector<800x1xi1> to vector<800x16xi1>
    %49 = vector.broadcast %cst_16 : f32 to vector<800x16xf32>
    %50 = arith.select %48, %46, %49 : vector<800x16xi1>, vector<800x16xf32>
    %51 = tpu.concatenate %45, %40, %50 in 1 : vector<800x16xf32>, vector<800x16xf32>, vector<800x16xf32> -> vector<800x48xf32>
    %52 = arith.truncf %51 : vector<800x48xf32> to vector<800x48xbf16>
    %c0_17 = arith.constant 0 : index
    %c0_18 = arith.constant 0 : index
    %53 = vector.load %arg3[%c0_17, %c0_18] : memref<48x32xbf16, #tpu.memory_space<vmem>>, vector<48x32xbf16>
    %cst_19 = arith.constant dense<0.000000e+00> : vector<800x32xf32>
    %54 = tpu.matmul %52, %53, %cst_19 {dimension_numbers = #tpu.dot_dimension_numbers<[1], [0], [0], [1], [0, 0, 1, 1], [], []>} : vector<800x48xbf16>, vector<48x32xbf16>, vector<800x32xf32> -> vector<800x32xf32>
    %c0_20 = arith.constant 0 : index
    %c0_21 = arith.constant 0 : index
    %55 = vector.load %arg4[%c0_20, %c0_21] : memref<1x32xf32, #tpu.memory_space<vmem>>, vector<1x32xf32>
    %56 = vector.broadcast %55 : vector<1x32xf32> to vector<800x32xf32>
    %57 = arith.addf %54, %56 : vector<800x32xf32>
    %cst_22 = arith.constant 0.000000e+00 : f32
    %58 = vector.broadcast %cst_22 : f32 to vector<800x32xf32>
    %59 = arith.maximumf %57, %58 : vector<800x32xf32>
    %c1_i32_23 = arith.constant 1 : i32
    %60 = tpu.dynamic_rotate %59 by %c1_i32_23 dim 0 : vector<800x32xf32>, i32 -> vector<800x32xf32>
    %cst_24 = arith.constant 0.000000e+00 : f32
    %61 = vector.shape_cast %18 : vector<800x1xi1> to vector<800x1xi1>
    %62 = vector.broadcast %61 : vector<800x1xi1> to vector<800x32xi1>
    %63 = vector.broadcast %cst_24 : f32 to vector<800x32xf32>
    %64 = arith.select %62, %60, %63 : vector<800x32xi1>, vector<800x32xf32>
    %c799_i32_25 = arith.constant 799 : i32
    %65 = tpu.dynamic_rotate %59 by %c799_i32_25 dim 0 : vector<800x32xf32>, i32 -> vector<800x32xf32>
    %cst_26 = arith.constant 0.000000e+00 : f32
    %66 = vector.shape_cast %20 : vector<800x1xi1> to vector<800x1xi1>
    %67 = vector.broadcast %66 : vector<800x1xi1> to vector<800x32xi1>
    %68 = vector.broadcast %cst_26 : f32 to vector<800x32xf32>
    %69 = arith.select %67, %65, %68 : vector<800x32xi1>, vector<800x32xf32>
    %70 = tpu.concatenate %64, %59, %69 in 1 : vector<800x32xf32>, vector<800x32xf32>, vector<800x32xf32> -> vector<800x96xf32>
    %71 = arith.truncf %70 : vector<800x96xf32> to vector<800x96xbf16>
    %c0_27 = arith.constant 0 : index
    %c0_28 = arith.constant 0 : index
    %72 = vector.load %arg5[%c0_27, %c0_28] : memref<96x64xbf16, #tpu.memory_space<vmem>>, vector<96x64xbf16>
    %cst_29 = arith.constant dense<0.000000e+00> : vector<800x64xf32>
    %73 = tpu.matmul %71, %72, %cst_29 {dimension_numbers = #tpu.dot_dimension_numbers<[1], [0], [0], [1], [0, 0, 1, 1], [], []>} : vector<800x96xbf16>, vector<96x64xbf16>, vector<800x64xf32> -> vector<800x64xf32>
    %c0_30 = arith.constant 0 : index
    %c0_31 = arith.constant 0 : index
    %74 = vector.load %arg6[%c0_30, %c0_31] : memref<1x64xf32, #tpu.memory_space<vmem>>, vector<1x64xf32>
    %75 = vector.broadcast %74 : vector<1x64xf32> to vector<800x64xf32>
    %76 = arith.addf %73, %75 : vector<800x64xf32>
    %cst_32 = arith.constant 0.000000e+00 : f32
    %77 = vector.broadcast %cst_32 : f32 to vector<800x64xf32>
    %78 = arith.maximumf %76, %77 : vector<800x64xf32>
    %79 = vector.shape_cast %78 : vector<800x64xf32> to vector<4x200x64xf32>
    %c0_33 = arith.constant 0 : index
    %c0_34 = arith.constant 0 : index
    %80 = vector.load %arg7[%c0_33, %c0_34] : memref<200x64xf32, #tpu.memory_space<vmem>>, vector<200x64xf32>
    %81 = vector.shape_cast %80 : vector<200x64xf32> to vector<1x200x64xf32>
    %82 = vector.broadcast %81 : vector<1x200x64xf32> to vector<4x200x64xf32>
    %83 = arith.mulf %79, %82 : vector<4x200x64xf32>
    %cst_35 = arith.constant dense<0.000000e+00> : vector<4x64xf32>
    %84 = vector.multi_reduction <add>, %83, %cst_35 [1] : vector<4x200x64xf32> to vector<4x64xf32>
    %cst_36 = arith.constant dense<0.000000e+00> : vector<4xf32>
    %85 = vector.multi_reduction <add>, %84, %cst_36 [1] : vector<4x64xf32> to vector<4xf32>
    %86 = vector.shape_cast %85 : vector<4xf32> to vector<4x1xf32>
    %c0_37 = arith.constant 0 : index
    %87 = memref.load %arg8[%c0_37] : memref<1xf32, #tpu.memory_space<smem>>
    %88 = vector.broadcast %87 : f32 to vector<4x1xf32>
    %89 = arith.addf %86, %88 : vector<4x1xf32>
    %c0_38 = arith.constant 0 : index
    %c0_39 = arith.constant 0 : index
    %90 = vector.load %arg9[%c0_38, %c0_39] : memref<4x1xf32, #tpu.memory_space<vmem>>, vector<4x1xf32>
    tpu.vector_store %arg9[%c0_38, %c0_39], %89 {strides = array<i32>} : memref<4x1xf32, #tpu.memory_space<vmem>>, vector<4x1xf32>,
    return
  }
}

</mosaic_0001>

<llo_original>
// kernel: cnn_forward_pallas.1
$region0: #{cnn_forward_pallas.1}
  #allocation0 [shape = 'u32[]', space=smem, size = 0x4, offset = 0x4, fixed_abs, tag = 'smem constant byte address 0x4 - core index']
  #allocation1 [shape = 'u32[144,128]{1,0:T(1,128)}', space=vmem, size = 0x12000, scoped, tag = 'internal scratch']
  #allocation2 [shape = 'f32[1]{0:T(128)S(6)}', space=smem, size = 0x200, scoped, tag = 'scoped memory for cnn_forward_pallas.1']
  %s0 = inlined_call_operand.vmem [shape: f32[800,43], index: 0, kind: input, shape index: {}]
  %s1 = inlined_call_operand.vmem [shape: bf16[129,16], index: 1, kind: input, shape index: {}]
  %s2 = inlined_call_operand.vmem [shape: f32[1,16], index: 2, kind: input, shape index: {}]
  %s3 = inlined_call_operand.vmem [shape: bf16[48,32], index: 3, kind: input, shape index: {}]
  %s4 = inlined_call_operand.vmem [shape: f32[1,32], index: 4, kind: input, shape index: {}]
  %s5 = inlined_call_operand.vmem [shape: bf16[96,64], index: 5, kind: input, shape index: {}]
  %s6 = inlined_call_operand.vmem [shape: f32[1,64], index: 6, kind: input, shape index: {}]
  %s7 = inlined_call_operand.vmem [shape: f32[200,64], index: 7, kind: input, shape index: {}]
  %s8 = inlined_call_operand.<no memory space> [shape: f32[1], index: 8, kind: input, shape index: {}]
  %s9 = inlined_call_operand.vmem [shape: f32[4,1], index: 9, kind: output, shape index: {}]
  %s10 = sld [smem:[#allocation0]]
  $region46: #{cnn_forward_pallas.1} parent=0
    _
  %s12 = ssub.s32 1, %s10
  %s13 = scalar_select 0, %s12, %s10
  %14 = sst [smem:[#allocation2]] %s8
  // Predicated region
  $region2: #{cnn_forward_pallas.1} parent=0 // pred_check
    _
  $region3: #{cnn_forward_pallas.1} parent=0 // pred_check_branch
    %16 = sbr.rel (0) target = $region5
  $region4: #{cnn_forward_pallas.1} parent=0 // pred_region
    _
  $region5: #{cnn_forward_pallas.1} parent=0 // pred_fallthru
    _
  // Predicated region
  $region6: #{cnn_forward_pallas.1} parent=0 // pred_check
    _
  $region7: #{cnn_forward_pallas.1} parent=0 // pred_check_branch
    %18 = sbr.rel (0) target = $region9
  $region8: #{cnn_forward_pallas.1} parent=0 // pred_region
    _
  $region9: #{cnn_forward_pallas.1} parent=0 // pred_fallthru
    _
  // Predicated region
  $region10: #{cnn_forward_pallas.1} parent=0 // pred_check
    _
  $region11: #{cnn_forward_pallas.1} parent=0 // pred_check_branch
    %20 = sbr.rel (0) target = $region13
  $region12: #{cnn_forward_pallas.1} parent=0 // pred_region
    _
  $region13: #{cnn_forward_pallas.1} parent=0 // pred_fallthru
    _
  // Predicated region
  $region14: #{cnn_forward_pallas.1} parent=0 // pred_check
    _
  $region15: #{cnn_forward_pallas.1} parent=0 // pred_check_branch
    %22 = sbr.rel (0) target = $region17
  $region16: #{cnn_forward_pallas.1} parent=0 // pred_region
    _
  $region17: #{cnn_forward_pallas.1} parent=0 // pred_fallthru
    _
  // Predicated region
  $region18: #{cnn_forward_pallas.1} parent=0 // pred_check
    _
  $region19: #{cnn_forward_pallas.1} parent=0 // pred_check_branch
    %24 = sbr.rel (0) target = $region21
  $region20: #{cnn_forward_pallas.1} parent=0 // pred_region
    _
  $region21: #{cnn_forward_pallas.1} parent=0 // pred_fallthru
    _
  // Predicated region
  $region22: #{cnn_forward_pallas.1} parent=0 // pred_check
    _
  $region23: #{cnn_forward_pallas.1} parent=0 // pred_check_branch
    %26 = sbr.rel (0) target = $region25
  $region24: #{cnn_forward_pallas.1} parent=0 // pred_region
    _
  $region25: #{cnn_forward_pallas.1} parent=0 // pred_fallthru
    _
  // Predicated region
  $region26: #{cnn_forward_pallas.1} parent=0 // pred_check
    _
  $region27: #{cnn_forward_pallas.1} parent=0 // pred_check_branch
    %28 = sbr.rel (0) target = $region29
  $region28: #{cnn_forward_pallas.1} parent=0 // pred_region
    _
  $region29: #{cnn_forward_pallas.1} parent=0 // pred_fallthru
    _
  // Predicated region
  $region30: #{cnn_forward_pallas.1} parent=0 // pred_check
    _
  $region31: #{cnn_forward_pallas.1} parent=0 // pred_check_branch
    %30 = sbr.rel (0) target = $region33
  $region32: #{cnn_forward_pallas.1} parent=0 // pred_region
    _
  $region33: #{cnn_forward_pallas.1} parent=0 // pred_fallthru
    _
  // Predicated region
  $region34: #{cnn_forward_pallas.1} parent=0 // pred_check
    _
  $region35: #{cnn_forward_pallas.1} parent=0 // pred_check_branch
    %32 = sbr.rel (0) target = $region37
  $region36: #{cnn_forward_pallas.1} parent=0 // pred_region
    _
  $region37: #{cnn_forward_pallas.1} parent=0 // pred_fallthru
    _
  %v34 = vlaneseq
  %v35 = vshrl.u32 %v34, 7
  %v36 = vadd.s32 %v35, 8
  %v37 = vadd.s32 %v35, 16
  %v38 = vadd.s32 %v35, 24
  %v39 = vadd.s32 %v35, 32
  %v40 = vadd.s32 %v35, 40
  %v41 = vadd.s32 %v35, 48
  %v42 = vadd.s32 %v35, 56
  %v43 = vadd.s32 %v35, 64
  %v44 = vadd.s32 %v35, 72
  %v45 = vadd.s32 %v35, 80
  %v46 = vadd.s32 %v35, 88
  %v47 = vadd.s32 %v35, 96
  %v48 = vadd.s32 %v35, 104
  %v49 = vadd.s32 %v35, 112
  %v50 = vadd.s32 %v35, 120
  %v51 = vadd.s32 %v35, 128
  %v52 = vadd.s32 %v35, 136
  %v53 = vadd.s32 %v35, 144
  %v54 = vadd.s32 %v35, 152
  %v55 = vadd.s32 %v35, 160
  %v56 = vadd.s32 %v35, 168
  %v57 = vadd.s32 %v35, 176
  %v58 = vadd.s32 %v35, 184
  %v59 = vadd.s32 %v35, 192
  %v60 = vadd.s32 %v35, 200
  %v61 = vadd.s32 %v35, 208
  %v62 = vadd.s32 %v35, 216
  %v63 = vadd.s32 %v35, 224
  %v64 = vadd.s32 %v35, 232
  %v65 = vadd.s32 %v35, 240
  %v66 = vadd.s32 %v35, 248
  %v67 = vadd.s32 %v35, 256
  %v68 = vadd.s32 %v35, 264
  %v69 = vadd.s32 %v35, 272
  %v70 = vadd.s32 %v35, 280
  %v71 = vadd.s32 %v35, 288
  %v72 = vadd.s32 %v35, 296
  %v73 = vadd.s32 %v35, 304
  %v74 = vadd.s32 %v35, 312
  %v75 = vadd.s32 %v35, 320
  %v76 = vadd.s32 %v35, 328
  %v77 = vadd.s32 %v35, 336
  %v78 = vadd.s32 %v35, 344
  %v79 = vadd.s32 %v35, 352
  %v80 = vadd.s32 %v35, 360
  %v81 = vadd.s32 %v35, 368
  %v82 = vadd.s32 %v35, 376
  %v83 = vadd.s32 %v35, 384
  %v84 = vadd.s32 %v35, 392
  %v85 = vadd.s32 %v35, 400
  %v86 = vadd.s32 %v35, 408
  %v87 = vadd.s32 %v35, 416
  %v88 = vadd.s32 %v35, 424
  %v89 = vadd.s32 %v35, 432
  %v90 = vadd.s32 %v35, 440
  %v91 = vadd.s32 %v35, 448
  %v92 = vadd.s32 %v35, 456
  %v93 = vadd.s32 %v35, 464
  %v94 = vadd.s32 %v35, 472
  %v95 = vadd.s32 %v35, 480
  %v96 = vadd.s32 %v35, 488
  %v97 = vadd.s32 %v35, 496
  %v98 = vadd.s32 %v35, 504
  %v99 = vadd.s32 %v35, 512
  %v100 = vadd.s32 %v35, 520
  %v101 = vadd.s32 %v35, 528
  %v102 = vadd.s32 %v35, 536
  %v103 = vadd.s32 %v35, 544
  %v104 = vadd.s32 %v35, 552
  %v105 = vadd.s32 %v35, 560
  %v106 = vadd.s32 %v35, 568
  %v107 = vadd.s32 %v35, 576
  %v108 = vadd.s32 %v35, 584
  %v109 = vadd.s32 %v35, 592
  %v110 = vadd.s32 %v35, 600
  %v111 = vadd.s32 %v35, 608
  %v112 = vadd.s32 %v35, 616
  %v113 = vadd.s32 %v35, 624
  %v114 = vadd.s32 %v35, 632
  %v115 = vadd.s32 %v35, 640
  %v116 = vadd.s32 %v35, 648
  %v117 = vadd.s32 %v35, 656
  %v118 = vadd.s32 %v35, 664
  %v119 = vadd.s32 %v35, 672
  %v120 = vadd.s32 %v35, 680
  %v121 = vadd.s32 %v35, 688
  %v122 = vadd.s32 %v35, 696
  %v123 = vadd.s32 %v35, 704
  %v124 = vadd.s32 %v35, 712
  %v125 = vadd.s32 %v35, 720
  %v126 = vadd.s32 %v35, 728
  %v127 = vadd.s32 %v35, 736
  %v128 = vadd.s32 %v35, 744
  %v129 = vadd.s32 %v35, 752
  %v130 = vadd.s32 %v35, 760
  %v131 = vadd.s32 %v35, 768
  %v132 = vadd.s32 %v35, 776
  %v133 = vadd.s32 %v35, 784
  %v134 = vadd.s32 %v35, 792
  %vm135 = vcmp.lt.s32.totalorder %v35, 0
  %v136 = vsub.s32 0, %v35
  %v137 = vsel %vm135, %v136, %v35
  %v138 = vmul.u32.u64.compose %v137, 2748779070
  %v139 = vextract.low.u32 %v138
  %v140 = vextract.high.u32 %v138
  %v141 = vshrl.u32 %v140, 7
  %v142 = vmul.u32 %v141, 200
  %v143 = vsub.s32 %v137, %v142
  %v144 = vsub.s32 0, %v143
  %v145 = vsel %vm135, %v144, %v143
  %vm146 = vcmp.lt.s32.totalorder %v36, 0
  %v147 = vsub.s32 0, %v36
  %v148 = vsel %vm146, %v147, %v36
  %v149 = vmul.u32.u64.compose %v148, 2748779070
  %v150 = vextract.low.u32 %v149
  %v151 = vextract.high.u32 %v149
  %v152 = vshrl.u32 %v151, 7
  %v153 = vmul.u32 %v152, 200
  %v154 = vsub.s32 %v148, %v153
  %v155 = vsub.s32 0, %v154
  %v156 = vsel %vm146, %v155, %v154
  %vm157 = vcmp.lt.s32.totalorder %v37, 0
  %v158 = vsub.s32 0, %v37
  %v159 = vsel %vm157, %v158, %v37
  %v160 = vmul.u32.u64.compose %v159, 2748779070
  %v161 = vextract.low.u32 %v160
  %v162 = vextract.high.u32 %v160
  %v163 = vshrl.u32 %v162, 7
  %v164 = vmul.u32 %v163, 200
  %v165 = vsub.s32 %v159, %v164
  %v166 = vsub.s32 0, %v165
  %v167 = vsel %vm157, %v166, %v165
  %vm168 = vcmp.lt.s32.totalorder %v38, 0
  %v169 = vsub.s32 0, %v38
  %v170 = vsel %vm168, %v169, %v38
  %v171 = vmul.u32.u64.compose %v170, 2748779070
  %v172 = vextract.low.u32 %v171
  %v173 = vextract.high.u32 %v171
  %v174 = vshrl.u32 %v173, 7
  %v175 = vmul.u32 %v174, 200
  %v176 = vsub.s32 %v170, %v175
  %v177 = vsub.s32 0, %v176
  %v178 = vsel %vm168, %v177, %v176
  %vm179 = vcmp.lt.s32.totalorder %v39, 0
  %v180 = vsub.s32 0, %v39
  %v181 = vsel %vm179, %v180, %v39
  %v182 = vmul.u32.u64.compose %v181, 2748779070
  %v183 = vextract.low.u32 %v182
  %v184 = vextract.high.u32 %v182
  %v185 = vshrl.u32 %v184, 7
  %v186 = vmul.u32 %v185, 200
  %v187 = vsub.s32 %v181, %v186
  %v188 = vsub.s32 0, %v187
  %v189 = vsel %vm179, %v188, %v187
  %vm190 = vcmp.lt.s32.totalorder %v40, 0
  %v191 = vsub.s32 0, %v40
  %v192 = vsel %vm190, %v191, %v40
  %v193 = vmul.u32.u64.compose %v192, 2748779070
  %v194 = vextract.low.u32 %v193
  %v195 = vextract.high.u32 %v193
  %v196 = vshrl.u32 %v195, 7
  %v197 = vmul.u32 %v196, 200
  %v198 = vsub.s32 %v192, %v197
  %v199 = vsub.s32 0, %v198
  %v200 = vsel %vm190, %v199, %v198
  %vm201 = vcmp.lt.s32.totalorder %v41, 0
  %v202 = vsub.s32 0, %v41
  %v203 = vsel %vm201, %v202, %v41
  %v204 = vmul.u32.u64.compose %v203, 2748779070
  %v205 = vextract.low.u32 %v204
  %v206 = vextract.high.u32 %v204
  %v207 = vshrl.u32 %v206, 7
  %v208 = vmul.u32 %v207, 200
  %v209 = vsub.s32 %v203, %v208
  %v210 = vsub.s32 0, %v209
  %v211 = vsel %vm201, %v210, %v209
  %vm212 = vcmp.lt.s32.totalorder %v42, 0
  %v213 = vsub.s32 0, %v42
  %v214 = vsel %vm212, %v213, %v42
  %v215 = vmul.u32.u64.compose %v214, 2748779070
  %v216 = vextract.low.u32 %v215
  %v217 = vextract.high.u32 %v215
  %v218 = vshrl.u32 %v217, 7
  %v219 = vmul.u32 %v218, 200
  %v220 = vsub.s32 %v214, %v219
  %v221 = vsub.s32 0, %v220
  %v222 = vsel %vm212, %v221, %v220
  %vm223 = vcmp.lt.s32.totalorder %v43, 0
  %v224 = vsub.s32 0, %v43
  %v225 = vsel %vm223, %v224, %v43
  %v226 = vmul.u32.u64.compose %v225, 2748779070
  %v227 = vextract.low.u32 %v226
  %v228 = vextract.high.u32 %v226
  %v229 = vshrl.u32 %v228, 7
  %v230 = vmul.u32 %v229, 200
  %v231 = vsub.s32 %v225, %v230
  %v232 = vsub.s32 0, %v231
  %v233 = vsel %vm223, %v232, %v231
  %vm234 = vcmp.lt.s32.totalorder %v44, 0
  %v235 = vsub.s32 0, %v44
  %v236 = vsel %vm234, %v235, %v44
  %v237 = vmul.u32.u64.compose %v236, 2748779070
  %v238 = vextract.low.u32 %v237
  %v239 = vextract.high.u32 %v237
  %v240 = vshrl.u32 %v239, 7
  %v241 = vmul.u32 %v240, 200
  %v242 = vsub.s32 %v236, %v241
  %v243 = vsub.s32 0, %v242
  %v244 = vsel %vm234, %v243, %v242
  %vm245 = vcmp.lt.s32.totalorder %v45, 0
  %v246 = vsub.s32 0, %v45
  %v247 = vsel %vm245, %v246, %v45
  %v248 = vmul.u32.u64.compose %v247, 2748779070
  %v249 = vextract.low.u32 %v248
  %v250 = vextract.high.u32 %v248
  %v251 = vshrl.u32 %v250, 7
  %v252 = vmul.u32 %v251, 200
  %v253 = vsub.s32 %v247, %v252
  %v254 = vsub.s32 0, %v253
  %v255 = vsel %vm245, %v254, %v253
  %vm256 = vcmp.lt.s32.totalorder %v46, 0
  %v257 = vsub.s32 0, %v46
  %v258 = vsel %vm256, %v257, %v46
  %v259 = vmul.u32.u64.compose %v258, 2748779070
  %v260 = vextract.low.u32 %v259
  %v261 = vextract.high.u32 %v259
  %v262 = vshrl.u32 %v261, 7
  %v263 = vmul.u32 %v262, 200
  %v264 = vsub.s32 %v258, %v263
  %v265 = vsub.s32 0, %v264
  %v266 = vsel %vm256, %v265, %v264
  %vm267 = vcmp.lt.s32.totalorder %v47, 0
  %v268 = vsub.s32 0, %v47
  %v269 = vsel %vm267, %v268, %v47
  %v270 = vmul.u32.u64.compose %v269, 2748779070
  %v271 = vextract.low.u32 %v270
  %v272 = vextract.high.u32 %v270
  %v273 = vshrl.u32 %v272, 7
  %v274 = vmul.u32 %v273, 200
  %v275 = vsub.s32 %v269, %v274
  %v276 = vsub.s32 0, %v275
  %v277 = vsel %vm267, %v276, %v275
  %vm278 = vcmp.lt.s32.totalorder %v48, 0
  %v279 = vsub.s32 0, %v48
  %v280 = vsel %vm278, %v279, %v48
  %v281 = vmul.u32.u64.compose %v280, 2748779070
  %v282 = vextract.low.u32 %v281
  %v283 = vextract.high.u32 %v281
  %v284 = vshrl.u32 %v283, 7
  %v285 = vmul.u32 %v284, 200
  %v286 = vsub.s32 %v280, %v285
  %v287 = vsub.s32 0, %v286
  %v288 = vsel %vm278, %v287, %v286
  %vm289 = vcmp.lt.s32.totalorder %v49, 0
  %v290 = vsub.s32 0, %v49
  %v291 = vsel %vm289, %v290, %v49
  %v292 = vmul.u32.u64.compose %v291, 2748779070
  %v293 = vextract.low.u32 %v292
  %v294 = vextract.high.u32 %v292
  %v295 = vshrl.u32 %v294, 7
  %v296 = vmul.u32 %v295, 200
  %v297 = vsub.s32 %v291, %v296
  %v298 = vsub.s32 0, %v297
  %v299 = vsel %vm289, %v298, %v297
  %vm300 = vcmp.lt.s32.totalorder %v50, 0
  %v301 = vsub.s32 0, %v50
  %v302 = vsel %vm300, %v301, %v50
  %v303 = vmul.u32.u64.compose %v302, 2748779070
  %v304 = vextract.low.u32 %v303
  %v305 = vextract.high.u32 %v303
  %v306 = vshrl.u32 %v305, 7
  %v307 = vmul.u32 %v306, 200
  %v308 = vsub.s32 %v302, %v307
  %v309 = vsub.s32 0, %v308
  %v310 = vsel %vm300, %v309, %v308
  %vm311 = vcmp.lt.s32.totalorder %v51, 0
  %v312 = vsub.s32 0, %v51
  %v313 = vsel %vm311, %v312, %v51
  %v314 = vmul.u32.u64.compose %v313, 2748779070
  %v315 = vextract.low.u32 %v314
  %v316 = vextract.high.u32 %v314
  %v317 = vshrl.u32 %v316, 7
  %v318 = vmul.u32 %v317, 200
  %v319 = vsub.s32 %v313, %v318
  %v320 = vsub.s32 0, %v319
  %v321 = vsel %vm311, %v320, %v319
  %vm322 = vcmp.lt.s32.totalorder %v52, 0
  %v323 = vsub.s32 0, %v52
  %v324 = vsel %vm322, %v323, %v52
  %v325 = vmul.u32.u64.compose %v324, 2748779070
  %v326 = vextract.low.u32 %v325
  %v327 = vextract.high.u32 %v325
  %v328 = vshrl.u32 %v327, 7
  %v329 = vmul.u32 %v328, 200
  %v330 = vsub.s32 %v324, %v329
  %v331 = vsub.s32 0, %v330
  %v332 = vsel %vm322, %v331, %v330
  %vm333 = vcmp.lt.s32.totalorder %v53, 0
  %v334 = vsub.s32 0, %v53
  %v335 = vsel %vm333, %v334, %v53
  %v336 = vmul.u32.u64.compose %v335, 2748779070
  %v337 = vextract.low.u32 %v336
  %v338 = vextract.high.u32 %v336
  %v339 = vshrl.u32 %v338, 7
  %v340 = vmul.u32 %v339, 200
  %v341 = vsub.s32 %v335, %v340
  %v342 = vsub.s32 0, %v341
  %v343 = vsel %vm333, %v342, %v341
  %vm344 = vcmp.lt.s32.totalorder %v54, 0
  %v345 = vsub.s32 0, %v54
  %v346 = vsel %vm344, %v345, %v54
  %v347 = vmul.u32.u64.compose %v346, 2748779070
  %v348 = vextract.low.u32 %v347
  %v349 = vextract.high.u32 %v347
  %v350 = vshrl.u32 %v349, 7
  %v351 = vmul.u32 %v350, 200
  %v352 = vsub.s32 %v346, %v351
  %v353 = vsub.s32 0, %v352
  %v354 = vsel %vm344, %v353, %v352
  %vm355 = vcmp.lt.s32.totalorder %v55, 0
  %v356 = vsub.s32 0, %v55
  %v357 = vsel %vm355, %v356, %v55
  %v358 = vmul.u32.u64.compose %v357, 2748779070
  %v359 = vextract.low.u32 %v358
  %v360 = vextract.high.u32 %v358
  %v361 = vshrl.u32 %v360, 7
  %v362 = vmul.u32 %v361, 200
  %v363 = vsub.s32 %v357, %v362
  %v364 = vsub.s32 0, %v363
  %v365 = vsel %vm355, %v364, %v363
  %vm366 = vcmp.lt.s32.totalorder %v56, 0
  %v367 = vsub.s32 0, %v56
  %v368 = vsel %vm366, %v367, %v56
  %v369 = vmul.u32.u64.compose %v368, 2748779070
  %v370 = vextract.low.u32 %v369
  %v371 = vextract.high.u32 %v369
  %v372 = vshrl.u32 %v371, 7
  %v373 = vmul.u32 %v372, 200
  %v374 = vsub.s32 %v368, %v373
  %v375 = vsub.s32 0, %v374
  %v376 = vsel %vm366, %v375, %v374
  %vm377 = vcmp.lt.s32.totalorder %v57, 0
  %v378 = vsub.s32 0, %v57
  %v379 = vsel %vm377, %v378, %v57
  %v380 = vmul.u32.u64.compose %v379, 2748779070
  %v381 = vextract.low.u32 %v380
  %v382 = vextract.high.u32 %v380
  %v383 = vshrl.u32 %v382, 7
  %v384 = vmul.u32 %v383, 200
  %v385 = vsub.s32 %v379, %v384
  %v386 = vsub.s32 0, %v385
  %v387 = vsel %vm377, %v386, %v385
  %vm388 = vcmp.lt.s32.totalorder %v58, 0
  %v389 = vsub.s32 0, %v58
  %v390 = vsel %vm388, %v389, %v58
  %v391 = vmul.u32.u64.compose %v390, 2748779070
  %v392 = vextract.low.u32 %v391
  %v393 = vextract.high.u32 %v391
  %v394 = vshrl.u32 %v393, 7
  %v395 = vmul.u32 %v394, 200
  %v396 = vsub.s32 %v390, %v395
  %v397 = vsub.s32 0, %v396
  %v398 = vsel %vm388, %v397, %v396
  %vm399 = vcmp.lt.s32.totalorder %v59, 0
  %v400 = vsub.s32 0, %v59
  %v401 = vsel %vm399, %v400, %v59
  %v402 = vmul.u32.u64.compose %v401, 2748779070
  %v403 = vextract.low.u32 %v402
  %v404 = vextract.high.u32 %v402
  %v405 = vshrl.u32 %v404, 7
  %v406 = vmul.u32 %v405, 200
  %v407 = vsub.s32 %v401, %v406
  %v408 = vsub.s32 0, %v407
  %v409 = vsel %vm399, %v408, %v407
  %vm410 = vcmp.lt.s32.totalorder %v60, 0
  %v411 = vsub.s32 0, %v60
  %v412 = vsel %vm410, %v411, %v60
  %v413 = vmul.u32.u64.compose %v412, 2748779070
  %v414 = vextract.low.u32 %v413
  %v415 = vextract.high.u32 %v413
  %v416 = vshrl.u32 %v415, 7
  %v417 = vmul.u32 %v416, 200
  %v418 = vsub.s32 %v412, %v417
  %v419 = vsub.s32 0, %v418
  %v420 = vsel %vm410, %v419, %v418
  %vm421 = vcmp.lt.s32.totalorder %v61, 0
  %v422 = vsub.s32 0, %v61
  %v423 = vsel %vm421, %v422, %v61
  %v424 = vmul.u32.u64.compose %v423, 2748779070
  %v425 = vextract.low.u32 %v424
  %v426 = vextract.high.u32 %v424
  %v427 = vshrl.u32 %v426, 7
  %v428 = vmul.u32 %v427, 200
  %v429 = vsub.s32 %v423, %v428
  %v430 = vsub.s32 0, %v429
  %v431 = vsel %vm421, %v430, %v429
  %vm432 = vcmp.lt.s32.totalorder %v62, 0
  %v433 = vsub.s32 0, %v62
  %v434 = vsel %vm432, %v433, %v62
  %v435 = vmul.u32.u64.compose %v434, 2748779070
  %v436 = vextract.low.u32 %v435
  %v437 = vextract.high.u32 %v435
  %v438 = vshrl.u32 %v437, 7
  %v439 = vmul.u32 %v438, 200
  %v440 = vsub.s32 %v434, %v439
  %v441 = vsub.s32 0, %v440
  %v442 = vsel %vm432, %v441, %v440
  %vm443 = vcmp.lt.s32.totalorder %v63, 0
  %v444 = vsub.s32 0, %v63
  %v445 = vsel %vm443, %v444, %v63
  %v446 = vmul.u32.u64.compose %v445, 2748779070
  %v447 = vextract.low.u32 %v446
  %v448 = vextract.high.u32 %v446
  %v449 = vshrl.u32 %v448, 7
  %v450 = vmul.u32 %v449, 200
  %v451 = vsub.s32 %v445, %v450
  %v452 = vsub.s32 0, %v451
  %v453 = vsel %vm443, %v452, %v451
  %vm454 = vcmp.lt.s32.totalorder %v64, 0
  %v455 = vsub.s32 0, %v64
  %v456 = vsel %vm454, %v455, %v64
  %v457 = vmul.u32.u64.compose %v456, 2748779070
  %v458 = vextract.low.u32 %v457
  %v459 = vextract.high.u32 %v457
  %v460 = vshrl.u32 %v459, 7
  %v461 = vmul.u32 %v460, 200
  %v462 = vsub.s32 %v456, %v461
  %v463 = vsub.s32 0, %v462
  %v464 = vsel %vm454, %v463, %v462
  %vm465 = vcmp.lt.s32.totalorder %v65, 0
  %v466 = vsub.s32 0, %v65
  %v467 = vsel %vm465, %v466, %v65
  %v468 = vmul.u32.u64.compose %v467, 2748779070
  %v469 = vextract.low.u32 %v468
  %v470 = vextract.high.u32 %v468
  %v471 = vshrl.u32 %v470, 7
  %v472 = vmul.u32 %v471, 200
  %v473 = vsub.s32 %v467, %v472
  %v474 = vsub.s32 0, %v473
  %v475 = vsel %vm465, %v474, %v473
  %vm476 = vcmp.lt.s32.totalorder %v66, 0
  %v477 = vsub.s32 0, %v66
  %v478 = vsel %vm476, %v477, %v66
  %v479 = vmul.u32.u64.compose %v478, 2748779070
  %v480 = vextract.low.u32 %v479
  %v481 = vextract.high.u32 %v479
  %v482 = vshrl.u32 %v481, 7
  %v483 = vmul.u32 %v482, 200
  %v484 = vsub.s32 %v478, %v483
  %v485 = vsub.s32 0, %v484
  %v486 = vsel %vm476, %v485, %v484
  %vm487 = vcmp.lt.s32.totalorder %v67, 0
  %v488 = vsub.s32 0, %v67
  %v489 = vsel %vm487, %v488, %v67
  %v490 = vmul.u32.u64.compose %v489, 2748779070
  %v491 = vextract.low.u32 %v490
  %v492 = vextract.high.u32 %v490
  %v493 = vshrl.u32 %v492, 7
  %v494 = vmul.u32 %v493, 200
  %v495 = vsub.s32 %v489, %v494
  %v496 = vsub.s32 0, %v495
  %v497 = vsel %vm487, %v496, %v495
  %vm498 = vcmp.lt.s32.totalorder %v68, 0
  %v499 = vsub.s32 0, %v68
  %v500 = vsel %vm498, %v499, %v68
  %v501 = vmul.u32.u64.compose %v500, 2748779070
  %v502 = vextract.low.u32 %v501
  %v503 = vextract.high.u32 %v501
  %v504 = vshrl.u32 %v503, 7
  %v505 = vmul.u32 %v504, 200
  %v506 = vsub.s32 %v500, %v505
  %v507 = vsub.s32 0, %v506
  %v508 = vsel %vm498, %v507, %v506
  %vm509 = vcmp.lt.s32.totalorder %v69, 0
  %v510 = vsub.s32 0, %v69
  %v511 = vsel %vm509, %v510, %v69
  %v512 = vmul.u32.u64.compose %v511, 2748779070
  %v513 = vextract.low.u32 %v512
  %v514 = vextract.high.u32 %v512
  %v515 = vshrl.u32 %v514, 7
  %v516 = vmul.u32 %v515, 200
  %v517 = vsub.s32 %v511, %v516
  %v518 = vsub.s32 0, %v517
  %v519 = vsel %vm509, %v518, %v517
  %vm520 = vcmp.lt.s32.totalorder %v70, 0
  %v521 = vsub.s32 0, %v70
  %v522 = vsel %vm520, %v521, %v70
  %v523 = vmul.u32.u64.compose %v522, 2748779070
  %v524 = vextract.low.u32 %v523
  %v525 = vextract.high.u32 %v523
  %v526 = vshrl.u32 %v525, 7
  %v527 = vmul.u32 %v526, 200
  %v528 = vsub.s32 %v522, %v527
  %v529 = vsub.s32 0, %v528
  %v530 = vsel %vm520, %v529, %v528
  %vm531 = vcmp.lt.s32.totalorder %v71, 0
  %v532 = vsub.s32 0, %v71
  %v533 = vsel %vm531, %v532, %v71
  %v534 = vmul.u32.u64.compose %v533, 2748779070
  %v535 = vextract.low.u32 %v534
  %v536 = vextract.high.u32 %v534
  %v537 = vshrl.u32 %v536, 7
  %v538 = vmul.u32 %v537, 200
  %v539 = vsub.s32 %v533, %v538
  %v540 = vsub.s32 0, %v539
  %v541 = vsel %vm531, %v540, %v539
  %vm542 = vcmp.lt.s32.totalorder %v72, 0
  %v543 = vsub.s32 0, %v72
  %v544 = vsel %vm542, %v543, %v72
  %v545 = vmul.u32.u64.compose %v544, 2748779070
  %v546 = vextract.low.u32 %v545
  %v547 = vextract.high.u32 %v545
  %v548 = vshrl.u32 %v547, 7
  %v549 = vmul.u32 %v548, 200
  %v550 = vsub.s32 %v544, %v549
  %v551 = vsub.s32 0, %v550
  %v552 = vsel %vm542, %v551, %v550
  %vm553 = vcmp.lt.s32.totalorder %v73, 0
  %v554 = vsub.s32 0, %v73
  %v555 = vsel %vm553, %v554, %v73
  %v556 = vmul.u32.u64.compose %v555, 2748779070
  %v557 = vextract.low.u32 %v556
  %v558 = vextract.high.u32 %v556
  %v559 = vshrl.u32 %v558, 7
  %v560 = vmul.u32 %v559, 200
  %v561 = vsub.s32 %v555, %v560
  %v562 = vsub.s32 0, %v561
  %v563 = vsel %vm553, %v562, %v561
  %vm564 = vcmp.lt.s32.totalorder %v74, 0
  %v565 = vsub.s32 0, %v74
  %v566 = vsel %vm564, %v565, %v74
  %v567 = vmul.u32.u64.compose %v566, 2748779070
  %v568 = vextract.low.u32 %v567
  %v569 = vextract.high.u32 %v567
  %v570 = vshrl.u32 %v569, 7
  %v571 = vmul.u32 %v570, 200
  %v572 = vsub.s32 %v566, %v571
  %v573 = vsub.s32 0, %v572
  %v574 = vsel %vm564, %v573, %v572
  %vm575 = vcmp.lt.s32.totalorder %v75, 0
  %v576 = vsub.s32 0, %v75
  %v577 = vsel %vm575, %v576, %v75
  %v578 = vmul.u32.u64.compose %v577, 2748779070
  %v579 = vextract.low.u32 %v578
  %v580 = vextract.high.u32 %v578
  %v581 = vshrl.u32 %v580, 7
  %v582 = vmul.u32 %v581, 200
  %v583 = vsub.s32 %v577, %v582
  %v584 = vsub.s32 0, %v583
  %v585 = vsel %vm575, %v584, %v583
  %vm586 = vcmp.lt.s32.totalorder %v76, 0
  %v587 = vsub.s32 0, %v76
  %v588 = vsel %vm586, %v587, %v76
  %v589 = vmul.u32.u64.compose %v588, 2748779070
  %v590 = vextract.low.u32 %v589
  %v591 = vextract.high.u32 %v589
  %v592 = vshrl.u32 %v591, 7
  %v593 = vmul.u32 %v592, 200
  %v594 = vsub.s32 %v588, %v593
  %v595 = vsub.s32 0, %v594
  %v596 = vsel %vm586, %v595, %v594
  %vm597 = vcmp.lt.s32.totalorder %v77, 0
  %v598 = vsub.s32 0, %v77
  %v599 = vsel %vm597, %v598, %v77
  %v600 = vmul.u32.u64.compose %v599, 2748779070
  %v601 = vextract.low.u32 %v600
  %v602 = vextract.high.u32 %v600
  %v603 = vshrl.u32 %v602, 7
  %v604 = vmul.u32 %v603, 200
  %v605 = vsub.s32 %v599, %v604
  %v606 = vsub.s32 0, %v605
  %v607 = vsel %vm597, %v606, %v605
  %vm608 = vcmp.lt.s32.totalorder %v78, 0
  %v609 = vsub.s32 0, %v78
  %v610 = vsel %vm608, %v609, %v78
  %v611 = vmul.u32.u64.compose %v610, 2748779070
  %v612 = vextract.low.u32 %v611
  %v613 = vextract.high.u32 %v611
  %v614 = vshrl.u32 %v613, 7
  %v615 = vmul.u32 %v614, 200
  %v616 = vsub.s32 %v610, %v615
  %v617 = vsub.s32 0, %v616
  %v618 = vsel %vm608, %v617, %v616
  %vm619 = vcmp.lt.s32.totalorder %v79, 0
  %v620 = vsub.s32 0, %v79
  %v621 = vsel %vm619, %v620, %v79
  %v622 = vmul.u32.u64.compose %v621, 2748779070
  %v623 = vextract.low.u32 %v622
  %v624 = vextract.high.u32 %v622
  %v625 = vshrl.u32 %v624, 7
  %v626 = vmul.u32 %v625, 200
  %v627 = vsub.s32 %v621, %v626
  %v628 = vsub.s32 0, %v627
  %v629 = vsel %vm619, %v628, %v627
  %vm630 = vcmp.lt.s32.totalorder %v80, 0
  %v631 = vsub.s32 0, %v80
  %v632 = vsel %vm630, %v631, %v80
  %v633 = vmul.u32.u64.compose %v632, 2748779070
  %v634 = vextract.low.u32 %v633
  %v635 = vextract.high.u32 %v633
  %v636 = vshrl.u32 %v635, 7
  %v637 = vmul.u32 %v636, 200
  %v638 = vsub.s32 %v632, %v637
  %v639 = vsub.s32 0, %v638
  %v640 = vsel %vm630, %v639, %v638
  %vm641 = vcmp.lt.s32.totalorder %v81, 0
  %v642 = vsub.s32 0, %v81
  %v643 = vsel %vm641, %v642, %v81
  %v644 = vmul.u32.u64.compose %v643, 2748779070
  %v645 = vextract.low.u32 %v644
  %v646 = vextract.high.u32 %v644
  %v647 = vshrl.u32 %v646, 7
  %v648 = vmul.u32 %v647, 200
  %v649 = vsub.s32 %v643, %v648
  %v650 = vsub.s32 0, %v649
  %v651 = vsel %vm641, %v650, %v649
  %vm652 = vcmp.lt.s32.totalorder %v82, 0
  %v653 = vsub.s32 0, %v82
  %v654 = vsel %vm652, %v653, %v82
  %v655 = vmul.u32.u64.compose %v654, 2748779070
  %v656 = vextract.low.u32 %v655
  %v657 = vextract.high.u32 %v655
  %v658 = vshrl.u32 %v657, 7
  %v659 = vmul.u32 %v658, 200
  %v660 = vsub.s32 %v654, %v659
  %v661 = vsub.s32 0, %v660
  %v662 = vsel %vm652, %v661, %v660
  %vm663 = vcmp.lt.s32.totalorder %v83, 0
  %v664 = vsub.s32 0, %v83
  %v665 = vsel %vm663, %v664, %v83
  %v666 = vmul.u32.u64.compose %v665, 2748779070
  %v667 = vextract.low.u32 %v666
  %v668 = vextract.high.u32 %v666
  %v669 = vshrl.u32 %v668, 7
  %v670 = vmul.u32 %v669, 200
  %v671 = vsub.s32 %v665, %v670
  %v672 = vsub.s32 0, %v671
  %v673 = vsel %vm663, %v672, %v671
  %vm674 = vcmp.lt.s32.totalorder %v84, 0
  %v675 = vsub.s32 0, %v84
  %v676 = vsel %vm674, %v675, %v84
  %v677 = vmul.u32.u64.compose %v676, 2748779070
  %v678 = vextract.low.u32 %v677
  %v679 = vextract.high.u32 %v677
  %v680 = vshrl.u32 %v679, 7
  %v681 = vmul.u32 %v680, 200
  %v682 = vsub.s32 %v676, %v681
  %v683 = vsub.s32 0, %v682
  %v684 = vsel %vm674, %v683, %v682
  %vm685 = vcmp.lt.s32.totalorder %v85, 0
  %v686 = vsub.s32 0, %v85
  %v687 = vsel %vm685, %v686, %v85
  %v688 = vmul.u32.u64.compose %v687, 2748779070
  %v689 = vextract.low.u32 %v688
  %v690 = vextract.high.u32 %v688
  %v691 = vshrl.u32 %v690, 7
  %v692 = vmul.u32 %v691, 200
  %v693 = vsub.s32 %v687, %v692
  %v694 = vsub.s32 0, %v693
  %v695 = vsel %vm685, %v694, %v693
  %vm696 = vcmp.lt.s32.totalorder %v86, 0
  %v697 = vsub.s32 0, %v86
  %v698 = vsel %vm696, %v697, %v86
  %v699 = vmul.u32.u64.compose %v698, 2748779070
  %v700 = vextract.low.u32 %v699
  %v701 = vextract.high.u32 %v699
  %v702 = vshrl.u32 %v701, 7
  %v703 = vmul.u32 %v702, 200
  %v704 = vsub.s32 %v698, %v703
  %v705 = vsub.s32 0, %v704
  %v706 = vsel %vm696, %v705, %v704
  %vm707 = vcmp.lt.s32.totalorder %v87, 0
  %v708 = vsub.s32 0, %v87
  %v709 = vsel %vm707, %v708, %v87
  %v710 = vmul.u32.u64.compose %v709, 2748779070
  %v711 = vextract.low.u32 %v710
  %v712 = vextract.high.u32 %v710
  %v713 = vshrl.u32 %v712, 7
  %v714 = vmul.u32 %v713, 200
  %v715 = vsub.s32 %v709, %v714
  %v716 = vsub.s32 0, %v715
  %v717 = vsel %vm707, %v716, %v715
  %vm718 = vcmp.lt.s32.totalorder %v88, 0
  %v719 = vsub.s32 0, %v88
  %v720 = vsel %vm718, %v719, %v88
  %v721 = vmul.u32.u64.compose %v720, 2748779070
  %v722 = vextract.low.u32 %v721
  %v723 = vextract.high.u32 %v721
  %v724 = vshrl.u32 %v723, 7
  %v725 = vmul.u32 %v724, 200
  %v726 = vsub.s32 %v720, %v725
  %v727 = vsub.s32 0, %v726
  %v728 = vsel %vm718, %v727, %v726
  %vm729 = vcmp.lt.s32.totalorder %v89, 0
  %v730 = vsub.s32 0, %v89
  %v731 = vsel %vm729, %v730, %v89
  %v732 = vmul.u32.u64.compose %v731, 2748779070
  %v733 = vextract.low.u32 %v732
  %v734 = vextract.high.u32 %v732
  %v735 = vshrl.u32 %v734, 7
  %v736 = vmul.u32 %v735, 200
  %v737 = vsub.s32 %v731, %v736
  %v738 = vsub.s32 0, %v737
  %v739 = vsel %vm729, %v738, %v737
  %vm740 = vcmp.lt.s32.totalorder %v90, 0
  %v741 = vsub.s32 0, %v90
  %v742 = vsel %vm740, %v741, %v90
  %v743 = vmul.u32.u64.compose %v742, 2748779070
  %v744 = vextract.low.u32 %v743
  %v745 = vextract.high.u32 %v743
  %v746 = vshrl.u32 %v745, 7
  %v747 = vmul.u32 %v746, 200
  %v748 = vsub.s32 %v742, %v747
  %v749 = vsub.s32 0, %v748
  %v750 = vsel %vm740, %v749, %v748
  %vm751 = vcmp.lt.s32.totalorder %v91, 0
  %v752 = vsub.s32 0, %v91
  %v753 = vsel %vm751, %v752, %v91
  %v754 = vmul.u32.u64.compose %v753, 2748779070
  %v755 = vextract.low.u32 %v754
  %v756 = vextract.high.u32 %v754
  %v757 = vshrl.u32 %v756, 7
  %v758 = vmul.u32 %v757, 200
  %v759 = vsub.s32 %v753, %v758
  %v760 = vsub.s32 0, %v759
  %v761 = vsel %vm751, %v760, %v759
  %vm762 = vcmp.lt.s32.totalorder %v92, 0
  %v763 = vsub.s32 0, %v92
  %v764 = vsel %vm762, %v763, %v92
  %v765 = vmul.u32.u64.compose %v764, 2748779070
  %v766 = vextract.low.u32 %v765
  %v767 = vextract.high.u32 %v765
  %v768 = vshrl.u32 %v767, 7
  %v769 = vmul.u32 %v768, 200
  %v770 = vsub.s32 %v764, %v769
  %v771 = vsub.s32 0, %v770
  %v772 = vsel %vm762, %v771, %v770
  %vm773 = vcmp.lt.s32.totalorder %v93, 0
  %v774 = vsub.s32 0, %v93
  %v775 = vsel %vm773, %v774, %v93
  %v776 = vmul.u32.u64.compose %v775, 2748779070
  %v777 = vextract.low.u32 %v776
  %v778 = vextract.high.u32 %v776
  %v779 = vshrl.u32 %v778, 7
  %v780 = vmul.u32 %v779, 200
  %v781 = vsub.s32 %v775, %v780
  %v782 = vsub.s32 0, %v781
  %v783 = vsel %vm773, %v782, %v781
  %vm784 = vcmp.lt.s32.totalorder %v94, 0
  %v785 = vsub.s32 0, %v94
  %v786 = vsel %vm784, %v785, %v94
  %v787 = vmul.u32.u64.compose %v786, 2748779070
  %v788 = vextract.low.u32 %v787
  %v789 = vextract.high.u32 %v787
  %v790 = vshrl.u32 %v789, 7
  %v791 = vmul.u32 %v790, 200
  %v792 = vsub.s32 %v786, %v791
  %v793 = vsub.s32 0, %v792
  %v794 = vsel %vm784, %v793, %v792
  %vm795 = vcmp.lt.s32.totalorder %v95, 0
  %v796 = vsub.s32 0, %v95
  %v797 = vsel %vm795, %v796, %v95
  %v798 = vmul.u32.u64.compose %v797, 2748779070
  %v799 = vextract.low.u32 %v798
  %v800 = vextract.high.u32 %v798
  %v801 = vshrl.u32 %v800, 7
  %v802 = vmul.u32 %v801, 200
  %v803 = vsub.s32 %v797, %v802
  %v804 = vsub.s32 0, %v803
  %v805 = vsel %vm795, %v804, %v803
  %vm806 = vcmp.lt.s32.totalorder %v96, 0
  %v807 = vsub.s32 0, %v96
  %v808 = vsel %vm806, %v807, %v96
  %v809 = vmul.u32.u64.compose %v808, 2748779070
  %v810 = vextract.low.u32 %v809
  %v811 = vextract.high.u32 %v809
  %v812 = vshrl.u32 %v811, 7
  %v813 = vmul.u32 %v812, 200
  %v814 = vsub.s32 %v808, %v813
  %v815 = vsub.s32 0, %v814
  %v816 = vsel %vm806, %v815, %v814
  %vm817 = vcmp.lt.s32.totalorder %v97, 0
  %v818 = vsub.s32 0, %v97
  %v819 = vsel %vm817, %v818, %v97
  %v820 = vmul.u32.u64.compose %v819, 2748779070
  %v821 = vextract.low.u32 %v820
  %v822 = vextract.high.u32 %v820
  %v823 = vshrl.u32 %v822, 7
  %v824 = vmul.u32 %v823, 200
  %v825 = vsub.s32 %v819, %v824
  %v826 = vsub.s32 0, %v825
  %v827 = vsel %vm817, %v826, %v825
  %vm828 = vcmp.lt.s32.totalorder %v98, 0
  %v829 = vsub.s32 0, %v98
  %v830 = vsel %vm828, %v829, %v98
  %v831 = vmul.u32.u64.compose %v830, 2748779070
  %v832 = vextract.low.u32 %v831
  %v833 = vextract.high.u32 %v831
  %v834 = vshrl.u32 %v833, 7
  %v835 = vmul.u32 %v834, 200
  %v836 = vsub.s32 %v830, %v835
  %v837 = vsub.s32 0, %v836
  %v838 = vsel %vm828, %v837, %v836
  %vm839 = vcmp.lt.s32.totalorder %v99, 0
  %v840 = vsub.s32 0, %v99
  %v841 = vsel %vm839, %v840, %v99
  %v842 = vmul.u32.u64.compose %v841, 2748779070
  %v843 = vextract.low.u32 %v842
  %v844 = vextract.high.u32 %v842
  %v845 = vshrl.u32 %v844, 7
  %v846 = vmul.u32 %v845, 200
  %v847 = vsub.s32 %v841, %v846
  %v848 = vsub.s32 0, %v847
  %v849 = vsel %vm839, %v848, %v847
  %vm850 = vcmp.lt.s32.totalorder %v100, 0
  %v851 = vsub.s32 0, %v100
  %v852 = vsel %vm850, %v851, %v100
  %v853 = vmul.u32.u64.compose %v852, 2748779070
  %v854 = vextract.low.u32 %v853
  %v855 = vextract.high.u32 %v853
  %v856 = vshrl.u32 %v855, 7
  %v857 = vmul.u32 %v856, 200
  %v858 = vsub.s32 %v852, %v857
  %v859 = vsub.s32 0, %v858
  %v860 = vsel %vm850, %v859, %v858
  %vm861 = vcmp.lt.s32.totalorder %v101, 0
  %v862 = vsub.s32 0, %v101
  %v863 = vsel %vm861, %v862, %v101
  %v864 = vmul.u32.u64.compose %v863, 2748779070
  %v865 = vextract.low.u32 %v864
  %v866 = vextract.high.u32 %v864
  %v867 = vshrl.u32 %v866, 7
  %v868 = vmul.u32 %v867, 200
  %v869 = vsub.s32 %v863, %v868
  %v870 = vsub.s32 0, %v869
  %v871 = vsel %vm861, %v870, %v869
  %vm872 = vcmp.lt.s32.totalorder %v102, 0
  %v873 = vsub.s32 0, %v102
  %v874 = vsel %vm872, %v873, %v102
  %v875 = vmul.u32.u64.compose %v874, 2748779070
  %v876 = vextract.low.u32 %v875
  %v877 = vextract.high.u32 %v875
  %v878 = vshrl.u32 %v877, 7
  %v879 = vmul.u32 %v878, 200
  %v880 = vsub.s32 %v874, %v879
  %v881 = vsub.s32 0, %v880
  %v882 = vsel %vm872, %v881, %v880
  %vm883 = vcmp.lt.s32.totalorder %v103, 0
  %v884 = vsub.s32 0, %v103
  %v885 = vsel %vm883, %v884, %v103
  %v886 = vmul.u32.u64.compose %v885, 2748779070
  %v887 = vextract.low.u32 %v886
  %v888 = vextract.high.u32 %v886
  %v889 = vshrl.u32 %v888, 7
  %v890 = vmul.u32 %v889, 200
  %v891 = vsub.s32 %v885, %v890
  %v892 = vsub.s32 0, %v891
  %v893 = vsel %vm883, %v892, %v891
  %vm894 = vcmp.lt.s32.totalorder %v104, 0
  %v895 = vsub.s32 0, %v104
  %v896 = vsel %vm894, %v895, %v104
  %v897 = vmul.u32.u64.compose %v896, 2748779070
  %v898 = vextract.low.u32 %v897
  %v899 = vextract.high.u32 %v897
  %v900 = vshrl.u32 %v899, 7
  %v901 = vmul.u32 %v900, 200
  %v902 = vsub.s32 %v896, %v901
  %v903 = vsub.s32 0, %v902
  %v904 = vsel %vm894, %v903, %v902
  %vm905 = vcmp.lt.s32.totalorder %v105, 0
  %v906 = vsub.s32 0, %v105
  %v907 = vsel %vm905, %v906, %v105
  %v908 = vmul.u32.u64.compose %v907, 2748779070
  %v909 = vextract.low.u32 %v908
  %v910 = vextract.high.u32 %v908
  %v911 = vshrl.u32 %v910, 7
  %v912 = vmul.u32 %v911, 200
  %v913 = vsub.s32 %v907, %v912
  %v914 = vsub.s32 0, %v913
  %v915 = vsel %vm905, %v914, %v913
  %vm916 = vcmp.lt.s32.totalorder %v106, 0
  %v917 = vsub.s32 0, %v106
  %v918 = vsel %vm916, %v917, %v106
  %v919 = vmul.u32.u64.compose %v918, 2748779070
  %v920 = vextract.low.u32 %v919
  %v921 = vextract.high.u32 %v919
  %v922 = vshrl.u32 %v921, 7
  %v923 = vmul.u32 %v922, 200
  %v924 = vsub.s32 %v918, %v923
  %v925 = vsub.s32 0, %v924
  %v926 = vsel %vm916, %v925, %v924
  %vm927 = vcmp.lt.s32.totalorder %v107, 0
  %v928 = vsub.s32 0, %v107
  %v929 = vsel %vm927, %v928, %v107
  %v930 = vmul.u32.u64.compose %v929, 2748779070
  %v931 = vextract.low.u32 %v930
  %v932 = vextract.high.u32 %v930
  %v933 = vshrl.u32 %v932, 7
  %v934 = vmul.u32 %v933, 200
  %v935 = vsub.s32 %v929, %v934
  %v936 = vsub.s32 0, %v935
  %v937 = vsel %vm927, %v936, %v935
  %vm938 = vcmp.lt.s32.totalorder %v108, 0
  %v939 = vsub.s32 0, %v108
  %v940 = vsel %vm938, %v939, %v108
  %v941 = vmul.u32.u64.compose %v940, 2748779070
  %v942 = vextract.low.u32 %v941
  %v943 = vextract.high.u32 %v941
  %v944 = vshrl.u32 %v943, 7
  %v945 = vmul.u32 %v944, 200
  %v946 = vsub.s32 %v940, %v945
  %v947 = vsub.s32 0, %v946
  %v948 = vsel %vm938, %v947, %v946
  %vm949 = vcmp.lt.s32.totalorder %v109, 0
  %v950 = vsub.s32 0, %v109
  %v951 = vsel %vm949, %v950, %v109
  %v952 = vmul.u32.u64.compose %v951, 2748779070
  %v953 = vextract.low.u32 %v952
  %v954 = vextract.high.u32 %v952
  %v955 = vshrl.u32 %v954, 7
  %v956 = vmul.u32 %v955, 200
  %v957 = vsub.s32 %v951, %v956
  %v958 = vsub.s32 0, %v957
  %v959 = vsel %vm949, %v958, %v957
  %vm960 = vcmp.lt.s32.totalorder %v110, 0
  %v961 = vsub.s32 0, %v110
  %v962 = vsel %vm960, %v961, %v110
  %v963 = vmul.u32.u64.compose %v962, 2748779070
  %v964 = vextract.low.u32 %v963
  %v965 = vextract.high.u32 %v963
  %v966 = vshrl.u32 %v965, 7
  %v967 = vmul.u32 %v966, 200
  %v968 = vsub.s32 %v962, %v967
  %v969 = vsub.s32 0, %v968
  %v970 = vsel %vm960, %v969, %v968
  %vm971 = vcmp.lt.s32.totalorder %v111, 0
  %v972 = vsub.s32 0, %v111
  %v973 = vsel %vm971, %v972, %v111
  %v974 = vmul.u32.u64.compose %v973, 2748779070
  %v975 = vextract.low.u32 %v974
  %v976 = vextract.high.u32 %v974
  %v977 = vshrl.u32 %v976, 7
  %v978 = vmul.u32 %v977, 200
  %v979 = vsub.s32 %v973, %v978
  %v980 = vsub.s32 0, %v979
  %v981 = vsel %vm971, %v980, %v979
  %vm982 = vcmp.lt.s32.totalorder %v112, 0
  %v983 = vsub.s32 0, %v112
  %v984 = vsel %vm982, %v983, %v112
  %v985 = vmul.u32.u64.compose %v984, 2748779070
  %v986 = vextract.low.u32 %v985
  %v987 = vextract.high.u32 %v985
  %v988 = vshrl.u32 %v987, 7
  %v989 = vmul.u32 %v988, 200
  %v990 = vsub.s32 %v984, %v989
  %v991 = vsub.s32 0, %v990
  %v992 = vsel %vm982, %v991, %v990
  %vm993 = vcmp.lt.s32.totalorder %v113, 0
  %v994 = vsub.s32 0, %v113
  %v995 = vsel %vm993, %v994, %v113
  %v996 = vmul.u32.u64.compose %v995, 2748779070
  %v997 = vextract.low.u32 %v996
  %v998 = vextract.high.u32 %v996
  %v999 = vshrl.u32 %v998, 7
  %v1000 = vmul.u32 %v999, 200
  %v1001 = vsub.s32 %v995, %v1000
  %v1002 = vsub.s32 0, %v1001
  %v1003 = vsel %vm993, %v1002, %v1001
  %vm1004 = vcmp.lt.s32.totalorder %v114, 0
  %v1005 = vsub.s32 0, %v114
  %v1006 = vsel %vm1004, %v1005, %v114
  %v1007 = vmul.u32.u64.compose %v1006, 2748779070
  %v1008 = vextract.low.u32 %v1007
  %v1009 = vextract.high.u32 %v1007
  %v1010 = vshrl.u32 %v1009, 7
  %v1011 = vmul.u32 %v1010, 200
  %v1012 = vsub.s32 %v1006, %v1011
  %v1013 = vsub.s32 0, %v1012
  %v1014 = vsel %vm1004, %v1013, %v1012
  %vm1015 = vcmp.lt.s32.totalorder %v115, 0
  %v1016 = vsub.s32 0, %v115
  %v1017 = vsel %vm1015, %v1016, %v115
  %v1018 = vmul.u32.u64.compose %v1017, 2748779070
  %v1019 = vextract.low.u32 %v1018
  %v1020 = vextract.high.u32 %v1018
  %v1021 = vshrl.u32 %v1020, 7
  %v1022 = vmul.u32 %v1021, 200
  %v1023 = vsub.s32 %v1017, %v1022
  %v1024 = vsub.s32 0, %v1023
  %v1025 = vsel %vm1015, %v1024, %v1023
  %vm1026 = vcmp.lt.s32.totalorder %v116, 0
  %v1027 = vsub.s32 0, %v116
  %v1028 = vsel %vm1026, %v1027, %v116
  %v1029 = vmul.u32.u64.compose %v1028, 2748779070
  %v1030 = vextract.low.u32 %v1029
  %v1031 = vextract.high.u32 %v1029
  %v1032 = vshrl.u32 %v1031, 7
  %v1033 = vmul.u32 %v1032, 200
  %v1034 = vsub.s32 %v1028, %v1033
  %v1035 = vsub.s32 0, %v1034
  %v1036 = vsel %vm1026, %v1035, %v1034
  %vm1037 = vcmp.lt.s32.totalorder %v117, 0
  %v1038 = vsub.s32 0, %v117
  %v1039 = vsel %vm1037, %v1038, %v117
  %v1040 = vmul.u32.u64.compose %v1039, 2748779070
  %v1041 = vextract.low.u32 %v1040
  %v1042 = vextract.high.u32 %v1040
  %v1043 = vshrl.u32 %v1042, 7
  %v1044 = vmul.u32 %v1043, 200
  %v1045 = vsub.s32 %v1039, %v1044
  %v1046 = vsub.s32 0, %v1045
  %v1047 = vsel %vm1037, %v1046, %v1045
  %vm1048 = vcmp.lt.s32.totalorder %v118, 0
  %v1049 = vsub.s32 0, %v118
  %v1050 = vsel %vm1048, %v1049, %v118
  %v1051 = vmul.u32.u64.compose %v1050, 2748779070
  %v1052 = vextract.low.u32 %v1051
  %v1053 = vextract.high.u32 %v1051
  %v1054 = vshrl.u32 %v1053, 7
  %v1055 = vmul.u32 %v1054, 200
  %v1056 = vsub.s32 %v1050, %v1055
  %v1057 = vsub.s32 0, %v1056
  %v1058 = vsel %vm1048, %v1057, %v1056
  %vm1059 = vcmp.lt.s32.totalorder %v119, 0
  %v1060 = vsub.s32 0, %v119
  %v1061 = vsel %vm1059, %v1060, %v119
  %v1062 = vmul.u32.u64.compose %v1061, 2748779070
  %v1063 = vextract.low.u32 %v1062
  %v1064 = vextract.high.u32 %v1062
  %v1065 = vshrl.u32 %v1064, 7
  %v1066 = vmul.u32 %v1065, 200
  %v1067 = vsub.s32 %v1061, %v1066
  %v1068 = vsub.s32 0, %v1067
  %v1069 = vsel %vm1059, %v1068, %v1067
  %vm1070 = vcmp.lt.s32.totalorder %v120, 0
  %v1071 = vsub.s32 0, %v120
  %v1072 = vsel %vm1070, %v1071, %v120
  %v1073 = vmul.u32.u64.compose %v1072, 2748779070
  %v1074 = vextract.low.u32 %v1073
  %v1075 = vextract.high.u32 %v1073
  %v1076 = vshrl.u32 %v1075, 7
  %v1077 = vmul.u32 %v1076, 200
  %v1078 = vsub.s32 %v1072, %v1077
  %v1079 = vsub.s32 0, %v1078
  %v1080 = vsel %vm1070, %v1079, %v1078
  %vm1081 = vcmp.lt.s32.totalorder %v121, 0
  %v1082 = vsub.s32 0, %v121
  %v1083 = vsel %vm1081, %v1082, %v121
  %v1084 = vmul.u32.u64.compose %v1083, 2748779070
  %v1085 = vextract.low.u32 %v1084
  %v1086 = vextract.high.u32 %v1084
  %v1087 = vshrl.u32 %v1086, 7
  %v1088 = vmul.u32 %v1087, 200
  %v1089 = vsub.s32 %v1083, %v1088
  %v1090 = vsub.s32 0, %v1089
  %v1091 = vsel %vm1081, %v1090, %v1089
  %vm1092 = vcmp.lt.s32.totalorder %v122, 0
  %v1093 = vsub.s32 0, %v122
  %v1094 = vsel %vm1092, %v1093, %v122
  %v1095 = vmul.u32.u64.compose %v1094, 2748779070
  %v1096 = vextract.low.u32 %v1095
  %v1097 = vextract.high.u32 %v1095
  %v1098 = vshrl.u32 %v1097, 7
  %v1099 = vmul.u32 %v1098, 200
  %v1100 = vsub.s32 %v1094, %v1099
  %v1101 = vsub.s32 0, %v1100
  %v1102 = vsel %vm1092, %v1101, %v1100
  %vm1103 = vcmp.lt.s32.totalorder %v123, 0
  %v1104 = vsub.s32 0, %v123
  %v1105 = vsel %vm1103, %v1104, %v123
  %v1106 = vmul.u32.u64.compose %v1105, 2748779070
  %v1107 = vextract.low.u32 %v1106
  %v1108 = vextract.high.u32 %v1106
  %v1109 = vshrl.u32 %v1108, 7
  %v1110 = vmul.u32 %v1109, 200
  %v1111 = vsub.s32 %v1105, %v1110
  %v1112 = vsub.s32 0, %v1111
  %v1113 = vsel %vm1103, %v1112, %v1111
  %vm1114 = vcmp.lt.s32.totalorder %v124, 0
  %v1115 = vsub.s32 0, %v124
  %v1116 = vsel %vm1114, %v1115, %v124
  %v1117 = vmul.u32.u64.compose %v1116, 2748779070
  %v1118 = vextract.low.u32 %v1117
  %v1119 = vextract.high.u32 %v1117
  %v1120 = vshrl.u32 %v1119, 7
  %v1121 = vmul.u32 %v1120, 200
  %v1122 = vsub.s32 %v1116, %v1121
  %v1123 = vsub.s32 0, %v1122
  %v1124 = vsel %vm1114, %v1123, %v1122
  %vm1125 = vcmp.lt.s32.totalorder %v125, 0
  %v1126 = vsub.s32 0, %v125
  %v1127 = vsel %vm1125, %v1126, %v125
  %v1128 = vmul.u32.u64.compose %v1127, 2748779070
  %v1129 = vextract.low.u32 %v1128
  %v1130 = vextract.high.u32 %v1128
  %v1131 = vshrl.u32 %v1130, 7
  %v1132 = vmul.u32 %v1131, 200
  %v1133 = vsub.s32 %v1127, %v1132
  %v1134 = vsub.s32 0, %v1133
  %v1135 = vsel %vm1125, %v1134, %v1133
  %vm1136 = vcmp.lt.s32.totalorder %v126, 0
  %v1137 = vsub.s32 0, %v126
  %v1138 = vsel %vm1136, %v1137, %v126
  %v1139 = vmul.u32.u64.compose %v1138, 2748779070
  %v1140 = vextract.low.u32 %v1139
  %v1141 = vextract.high.u32 %v1139
  %v1142 = vshrl.u32 %v1141, 7
  %v1143 = vmul.u32 %v1142, 200
  %v1144 = vsub.s32 %v1138, %v1143
  %v1145 = vsub.s32 0, %v1144
  %v1146 = vsel %vm1136, %v1145, %v1144
  %vm1147 = vcmp.lt.s32.totalorder %v127, 0
  %v1148 = vsub.s32 0, %v127
  %v1149 = vsel %vm1147, %v1148, %v127
  %v1150 = vmul.u32.u64.compose %v1149, 2748779070
  %v1151 = vextract.low.u32 %v1150
  %v1152 = vextract.high.u32 %v1150
  %v1153 = vshrl.u32 %v1152, 7
  %v1154 = vmul.u32 %v1153, 200
  %v1155 = vsub.s32 %v1149, %v1154
  %v1156 = vsub.s32 0, %v1155
  %v1157 = vsel %vm1147, %v1156, %v1155
  %vm1158 = vcmp.lt.s32.totalorder %v128, 0
  %v1159 = vsub.s32 0, %v128
  %v1160 = vsel %vm1158, %v1159, %v128
  %v1161 = vmul.u32.u64.compose %v1160, 2748779070
  %v1162 = vextract.low.u32 %v1161
  %v1163 = vextract.high.u32 %v1161
  %v1164 = vshrl.u32 %v1163, 7
  %v1165 = vmul.u32 %v1164, 200
  %v1166 = vsub.s32 %v1160, %v1165
  %v1167 = vsub.s32 0, %v1166
  %v1168 = vsel %vm1158, %v1167, %v1166
  %vm1169 = vcmp.lt.s32.totalorder %v129, 0
  %v1170 = vsub.s32 0, %v129
  %v1171 = vsel %vm1169, %v1170, %v129
  %v1172 = vmul.u32.u64.compose %v1171, 2748779070
  %v1173 = vextract.low.u32 %v1172
  %v1174 = vextract.high.u32 %v1172
  %v1175 = vshrl.u32 %v1174, 7
  %v1176 = vmul.u32 %v1175, 200
  %v1177 = vsub.s32 %v1171, %v1176
  %v1178 = vsub.s32 0, %v1177
  %v1179 = vsel %vm1169, %v1178, %v1177
  %vm1180 = vcmp.lt.s32.totalorder %v130, 0
  %v1181 = vsub.s32 0, %v130
  %v1182 = vsel %vm1180, %v1181, %v130
  %v1183 = vmul.u32.u64.compose %v1182, 2748779070
  %v1184 = vextract.low.u32 %v1183
  %v1185 = vextract.high.u32 %v1183
  %v1186 = vshrl.u32 %v1185, 7
  %v1187 = vmul.u32 %v1186, 200
  %v1188 = vsub.s32 %v1182, %v1187
  %v1189 = vsub.s32 0, %v1188
  %v1190 = vsel %vm1180, %v1189, %v1188
  %vm1191 = vcmp.lt.s32.totalorder %v131, 0
  %v1192 = vsub.s32 0, %v131
  %v1193 = vsel %vm1191, %v1192, %v131
  %v1194 = vmul.u32.u64.compose %v1193, 2748779070
  %v1195 = vextract.low.u32 %v1194
  %v1196 = vextract.high.u32 %v1194
  %v1197 = vshrl.u32 %v1196, 7
  %v1198 = vmul.u32 %v1197, 200
  %v1199 = vsub.s32 %v1193, %v1198
  %v1200 = vsub.s32 0, %v1199
  %v1201 = vsel %vm1191, %v1200, %v1199
  %vm1202 = vcmp.lt.s32.totalorder %v132, 0
  %v1203 = vsub.s32 0, %v132
  %v1204 = vsel %vm1202, %v1203, %v132
  %v1205 = vmul.u32.u64.compose %v1204, 2748779070
  %v1206 = vextract.low.u32 %v1205
  %v1207 = vextract.high.u32 %v1205
  %v1208 = vshrl.u32 %v1207, 7
  %v1209 = vmul.u32 %v1208, 200
  %v1210 = vsub.s32 %v1204, %v1209
  %v1211 = vsub.s32 0, %v1210
  %v1212 = vsel %vm1202, %v1211, %v1210
  %vm1213 = vcmp.lt.s32.totalorder %v133, 0
  %v1214 = vsub.s32 0, %v133
  %v1215 = vsel %vm1213, %v1214, %v133
  %v1216 = vmul.u32.u64.compose %v1215, 2748779070
  %v1217 = vextract.low.u32 %v1216
  %v1218 = vextract.high.u32 %v1216
  %v1219 = vshrl.u32 %v1218, 7
  %v1220 = vmul.u32 %v1219, 200
  %v1221 = vsub.s32 %v1215, %v1220
  %v1222 = vsub.s32 0, %v1221
  %v1223 = vsel %vm1213, %v1222, %v1221
  %vm1224 = vcmp.lt.s32.totalorder %v134, 0
  %v1225 = vsub.s32 0, %v134
  %v1226 = vsel %vm1224, %v1225, %v134
  %v1227 = vmul.u32.u64.compose %v1226, 2748779070
  %v1228 = vextract.low.u32 %v1227
  %v1229 = vextract.high.u32 %v1227
  %v1230 = vshrl.u32 %v1229, 7
  %v1231 = vmul.u32 %v1230, 200
  %v1232 = vsub.s32 %v1226, %v1231
  %v1233 = vsub.s32 0, %v1232
  %v1234 = vsel %vm1224, %v1233, %v1232
  %vm1235 = vcmp.ne.s32.totalorder %v145, 0
  %vm1236 = vcmp.ne.s32.totalorder %v156, 0
  %vm1237 = vcmp.ne.s32.totalorder %v167, 0
  %vm1238 = vcmp.ne.s32.totalorder %v178, 0
  %vm1239 = vcmp.ne.s32.totalorder %v189, 0
  %vm1240 = vcmp.ne.s32.totalorder %v200, 0
  %vm1241 = vcmp.ne.s32.totalorder %v211, 0
  %vm1242 = vcmp.ne.s32.totalorder %v222, 0
  %vm1243 = vcmp.ne.s32.totalorder %v233, 0
  %vm1244 = vcmp.ne.s32.totalorder %v244, 0
  %vm1245 = vcmp.ne.s32.totalorder %v255, 0
  %vm1246 = vcmp.ne.s32.totalorder %v266, 0
  %vm1247 = vcmp.ne.s32.totalorder %v277, 0
  %vm1248 = vcmp.ne.s32.totalorder %v288, 0
  %vm1249 = vcmp.ne.s32.totalorder %v299, 0
  %vm1250 = vcmp.ne.s32.totalorder %v310, 0
  %vm1251 = vcmp.ne.s32.totalorder %v321, 0
  %vm1252 = vcmp.ne.s32.totalorder %v332, 0
  %vm1253 = vcmp.ne.s32.totalorder %v343, 0
  %vm1254 = vcmp.ne.s32.totalorder %v354, 0
  %vm1255 = vcmp.ne.s32.totalorder %v365, 0
  %vm1256 = vcmp.ne.s32.totalorder %v376, 0
  %vm1257 = vcmp.ne.s32.totalorder %v387, 0
  %vm1258 = vcmp.ne.s32.totalorder %v398, 0
  %vm1259 = vcmp.ne.s32.totalorder %v409, 0
  %vm1260 = vcmp.ne.s32.totalorder %v420, 0
  %vm1261 = vcmp.ne.s32.totalorder %v431, 0
  %vm1262 = vcmp.ne.s32.totalorder %v442, 0
  %vm1263 = vcmp.ne.s32.totalorder %v453, 0
  %vm1264 = vcmp.ne.s32.totalorder %v464, 0
  %vm1265 = vcmp.ne.s32.totalorder %v475, 0
  %vm1266 = vcmp.ne.s32.totalorder %v486, 0
  %vm1267 = vcmp.ne.s32.totalorder %v497, 0
  %vm1268 = vcmp.ne.s32.totalorder %v508, 0
  %vm1269 = vcmp.ne.s32.totalorder %v519, 0
  %vm1270 = vcmp.ne.s32.totalorder %v530, 0
  %vm1271 = vcmp.ne.s32.totalorder %v541, 0
  %vm1272 = vcmp.ne.s32.totalorder %v552, 0
  %vm1273 = vcmp.ne.s32.totalorder %v563, 0
  %vm1274 = vcmp.ne.s32.totalorder %v574, 0
  %vm1275 = vcmp.ne.s32.totalorder %v585, 0
  %vm1276 = vcmp.ne.s32.totalorder %v596, 0
  %vm1277 = vcmp.ne.s32.totalorder %v607, 0
  %vm1278 = vcmp.ne.s32.totalorder %v618, 0
  %vm1279 = vcmp.ne.s32.totalorder %v629, 0
  %vm1280 = vcmp.ne.s32.totalorder %v640, 0
  %vm1281 = vcmp.ne.s32.totalorder %v651, 0
  %vm1282 = vcmp.ne.s32.totalorder %v662, 0
  %vm1283 = vcmp.ne.s32.totalorder %v673, 0
  %vm1284 = vcmp.ne.s32.totalorder %v684, 0
  %vm1285 = vcmp.ne.s32.totalorder %v695, 0
  %vm1286 = vcmp.ne.s32.totalorder %v706, 0
  %vm1287 = vcmp.ne.s32.totalorder %v717, 0
  %vm1288 = vcmp.ne.s32.totalorder %v728, 0
  %vm1289 = vcmp.ne.s32.totalorder %v739, 0
  %vm1290 = vcmp.ne.s32.totalorder %v750, 0
  %vm1291 = vcmp.ne.s32.totalorder %v761, 0
  %vm1292 = vcmp.ne.s32.totalorder %v772, 0
  %vm1293 = vcmp.ne.s32.totalorder %v783, 0
  %vm1294 = vcmp.ne.s32.totalorder %v794, 0
  %vm1295 = vcmp.ne.s32.totalorder %v805, 0
  %vm1296 = vcmp.ne.s32.totalorder %v816, 0
  %vm1297 = vcmp.ne.s32.totalorder %v827, 0
  %vm1298 = vcmp.ne.s32.totalorder %v838, 0
  %vm1299 = vcmp.ne.s32.totalorder %v849, 0
  %vm1300 = vcmp.ne.s32.totalorder %v860, 0
  %vm1301 = vcmp.ne.s32.totalorder %v871, 0
  %vm1302 = vcmp.ne.s32.totalorder %v882, 0
  %vm1303 = vcmp.ne.s32.totalorder %v893, 0
  %vm1304 = vcmp.ne.s32.totalorder %v904, 0
  %vm1305 = vcmp.ne.s32.totalorder %v915, 0
  %vm1306 = vcmp.ne.s32.totalorder %v926, 0
  %vm1307 = vcmp.ne.s32.totalorder %v937, 0
  %vm1308 = vcmp.ne.s32.totalorder %v948, 0
  %vm1309 = vcmp.ne.s32.totalorder %v959, 0
  %vm1310 = vcmp.ne.s32.totalorder %v970, 0
  %vm1311 = vcmp.ne.s32.totalorder %v981, 0
  %vm1312 = vcmp.ne.s32.totalorder %v992, 0
  %vm1313 = vcmp.ne.s32.totalorder %v1003, 0
  %vm1314 = vcmp.ne.s32.totalorder %v1014, 0
  %vm1315 = vcmp.ne.s32.totalorder %v1025, 0
  %vm1316 = vcmp.ne.s32.totalorder %v1036, 0
  %vm1317 = vcmp.ne.s32.totalorder %v1047, 0
  %vm1318 = vcmp.ne.s32.totalorder %v1058, 0
  %vm1319 = vcmp.ne.s32.totalorder %v1069, 0
  %vm1320 = vcmp.ne.s32.totalorder %v1080, 0
  %vm1321 = vcmp.ne.s32.totalorder %v1091, 0
  %vm1322 = vcmp.ne.s32.totalorder %v1102, 0
  %vm1323 = vcmp.ne.s32.totalorder %v1113, 0
  %vm1324 = vcmp.ne.s32.totalorder %v1124, 0
  %vm1325 = vcmp.ne.s32.totalorder %v1135, 0
  %vm1326 = vcmp.ne.s32.totalorder %v1146, 0
  %vm1327 = vcmp.ne.s32.totalorder %v1157, 0
  %vm1328 = vcmp.ne.s32.totalorder %v1168, 0
  %vm1329 = vcmp.ne.s32.totalorder %v1179, 0
  %vm1330 = vcmp.ne.s32.totalorder %v1190, 0
  %vm1331 = vcmp.ne.s32.totalorder %v1201, 0
  %vm1332 = vcmp.ne.s32.totalorder %v1212, 0
  %vm1333 = vcmp.ne.s32.totalorder %v1223, 0
  %vm1334 = vcmp.ne.s32.totalorder %v1234, 0
  %vm1335 = vcmp.lt.s32.totalorder %v145, 0
  %vm1336 = vcmp.lt.s32.totalorder %v156, 0
  %vm1337 = vcmp.lt.s32.totalorder %v167, 0
  %vm1338 = vcmp.lt.s32.totalorder %v178, 0
  %vm1339 = vcmp.lt.s32.totalorder %v189, 0
  %vm1340 = vcmp.lt.s32.totalorder %v200, 0
  %vm1341 = vcmp.lt.s32.totalorder %v211, 0
  %vm1342 = vcmp.lt.s32.totalorder %v222, 0
  %vm1343 = vcmp.lt.s32.totalorder %v233, 0
  %vm1344 = vcmp.lt.s32.totalorder %v244, 0
  %vm1345 = vcmp.lt.s32.totalorder %v255, 0
  %vm1346 = vcmp.lt.s32.totalorder %v266, 0
  %vm1347 = vcmp.lt.s32.totalorder %v277, 0
  %vm1348 = vcmp.lt.s32.totalorder %v288, 0
  %vm1349 = vcmp.lt.s32.totalorder %v299, 0
  %vm1350 = vcmp.lt.s32.totalorder %v310, 0
  %vm1351 = vcmp.lt.s32.totalorder %v321, 0
  %vm1352 = vcmp.lt.s32.totalorder %v332, 0
  %vm1353 = vcmp.lt.s32.totalorder %v343, 0
  %vm1354 = vcmp.lt.s32.totalorder %v354, 0
  %vm1355 = vcmp.lt.s32.totalorder %v365, 0
  %vm1356 = vcmp.lt.s32.totalorder %v376, 0
  %vm1357 = vcmp.lt.s32.totalorder %v387, 0
  %vm1358 = vcmp.lt.s32.totalorder %v398, 0
  %vm1359 = vcmp.lt.s32.totalorder %v409, 0
  %vm1360 = vcmp.lt.s32.totalorder %v420, 0
  %vm1361 = vcmp.lt.s32.totalorder %v431, 0
  %vm1362 = vcmp.lt.s32.totalorder %v442, 0
  %vm1363 = vcmp.lt.s32.totalorder %v453, 0
  %vm1364 = vcmp.lt.s32.totalorder %v464, 0
  %vm1365 = vcmp.lt.s32.totalorder %v475, 0
  %vm1366 = vcmp.lt.s32.totalorder %v486, 0
  %vm1367 = vcmp.lt.s32.totalorder %v497, 0
  %vm1368 = vcmp.lt.s32.totalorder %v508, 0
  %vm1369 = vcmp.lt.s32.totalorder %v519, 0
  %vm1370 = vcmp.lt.s32.totalorder %v530, 0
  %vm1371 = vcmp.lt.s32.totalorder %v541, 0
  %vm1372 = vcmp.lt.s32.totalorder %v552, 0
  %vm1373 = vcmp.lt.s32.totalorder %v563, 0
  %vm1374 = vcmp.lt.s32.totalorder %v574, 0
  %vm1375 = vcmp.lt.s32.totalorder %v585, 0
  %vm1376 = vcmp.lt.s32.totalorder %v596, 0
  %vm1377 = vcmp.lt.s32.totalorder %v607, 0
  %vm1378 = vcmp.lt.s32.totalorder %v618, 0
  %vm1379 = vcmp.lt.s32.totalorder %v629, 0
  %vm1380 = vcmp.lt.s32.totalorder %v640, 0
  %vm1381 = vcmp.lt.s32.totalorder %v651, 0
  %vm1382 = vcmp.lt.s32.totalorder %v662, 0
  %vm1383 = vcmp.lt.s32.totalorder %v673, 0
  %vm1384 = vcmp.lt.s32.totalorder %v684, 0
  %vm1385 = vcmp.lt.s32.totalorder %v695, 0
  %vm1386 = vcmp.lt.s32.totalorder %v706, 0
  %vm1387 = vcmp.lt.s32.totalorder %v717, 0
  %vm1388 = vcmp.lt.s32.totalorder %v728, 0
  %vm1389 = vcmp.lt.s32.totalorder %v739, 0
  %vm1390 = vcmp.lt.s32.totalorder %v750, 0
  %vm1391 = vcmp.lt.s32.totalorder %v761, 0
  %vm1392 = vcmp.lt.s32.totalorder %v772, 0
  %vm1393 = vcmp.lt.s32.totalorder %v783, 0
  %vm1394 = vcmp.lt.s32.totalorder %v794, 0
  %vm1395 = vcmp.lt.s32.totalorder %v805, 0
  %vm1396 = vcmp.lt.s32.totalorder %v816, 0
  %vm1397 = vcmp.lt.s32.totalorder %v827, 0
  %vm1398 = vcmp.lt.s32.totalorder %v838, 0
  %vm1399 = vcmp.lt.s32.totalorder %v849, 0
  %vm1400 = vcmp.lt.s32.totalorder %v860, 0
  %vm1401 = vcmp.lt.s32.totalorder %v871, 0
  %vm1402 = vcmp.lt.s32.totalorder %v882, 0
  %vm1403 = vcmp.lt.s32.totalorder %v893, 0
  %vm1404 = vcmp.lt.s32.totalorder %v904, 0
  %vm1405 = vcmp.lt.s32.totalorder %v915, 0
  %vm1406 = vcmp.lt.s32.totalorder %v926, 0
  %vm1407 = vcmp.lt.s32.totalorder %v937, 0
  %vm1408 = vcmp.lt.s32.totalorder %v948, 0
  %vm1409 = vcmp.lt.s32.totalorder %v959, 0
  %vm1410 = vcmp.lt.s32.totalorder %v970, 0
  %vm1411 = vcmp.lt.s32.totalorder %v981, 0
  %vm1412 = vcmp.lt.s32.totalorder %v992, 0
  %vm1413 = vcmp.lt.s32.totalorder %v1003, 0
  %vm1414 = vcmp.lt.s32.totalorder %v1014, 0
  %vm1415 = vcmp.lt.s32.totalorder %v1025, 0
  %vm1416 = vcmp.lt.s32.totalorder %v1036, 0
  %vm1417 = vcmp.lt.s32.totalorder %v1047, 0
  %vm1418 = vcmp.lt.s32.totalorder %v1058, 0
  %vm1419 = vcmp.lt.s32.totalorder %v1069, 0
  %vm1420 = vcmp.lt.s32.totalorder %v1080, 0
  %vm1421 = vcmp.lt.s32.totalorder %v1091, 0
  %vm1422 = vcmp.lt.s32.totalorder %v1102, 0
  %vm1423 = vcmp.lt.s32.totalorder %v1113, 0
  %vm1424 = vcmp.lt.s32.totalorder %v1124, 0
  %vm1425 = vcmp.lt.s32.totalorder %v1135, 0
  %vm1426 = vcmp.lt.s32.totalorder %v1146, 0
  %vm1427 = vcmp.lt.s32.totalorder %v1157, 0
  %vm1428 = vcmp.lt.s32.totalorder %v1168, 0
  %vm1429 = vcmp.lt.s32.totalorder %v1179, 0
  %vm1430 = vcmp.lt.s32.totalorder %v1190, 0
  %vm1431 = vcmp.lt.s32.totalorder %v1201, 0
  %vm1432 = vcmp.lt.s32.totalorder %v1212, 0
  %vm1433 = vcmp.lt.s32.totalorder %v1223, 0
  %vm1434 = vcmp.lt.s32.totalorder %v1234, 0
  %vm1435 = vmand %vm1335, %vm1235
  %vm1436 = vmand %vm1336, %vm1236
  %vm1437 = vmand %vm1337, %vm1237
  %vm1438 = vmand %vm1338, %vm1238
  %vm1439 = vmand %vm1339, %vm1239
  %vm1440 = vmand %vm1340, %vm1240
  %vm1441 = vmand %vm1341, %vm1241
  %vm1442 = vmand %vm1342, %vm1242
  %vm1443 = vmand %vm1343, %vm1243
  %vm1444 = vmand %vm1344, %vm1244
  %vm1445 = vmand %vm1345, %vm1245
  %vm1446 = vmand %vm1346, %vm1246
  %vm1447 = vmand %vm1347, %vm1247
  %vm1448 = vmand %vm1348, %vm1248
  %vm1449 = vmand %vm1349, %vm1249
  %vm1450 = vmand %vm1350, %vm1250
  %vm1451 = vmand %vm1351, %vm1251
  %vm1452 = vmand %vm1352, %vm1252
  %vm1453 = vmand %vm1353, %vm1253
  %vm1454 = vmand %vm1354, %vm1254
  %vm1455 = vmand %vm1355, %vm1255
  %vm1456 = vmand %vm1356, %vm1256
  %vm1457 = vmand %vm1357, %vm1257
  %vm1458 = vmand %vm1358, %vm1258
  %vm1459 = vmand %vm1359, %vm1259
  %vm1460 = vmand %vm1360, %vm1260
  %vm1461 = vmand %vm1361, %vm1261
  %vm1462 = vmand %vm1362, %vm1262
  %vm1463 = vmand %vm1363, %vm1263
  %vm1464 = vmand %vm1364, %vm1264
  %vm1465 = vmand %vm1365, %vm1265
  %vm1466 = vmand %vm1366, %vm1266
  %vm1467 = vmand %vm1367, %vm1267
  %vm1468 = vmand %vm1368, %vm1268
  %vm1469 = vmand %vm1369, %vm1269
  %vm1470 = vmand %vm1370, %vm1270
  %vm1471 = vmand %vm1371, %vm1271
  %vm1472 = vmand %vm1372, %vm1272
  %vm1473 = vmand %vm1373, %vm1273
  %vm1474 = vmand %vm1374, %vm1274
  %vm1475 = vmand %vm1375, %vm1275
  %vm1476 = vmand %vm1376, %vm1276
  %vm1477 = vmand %vm1377, %vm1277
  %vm1478 = vmand %vm1378, %vm1278
  %vm1479 = vmand %vm1379, %vm1279
  %vm1480 = vmand %vm1380, %vm1280
  %vm1481 = vmand %vm1381, %vm1281
  %vm1482 = vmand %vm1382, %vm1282
  %vm1483 = vmand %vm1383, %vm1283
  %vm1484 = vmand %vm1384, %vm1284
  %vm1485 = vmand %vm1385, %vm1285
  %vm1486 = vmand %vm1386, %vm1286
  %vm1487 = vmand %vm1387, %vm1287
  %vm1488 = vmand %vm1388, %vm1288
  %vm1489 = vmand %vm1389, %vm1289
  %vm1490 = vmand %vm1390, %vm1290
  %vm1491 = vmand %vm1391, %vm1291
  %vm1492 = vmand %vm1392, %vm1292
  %vm1493 = vmand %vm1393, %vm1293
  %vm1494 = vmand %vm1394, %vm1294
  %vm1495 = vmand %vm1395, %vm1295
  %vm1496 = vmand %vm1396, %vm1296
  %vm1497 = vmand %vm1397, %vm1297
  %vm1498 = vmand %vm1398, %vm1298
  %vm1499 = vmand %vm1399, %vm1299
  %vm1500 = vmand %vm1400, %vm1300
  %vm1501 = vmand %vm1401, %vm1301
  %vm1502 = vmand %vm1402, %vm1302
  %vm1503 = vmand %vm1403, %vm1303
  %vm1504 = vmand %vm1404, %vm1304
  %vm1505 = vmand %vm1405, %vm1305
  %vm1506 = vmand %vm1406, %vm1306
  %vm1507 = vmand %vm1407, %vm1307
  %vm1508 = vmand %vm1408, %vm1308
  %vm1509 = vmand %vm1409, %vm1309
  %vm1510 = vmand %vm1410, %vm1310
  %vm1511 = vmand %vm1411, %vm1311
  %vm1512 = vmand %vm1412, %vm1312
  %vm1513 = vmand %vm1413, %vm1313
  %vm1514 = vmand %vm1414, %vm1314
  %vm1515 = vmand %vm1415, %vm1315
  %vm1516 = vmand %vm1416, %vm1316
  %vm1517 = vmand %vm1417, %vm1317
  %vm1518 = vmand %vm1418, %vm1318
  %vm1519 = vmand %vm1419, %vm1319
  %vm1520 = vmand %vm1420, %vm1320
  %vm1521 = vmand %vm1421, %vm1321
  %vm1522 = vmand %vm1422, %vm1322
  %vm1523 = vmand %vm1423, %vm1323
  %vm1524 = vmand %vm1424, %vm1324
  %vm1525 = vmand %vm1425, %vm1325
  %vm1526 = vmand %vm1426, %vm1326
  %vm1527 = vmand %vm1427, %vm1327
  %vm1528 = vmand %vm1428, %vm1328
  %vm1529 = vmand %vm1429, %vm1329
  %vm1530 = vmand %vm1430, %vm1330
  %vm1531 = vmand %vm1431, %vm1331
  %vm1532 = vmand %vm1432, %vm1332
  %vm1533 = vmand %vm1433, %vm1333
  %vm1534 = vmand %vm1434, %vm1334
  %v1535 = vadd.s32 %v145, 200
  %v1536 = vadd.s32 %v156, 200
  %v1537 = vadd.s32 %v167, 200
  %v1538 = vadd.s32 %v178, 200
  %v1539 = vadd.s32 %v189, 200
  %v1540 = vadd.s32 %v200, 200
  %v1541 = vadd.s32 %v211, 200
  %v1542 = vadd.s32 %v222, 200
  %v1543 = vadd.s32 %v233, 200
  %v1544 = vadd.s32 %v244, 200
  %v1545 = vadd.s32 %v255, 200
  %v1546 = vadd.s32 %v266, 200
  %v1547 = vadd.s32 %v277, 200
  %v1548 = vadd.s32 %v288, 200
  %v1549 = vadd.s32 %v299, 200
  %v1550 = vadd.s32 %v310, 200
  %v1551 = vadd.s32 %v321, 200
  %v1552 = vadd.s32 %v332, 200
  %v1553 = vadd.s32 %v343, 200
  %v1554 = vadd.s32 %v354, 200
  %v1555 = vadd.s32 %v365, 200
  %v1556 = vadd.s32 %v376, 200
  %v1557 = vadd.s32 %v387, 200
  %v1558 = vadd.s32 %v398, 200
  %v1559 = vadd.s32 %v409, 200
  %v1560 = vadd.s32 %v420, 200
  %v1561 = vadd.s32 %v431, 200
  %v1562 = vadd.s32 %v442, 200
  %v1563 = vadd.s32 %v453, 200
  %v1564 = vadd.s32 %v464, 200
  %v1565 = vadd.s32 %v475, 200
  %v1566 = vadd.s32 %v486, 200
  %v1567 = vadd.s32 %v497, 200
  %v1568 = vadd.s32 %v508, 200
  %v1569 = vadd.s32 %v519, 200
  %v1570 = vadd.s32 %v530, 200
  %v1571 = vadd.s32 %v541, 200
  %v1572 = vadd.s32 %v552, 200
  %v1573 = vadd.s32 %v563, 200
  %v1574 = vadd.s32 %v574, 200
  %v1575 = vadd.s32 %v585, 200
  %v1576 = vadd.s32 %v596, 200
  %v1577 = vadd.s32 %v607, 200
  %v1578 = vadd.s32 %v618, 200
  %v1579 = vadd.s32 %v629, 200
  %v1580 = vadd.s32 %v640, 200
  %v1581 = vadd.s32 %v651, 200
  %v1582 = vadd.s32 %v662, 200
  %v1583 = vadd.s32 %v673, 200
  %v1584 = vadd.s32 %v684, 200
  %v1585 = vadd.s32 %v695, 200
  %v1586 = vadd.s32 %v706, 200
  %v1587 = vadd.s32 %v717, 200
  %v1588 = vadd.s32 %v728, 200
  %v1589 = vadd.s32 %v739, 200
  %v1590 = vadd.s32 %v750, 200
  %v1591 = vadd.s32 %v761, 200
  %v1592 = vadd.s32 %v772, 200
  %v1593 = vadd.s32 %v783, 200
  %v1594 = vadd.s32 %v794, 200
  %v1595 = vadd.s32 %v805, 200
  %v1596 = vadd.s32 %v816, 200
  %v1597 = vadd.s32 %v827, 200
  %v1598 = vadd.s32 %v838, 200
  %v1599 = vadd.s32 %v849, 200
  %v1600 = vadd.s32 %v860, 200
  %v1601 = vadd.s32 %v871, 200
  %v1602 = vadd.s32 %v882, 200
  %v1603 = vadd.s32 %v893, 200
  %v1604 = vadd.s32 %v904, 200
  %v1605 = vadd.s32 %v915, 200
  %v1606 = vadd.s32 %v926, 200
  %v1607 = vadd.s32 %v937, 200
  %v1608 = vadd.s32 %v948, 200
  %v1609 = vadd.s32 %v959, 200
  %v1610 = vadd.s32 %v970, 200
  %v1611 = vadd.s32 %v981, 200
  %v1612 = vadd.s32 %v992, 200
  %v1613 = vadd.s32 %v1003, 200
  %v1614 = vadd.s32 %v1014, 200
  %v1615 = vadd.s32 %v1025, 200
  %v1616 = vadd.s32 %v1036, 200
  %v1617 = vadd.s32 %v1047, 200
  %v1618 = vadd.s32 %v1058, 200
  %v1619 = vadd.s32 %v1069, 200
  %v1620 = vadd.s32 %v1080, 200
  %v1621 = vadd.s32 %v1091, 200
  %v1622 = vadd.s32 %v1102, 200
  %v1623 = vadd.s32 %v1113, 200
  %v1624 = vadd.s32 %v1124, 200
  %v1625 = vadd.s32 %v1135, 200
  %v1626 = vadd.s32 %v1146, 200
  %v1627 = vadd.s32 %v1157, 200
  %v1628 = vadd.s32 %v1168, 200
  %v1629 = vadd.s32 %v1179, 200
  %v1630 = vadd.s32 %v1190, 200
  %v1631 = vadd.s32 %v1201, 200
  %v1632 = vadd.s32 %v1212, 200
  %v1633 = vadd.s32 %v1223, 200
  %v1634 = vadd.s32 %v1234, 200
  %v1635 = vsel %vm1435, %v1535, %v145
  %v1636 = vsel %vm1436, %v1536, %v156
  %v1637 = vsel %vm1437, %v1537, %v167
  %v1638 = vsel %vm1438, %v1538, %v178
  %v1639 = vsel %vm1439, %v1539, %v189
  %v1640 = vsel %vm1440, %v1540, %v200
  %v1641 = vsel %vm1441, %v1541, %v211
  %v1642 = vsel %vm1442, %v1542, %v222
  %v1643 = vsel %vm1443, %v1543, %v233
  %v1644 = vsel %vm1444, %v1544, %v244
  %v1645 = vsel %vm1445, %v1545, %v255
  %v1646 = vsel %vm1446, %v1546, %v266
  %v1647 = vsel %vm1447, %v1547, %v277
  %v1648 = vsel %vm1448, %v1548, %v288
  %v1649 = vsel %vm1449, %v1549, %v299
  %v1650 = vsel %vm1450, %v1550, %v310
  %v1651 = vsel %vm1451, %v1551, %v321
  %v1652 = vsel %vm1452, %v1552, %v332
  %v1653 = vsel %vm1453, %v1553, %v343
  %v1654 = vsel %vm1454, %v1554, %v354
  %v1655 = vsel %vm1455, %v1555, %v365
  %v1656 = vsel %vm1456, %v1556, %v376
  %v1657 = vsel %vm1457, %v1557, %v387
  %v1658 = vsel %vm1458, %v1558, %v398
  %v1659 = vsel %vm1459, %v1559, %v409
  %v1660 = vsel %vm1460, %v1560, %v420
  %v1661 = vsel %vm1461, %v1561, %v431
  %v1662 = vsel %vm1462, %v1562, %v442
  %v1663 = vsel %vm1463, %v1563, %v453
  %v1664 = vsel %vm1464, %v1564, %v464
  %v1665 = vsel %vm1465, %v1565, %v475
  %v1666 = vsel %vm1466, %v1566, %v486
  %v1667 = vsel %vm1467, %v1567, %v497
  %v1668 = vsel %vm1468, %v1568, %v508
  %v1669 = vsel %vm1469, %v1569, %v519
  %v1670 = vsel %vm1470, %v1570, %v530
  %v1671 = vsel %vm1471, %v1571, %v541
  %v1672 = vsel %vm1472, %v1572, %v552
  %v1673 = vsel %vm1473, %v1573, %v563
  %v1674 = vsel %vm1474, %v1574, %v574
  %v1675 = vsel %vm1475, %v1575, %v585
  %v1676 = vsel %vm1476, %v1576, %v596
  %v1677 = vsel %vm1477, %v1577, %v607
  %v1678 = vsel %vm1478, %v1578, %v618
  %v1679 = vsel %vm1479, %v1579, %v629
  %v1680 = vsel %vm1480, %v1580, %v640
  %v1681 = vsel %vm1481, %v1581, %v651
  %v1682 = vsel %vm1482, %v1582, %v662
  %v1683 = vsel %vm1483, %v1583, %v673
  %v1684 = vsel %vm1484, %v1584, %v684
  %v1685 = vsel %vm1485, %v1585, %v695
  %v1686 = vsel %vm1486, %v1586, %v706
  %v1687 = vsel %vm1487, %v1587, %v717
  %v1688 = vsel %vm1488, %v1588, %v728
  %v1689 = vsel %vm1489, %v1589, %v739
  %v1690 = vsel %vm1490, %v1590, %v750
  %v1691 = vsel %vm1491, %v1591, %v761
  %v1692 = vsel %vm1492, %v1592, %v772
  %v1693 = vsel %vm1493, %v1593, %v783
  %v1694 = vsel %vm1494, %v1594, %v794
  %v1695 = vsel %vm1495, %v1595, %v805
  %v1696 = vsel %vm1496, %v1596, %v816
  %v1697 = vsel %vm1497, %v1597, %v827
  %v1698 = vsel %vm1498, %v1598, %v838
  %v1699 = vsel %vm1499, %v1599, %v849
  %v1700 = vsel %vm1500, %v1600, %v860
  %v1701 = vsel %vm1501, %v1601, %v871
  %v1702 = vsel %vm1502, %v1602, %v882
  %v1703 = vsel %vm1503, %v1603, %v893
  %v1704 = vsel %vm1504, %v1604, %v904
  %v1705 = vsel %vm1505, %v1605, %v915
  %v1706 = vsel %vm1506, %v1606, %v926
  %v1707 = vsel %vm1507, %v1607, %v937
  %v1708 = vsel %vm1508, %v1608, %v948
  %v1709 = vsel %vm1509, %v1609, %v959
  %v1710 = vsel %vm1510, %v1610, %v970
  %v1711 = vsel %vm1511, %v1611, %v981
  %v1712 = vsel %vm1512, %v1612, %v992
  %v1713 = vsel %vm1513, %v1613, %v1003
  %v1714 = vsel %vm1514, %v1614, %v1014
  %v1715 = vsel %vm1515, %v1615, %v1025
  %v1716 = vsel %vm1516, %v1616, %v1036
  %v1717 = vsel %vm1517, %v1617, %v1047
  %v1718 = vsel %vm1518, %v1618, %v1058
  %v1719 = vsel %vm1519, %v1619, %v1069
  %v1720 = vsel %vm1520, %v1620, %v1080
  %v1721 = vsel %vm1521, %v1621, %v1091
  %v1722 = vsel %vm1522, %v1622, %v1102
  %v1723 = vsel %vm1523, %v1623, %v1113
  %v1724 = vsel %vm1524, %v1624, %v1124
  %v1725 = vsel %vm1525, %v1625, %v1135
  %v1726 = vsel %vm1526, %v1626, %v1146
  %v1727 = vsel %vm1527, %v1627, %v1157
  %v1728 = vsel %vm1528, %v1628, %v1168
  %v1729 = vsel %vm1529, %v1629, %v1179
  %v1730 = vsel %vm1530, %v1630, %v1190
  %v1731 = vsel %vm1531, %v1631, %v1201
  %v1732 = vsel %vm1532, %v1632, %v1212
  %v1733 = vsel %vm1533, %v1633, %v1223
  %v1734 = vsel %vm1534, %v1634, %v1234
  %vm1735 = vcmp.ne.s32.totalorder %v1635, 0
  %vm1736 = vcmp.ne.s32.totalorder %v1636, 0
  %vm1737 = vcmp.ne.s32.totalorder %v1637, 0
  %vm1738 = vcmp.ne.s32.totalorder %v1638, 0
  %vm1739 = vcmp.ne.s32.totalorder %v1639, 0
  %vm1740 = vcmp.ne.s32.totalorder %v1640, 0
  %vm1741 = vcmp.ne.s32.totalorder %v1641, 0
  %vm1742 = vcmp.ne.s32.totalorder %v1642, 0
  %vm1743 = vcmp.ne.s32.totalorder %v1643, 0
  %vm1744 = vcmp.ne.s32.totalorder %v1644, 0
  %vm1745 = vcmp.ne.s32.totalorder %v1645, 0
  %vm1746 = vcmp.ne.s32.totalorder %v1646, 0
  %vm1747 = vcmp.ne.s32.totalorder %v1647, 0
  %vm1748 = vcmp.ne.s32.totalorder %v1648, 0
  %vm1749 = vcmp.ne.s32.totalorder %v1649, 0
  %vm1750 = vcmp.ne.s32.totalorder %v1650, 0
  %vm1751 = vcmp.ne.s32.totalorder %v1651, 0
  %vm1752 = vcmp.ne.s32.totalorder %v1652, 0
  %vm1753 = vcmp.ne.s32.totalorder %v1653, 0
  %vm1754 = vcmp.ne.s32.totalorder %v1654, 0
  %vm1755 = vcmp.ne.s32.totalorder %v1655, 0
  %vm1756 = vcmp.ne.s32.totalorder %v1656, 0
  %vm1757 = vcmp.ne.s32.totalorder %v1657, 0
  %vm1758 = vcmp.ne.s32.totalorder %v1658, 0
  %vm1759 = vcmp.ne.s32.totalorder %v1659, 0
  %vm1760 = vcmp.ne.s32.totalorder %v1660, 0
  %vm1761 = vcmp.ne.s32.totalorder %v1661, 0
  %vm1762 = vcmp.ne.s32.totalorder %v1662, 0
  %vm1763 = vcmp.ne.s32.totalorder %v1663, 0
  %vm1764 = vcmp.ne.s32.totalorder %v1664, 0
  %vm1765 = vcmp.ne.s32.totalorder %v1665, 0
  %vm1766 = vcmp.ne.s32.totalorder %v1666, 0
  %vm1767 = vcmp.ne.s32.totalorder %v1667, 0
  %vm1768 = vcmp.ne.s32.totalorder %v1668, 0
  %vm1769 = vcmp.ne.s32.totalorder %v1669, 0
  %vm1770 = vcmp.ne.s32.totalorder %v1670, 0
  %vm1771 = vcmp.ne.s32.totalorder %v1671, 0
  %vm1772 = vcmp.ne.s32.totalorder %v1672, 0
  %vm1773 = vcmp.ne.s32.totalorder %v1673, 0
  %vm1774 = vcmp.ne.s32.totalorder %v1674, 0
  %vm1775 = vcmp.ne.s32.totalorder %v1675, 0
  %vm1776 = vcmp.ne.s32.totalorder %v1676, 0
  %vm1777 = vcmp.ne.s32.totalorder %v1677, 0
  %vm1778 = vcmp.ne.s32.totalorder %v1678, 0
  %vm1779 = vcmp.ne.s32.totalorder %v1679, 0
  %vm1780 = vcmp.ne.s32.totalorder %v1680, 0
  %vm1781 = vcmp.ne.s32.totalorder %v1681, 0
  %vm1782 = vcmp.ne.s32.totalorder %v1682, 0
  %vm1783 = vcmp.ne.s32.totalorder %v1683, 0
  %vm1784 = vcmp.ne.s32.totalorder %v1684, 0
  %vm1785 = vcmp.ne.s32.totalorder %v1685, 0
  %vm1786 = vcmp.ne.s32.totalorder %v1686, 0
  %vm1787 = vcmp.ne.s32.totalorder %v1687, 0
  %vm1788 = vcmp.ne.s32.totalorder %v1688, 0
  %vm1789 = vcmp.ne.s32.totalorder %v1689, 0
  %vm1790 = vcmp.ne.s32.totalorder %v1690, 0
  %vm1791 = vcmp.ne.s32.totalorder %v1691, 0
  %vm1792 = vcmp.ne.s32.totalorder %v1692, 0
  %vm1793 = vcmp.ne.s32.totalorder %v1693, 0
  %vm1794 = vcmp.ne.s32.totalorder %v1694, 0
  %vm1795 = vcmp.ne.s32.totalorder %v1695, 0
  %vm1796 = vcmp.ne.s32.totalorder %v1696, 0
  %vm1797 = vcmp.ne.s32.totalorder %v1697, 0
  %vm1798 = vcmp.ne.s32.totalorder %v1698, 0
  %vm1799 = vcmp.ne.s32.totalorder %v1699, 0
  %vm1800 = vcmp.ne.s32.totalorder %v1700, 0
  %vm1801 = vcmp.ne.s32.totalorder %v1701, 0
  %vm1802 = vcmp.ne.s32.totalorder %v1702, 0
  %vm1803 = vcmp.ne.s32.totalorder %v1703, 0
  %vm1804 = vcmp.ne.s32.totalorder %v1704, 0
  %vm1805 = vcmp.ne.s32.totalorder %v1705, 0
  %vm1806 = vcmp.ne.s32.totalorder %v1706, 0
  %vm1807 = vcmp.ne.s32.totalorder %v1707, 0
  %vm1808 = vcmp.ne.s32.totalorder %v1708, 0
  %vm1809 = vcmp.ne.s32.totalorder %v1709, 0
  %vm1810 = vcmp.ne.s32.totalorder %v1710, 0
  %vm1811 = vcmp.ne.s32.totalorder %v1711, 0
  %vm1812 = vcmp.ne.s32.totalorder %v1712, 0
  %vm1813 = vcmp.ne.s32.totalorder %v1713, 0
  %vm1814 = vcmp.ne.s32.totalorder %v1714, 0
  %vm1815 = vcmp.ne.s32.totalorder %v1715, 0
  %vm1816 = vcmp.ne.s32.totalorder %v1716, 0
  %vm1817 = vcmp.ne.s32.totalorder %v1717, 0
  %vm1818 = vcmp.ne.s32.totalorder %v1718, 0
  %vm1819 = vcmp.ne.s32.totalorder %v1719, 0
  %vm1820 = vcmp.ne.s32.totalorder %v1720, 0
  %vm1821 = vcmp.ne.s32.totalorder %v1721, 0
  %vm1822 = vcmp.ne.s32.totalorder %v1722, 0
  %vm1823 = vcmp.ne.s32.totalorder %v1723, 0
  %vm1824 = vcmp.ne.s32.totalorder %v1724, 0
  %vm1825 = vcmp.ne.s32.totalorder %v1725, 0
  %vm1826 = vcmp.ne.s32.totalorder %v1726, 0
  %vm1827 = vcmp.ne.s32.totalorder %v1727, 0
  %vm1828 = vcmp.ne.s32.totalorder %v1728, 0
  %vm1829 = vcmp.ne.s32.totalorder %v1729, 0
  %vm1830 = vcmp.ne.s32.totalorder %v1730, 0
  %vm1831 = vcmp.ne.s32.totalorder %v1731, 0
  %vm1832 = vcmp.ne.s32.totalorder %v1732, 0
  %vm1833 = vcmp.ne.s32.totalorder %v1733, 0
  %vm1834 = vcmp.ne.s32.totalorder %v1734, 0
  %vm1835 = vcmp.ne.s32.totalorder %v1635, 199
  %vm1836 = vcmp.ne.s32.totalorder %v1636, 199
  %vm1837 = vcmp.ne.s32.totalorder %v1637, 199
  %vm1838 = vcmp.ne.s32.totalorder %v1638, 199
  %vm1839 = vcmp.ne.s32.totalorder %v1639, 199
  %vm1840 = vcmp.ne.s32.totalorder %v1640, 199
  %vm1841 = vcmp.ne.s32.totalorder %v1641, 199
  %vm1842 = vcmp.ne.s32.totalorder %v1642, 199
  %vm1843 = vcmp.ne.s32.totalorder %v1643, 199
  %vm1844 = vcmp.ne.s32.totalorder %v1644, 199
  %vm1845 = vcmp.ne.s32.totalorder %v1645, 199
  %vm1846 = vcmp.ne.s32.totalorder %v1646, 199
  %vm1847 = vcmp.ne.s32.totalorder %v1647, 199
  %vm1848 = vcmp.ne.s32.totalorder %v1648, 199
  %vm1849 = vcmp.ne.s32.totalorder %v1649, 199
  %vm1850 = vcmp.ne.s32.totalorder %v1650, 199
  %vm1851 = vcmp.ne.s32.totalorder %v1651, 199
  %vm1852 = vcmp.ne.s32.totalorder %v1652, 199
  %vm1853 = vcmp.ne.s32.totalorder %v1653, 199
  %vm1854 = vcmp.ne.s32.totalorder %v1654, 199
  %vm1855 = vcmp.ne.s32.totalorder %v1655, 199
  %vm1856 = vcmp.ne.s32.totalorder %v1656, 199
  %vm1857 = vcmp.ne.s32.totalorder %v1657, 199
  %vm1858 = vcmp.ne.s32.totalorder %v1658, 199
  %vm1859 = vcmp.ne.s32.totalorder %v1659, 199
  %vm1860 = vcmp.ne.s32.totalorder %v1660, 199
  %vm1861 = vcmp.ne.s32.totalorder %v1661, 199
  %vm1862 = vcmp.ne.s32.totalorder %v1662, 199
  %vm1863 = vcmp.ne.s32.totalorder %v1663, 199
  %vm1864 = vcmp.ne.s32.totalorder %v1664, 199
  %vm1865 = vcmp.ne.s32.totalorder %v1665, 199
  %vm1866 = vcmp.ne.s32.totalorder %v1666, 199
  %vm1867 = vcmp.ne.s32.totalorder %v1667, 199
  %vm1868 = vcmp.ne.s32.totalorder %v1668, 199
  %vm1869 = vcmp.ne.s32.totalorder %v1669, 199
  %vm1870 = vcmp.ne.s32.totalorder %v1670, 199
  %vm1871 = vcmp.ne.s32.totalorder %v1671, 199
  %vm1872 = vcmp.ne.s32.totalorder %v1672, 199
  %vm1873 = vcmp.ne.s32.totalorder %v1673, 199
  %vm1874 = vcmp.ne.s32.totalorder %v1674, 199
  %vm1875 = vcmp.ne.s32.totalorder %v1675, 199
  %vm1876 = vcmp.ne.s32.totalorder %v1676, 199
  %vm1877 = vcmp.ne.s32.totalorder %v1677, 199
  %vm1878 = vcmp.ne.s32.totalorder %v1678, 199
  %vm1879 = vcmp.ne.s32.totalorder %v1679, 199
  %vm1880 = vcmp.ne.s32.totalorder %v1680, 199
  %vm1881 = vcmp.ne.s32.totalorder %v1681, 199
  %vm1882 = vcmp.ne.s32.totalorder %v1682, 199
  %vm1883 = vcmp.ne.s32.totalorder %v1683, 199
  %vm1884 = vcmp.ne.s32.totalorder %v1684, 199
  %vm1885 = vcmp.ne.s32.totalorder %v1685, 199
  %vm1886 = vcmp.ne.s32.totalorder %v1686, 199
  %vm1887 = vcmp.ne.s32.totalorder %v1687, 199
  %vm1888 = vcmp.ne.s32.totalorder %v1688, 199
  %vm1889 = vcmp.ne.s32.totalorder %v1689, 199
  %vm1890 = vcmp.ne.s32.totalorder %v1690, 199
  %vm1891 = vcmp.ne.s32.totalorder %v1691, 199
  %vm1892 = vcmp.ne.s32.totalorder %v1692, 199
  %vm1893 = vcmp.ne.s32.totalorder %v1693, 199
  %vm1894 = vcmp.ne.s32.totalorder %v1694, 199
  %vm1895 = vcmp.ne.s32.totalorder %v1695, 199
  %vm1896 = vcmp.ne.s32.totalorder %v1696, 199
  %vm1897 = vcmp.ne.s32.totalorder %v1697, 199
  %vm1898 = vcmp.ne.s32.totalorder %v1698, 199
  %vm1899 = vcmp.ne.s32.totalorder %v1699, 199
  %vm1900 = vcmp.ne.s32.totalorder %v1700, 199
  %vm1901 = vcmp.ne.s32.totalorder %v1701, 199
  %vm1902 = vcmp.ne.s32.totalorder %v1702, 199
  %vm1903 = vcmp.ne.s32.totalorder %v1703, 199
  %vm1904 = vcmp.ne.s32.totalorder %v1704, 199
  %vm1905 = vcmp.ne.s32.totalorder %v1705, 199
  %vm1906 = vcmp.ne.s32.totalorder %v1706, 199
  %vm1907 = vcmp.ne.s32.totalorder %v1707, 199
  %vm1908 = vcmp.ne.s32.totalorder %v1708, 199
  %vm1909 = vcmp.ne.s32.totalorder %v1709, 199
  %vm1910 = vcmp.ne.s32.totalorder %v1710, 199
  %vm1911 = vcmp.ne.s32.totalorder %v1711, 199
  %vm1912 = vcmp.ne.s32.totalorder %v1712, 199
  %vm1913 = vcmp.ne.s32.totalorder %v1713, 199
  %vm1914 = vcmp.ne.s32.totalorder %v1714, 199
  %vm1915 = vcmp.ne.s32.totalorder %v1715, 199
  %vm1916 = vcmp.ne.s32.totalorder %v1716, 199
  %vm1917 = vcmp.ne.s32.totalorder %v1717, 199
  %vm1918 = vcmp.ne.s32.totalorder %v1718, 199
  %vm1919 = vcmp.ne.s32.totalorder %v1719, 199
  %vm1920 = vcmp.ne.s32.totalorder %v1720, 199
  %vm1921 = vcmp.ne.s32.totalorder %v1721, 199
  %vm1922 = vcmp.ne.s32.totalorder %v1722, 199
  %vm1923 = vcmp.ne.s32.totalorder %v1723, 199
  %vm1924 = vcmp.ne.s32.totalorder %v1724, 199
  %vm1925 = vcmp.ne.s32.totalorder %v1725, 199
  %vm1926 = vcmp.ne.s32.totalorder %v1726, 199
  %vm1927 = vcmp.ne.s32.totalorder %v1727, 199
  %vm1928 = vcmp.ne.s32.totalorder %v1728, 199
  %vm1929 = vcmp.ne.s32.totalorder %v1729, 199
  %vm1930 = vcmp.ne.s32.totalorder %v1730, 199
  %vm1931 = vcmp.ne.s32.totalorder %v1731, 199
  %vm1932 = vcmp.ne.s32.totalorder %v1732, 199
  %vm1933 = vcmp.ne.s32.totalorder %v1733, 199
  %vm1934 = vcmp.ne.s32.totalorder %v1734, 199
  %v1935 = vld [vmem:[%s0] sm:$0xff]
  %v1936 = vld [vmem:[%s0 + $0x8] sm:$0xff]
  %v1937 = vld [vmem:[%s0 + $0x10] sm:$0xff]
  %v1938 = vld [vmem:[%s0 + $0x18] sm:$0xff]
  %v1939 = vld [vmem:[%s0 + $0x20] sm:$0xff]
  %v1940 = vld [vmem:[%s0 + $0x28] sm:$0xff]
  %v1941 = vld [vmem:[%s0 + $0x30] sm:$0xff]
  %v1942 = vld [vmem:[%s0 + $0x38] sm:$0xff]
  %v1943 = vld [vmem:[%s0 + $0x40] sm:$0xff]
  %v1944 = vld [vmem:[%s0 + $0x48] sm:$0xff]
  %v1945 = vld [vmem:[%s0 + $0x50] sm:$0xff]
  %v1946 = vld [vmem:[%s0 + $0x58] sm:$0xff]
  %v1947 = vld [vmem:[%s0 + $0x60] sm:$0xff]
  %v1948 = vld [vmem:[%s0 + $0x68] sm:$0xff]
  %v1949 = vld [vmem:[%s0 + $0x70] sm:$0xff]
  %v1950 = vld [vmem:[%s0 + $0x78] sm:$0xff]
  %v1951 = vld [vmem:[%s0 + $0x80] sm:$0xff]
  %v1952 = vld [vmem:[%s0 + $0x88] sm:$0xff]
  %v1953 = vld [vmem:[%s0 + $0x90] sm:$0xff]
  %v1954 = vld [vmem:[%s0 + $0x98] sm:$0xff]
  %v1955 = vld [vmem:[%s0 + $0xa0] sm:$0xff]
  %v1956 = vld [vmem:[%s0 + $0xa8] sm:$0xff]
  %v1957 = vld [vmem:[%s0 + $0xb0] sm:$0xff]
  %v1958 = vld [vmem:[%s0 + $0xb8] sm:$0xff]
  %v1959 = vld [vmem:[%s0 + $0xc0] sm:$0xff]
  %v1960 = vld [vmem:[%s0 + $0xc8] sm:$0xff]
  %v1961 = vld [vmem:[%s0 + $0xd0] sm:$0xff]
  %v1962 = vld [vmem:[%s0 + $0xd8] sm:$0xff]
  %v1963 = vld [vmem:[%s0 + $0xe0] sm:$0xff]
  %v1964 = vld [vmem:[%s0 + $0xe8] sm:$0xff]
  %v1965 = vld [vmem:[%s0 + $0xf0] sm:$0xff]
  %v1966 = vld [vmem:[%s0 + $0xf8] sm:$0xff]
  %v1967 = vld [vmem:[%s0 + $0x100] sm:$0xff]
  %v1968 = vld [vmem:[%s0 + $0x108] sm:$0xff]
  %v1969 = vld [vmem:[%s0 + $0x110] sm:$0xff]
  %v1970 = vld [vmem:[%s0 + $0x118] sm:$0xff]
  %v1971 = vld [vmem:[%s0 + $0x120] sm:$0xff]
  %v1972 = vld [vmem:[%s0 + $0x128] sm:$0xff]
  %v1973 = vld [vmem:[%s0 + $0x130] sm:$0xff]
  %v1974 = vld [vmem:[%s0 + $0x138] sm:$0xff]
  %v1975 = vld [vmem:[%s0 + $0x140] sm:$0xff]
  %v1976 = vld [vmem:[%s0 + $0x148] sm:$0xff]
  %v1977 = vld [vmem:[%s0 + $0x150] sm:$0xff]
  %v1978 = vld [vmem:[%s0 + $0x158] sm:$0xff]
  %v1979 = vld [vmem:[%s0 + $0x160] sm:$0xff]
  %v1980 = vld [vmem:[%s0 + $0x168] sm:$0xff]
  %v1981 = vld [vmem:[%s0 + $0x170] sm:$0xff]
  %v1982 = vld [vmem:[%s0 + $0x178] sm:$0xff]
  %v1983 = vld [vmem:[%s0 + $0x180] sm:$0xff]
  %v1984 = vld [vmem:[%s0 + $0x188] sm:$0xff]
  %v1985 = vld [vmem:[%s0 + $0x190] sm:$0xff]
  %v1986 = vld [vmem:[%s0 + $0x198] sm:$0xff]
  %v1987 = vld [vmem:[%s0 + $0x1a0] sm:$0xff]
  %v1988 = vld [vmem:[%s0 + $0x1a8] sm:$0xff]
  %v1989 = vld [vmem:[%s0 + $0x1b0] sm:$0xff]
  %v1990 = vld [vmem:[%s0 + $0x1b8] sm:$0xff]
  %v1991 = vld [vmem:[%s0 + $0x1c0] sm:$0xff]
  %v1992 = vld [vmem:[%s0 + $0x1c8] sm:$0xff]
  %v1993 = vld [vmem:[%s0 + $0x1d0] sm:$0xff]
  %v1994 = vld [vmem:[%s0 + $0x1d8] sm:$0xff]
  %v1995 = vld [vmem:[%s0 + $0x1e0] sm:$0xff]
  %v1996 = vld [vmem:[%s0 + $0x1e8] sm:$0xff]
  %v1997 = vld [vmem:[%s0 + $0x1f0] sm:$0xff]
  %v1998 = vld [vmem:[%s0 + $0x1f8] sm:$0xff]
  %v1999 = vld [vmem:[%s0 + $0x200] sm:$0xff]
  %v2000 = vld [vmem:[%s0 + $0x208] sm:$0xff]
  %v2001 = vld [vmem:[%s0 + $0x210] sm:$0xff]
  %v2002 = vld [vmem:[%s0 + $0x218] sm:$0xff]
  %v2003 = vld [vmem:[%s0 + $0x220] sm:$0xff]
  %v2004 = vld [vmem:[%s0 + $0x228] sm:$0xff]
  %v2005 = vld [vmem:[%s0 + $0x230] sm:$0xff]
  %v2006 = vld [vmem:[%s0 + $0x238] sm:$0xff]
  %v2007 = vld [vmem:[%s0 + $0x240] sm:$0xff]
  %v2008 = vld [vmem:[%s0 + $0x248] sm:$0xff]
  %v2009 = vld [vmem:[%s0 + $0x250] sm:$0xff]
  %v2010 = vld [vmem:[%s0 + $0x258] sm:$0xff]
  %v2011 = vld [vmem:[%s0 + $0x260] sm:$0xff]
  %v2012 = vld [vmem:[%s0 + $0x268] sm:$0xff]
  %v2013 = vld [vmem:[%s0 + $0x270] sm:$0xff]
  %v2014 = vld [vmem:[%s0 + $0x278] sm:$0xff]
  %v2015 = vld [vmem:[%s0 + $0x280] sm:$0xff]
  %v2016 = vld [vmem:[%s0 + $0x288] sm:$0xff]
  %v2017 = vld [vmem:[%s0 + $0x290] sm:$0xff]
  %v2018 = vld [vmem:[%s0 + $0x298] sm:$0xff]
  %v2019 = vld [vmem:[%s0 + $0x2a0] sm:$0xff]
  %v2020 = vld [vmem:[%s0 + $0x2a8] sm:$0xff]
  %v2021 = vld [vmem:[%s0 + $0x2b0] sm:$0xff]
  %v2022 = vld [vmem:[%s0 + $0x2b8] sm:$0xff]
  %v2023 = vld [vmem:[%s0 + $0x2c0] sm:$0xff]
  %v2024 = vld [vmem:[%s0 + $0x2c8] sm:$0xff]
  %v2025 = vld [vmem:[%s0 + $0x2d0] sm:$0xff]
  %v2026 = vld [vmem:[%s0 + $0x2d8] sm:$0xff]
  %v2027 = vld [vmem:[%s0 + $0x2e0] sm:$0xff]
  %v2028 = vld [vmem:[%s0 + $0x2e8] sm:$0xff]
  %v2029 = vld [vmem:[%s0 + $0x2f0] sm:$0xff]
  %v2030 = vld [vmem:[%s0 + $0x2f8] sm:$0xff]
  %v2031 = vld [vmem:[%s0 + $0x300] sm:$0xff]
  %v2032 = vld [vmem:[%s0 + $0x308] sm:$0xff]
  %v2033 = vld [vmem:[%s0 + $0x310] sm:$0xff]
  %v2034 = vld [vmem:[%s0 + $0x318] sm:$0xff]
  %v2035 = vrot.slane %v1935, 7
  %v2036 = vrot.slane %v1936, 7
  %v2037 = vrot.slane %v1937, 7
  %v2038 = vrot.slane %v1938, 7
  %v2039 = vrot.slane %v1939, 7
  %v2040 = vrot.slane %v1940, 7
  %v2041 = vrot.slane %v1941, 7
  %v2042 = vrot.slane %v1942, 7
  %v2043 = vrot.slane %v1943, 7
  %v2044 = vrot.slane %v1944, 7
  %v2045 = vrot.slane %v1945, 7
  %v2046 = vrot.slane %v1946, 7
  %v2047 = vrot.slane %v1947, 7
  %v2048 = vrot.slane %v1948, 7
  %v2049 = vrot.slane %v1949, 7
  %v2050 = vrot.slane %v1950, 7
  %v2051 = vrot.slane %v1951, 7
  %v2052 = vrot.slane %v1952, 7
  %v2053 = vrot.slane %v1953, 7
  %v2054 = vrot.slane %v1954, 7
  %v2055 = vrot.slane %v1955, 7
  %v2056 = vrot.slane %v1956, 7
  %v2057 = vrot.slane %v1957, 7
  %v2058 = vrot.slane %v1958, 7
  %v2059 = vrot.slane %v1959, 7
  %v2060 = vrot.slane %v1960, 7
  %v2061 = vrot.slane %v1961, 7
  %v2062 = vrot.slane %v1962, 7
  %v2063 = vrot.slane %v1963, 7
  %v2064 = vrot.slane %v1964, 7
  %v2065 = vrot.slane %v1965, 7
  %v2066 = vrot.slane %v1966, 7
  %v2067 = vrot.slane %v1967, 7
  %v2068 = vrot.slane %v1968, 7
  %v2069 = vrot.slane %v1969, 7
  %v2070 = vrot.slane %v1970, 7
  %v2071 = vrot.slane %v1971, 7
  %v2072 = vrot.slane %v1972, 7
  %v2073 = vrot.slane %v1973, 7
  %v2074 = vrot.slane %v1974, 7
  %v2075 = vrot.slane %v1975, 7
  %v2076 = vrot.slane %v1976, 7
  %v2077 = vrot.slane %v1977, 7
  %v2078 = vrot.slane %v1978, 7
  %v2079 = vrot.slane %v1979, 7
  %v2080 = vrot.slane %v1980, 7
  %v2081 = vrot.slane %v1981, 7
  %v2082 = vrot.slane %v1982, 7
  %v2083 = vrot.slane %v1983, 7
  %v2084 = vrot.slane %v1984, 7
  %v2085 = vrot.slane %v1985, 7
  %v2086 = vrot.slane %v1986, 7
  %v2087 = vrot.slane %v1987, 7
  %v2088 = vrot.slane %v1988, 7
  %v2089 = vrot.slane %v1989, 7
  %v2090 = vrot.slane %v1990, 7
  %v2091 = vrot.slane %v1991, 7
  %v2092 = vrot.slane %v1992, 7
  %v2093 = vrot.slane %v1993, 7
  %v2094 = vrot.slane %v1994, 7
  %v2095 = vrot.slane %v1995, 7
  %v2096 = vrot.slane %v1996, 7
  %v2097 = vrot.slane %v1997, 7
  %v2098 = vrot.slane %v1998, 7
  %v2099 = vrot.slane %v1999, 7
  %v2100 = vrot.slane %v2000, 7
  %v2101 = vrot.slane %v2001, 7
  %v2102 = vrot.slane %v2002, 7
  %v2103 = vrot.slane %v2003, 7
  %v2104 = vrot.slane %v2004, 7
  %v2105 = vrot.slane %v2005, 7
  %v2106 = vrot.slane %v2006, 7
  %v2107 = vrot.slane %v2007, 7
  %v2108 = vrot.slane %v2008, 7
  %v2109 = vrot.slane %v2009, 7
  %v2110 = vrot.slane %v2010, 7
  %v2111 = vrot.slane %v2011, 7
  %v2112 = vrot.slane %v2012, 7
  %v2113 = vrot.slane %v2013, 7
  %v2114 = vrot.slane %v2014, 7
  %v2115 = vrot.slane %v2015, 7
  %v2116 = vrot.slane %v2016, 7
  %v2117 = vrot.slane %v2017, 7
  %v2118 = vrot.slane %v2018, 7
  %v2119 = vrot.slane %v2019, 7
  %v2120 = vrot.slane %v2020, 7
  %v2121 = vrot.slane %v2021, 7
  %v2122 = vrot.slane %v2022, 7
  %v2123 = vrot.slane %v2023, 7
  %v2124 = vrot.slane %v2024, 7
  %v2125 = vrot.slane %v2025, 7
  %v2126 = vrot.slane %v2026, 7
  %v2127 = vrot.slane %v2027, 7
  %v2128 = vrot.slane %v2028, 7
  %v2129 = vrot.slane %v2029, 7
  %v2130 = vrot.slane %v2030, 7
  %v2131 = vrot.slane %v2031, 7
  %v2132 = vrot.slane %v2032, 7
  %v2133 = vrot.slane %v2033, 7
  %v2134 = vrot.slane %v2034, 7
  %vm2135 = vcmp.lt.s32.totalorder %v35, 1
  %v2136 = vsel %vm2135, %v2133, %v2134
  %v2137 = vsel %vm2135, %v2132, %v2133
  %v2138 = vsel %vm2135, %v2131, %v2132
  %v2139 = vsel %vm2135, %v2130, %v2131
  %v2140 = vsel %vm2135, %v2129, %v2130
  %v2141 = vsel %vm2135, %v2128, %v2129
  %v2142 = vsel %vm2135, %v2127, %v2128
  %v2143 = vsel %vm2135, %v2126, %v2127
  %v2144 = vsel %vm2135, %v2125, %v2126
  %v2145 = vsel %vm2135, %v2124, %v2125
  %v2146 = vsel %vm2135, %v2123, %v2124
  %v2147 = vsel %vm2135, %v2122, %v2123
  %v2148 = vsel %vm2135, %v2121, %v2122
  %v2149 = vsel %vm2135, %v2120, %v2121
  %v2150 = vsel %vm2135, %v2119, %v2120
  %v2151 = vsel %vm2135, %v2118, %v2119
  %v2152 = vsel %vm2135, %v2117, %v2118
  %v2153 = vsel %vm2135, %v2116, %v2117
  %v2154 = vsel %vm2135, %v2115, %v2116
  %v2155 = vsel %vm2135, %v2114, %v2115
  %v2156 = vsel %vm2135, %v2113, %v2114
  %v2157 = vsel %vm2135, %v2112, %v2113
  %v2158 = vsel %vm2135, %v2111, %v2112
  %v2159 = vsel %vm2135, %v2110, %v2111
  %v2160 = vsel %vm2135, %v2109, %v2110
  %v2161 = vsel %vm2135, %v2108, %v2109
  %v2162 = vsel %vm2135, %v2107, %v2108
  %v2163 = vsel %vm2135, %v2106, %v2107
  %v2164 = vsel %vm2135, %v2105, %v2106
  %v2165 = vsel %vm2135, %v2104, %v2105
  %v2166 = vsel %vm2135, %v2103, %v2104
  %v2167 = vsel %vm2135, %v2102, %v2103
  %v2168 = vsel %vm2135, %v2101, %v2102
  %v2169 = vsel %vm2135, %v2100, %v2101
  %v2170 = vsel %vm2135, %v2099, %v2100
  %v2171 = vsel %vm2135, %v2098, %v2099
  %v2172 = vsel %vm2135, %v2097, %v2098
  %v2173 = vsel %vm2135, %v2096, %v2097
  %v2174 = vsel %vm2135, %v2095, %v2096
  %v2175 = vsel %vm2135, %v2094, %v2095
  %v2176 = vsel %vm2135, %v2093, %v2094
  %v2177 = vsel %vm2135, %v2092, %v2093
  %v2178 = vsel %vm2135, %v2091, %v2092
  %v2179 = vsel %vm2135, %v2090, %v2091
  %v2180 = vsel %vm2135, %v2089, %v2090
  %v2181 = vsel %vm2135, %v2088, %v2089
  %v2182 = vsel %vm2135, %v2087, %v2088
  %v2183 = vsel %vm2135, %v2086, %v2087
  %v2184 = vsel %vm2135, %v2085, %v2086
  %v2185 = vsel %vm2135, %v2084, %v2085
  %v2186 = vsel %vm2135, %v2083, %v2084
  %v2187 = vsel %vm2135, %v2082, %v2083
  %v2188 = vsel %vm2135, %v2081, %v2082
  %v2189 = vsel %vm2135, %v2080, %v2081
  %v2190 = vsel %vm2135, %v2079, %v2080
  %v2191 = vsel %vm2135, %v2078, %v2079
  %v2192 = vsel %vm2135, %v2077, %v2078
  %v2193 = vsel %vm2135, %v2076, %v2077
  %v2194 = vsel %vm2135, %v2075, %v2076
  %v2195 = vsel %vm2135, %v2074, %v2075
  %v2196 = vsel %vm2135, %v2073, %v2074
  %v2197 = vsel %vm2135, %v2072, %v2073
  %v2198 = vsel %vm2135, %v2071, %v2072
  %v2199 = vsel %vm2135, %v2070, %v2071
  %v2200 = vsel %vm2135, %v2069, %v2070
  %v2201 = vsel %vm2135, %v2068, %v2069
  %v2202 = vsel %vm2135, %v2067, %v2068
  %v2203 = vsel %vm2135, %v2066, %v2067
  %v2204 = vsel %vm2135, %v2065, %v2066
  %v2205 = vsel %vm2135, %v2064, %v2065
  %v2206 = vsel %vm2135, %v2063, %v2064
  %v2207 = vsel %vm2135, %v2062, %v2063
  %v2208 = vsel %vm2135, %v2061, %v2062
  %v2209 = vsel %vm2135, %v2060, %v2061
  %v2210 = vsel %vm2135, %v2059, %v2060
  %v2211 = vsel %vm2135, %v2058, %v2059
  %v2212 = vsel %vm2135, %v2057, %v2058
  %v2213 = vsel %vm2135, %v2056, %v2057
  %v2214 = vsel %vm2135, %v2055, %v2056
  %v2215 = vsel %vm2135, %v2054, %v2055
  %v2216 = vsel %vm2135, %v2053, %v2054
  %v2217 = vsel %vm2135, %v2052, %v2053
  %v2218 = vsel %vm2135, %v2051, %v2052
  %v2219 = vsel %vm2135, %v2050, %v2051
  %v2220 = vsel %vm2135, %v2049, %v2050
  %v2221 = vsel %vm2135, %v2048, %v2049
  %v2222 = vsel %vm2135, %v2047, %v2048
  %v2223 = vsel %vm2135, %v2046, %v2047
  %v2224 = vsel %vm2135, %v2045, %v2046
  %v2225 = vsel %vm2135, %v2044, %v2045
  %v2226 = vsel %vm2135, %v2043, %v2044
  %v2227 = vsel %vm2135, %v2042, %v2043
  %v2228 = vsel %vm2135, %v2041, %v2042
  %v2229 = vsel %vm2135, %v2040, %v2041
  %v2230 = vsel %vm2135, %v2039, %v2040
  %v2231 = vsel %vm2135, %v2038, %v2039
  %v2232 = vsel %vm2135, %v2037, %v2038
  %v2233 = vsel %vm2135, %v2036, %v2037
  %v2234 = vsel %vm2135, %v2035, %v2036
  %v2235 = vsel %vm2135, %v2134, %v2035
  %v2236 = vsel %vm1735, 1, 0
  %v2237 = vsel %vm1736, 1, 0
  %v2238 = vsel %vm1737, 1, 0
  %v2239 = vsel %vm1738, 1, 0
  %v2240 = vsel %vm1739, 1, 0
  %v2241 = vsel %vm1740, 1, 0
  %v2242 = vsel %vm1741, 1, 0
  %v2243 = vsel %vm1742, 1, 0
  %v2244 = vsel %vm1743, 1, 0
  %v2245 = vsel %vm1744, 1, 0
  %v2246 = vsel %vm1745, 1, 0
  %v2247 = vsel %vm1746, 1, 0
  %v2248 = vsel %vm1747, 1, 0
  %v2249 = vsel %vm1748, 1, 0
  %v2250 = vsel %vm1749, 1, 0
  %v2251 = vsel %vm1750, 1, 0
  %v2252 = vsel %vm1751, 1, 0
  %v2253 = vsel %vm1752, 1, 0
  %v2254 = vsel %vm1753, 1, 0
  %v2255 = vsel %vm1754, 1, 0
  %v2256 = vsel %vm1755, 1, 0
  %v2257 = vsel %vm1756, 1, 0
  %v2258 = vsel %vm1757, 1, 0
  %v2259 = vsel %vm1758, 1, 0
  %v2260 = vsel %vm1759, 1, 0
  %v2261 = vsel %vm1760, 1, 0
  %v2262 = vsel %vm1761, 1, 0
  %v2263 = vsel %vm1762, 1, 0
  %v2264 = vsel %vm1763, 1, 0
  %v2265 = vsel %vm1764, 1, 0
  %v2266 = vsel %vm1765, 1, 0
  %v2267 = vsel %vm1766, 1, 0
  %v2268 = vsel %vm1767, 1, 0
  %v2269 = vsel %vm1768, 1, 0
  %v2270 = vsel %vm1769, 1, 0
  %v2271 = vsel %vm1770, 1, 0
  %v2272 = vsel %vm1771, 1, 0
  %v2273 = vsel %vm1772, 1, 0
  %v2274 = vsel %vm1773, 1, 0
  %v2275 = vsel %vm1774, 1, 0
  %v2276 = vsel %vm1775, 1, 0
  %v2277 = vsel %vm1776, 1, 0
  %v2278 = vsel %vm1777, 1, 0
  %v2279 = vsel %vm1778, 1, 0
  %v2280 = vsel %vm1779, 1, 0
  %v2281 = vsel %vm1780, 1, 0
  %v2282 = vsel %vm1781, 1, 0
  %v2283 = vsel %vm1782, 1, 0
  %v2284 = vsel %vm1783, 1, 0
  %v2285 = vsel %vm1784, 1, 0
  %v2286 = vsel %vm1785, 1, 0
  %v2287 = vsel %vm1786, 1, 0
  %v2288 = vsel %vm1787, 1, 0
  %v2289 = vsel %vm1788, 1, 0
  %v2290 = vsel %vm1789, 1, 0
  %v2291 = vsel %vm1790, 1, 0
  %v2292 = vsel %vm1791, 1, 0
  %v2293 = vsel %vm1792, 1, 0
  %v2294 = vsel %vm1793, 1, 0
  %v2295 = vsel %vm1794, 1, 0
  %v2296 = vsel %vm1795, 1, 0
  %v2297 = vsel %vm1796, 1, 0
  %v2298 = vsel %vm1797, 1, 0
  %v2299 = vsel %vm1798, 1, 0
  %v2300 = vsel %vm1799, 1, 0
  %v2301 = vsel %vm1800, 1, 0
  %v2302 = vsel %vm1801, 1, 0
  %v2303 = vsel %vm1802, 1, 0
  %v2304 = vsel %vm1803, 1, 0
  %v2305 = vsel %vm1804, 1, 0
  %v2306 = vsel %vm1805, 1, 0
  %v2307 = vsel %vm1806, 1, 0
  %v2308 = vsel %vm1807, 1, 0
  %v2309 = vsel %vm1808, 1, 0
  %v2310 = vsel %vm1809, 1, 0
  %v2311 = vsel %vm1810, 1, 0
  %v2312 = vsel %vm1811, 1, 0
  %v2313 = vsel %vm1812, 1, 0
  %v2314 = vsel %vm1813, 1, 0
  %v2315 = vsel %vm1814, 1, 0
  %v2316 = vsel %vm1815, 1, 0
  %v2317 = vsel %vm1816, 1, 0
  %v2318 = vsel %vm1817, 1, 0
  %v2319 = vsel %vm1818, 1, 0
  %v2320 = vsel %vm1819, 1, 0
  %v2321 = vsel %vm1820, 1, 0
  %v2322 = vsel %vm1821, 1, 0
  %v2323 = vsel %vm1822, 1, 0
  %v2324 = vsel %vm1823, 1, 0
  %v2325 = vsel %vm1824, 1, 0
  %v2326 = vsel %vm1825, 1, 0
  %v2327 = vsel %vm1826, 1, 0
  %v2328 = vsel %vm1827, 1, 0
  %v2329 = vsel %vm1828, 1, 0
  %v2330 = vsel %vm1829, 1, 0
  %v2331 = vsel %vm1830, 1, 0
  %v2332 = vsel %vm1831, 1, 0
  %v2333 = vsel %vm1832, 1, 0
  %v2334 = vsel %vm1833, 1, 0
  %v2335 = vsel %vm1834, 1, 0
  %vm2336 = vcmp.eq.s32.totalorder %v2236, 1
  %vm2337 = vcmp.eq.s32.totalorder %v2237, 1
  %vm2338 = vcmp.eq.s32.totalorder %v2238, 1
  %vm2339 = vcmp.eq.s32.totalorder %v2239, 1
  %vm2340 = vcmp.eq.s32.totalorder %v2240, 1
  %vm2341 = vcmp.eq.s32.totalorder %v2241, 1
  %vm2342 = vcmp.eq.s32.totalorder %v2242, 1
  %vm2343 = vcmp.eq.s32.totalorder %v2243, 1
  %vm2344 = vcmp.eq.s32.totalorder %v2244, 1
  %vm2345 = vcmp.eq.s32.totalorder %v2245, 1
  %vm2346 = vcmp.eq.s32.totalorder %v2246, 1
  %vm2347 = vcmp.eq.s32.totalorder %v2247, 1
  %vm2348 = vcmp.eq.s32.totalorder %v2248, 1
  %vm2349 = vcmp.eq.s32.totalorder %v2249, 1
  %vm2350 = vcmp.eq.s32.totalorder %v2250, 1
  %vm2351 = vcmp.eq.s32.totalorder %v2251, 1
  %vm2352 = vcmp.eq.s32.totalorder %v2252, 1
  %vm2353 = vcmp.eq.s32.totalorder %v2253, 1
  %vm2354 = vcmp.eq.s32.totalorder %v2254, 1
  %vm2355 = vcmp.eq.s32.totalorder %v2255, 1
  %vm2356 = vcmp.eq.s32.totalorder %v2256, 1
  %vm2357 = vcmp.eq.s32.totalorder %v2257, 1
  %vm2358 = vcmp.eq.s32.totalorder %v2258, 1
  %vm2359 = vcmp.eq.s32.totalorder %v2259, 1
  %vm2360 = vcmp.eq.s32.totalorder %v2260, 1
  %vm2361 = vcmp.eq.s32.totalorder %v2261, 1
  %vm2362 = vcmp.eq.s32.totalorder %v2262, 1
  %vm2363 = vcmp.eq.s32.totalorder %v2263, 1
  %vm2364 = vcmp.eq.s32.totalorder %v2264, 1
  %vm2365 = vcmp.eq.s32.totalorder %v2265, 1
  %vm2366 = vcmp.eq.s32.totalorder %v2266, 1
  %vm2367 = vcmp.eq.s32.totalorder %v2267, 1
  %vm2368 = vcmp.eq.s32.totalorder %v2268, 1
  %vm2369 = vcmp.eq.s32.totalorder %v2269, 1
  %vm2370 = vcmp.eq.s32.totalorder %v2270, 1
  %vm2371 = vcmp.eq.s32.totalorder %v2271, 1
  %vm2372 = vcmp.eq.s32.totalorder %v2272, 1
  %vm2373 = vcmp.eq.s32.totalorder %v2273, 1
  %vm2374 = vcmp.eq.s32.totalorder %v2274, 1
  %vm2375 = vcmp.eq.s32.totalorder %v2275, 1
  %vm2376 = vcmp.eq.s32.totalorder %v2276, 1
  %vm2377 = vcmp.eq.s32.totalorder %v2277, 1
  %vm2378 = vcmp.eq.s32.totalorder %v2278, 1
  %vm2379 = vcmp.eq.s32.totalorder %v2279, 1
  %vm2380 = vcmp.eq.s32.totalorder %v2280, 1
  %vm2381 = vcmp.eq.s32.totalorder %v2281, 1
  %vm2382 = vcmp.eq.s32.totalorder %v2282, 1
  %vm2383 = vcmp.eq.s32.totalorder %v2283, 1
  %vm2384 = vcmp.eq.s32.totalorder %v2284, 1
  %vm2385 = vcmp.eq.s32.totalorder %v2285, 1
  %vm2386 = vcmp.eq.s32.totalorder %v2286, 1
  %vm2387 = vcmp.eq.s32.totalorder %v2287, 1
  %vm2388 = vcmp.eq.s32.totalorder %v2288, 1
  %vm2389 = vcmp.eq.s32.totalorder %v2289, 1
  %vm2390 = vcmp.eq.s32.totalorder %v2290, 1
  %vm2391 = vcmp.eq.s32.totalorder %v2291, 1
  %vm2392 = vcmp.eq.s32.totalorder %v2292, 1
  %vm2393 = vcmp.eq.s32.totalorder %v2293, 1
  %vm2394 = vcmp.eq.s32.totalorder %v2294, 1
  %vm2395 = vcmp.eq.s32.totalorder %v2295, 1
  %vm2396 = vcmp.eq.s32.totalorder %v2296, 1
  %vm2397 = vcmp.eq.s32.totalorder %v2297, 1
  %vm2398 = vcmp.eq.s32.totalorder %v2298, 1
  %vm2399 = vcmp.eq.s32.totalorder %v2299, 1
  %vm2400 = vcmp.eq.s32.totalorder %v2300, 1
  %vm2401 = vcmp.eq.s32.totalorder %v2301, 1
  %vm2402 = vcmp.eq.s32.totalorder %v2302, 1
  %vm2403 = vcmp.eq.s32.totalorder %v2303, 1
  %vm2404 = vcmp.eq.s32.totalorder %v2304, 1
  %vm2405 = vcmp.eq.s32.totalorder %v2305, 1
  %vm2406 = vcmp.eq.s32.totalorder %v2306, 1
  %vm2407 = vcmp.eq.s32.totalorder %v2307, 1
  %vm2408 = vcmp.eq.s32.totalorder %v2308, 1
  %vm2409 = vcmp.eq.s32.totalorder %v2309, 1
  %vm2410 = vcmp.eq.s32.totalorder %v2310, 1
  %vm2411 = vcmp.eq.s32.totalorder %v2311, 1
  %vm2412 = vcmp.eq.s32.totalorder %v2312, 1
  %vm2413 = vcmp.eq.s32.totalorder %v2313, 1
  %vm2414 = vcmp.eq.s32.totalorder %v2314, 1
  %vm2415 = vcmp.eq.s32.totalorder %v2315, 1
  %vm2416 = vcmp.eq.s32.totalorder %v2316, 1
  %vm2417 = vcmp.eq.s32.totalorder %v2317, 1
  %vm2418 = vcmp.eq.s32.totalorder %v2318, 1
  %vm2419 = vcmp.eq.s32.totalorder %v2319, 1
  %vm2420 = vcmp.eq.s32.totalorder %v2320, 1
  %vm2421 = vcmp.eq.s32.totalorder %v2321, 1
  %vm2422 = vcmp.eq.s32.totalorder %v2322, 1
  %vm2423 = vcmp.eq.s32.totalorder %v2323, 1
  %vm2424 = vcmp.eq.s32.totalorder %v2324, 1
  %vm2425 = vcmp.eq.s32.totalorder %v2325, 1
  %vm2426 = vcmp.eq.s32.totalorder %v2326, 1
  %vm2427 = vcmp.eq.s32.totalorder %v2327, 1
  %vm2428 = vcmp.eq.s32.totalorder %v2328, 1
  %vm2429 = vcmp.eq.s32.totalorder %v2329, 1
  %vm2430 = vcmp.eq.s32.totalorder %v2330, 1
  %vm2431 = vcmp.eq.s32.totalorder %v2331, 1
  %vm2432 = vcmp.eq.s32.totalorder %v2332, 1
  %vm2433 = vcmp.eq.s32.totalorder %v2333, 1
  %vm2434 = vcmp.eq.s32.totalorder %v2334, 1
  %vm2435 = vcmp.eq.s32.totalorder %v2335, 1
  %v2436 = vsel %vm2336, %v2235, 0.0
  %v2437 = vsel %vm2337, %v2234, 0.0
  %v2438 = vsel %vm2338, %v2233, 0.0
  %v2439 = vsel %vm2339, %v2232, 0.0
  %v2440 = vsel %vm2340, %v2231, 0.0
  %v2441 = vsel %vm2341, %v2230, 0.0
  %v2442 = vsel %vm2342, %v2229, 0.0
  %v2443 = vsel %vm2343, %v2228, 0.0
  %v2444 = vsel %vm2344, %v2227, 0.0
  %v2445 = vsel %vm2345, %v2226, 0.0
  %v2446 = vsel %vm2346, %v2225, 0.0
  %v2447 = vsel %vm2347, %v2224, 0.0
  %v2448 = vsel %vm2348, %v2223, 0.0
  %v2449 = vsel %vm2349, %v2222, 0.0
  %v2450 = vsel %vm2350, %v2221, 0.0
  %v2451 = vsel %vm2351, %v2220, 0.0
  %v2452 = vsel %vm2352, %v2219, 0.0
  %v2453 = vsel %vm2353, %v2218, 0.0
  %v2454 = vsel %vm2354, %v2217, 0.0
  %v2455 = vsel %vm2355, %v2216, 0.0
  %v2456 = vsel %vm2356, %v2215, 0.0
  %v2457 = vsel %vm2357, %v2214, 0.0
  %v2458 = vsel %vm2358, %v2213, 0.0
  %v2459 = vsel %vm2359, %v2212, 0.0
  %v2460 = vsel %vm2360, %v2211, 0.0
  %v2461 = vsel %vm2361, %v2210, 0.0
  %v2462 = vsel %vm2362, %v2209, 0.0
  %v2463 = vsel %vm2363, %v2208, 0.0
  %v2464 = vsel %vm2364, %v2207, 0.0
  %v2465 = vsel %vm2365, %v2206, 0.0
  %v2466 = vsel %vm2366, %v2205, 0.0
  %v2467 = vsel %vm2367, %v2204, 0.0
  %v2468 = vsel %vm2368, %v2203, 0.0
  %v2469 = vsel %vm2369, %v2202, 0.0
  %v2470 = vsel %vm2370, %v2201, 0.0
  %v2471 = vsel %vm2371, %v2200, 0.0
  %v2472 = vsel %vm2372, %v2199, 0.0
  %v2473 = vsel %vm2373, %v2198, 0.0
  %v2474 = vsel %vm2374, %v2197, 0.0
  %v2475 = vsel %vm2375, %v2196, 0.0
  %v2476 = vsel %vm2376, %v2195, 0.0
  %v2477 = vsel %vm2377, %v2194, 0.0
  %v2478 = vsel %vm2378, %v2193, 0.0
  %v2479 = vsel %vm2379, %v2192, 0.0
  %v2480 = vsel %vm2380, %v2191, 0.0
  %v2481 = vsel %vm2381, %v2190, 0.0
  %v2482 = vsel %vm2382, %v2189, 0.0
  %v2483 = vsel %vm2383, %v2188, 0.0
  %v2484 = vsel %vm2384, %v2187, 0.0
  %v2485 = vsel %vm2385, %v2186, 0.0
  %v2486 = vsel %vm2386, %v2185, 0.0
  %v2487 = vsel %vm2387, %v2184, 0.0
  %v2488 = vsel %vm2388, %v2183, 0.0
  %v2489 = vsel %vm2389, %v2182, 0.0
  %v2490 = vsel %vm2390, %v2181, 0.0
  %v2491 = vsel %vm2391, %v2180, 0.0
  %v2492 = vsel %vm2392, %v2179, 0.0
  %v2493 = vsel %vm2393, %v2178, 0.0
  %v2494 = vsel %vm2394, %v2177, 0.0
  %v2495 = vsel %vm2395, %v2176, 0.0
  %v2496 = vsel %vm2396, %v2175, 0.0
  %v2497 = vsel %vm2397, %v2174, 0.0
  %v2498 = vsel %vm2398, %v2173, 0.0
  %v2499 = vsel %vm2399, %v2172, 0.0
  %v2500 = vsel %vm2400, %v2171, 0.0
  %v2501 = vsel %vm2401, %v2170, 0.0
  %v2502 = vsel %vm2402, %v2169, 0.0
  %v2503 = vsel %vm2403, %v2168, 0.0
  %v2504 = vsel %vm2404, %v2167, 0.0
  %v2505 = vsel %vm2405, %v2166, 0.0
  %v2506 = vsel %vm2406, %v2165, 0.0
  %v2507 = vsel %vm2407, %v2164, 0.0
  %v2508 = vsel %vm2408, %v2163, 0.0
  %v2509 = vsel %vm2409, %v2162, 0.0
  %v2510 = vsel %vm2410, %v2161, 0.0
  %v2511 = vsel %vm2411, %v2160, 0.0
  %v2512 = vsel %vm2412, %v2159, 0.0
  %v2513 = vsel %vm2413, %v2158, 0.0
  %v2514 = vsel %vm2414, %v2157, 0.0
  %v2515 = vsel %vm2415, %v2156, 0.0
  %v2516 = vsel %vm2416, %v2155, 0.0
  %v2517 = vsel %vm2417, %v2154, 0.0
  %v2518 = vsel %vm2418, %v2153, 0.0
  %v2519 = vsel %vm2419, %v2152, 0.0
  %v2520 = vsel %vm2420, %v2151, 0.0
  %v2521 = vsel %vm2421, %v2150, 0.0
  %v2522 = vsel %vm2422, %v2149, 0.0
  %v2523 = vsel %vm2423, %v2148, 0.0
  %v2524 = vsel %vm2424, %v2147, 0.0
  %v2525 = vsel %vm2425, %v2146, 0.0
  %v2526 = vsel %vm2426, %v2145, 0.0
  %v2527 = vsel %vm2427, %v2144, 0.0
  %v2528 = vsel %vm2428, %v2143, 0.0
  %v2529 = vsel %vm2429, %v2142, 0.0
  %v2530 = vsel %vm2430, %v2141, 0.0
  %v2531 = vsel %vm2431, %v2140, 0.0
  %v2532 = vsel %vm2432, %v2139, 0.0
  %v2533 = vsel %vm2433, %v2138, 0.0
  %v2534 = vsel %vm2434, %v2137, 0.0
  %v2535 = vsel %vm2435, %v2136, 0.0
  %v2536 = vrot.slane %v1935, 1
  %v2537 = vrot.slane %v1936, 1
  %v2538 = vrot.slane %v1937, 1
  %v2539 = vrot.slane %v1938, 1
  %v2540 = vrot.slane %v1939, 1
  %v2541 = vrot.slane %v1940, 1
  %v2542 = vrot.slane %v1941, 1
  %v2543 = vrot.slane %v1942, 1
  %v2544 = vrot.slane %v1943, 1
  %v2545 = vrot.slane %v1944, 1
  %v2546 = vrot.slane %v1945, 1
  %v2547 = vrot.slane %v1946, 1
  %v2548 = vrot.slane %v1947, 1
  %v2549 = vrot.slane %v1948, 1
  %v2550 = vrot.slane %v1949, 1
  %v2551 = vrot.slane %v1950, 1
  %v2552 = vrot.slane %v1951, 1
  %v2553 = vrot.slane %v1952, 1
  %v2554 = vrot.slane %v1953, 1
  %v2555 = vrot.slane %v1954, 1
  %v2556 = vrot.slane %v1955, 1
  %v2557 = vrot.slane %v1956, 1
  %v2558 = vrot.slane %v1957, 1
  %v2559 = vrot.slane %v1958, 1
  %v2560 = vrot.slane %v1959, 1
  %v2561 = vrot.slane %v1960, 1
  %v2562 = vrot.slane %v1961, 1
  %v2563 = vrot.slane %v1962, 1
  %v2564 = vrot.slane %v1963, 1
  %v2565 = vrot.slane %v1964, 1
  %v2566 = vrot.slane %v1965, 1
  %v2567 = vrot.slane %v1966, 1
  %v2568 = vrot.slane %v1967, 1
  %v2569 = vrot.slane %v1968, 1
  %v2570 = vrot.slane %v1969, 1
  %v2571 = vrot.slane %v1970, 1
  %v2572 = vrot.slane %v1971, 1
  %v2573 = vrot.slane %v1972, 1
  %v2574 = vrot.slane %v1973, 1
  %v2575 = vrot.slane %v1974, 1
  %v2576 = vrot.slane %v1975, 1
  %v2577 = vrot.slane %v1976, 1
  %v2578 = vrot.slane %v1977, 1
  %v2579 = vrot.slane %v1978, 1
  %v2580 = vrot.slane %v1979, 1
  %v2581 = vrot.slane %v1980, 1
  %v2582 = vrot.slane %v1981, 1
  %v2583 = vrot.slane %v1982, 1
  %v2584 = vrot.slane %v1983, 1
  %v2585 = vrot.slane %v1984, 1
  %v2586 = vrot.slane %v1985, 1
  %v2587 = vrot.slane %v1986, 1
  %v2588 = vrot.slane %v1987, 1
  %v2589 = vrot.slane %v1988, 1
  %v2590 = vrot.slane %v1989, 1
  %v2591 = vrot.slane %v1990, 1
  %v2592 = vrot.slane %v1991, 1
  %v2593 = vrot.slane %v1992, 1
  %v2594 = vrot.slane %v1993, 1
  %v2595 = vrot.slane %v1994, 1
  %v2596 = vrot.slane %v1995, 1
  %v2597 = vrot.slane %v1996, 1
  %v2598 = vrot.slane %v1997, 1
  %v2599 = vrot.slane %v1998, 1
  %v2600 = vrot.slane %v1999, 1
  %v2601 = vrot.slane %v2000, 1
  %v2602 = vrot.slane %v2001, 1
  %v2603 = vrot.slane %v2002, 1
  %v2604 = vrot.slane %v2003, 1
  %v2605 = vrot.slane %v2004, 1
  %v2606 = vrot.slane %v2005, 1
  %v2607 = vrot.slane %v2006, 1
  %v2608 = vrot.slane %v2007, 1
  %v2609 = vrot.slane %v2008, 1
  %v2610 = vrot.slane %v2009, 1
  %v2611 = vrot.slane %v2010, 1
  %v2612 = vrot.slane %v2011, 1
  %v2613 = vrot.slane %v2012, 1
  %v2614 = vrot.slane %v2013, 1
  %v2615 = vrot.slane %v2014, 1
  %v2616 = vrot.slane %v2015, 1
  %v2617 = vrot.slane %v2016, 1
  %v2618 = vrot.slane %v2017, 1
  %v2619 = vrot.slane %v2018, 1
  %v2620 = vrot.slane %v2019, 1
  %v2621 = vrot.slane %v2020, 1
  %v2622 = vrot.slane %v2021, 1
  %v2623 = vrot.slane %v2022, 1
  %v2624 = vrot.slane %v2023, 1
  %v2625 = vrot.slane %v2024, 1
  %v2626 = vrot.slane %v2025, 1
  %v2627 = vrot.slane %v2026, 1
  %v2628 = vrot.slane %v2027, 1
  %v2629 = vrot.slane %v2028, 1
  %v2630 = vrot.slane %v2029, 1
  %v2631 = vrot.slane %v2030, 1
  %v2632 = vrot.slane %v2031, 1
  %v2633 = vrot.slane %v2032, 1
  %v2634 = vrot.slane %v2033, 1
  %v2635 = vrot.slane %v2034, 1
  %vm2636 = vcmp.lt.s32.totalorder %v35, 7
  %v2637 = vsel %vm2636, %v2634, %v2635
  %v2638 = vsel %vm2636, %v2633, %v2634
  %v2639 = vsel %vm2636, %v2632, %v2633
  %v2640 = vsel %vm2636, %v2631, %v2632
  %v2641 = vsel %vm2636, %v2630, %v2631
  %v2642 = vsel %vm2636, %v2629, %v2630
  %v2643 = vsel %vm2636, %v2628, %v2629
  %v2644 = vsel %vm2636, %v2627, %v2628
  %v2645 = vsel %vm2636, %v2626, %v2627
  %v2646 = vsel %vm2636, %v2625, %v2626
  %v2647 = vsel %vm2636, %v2624, %v2625
  %v2648 = vsel %vm2636, %v2623, %v2624
  %v2649 = vsel %vm2636, %v2622, %v2623
  %v2650 = vsel %vm2636, %v2621, %v2622
  %v2651 = vsel %vm2636, %v2620, %v2621
  %v2652 = vsel %vm2636, %v2619, %v2620
  %v2653 = vsel %vm2636, %v2618, %v2619
  %v2654 = vsel %vm2636, %v2617, %v2618
  %v2655 = vsel %vm2636, %v2616, %v2617
  %v2656 = vsel %vm2636, %v2615, %v2616
  %v2657 = vsel %vm2636, %v2614, %v2615
  %v2658 = vsel %vm2636, %v2613, %v2614
  %v2659 = vsel %vm2636, %v2612, %v2613
  %v2660 = vsel %vm2636, %v2611, %v2612
  %v2661 = vsel %vm2636, %v2610, %v2611
  %v2662 = vsel %vm2636, %v2609, %v2610
  %v2663 = vsel %vm2636, %v2608, %v2609
  %v2664 = vsel %vm2636, %v2607, %v2608
  %v2665 = vsel %vm2636, %v2606, %v2607
  %v2666 = vsel %vm2636, %v2605, %v2606
  %v2667 = vsel %vm2636, %v2604, %v2605
  %v2668 = vsel %vm2636, %v2603, %v2604
  %v2669 = vsel %vm2636, %v2602, %v2603
  %v2670 = vsel %vm2636, %v2601, %v2602
  %v2671 = vsel %vm2636, %v2600, %v2601
  %v2672 = vsel %vm2636, %v2599, %v2600
  %v2673 = vsel %vm2636, %v2598, %v2599
  %v2674 = vsel %vm2636, %v2597, %v2598
  %v2675 = vsel %vm2636, %v2596, %v2597
  %v2676 = vsel %vm2636, %v2595, %v2596
  %v2677 = vsel %vm2636, %v2594, %v2595
  %v2678 = vsel %vm2636, %v2593, %v2594
  %v2679 = vsel %vm2636, %v2592, %v2593
  %v2680 = vsel %vm2636, %v2591, %v2592
  %v2681 = vsel %vm2636, %v2590, %v2591
  %v2682 = vsel %vm2636, %v2589, %v2590
  %v2683 = vsel %vm2636, %v2588, %v2589
  %v2684 = vsel %vm2636, %v2587, %v2588
  %v2685 = vsel %vm2636, %v2586, %v2587
  %v2686 = vsel %vm2636, %v2585, %v2586
  %v2687 = vsel %vm2636, %v2584, %v2585
  %v2688 = vsel %vm2636, %v2583, %v2584
  %v2689 = vsel %vm2636, %v2582, %v2583
  %v2690 = vsel %vm2636, %v2581, %v2582
  %v2691 = vsel %vm2636, %v2580, %v2581
  %v2692 = vsel %vm2636, %v2579, %v2580
  %v2693 = vsel %vm2636, %v2578, %v2579
  %v2694 = vsel %vm2636, %v2577, %v2578
  %v2695 = vsel %vm2636, %v2576, %v2577
  %v2696 = vsel %vm2636, %v2575, %v2576
  %v2697 = vsel %vm2636, %v2574, %v2575
  %v2698 = vsel %vm2636, %v2573, %v2574
  %v2699 = vsel %vm2636, %v2572, %v2573
  %v2700 = vsel %vm2636, %v2571, %v2572
  %v2701 = vsel %vm2636, %v2570, %v2571
  %v2702 = vsel %vm2636, %v2569, %v2570
  %v2703 = vsel %vm2636, %v2568, %v2569
  %v2704 = vsel %vm2636, %v2567, %v2568
  %v2705 = vsel %vm2636, %v2566, %v2567
  %v2706 = vsel %vm2636, %v2565, %v2566
  %v2707 = vsel %vm2636, %v2564, %v2565
  %v2708 = vsel %vm2636, %v2563, %v2564
  %v2709 = vsel %vm2636, %v2562, %v2563
  %v2710 = vsel %vm2636, %v2561, %v2562
  %v2711 = vsel %vm2636, %v2560, %v2561
  %v2712 = vsel %vm2636, %v2559, %v2560
  %v2713 = vsel %vm2636, %v2558, %v2559
  %v2714 = vsel %vm2636, %v2557, %v2558
  %v2715 = vsel %vm2636, %v2556, %v2557
  %v2716 = vsel %vm2636, %v2555, %v2556
  %v2717 = vsel %vm2636, %v2554, %v2555
  %v2718 = vsel %vm2636, %v2553, %v2554
  %v2719 = vsel %vm2636, %v2552, %v2553
  %v2720 = vsel %vm2636, %v2551, %v2552
  %v2721 = vsel %vm2636, %v2550, %v2551
  %v2722 = vsel %vm2636, %v2549, %v2550
  %v2723 = vsel %vm2636, %v2548, %v2549
  %v2724 = vsel %vm2636, %v2547, %v2548
  %v2725 = vsel %vm2636, %v2546, %v2547
  %v2726 = vsel %vm2636, %v2545, %v2546
  %v2727 = vsel %vm2636, %v2544, %v2545
  %v2728 = vsel %vm2636, %v2543, %v2544
  %v2729 = vsel %vm2636, %v2542, %v2543
  %v2730 = vsel %vm2636, %v2541, %v2542
  %v2731 = vsel %vm2636, %v2540, %v2541
  %v2732 = vsel %vm2636, %v2539, %v2540
  %v2733 = vsel %vm2636, %v2538, %v2539
  %v2734 = vsel %vm2636, %v2537, %v2538
  %v2735 = vsel %vm2636, %v2536, %v2537
  %v2736 = vsel %vm2636, %v2635, %v2536
  %v2737 = vsel %vm1835, 1, 0
  %v2738 = vsel %vm1836, 1, 0
  %v2739 = vsel %vm1837, 1, 0
  %v2740 = vsel %vm1838, 1, 0
  %v2741 = vsel %vm1839, 1, 0
  %v2742 = vsel %vm1840, 1, 0
  %v2743 = vsel %vm1841, 1, 0
  %v2744 = vsel %vm1842, 1, 0
  %v2745 = vsel %vm1843, 1, 0
  %v2746 = vsel %vm1844, 1, 0
  %v2747 = vsel %vm1845, 1, 0
  %v2748 = vsel %vm1846, 1, 0
  %v2749 = vsel %vm1847, 1, 0
  %v2750 = vsel %vm1848, 1, 0
  %v2751 = vsel %vm1849, 1, 0
  %v2752 = vsel %vm1850, 1, 0
  %v2753 = vsel %vm1851, 1, 0
  %v2754 = vsel %vm1852, 1, 0
  %v2755 = vsel %vm1853, 1, 0
  %v2756 = vsel %vm1854, 1, 0
  %v2757 = vsel %vm1855, 1, 0
  %v2758 = vsel %vm1856, 1, 0
  %v2759 = vsel %vm1857, 1, 0
  %v2760 = vsel %vm1858, 1, 0
  %v2761 = vsel %vm1859, 1, 0
  %v2762 = vsel %vm1860, 1, 0
  %v2763 = vsel %vm1861, 1, 0
  %v2764 = vsel %vm1862, 1, 0
  %v2765 = vsel %vm1863, 1, 0
  %v2766 = vsel %vm1864, 1, 0
  %v2767 = vsel %vm1865, 1, 0
  %v2768 = vsel %vm1866, 1, 0
  %v2769 = vsel %vm1867, 1, 0
  %v2770 = vsel %vm1868, 1, 0
  %v2771 = vsel %vm1869, 1, 0
  %v2772 = vsel %vm1870, 1, 0
  %v2773 = vsel %vm1871, 1, 0
  %v2774 = vsel %vm1872, 1, 0
  %v2775 = vsel %vm1873, 1, 0
  %v2776 = vsel %vm1874, 1, 0
  %v2777 = vsel %vm1875, 1, 0
  %v2778 = vsel %vm1876, 1, 0
  %v2779 = vsel %vm1877, 1, 0
  %v2780 = vsel %vm1878, 1, 0
  %v2781 = vsel %vm1879, 1, 0
  %v2782 = vsel %vm1880, 1, 0
  %v2783 = vsel %vm1881, 1, 0
  %v2784 = vsel %vm1882, 1, 0
  %v2785 = vsel %vm1883, 1, 0
  %v2786 = vsel %vm1884, 1, 0
  %v2787 = vsel %vm1885, 1, 0
  %v2788 = vsel %vm1886, 1, 0
  %v2789 = vsel %vm1887, 1, 0
  %v2790 = vsel %vm1888, 1, 0
  %v2791 = vsel %vm1889, 1, 0
  %v2792 = vsel %vm1890, 1, 0
  %v2793 = vsel %vm1891, 1, 0
  %v2794 = vsel %vm1892, 1, 0
  %v2795 = vsel %vm1893, 1, 0
  %v2796 = vsel %vm1894, 1, 0
  %v2797 = vsel %vm1895, 1, 0
  %v2798 = vsel %vm1896, 1, 0
  %v2799 = vsel %vm1897, 1, 0
  %v2800 = vsel %vm1898, 1, 0
  %v2801 = vsel %vm1899, 1, 0
  %v2802 = vsel %vm1900, 1, 0
  %v2803 = vsel %vm1901, 1, 0
  %v2804 = vsel %vm1902, 1, 0
  %v2805 = vsel %vm1903, 1, 0
  %v2806 = vsel %vm1904, 1, 0
  %v2807 = vsel %vm1905, 1, 0
  %v2808 = vsel %vm1906, 1, 0
  %v2809 = vsel %vm1907, 1, 0
  %v2810 = vsel %vm1908, 1, 0
  %v2811 = vsel %vm1909, 1, 0
  %v2812 = vsel %vm1910, 1, 0
  %v2813 = vsel %vm1911, 1, 0
  %v2814 = vsel %vm1912, 1, 0
  %v2815 = vsel %vm1913, 1, 0
  %v2816 = vsel %vm1914, 1, 0
  %v2817 = vsel %vm1915, 1, 0
  %v2818 = vsel %vm1916, 1, 0
  %v2819 = vsel %vm1917, 1, 0
  %v2820 = vsel %vm1918, 1, 0
  %v2821 = vsel %vm1919, 1, 0
  %v2822 = vsel %vm1920, 1, 0
  %v2823 = vsel %vm1921, 1, 0
  %v2824 = vsel %vm1922, 1, 0
  %v2825 = vsel %vm1923, 1, 0
  %v2826 = vsel %vm1924, 1, 0
  %v2827 = vsel %vm1925, 1, 0
  %v2828 = vsel %vm1926, 1, 0
  %v2829 = vsel %vm1927, 1, 0
  %v2830 = vsel %vm1928, 1, 0
  %v2831 = vsel %vm1929, 1, 0
  %v2832 = vsel %vm1930, 1, 0
  %v2833 = vsel %vm1931, 1, 0
  %v2834 = vsel %vm1932, 1, 0
  %v2835 = vsel %vm1933, 1, 0
  %v2836 = vsel %vm1934, 1, 0
  %vm2837 = vcmp.eq.s32.totalorder %v2737, 1
  %vm2838 = vcmp.eq.s32.totalorder %v2738, 1
  %vm2839 = vcmp.eq.s32.totalorder %v2739, 1
  %vm2840 = vcmp.eq.s32.totalorder %v2740, 1
  %vm2841 = vcmp.eq.s32.totalorder %v2741, 1
  %vm2842 = vcmp.eq.s32.totalorder %v2742, 1
  %vm2843 = vcmp.eq.s32.totalorder %v2743, 1
  %vm2844 = vcmp.eq.s32.totalorder %v2744, 1
  %vm2845 = vcmp.eq.s32.totalorder %v2745, 1
  %vm2846 = vcmp.eq.s32.totalorder %v2746, 1
  %vm2847 = vcmp.eq.s32.totalorder %v2747, 1
  %vm2848 = vcmp.eq.s32.totalorder %v2748, 1
  %vm2849 = vcmp.eq.s32.totalorder %v2749, 1
  %vm2850 = vcmp.eq.s32.totalorder %v2750, 1
  %vm2851 = vcmp.eq.s32.totalorder %v2751, 1
  %vm2852 = vcmp.eq.s32.totalorder %v2752, 1
  %vm2853 = vcmp.eq.s32.totalorder %v2753, 1
  %vm2854 = vcmp.eq.s32.totalorder %v2754, 1
  %vm2855 = vcmp.eq.s32.totalorder %v2755, 1
  %vm2856 = vcmp.eq.s32.totalorder %v2756, 1
  %vm2857 = vcmp.eq.s32.totalorder %v2757, 1
  %vm2858 = vcmp.eq.s32.totalorder %v2758, 1
  %vm2859 = vcmp.eq.s32.totalorder %v2759, 1
  %vm2860 = vcmp.eq.s32.totalorder %v2760, 1
  %vm2861 = vcmp.eq.s32.totalorder %v2761, 1
  %vm2862 = vcmp.eq.s32.totalorder %v2762, 1
  %vm2863 = vcmp.eq.s32.totalorder %v2763, 1
  %vm2864 = vcmp.eq.s32.totalorder %v2764, 1
  %vm2865 = vcmp.eq.s32.totalorder %v2765, 1
  %vm2866 = vcmp.eq.s32.totalorder %v2766, 1
  %vm2867 = vcmp.eq.s32.totalorder %v2767, 1
  %vm2868 = vcmp.eq.s32.totalorder %v2768, 1
  %vm2869 = vcmp.eq.s32.totalorder %v2769, 1
  %vm2870 = vcmp.eq.s32.totalorder %v2770, 1
  %vm2871 = vcmp.eq.s32.totalorder %v2771, 1
  %vm2872 = vcmp.eq.s32.totalorder %v2772, 1
  %vm2873 = vcmp.eq.s32.totalorder %v2773, 1
  %vm2874 = vcmp.eq.s32.totalorder %v2774, 1
  %vm2875 = vcmp.eq.s32.totalorder %v2775, 1
  %vm2876 = vcmp.eq.s32.totalorder %v2776, 1
  %vm2877 = vcmp.eq.s32.totalorder %v2777, 1
  %vm2878 = vcmp.eq.s32.totalorder %v2778, 1
  %vm2879 = vcmp.eq.s32.totalorder %v2779, 1
  %vm2880 = vcmp.eq.s32.totalorder %v2780, 1
  %vm2881 = vcmp.eq.s32.totalorder %v2781, 1
  %vm2882 = vcmp.eq.s32.totalorder %v2782, 1
  %vm2883 = vcmp.eq.s32.totalorder %v2783, 1
  %vm2884 = vcmp.eq.s32.totalorder %v2784, 1
  %vm2885 = vcmp.eq.s32.totalorder %v2785, 1
  %vm2886 = vcmp.eq.s32.totalorder %v2786, 1
  %vm2887 = vcmp.eq.s32.totalorder %v2787, 1
  %vm2888 = vcmp.eq.s32.totalorder %v2788, 1
  %vm2889 = vcmp.eq.s32.totalorder %v2789, 1
  %vm2890 = vcmp.eq.s32.totalorder %v2790, 1
  %vm2891 = vcmp.eq.s32.totalorder %v2791, 1
  %vm2892 = vcmp.eq.s32.totalorder %v2792, 1
  %vm2893 = vcmp.eq.s32.totalorder %v2793, 1
  %vm2894 = vcmp.eq.s32.totalorder %v2794, 1
  %vm2895 = vcmp.eq.s32.totalorder %v2795, 1
  %vm2896 = vcmp.eq.s32.totalorder %v2796, 1
  %vm2897 = vcmp.eq.s32.totalorder %v2797, 1
  %vm2898 = vcmp.eq.s32.totalorder %v2798, 1
  %vm2899 = vcmp.eq.s32.totalorder %v2799, 1
  %vm2900 = vcmp.eq.s32.totalorder %v2800, 1
  %vm2901 = vcmp.eq.s32.totalorder %v2801, 1
  %vm2902 = vcmp.eq.s32.totalorder %v2802, 1
  %vm2903 = vcmp.eq.s32.totalorder %v2803, 1
  %vm2904 = vcmp.eq.s32.totalorder %v2804, 1
  %vm2905 = vcmp.eq.s32.totalorder %v2805, 1
  %vm2906 = vcmp.eq.s32.totalorder %v2806, 1
  %vm2907 = vcmp.eq.s32.totalorder %v2807, 1
  %vm2908 = vcmp.eq.s32.totalorder %v2808, 1
  %vm2909 = vcmp.eq.s32.totalorder %v2809, 1
  %vm2910 = vcmp.eq.s32.totalorder %v2810, 1
  %vm2911 = vcmp.eq.s32.totalorder %v2811, 1
  %vm2912 = vcmp.eq.s32.totalorder %v2812, 1
  %vm2913 = vcmp.eq.s32.totalorder %v2813, 1
  %vm2914 = vcmp.eq.s32.totalorder %v2814, 1
  %vm2915 = vcmp.eq.s32.totalorder %v2815, 1
  %vm2916 = vcmp.eq.s32.totalorder %v2816, 1
  %vm2917 = vcmp.eq.s32.totalorder %v2817, 1
  %vm2918 = vcmp.eq.s32.totalorder %v2818, 1
  %vm2919 = vcmp.eq.s32.totalorder %v2819, 1
  %vm2920 = vcmp.eq.s32.totalorder %v2820, 1
  %vm2921 = vcmp.eq.s32.totalorder %v2821, 1
  %vm2922 = vcmp.eq.s32.totalorder %v2822, 1
  %vm2923 = vcmp.eq.s32.totalorder %v2823, 1
  %vm2924 = vcmp.eq.s32.totalorder %v2824, 1
  %vm2925 = vcmp.eq.s32.totalorder %v2825, 1
  %vm2926 = vcmp.eq.s32.totalorder %v2826, 1
  %vm2927 = vcmp.eq.s32.totalorder %v2827, 1
  %vm2928 = vcmp.eq.s32.totalorder %v2828, 1
  %vm2929 = vcmp.eq.s32.totalorder %v2829, 1
  %vm2930 = vcmp.eq.s32.totalorder %v2830, 1
  %vm2931 = vcmp.eq.s32.totalorder %v2831, 1
  %vm2932 = vcmp.eq.s32.totalorder %v2832, 1
  %vm2933 = vcmp.eq.s32.totalorder %v2833, 1
  %vm2934 = vcmp.eq.s32.totalorder %v2834, 1
  %vm2935 = vcmp.eq.s32.totalorder %v2835, 1
  %vm2936 = vcmp.eq.s32.totalorder %v2836, 1
  %v2937 = vsel %vm2837, %v2735, 0.0
  %v2938 = vsel %vm2838, %v2734, 0.0
  %v2939 = vsel %vm2839, %v2733, 0.0
  %v2940 = vsel %vm2840, %v2732, 0.0
  %v2941 = vsel %vm2841, %v2731, 0.0
  %v2942 = vsel %vm2842, %v2730, 0.0
  %v2943 = vsel %vm2843, %v2729, 0.0
  %v2944 = vsel %vm2844, %v2728, 0.0
  %v2945 = vsel %vm2845, %v2727, 0.0
  %v2946 = vsel %vm2846, %v2726, 0.0
  %v2947 = vsel %vm2847, %v2725, 0.0
  %v2948 = vsel %vm2848, %v2724, 0.0
  %v2949 = vsel %vm2849, %v2723, 0.0
  %v2950 = vsel %vm2850, %v2722, 0.0
  %v2951 = vsel %vm2851, %v2721, 0.0
  %v2952 = vsel %vm2852, %v2720, 0.0
  %v2953 = vsel %vm2853, %v2719, 0.0
  %v2954 = vsel %vm2854, %v2718, 0.0
  %v2955 = vsel %vm2855, %v2717, 0.0
  %v2956 = vsel %vm2856, %v2716, 0.0
  %v2957 = vsel %vm2857, %v2715, 0.0
  %v2958 = vsel %vm2858, %v2714, 0.0
  %v2959 = vsel %vm2859, %v2713, 0.0
  %v2960 = vsel %vm2860, %v2712, 0.0
  %v2961 = vsel %vm2861, %v2711, 0.0
  %v2962 = vsel %vm2862, %v2710, 0.0
  %v2963 = vsel %vm2863, %v2709, 0.0
  %v2964 = vsel %vm2864, %v2708, 0.0
  %v2965 = vsel %vm2865, %v2707, 0.0
  %v2966 = vsel %vm2866, %v2706, 0.0
  %v2967 = vsel %vm2867, %v2705, 0.0
  %v2968 = vsel %vm2868, %v2704, 0.0
  %v2969 = vsel %vm2869, %v2703, 0.0
  %v2970 = vsel %vm2870, %v2702, 0.0
  %v2971 = vsel %vm2871, %v2701, 0.0
  %v2972 = vsel %vm2872, %v2700, 0.0
  %v2973 = vsel %vm2873, %v2699, 0.0
  %v2974 = vsel %vm2874, %v2698, 0.0
  %v2975 = vsel %vm2875, %v2697, 0.0
  %v2976 = vsel %vm2876, %v2696, 0.0
  %v2977 = vsel %vm2877, %v2695, 0.0
  %v2978 = vsel %vm2878, %v2694, 0.0
  %v2979 = vsel %vm2879, %v2693, 0.0
  %v2980 = vsel %vm2880, %v2692, 0.0
  %v2981 = vsel %vm2881, %v2691, 0.0
  %v2982 = vsel %vm2882, %v2690, 0.0
  %v2983 = vsel %vm2883, %v2689, 0.0
  %v2984 = vsel %vm2884, %v2688, 0.0
  %v2985 = vsel %vm2885, %v2687, 0.0
  %v2986 = vsel %vm2886, %v2686, 0.0
  %v2987 = vsel %vm2887, %v2685, 0.0
  %v2988 = vsel %vm2888, %v2684, 0.0
  %v2989 = vsel %vm2889, %v2683, 0.0
  %v2990 = vsel %vm2890, %v2682, 0.0
  %v2991 = vsel %vm2891, %v2681, 0.0
  %v2992 = vsel %vm2892, %v2680, 0.0
  %v2993 = vsel %vm2893, %v2679, 0.0
  %v2994 = vsel %vm2894, %v2678, 0.0
  %v2995 = vsel %vm2895, %v2677, 0.0
  %v2996 = vsel %vm2896, %v2676, 0.0
  %v2997 = vsel %vm2897, %v2675, 0.0
  %v2998 = vsel %vm2898, %v2674, 0.0
  %v2999 = vsel %vm2899, %v2673, 0.0
  %v3000 = vsel %vm2900, %v2672, 0.0
  %v3001 = vsel %vm2901, %v2671, 0.0
  %v3002 = vsel %vm2902, %v2670, 0.0
  %v3003 = vsel %vm2903, %v2669, 0.0
  %v3004 = vsel %vm2904, %v2668, 0.0
  %v3005 = vsel %vm2905, %v2667, 0.0
  %v3006 = vsel %vm2906, %v2666, 0.0
  %v3007 = vsel %vm2907, %v2665, 0.0
  %v3008 = vsel %vm2908, %v2664, 0.0
  %v3009 = vsel %vm2909, %v2663, 0.0
  %v3010 = vsel %vm2910, %v2662, 0.0
  %v3011 = vsel %vm2911, %v2661, 0.0
  %v3012 = vsel %vm2912, %v2660, 0.0
  %v3013 = vsel %vm2913, %v2659, 0.0
  %v3014 = vsel %vm2914, %v2658, 0.0
  %v3015 = vsel %vm2915, %v2657, 0.0
  %v3016 = vsel %vm2916, %v2656, 0.0
  %v3017 = vsel %vm2917, %v2655, 0.0
  %v3018 = vsel %vm2918, %v2654, 0.0
  %v3019 = vsel %vm2919, %v2653, 0.0
  %v3020 = vsel %vm2920, %v2652, 0.0
  %v3021 = vsel %vm2921, %v2651, 0.0
  %v3022 = vsel %vm2922, %v2650, 0.0
  %v3023 = vsel %vm2923, %v2649, 0.0
  %v3024 = vsel %vm2924, %v2648, 0.0
  %v3025 = vsel %vm2925, %v2647, 0.0
  %v3026 = vsel %vm2926, %v2646, 0.0
  %v3027 = vsel %vm2927, %v2645, 0.0
  %v3028 = vsel %vm2928, %v2644, 0.0
  %v3029 = vsel %vm2929, %v2643, 0.0
  %v3030 = vsel %vm2930, %v2642, 0.0
  %v3031 = vsel %vm2931, %v2641, 0.0
  %v3032 = vsel %vm2932, %v2640, 0.0
  %v3033 = vsel %vm2933, %v2639, 0.0
  %v3034 = vsel %vm2934, %v2638, 0.0
  %v3035 = vsel %vm2935, %v2637, 0.0
  %v3036 = vsel %vm2936, %v2736, 0.0
  %3137 = vrot.lane.b32.xlu0 %v1935, 43
  %v3138 = vpop.permute.xlu0 %3137
  %3139 = vrot.lane.b32.xlu0 %v1936, 43
  %v3140 = vpop.permute.xlu0 %3139
  %3141 = vrot.lane.b32.xlu0 %v1937, 43
  %v3142 = vpop.permute.xlu0 %3141
  %3143 = vrot.lane.b32.xlu0 %v1938, 43
  %v3144 = vpop.permute.xlu0 %3143
  %3145 = vrot.lane.b32.xlu0 %v1939, 43
  %v3146 = vpop.permute.xlu0 %3145
  %3147 = vrot.lane.b32.xlu0 %v1940, 43
  %v3148 = vpop.permute.xlu0 %3147
  %3149 = vrot.lane.b32.xlu0 %v1941, 43
  %v3150 = vpop.permute.xlu0 %3149
  %3151 = vrot.lane.b32.xlu0 %v1942, 43
  %v3152 = vpop.permute.xlu0 %3151
  %3153 = vrot.lane.b32.xlu0 %v1943, 43
  %v3154 = vpop.permute.xlu0 %3153
  %3155 = vrot.lane.b32.xlu0 %v1944, 43
  %v3156 = vpop.permute.xlu0 %3155
  %3157 = vrot.lane.b32.xlu0 %v1945, 43
  %v3158 = vpop.permute.xlu0 %3157
  %3159 = vrot.lane.b32.xlu0 %v1946, 43
  %v3160 = vpop.permute.xlu0 %3159
  %3161 = vrot.lane.b32.xlu0 %v1947, 43
  %v3162 = vpop.permute.xlu0 %3161
  %3163 = vrot.lane.b32.xlu0 %v1948, 43
  %v3164 = vpop.permute.xlu0 %3163
  %3165 = vrot.lane.b32.xlu0 %v1949, 43
  %v3166 = vpop.permute.xlu0 %3165
  %3167 = vrot.lane.b32.xlu0 %v1950, 43
  %v3168 = vpop.permute.xlu0 %3167
  %3169 = vrot.lane.b32.xlu0 %v1951, 43
  %v3170 = vpop.permute.xlu0 %3169
  %3171 = vrot.lane.b32.xlu0 %v1952, 43
  %v3172 = vpop.permute.xlu0 %3171
  %3173 = vrot.lane.b32.xlu0 %v1953, 43
  %v3174 = vpop.permute.xlu0 %3173
  %3175 = vrot.lane.b32.xlu0 %v1954, 43
  %v3176 = vpop.permute.xlu0 %3175
  %3177 = vrot.lane.b32.xlu0 %v1955, 43
  %v3178 = vpop.permute.xlu0 %3177
  %3179 = vrot.lane.b32.xlu0 %v1956, 43
  %v3180 = vpop.permute.xlu0 %3179
  %3181 = vrot.lane.b32.xlu0 %v1957, 43
  %v3182 = vpop.permute.xlu0 %3181
  %3183 = vrot.lane.b32.xlu0 %v1958, 43
  %v3184 = vpop.permute.xlu0 %3183
  %3185 = vrot.lane.b32.xlu0 %v1959, 43
  %v3186 = vpop.permute.xlu0 %3185
  %3187 = vrot.lane.b32.xlu0 %v1960, 43
  %v3188 = vpop.permute.xlu0 %3187
  %3189 = vrot.lane.b32.xlu0 %v1961, 43
  %v3190 = vpop.permute.xlu0 %3189
  %3191 = vrot.lane.b32.xlu0 %v1962, 43
  %v3192 = vpop.permute.xlu0 %3191
  %3193 = vrot.lane.b32.xlu0 %v1963, 43
  %v3194 = vpop.permute.xlu0 %3193
  %3195 = vrot.lane.b32.xlu0 %v1964, 43
  %v3196 = vpop.permute.xlu0 %3195
  %3197 = vrot.lane.b32.xlu0 %v1965, 43
  %v3198 = vpop.permute.xlu0 %3197
  %3199 = vrot.lane.b32.xlu0 %v1966, 43
  %v3200 = vpop.permute.xlu0 %3199
  %3201 = vrot.lane.b32.xlu0 %v1967, 43
  %v3202 = vpop.permute.xlu0 %3201
  %3203 = vrot.lane.b32.xlu0 %v1968, 43
  %v3204 = vpop.permute.xlu0 %3203
  %3205 = vrot.lane.b32.xlu0 %v1969, 43
  %v3206 = vpop.permute.xlu0 %3205
  %3207 = vrot.lane.b32.xlu0 %v1970, 43
  %v3208 = vpop.permute.xlu0 %3207
  %3209 = vrot.lane.b32.xlu0 %v1971, 43
  %v3210 = vpop.permute.xlu0 %3209
  %3211 = vrot.lane.b32.xlu0 %v1972, 43
  %v3212 = vpop.permute.xlu0 %3211
  %3213 = vrot.lane.b32.xlu0 %v1973, 43
  %v3214 = vpop.permute.xlu0 %3213
  %3215 = vrot.lane.b32.xlu0 %v1974, 43
  %v3216 = vpop.permute.xlu0 %3215
  %3217 = vrot.lane.b32.xlu0 %v1975, 43
  %v3218 = vpop.permute.xlu0 %3217
  %3219 = vrot.lane.b32.xlu0 %v1976, 43
  %v3220 = vpop.permute.xlu0 %3219
  %3221 = vrot.lane.b32.xlu0 %v1977, 43
  %v3222 = vpop.permute.xlu0 %3221
  %3223 = vrot.lane.b32.xlu0 %v1978, 43
  %v3224 = vpop.permute.xlu0 %3223
  %3225 = vrot.lane.b32.xlu0 %v1979, 43
  %v3226 = vpop.permute.xlu0 %3225
  %3227 = vrot.lane.b32.xlu0 %v1980, 43
  %v3228 = vpop.permute.xlu0 %3227
  %3229 = vrot.lane.b32.xlu0 %v1981, 43
  %v3230 = vpop.permute.xlu0 %3229
  %3231 = vrot.lane.b32.xlu0 %v1982, 43
  %v3232 = vpop.permute.xlu0 %3231
  %3233 = vrot.lane.b32.xlu0 %v1983, 43
  %v3234 = vpop.permute.xlu0 %3233
  %3235 = vrot.lane.b32.xlu0 %v1984, 43
  %v3236 = vpop.permute.xlu0 %3235
  %3237 = vrot.lane.b32.xlu0 %v1985, 43
  %v3238 = vpop.permute.xlu0 %3237
  %3239 = vrot.lane.b32.xlu0 %v1986, 43
  %v3240 = vpop.permute.xlu0 %3239
  %3241 = vrot.lane.b32.xlu0 %v1987, 43
  %v3242 = vpop.permute.xlu0 %3241
  %3243 = vrot.lane.b32.xlu0 %v1988, 43
  %v3244 = vpop.permute.xlu0 %3243
  %3245 = vrot.lane.b32.xlu0 %v1989, 43
  %v3246 = vpop.permute.xlu0 %3245
  %3247 = vrot.lane.b32.xlu0 %v1990, 43
  %v3248 = vpop.permute.xlu0 %3247
  %3249 = vrot.lane.b32.xlu0 %v1991, 43
  %v3250 = vpop.permute.xlu0 %3249
  %3251 = vrot.lane.b32.xlu0 %v1992, 43
  %v3252 = vpop.permute.xlu0 %3251
  %3253 = vrot.lane.b32.xlu0 %v1993, 43
  %v3254 = vpop.permute.xlu0 %3253
  %3255 = vrot.lane.b32.xlu0 %v1994, 43
  %v3256 = vpop.permute.xlu0 %3255
  %3257 = vrot.lane.b32.xlu0 %v1995, 43
  %v3258 = vpop.permute.xlu0 %3257
  %3259 = vrot.lane.b32.xlu0 %v1996, 43
  %v3260 = vpop.permute.xlu0 %3259
  %3261 = vrot.lane.b32.xlu0 %v1997, 43
  %v3262 = vpop.permute.xlu0 %3261
  %3263 = vrot.lane.b32.xlu0 %v1998, 43
  %v3264 = vpop.permute.xlu0 %3263
  %3265 = vrot.lane.b32.xlu0 %v1999, 43
  %v3266 = vpop.permute.xlu0 %3265
  %3267 = vrot.lane.b32.xlu0 %v2000, 43
  %v3268 = vpop.permute.xlu0 %3267
  %3269 = vrot.lane.b32.xlu0 %v2001, 43
  %v3270 = vpop.permute.xlu0 %3269
  %3271 = vrot.lane.b32.xlu0 %v2002, 43
  %v3272 = vpop.permute.xlu0 %3271
  %3273 = vrot.lane.b32.xlu0 %v2003, 43
  %v3274 = vpop.permute.xlu0 %3273
  %3275 = vrot.lane.b32.xlu0 %v2004, 43
  %v3276 = vpop.permute.xlu0 %3275
  %3277 = vrot.lane.b32.xlu0 %v2005, 43
  %v3278 = vpop.permute.xlu0 %3277
  %3279 = vrot.lane.b32.xlu0 %v2006, 43
  %v3280 = vpop.permute.xlu0 %3279
  %3281 = vrot.lane.b32.xlu0 %v2007, 43
  %v3282 = vpop.permute.xlu0 %3281
  %3283 = vrot.lane.b32.xlu0 %v2008, 43
  %v3284 = vpop.permute.xlu0 %3283
  %3285 = vrot.lane.b32.xlu0 %v2009, 43
  %v3286 = vpop.permute.xlu0 %3285
  %3287 = vrot.lane.b32.xlu0 %v2010, 43
  %v3288 = vpop.permute.xlu0 %3287
  %3289 = vrot.lane.b32.xlu0 %v2011, 43
  %v3290 = vpop.permute.xlu0 %3289
  %3291 = vrot.lane.b32.xlu0 %v2012, 43
  %v3292 = vpop.permute.xlu0 %3291
  %3293 = vrot.lane.b32.xlu0 %v2013, 43
  %v3294 = vpop.permute.xlu0 %3293
  %3295 = vrot.lane.b32.xlu0 %v2014, 43
  %v3296 = vpop.permute.xlu0 %3295
  %3297 = vrot.lane.b32.xlu0 %v2015, 43
  %v3298 = vpop.permute.xlu0 %3297
  %3299 = vrot.lane.b32.xlu0 %v2016, 43
  %v3300 = vpop.permute.xlu0 %3299
  %3301 = vrot.lane.b32.xlu0 %v2017, 43
  %v3302 = vpop.permute.xlu0 %3301
  %3303 = vrot.lane.b32.xlu0 %v2018, 43
  %v3304 = vpop.permute.xlu0 %3303
  %3305 = vrot.lane.b32.xlu0 %v2019, 43
  %v3306 = vpop.permute.xlu0 %3305
  %3307 = vrot.lane.b32.xlu0 %v2020, 43
  %v3308 = vpop.permute.xlu0 %3307
  %3309 = vrot.lane.b32.xlu0 %v2021, 43
  %v3310 = vpop.permute.xlu0 %3309
  %3311 = vrot.lane.b32.xlu0 %v2022, 43
  %v3312 = vpop.permute.xlu0 %3311
  %3313 = vrot.lane.b32.xlu0 %v2023, 43
  %v3314 = vpop.permute.xlu0 %3313
  %3315 = vrot.lane.b32.xlu0 %v2024, 43
  %v3316 = vpop.permute.xlu0 %3315
  %3317 = vrot.lane.b32.xlu0 %v2025, 43
  %v3318 = vpop.permute.xlu0 %3317
  %3319 = vrot.lane.b32.xlu0 %v2026, 43
  %v3320 = vpop.permute.xlu0 %3319
  %3321 = vrot.lane.b32.xlu0 %v2027, 43
  %v3322 = vpop.permute.xlu0 %3321
  %3323 = vrot.lane.b32.xlu0 %v2028, 43
  %v3324 = vpop.permute.xlu0 %3323
  %3325 = vrot.lane.b32.xlu0 %v2029, 43
  %v3326 = vpop.permute.xlu0 %3325
  %3327 = vrot.lane.b32.xlu0 %v2030, 43
  %v3328 = vpop.permute.xlu0 %3327
  %3329 = vrot.lane.b32.xlu0 %v2031, 43
  %v3330 = vpop.permute.xlu0 %3329
  %3331 = vrot.lane.b32.xlu0 %v2032, 43
  %v3332 = vpop.permute.xlu0 %3331
  %3333 = vrot.lane.b32.xlu0 %v2033, 43
  %v3334 = vpop.permute.xlu0 %3333
  %3335 = vrot.lane.b32.xlu0 %v2034, 43
  %v3336 = vpop.permute.xlu0 %3335
  %3537 = vrot.lane.b32.xlu0 %v2937, 86
  %v3538 = vpop.permute.xlu0 %3537
  %3539 = vrot.lane.b32.xlu0 %v2938, 86
  %v3540 = vpop.permute.xlu0 %3539
  %3541 = vrot.lane.b32.xlu0 %v2939, 86
  %v3542 = vpop.permute.xlu0 %3541
  %3543 = vrot.lane.b32.xlu0 %v2940, 86
  %v3544 = vpop.permute.xlu0 %3543
  %3545 = vrot.lane.b32.xlu0 %v2941, 86
  %v3546 = vpop.permute.xlu0 %3545
  %3547 = vrot.lane.b32.xlu0 %v2942, 86
  %v3548 = vpop.permute.xlu0 %3547
  %3549 = vrot.lane.b32.xlu0 %v2943, 86
  %v3550 = vpop.permute.xlu0 %3549
  %3551 = vrot.lane.b32.xlu0 %v2944, 86
  %v3552 = vpop.permute.xlu0 %3551
  %3553 = vrot.lane.b32.xlu0 %v2945, 86
  %v3554 = vpop.permute.xlu0 %3553
  %3555 = vrot.lane.b32.xlu0 %v2946, 86
  %v3556 = vpop.permute.xlu0 %3555
  %3557 = vrot.lane.b32.xlu0 %v2947, 86
  %v3558 = vpop.permute.xlu0 %3557
  %3559 = vrot.lane.b32.xlu0 %v2948, 86
  %v3560 = vpop.permute.xlu0 %3559
  %3561 = vrot.lane.b32.xlu0 %v2949, 86
  %v3562 = vpop.permute.xlu0 %3561
  %3563 = vrot.lane.b32.xlu0 %v2950, 86
  %v3564 = vpop.permute.xlu0 %3563
  %3565 = vrot.lane.b32.xlu0 %v2951, 86
  %v3566 = vpop.permute.xlu0 %3565
  %3567 = vrot.lane.b32.xlu0 %v2952, 86
  %v3568 = vpop.permute.xlu0 %3567
  %3569 = vrot.lane.b32.xlu0 %v2953, 86
  %v3570 = vpop.permute.xlu0 %3569
  %3571 = vrot.lane.b32.xlu0 %v2954, 86
  %v3572 = vpop.permute.xlu0 %3571
  %3573 = vrot.lane.b32.xlu0 %v2955, 86
  %v3574 = vpop.permute.xlu0 %3573
  %3575 = vrot.lane.b32.xlu0 %v2956, 86
  %v3576 = vpop.permute.xlu0 %3575
  %3577 = vrot.lane.b32.xlu0 %v2957, 86
  %v3578 = vpop.permute.xlu0 %3577
  %3579 = vrot.lane.b32.xlu0 %v2958, 86
  %v3580 = vpop.permute.xlu0 %3579
  %3581 = vrot.lane.b32.xlu0 %v2959, 86
  %v3582 = vpop.permute.xlu0 %3581
  %3583 = vrot.lane.b32.xlu0 %v2960, 86
  %v3584 = vpop.permute.xlu0 %3583
  %3585 = vrot.lane.b32.xlu0 %v2961, 86
  %v3586 = vpop.permute.xlu0 %3585
  %3587 = vrot.lane.b32.xlu0 %v2962, 86
  %v3588 = vpop.permute.xlu0 %3587
  %3589 = vrot.lane.b32.xlu0 %v2963, 86
  %v3590 = vpop.permute.xlu0 %3589
  %3591 = vrot.lane.b32.xlu0 %v2964, 86
  %v3592 = vpop.permute.xlu0 %3591
  %3593 = vrot.lane.b32.xlu0 %v2965, 86
  %v3594 = vpop.permute.xlu0 %3593
  %3595 = vrot.lane.b32.xlu0 %v2966, 86
  %v3596 = vpop.permute.xlu0 %3595
  %3597 = vrot.lane.b32.xlu0 %v2967, 86
  %v3598 = vpop.permute.xlu0 %3597
  %3599 = vrot.lane.b32.xlu0 %v2968, 86
  %v3600 = vpop.permute.xlu0 %3599
  %3601 = vrot.lane.b32.xlu0 %v2969, 86
  %v3602 = vpop.permute.xlu0 %3601
  %3603 = vrot.lane.b32.xlu0 %v2970, 86
  %v3604 = vpop.permute.xlu0 %3603
  %3605 = vrot.lane.b32.xlu0 %v2971, 86
  %v3606 = vpop.permute.xlu0 %3605
  %3607 = vrot.lane.b32.xlu0 %v2972, 86
  %v3608 = vpop.permute.xlu0 %3607
  %3609 = vrot.lane.b32.xlu0 %v2973, 86
  %v3610 = vpop.permute.xlu0 %3609
  %3611 = vrot.lane.b32.xlu0 %v2974, 86
  %v3612 = vpop.permute.xlu0 %3611
  %3613 = vrot.lane.b32.xlu0 %v2975, 86
  %v3614 = vpop.permute.xlu0 %3613
  %3615 = vrot.lane.b32.xlu0 %v2976, 86
  %v3616 = vpop.permute.xlu0 %3615
  %3617 = vrot.lane.b32.xlu0 %v2977, 86
  %v3618 = vpop.permute.xlu0 %3617
  %3619 = vrot.lane.b32.xlu0 %v2978, 86
  %v3620 = vpop.permute.xlu0 %3619
  %3621 = vrot.lane.b32.xlu0 %v2979, 86
  %v3622 = vpop.permute.xlu0 %3621
  %3623 = vrot.lane.b32.xlu0 %v2980, 86
  %v3624 = vpop.permute.xlu0 %3623
  %3625 = vrot.lane.b32.xlu0 %v2981, 86
  %v3626 = vpop.permute.xlu0 %3625
  %3627 = vrot.lane.b32.xlu0 %v2982, 86
  %v3628 = vpop.permute.xlu0 %3627
  %3629 = vrot.lane.b32.xlu0 %v2983, 86
  %v3630 = vpop.permute.xlu0 %3629
  %3631 = vrot.lane.b32.xlu0 %v2984, 86
  %v3632 = vpop.permute.xlu0 %3631
  %3633 = vrot.lane.b32.xlu0 %v2985, 86
  %v3634 = vpop.permute.xlu0 %3633
  %3635 = vrot.lane.b32.xlu0 %v2986, 86
  %v3636 = vpop.permute.xlu0 %3635
  %3637 = vrot.lane.b32.xlu0 %v2987, 86
  %v3638 = vpop.permute.xlu0 %3637
  %3639 = vrot.lane.b32.xlu0 %v2988, 86
  %v3640 = vpop.permute.xlu0 %3639
  %3641 = vrot.lane.b32.xlu0 %v2989, 86
  %v3642 = vpop.permute.xlu0 %3641
  %3643 = vrot.lane.b32.xlu0 %v2990, 86
  %v3644 = vpop.permute.xlu0 %3643
  %3645 = vrot.lane.b32.xlu0 %v2991, 86
  %v3646 = vpop.permute.xlu0 %3645
  %3647 = vrot.lane.b32.xlu0 %v2992, 86
  %v3648 = vpop.permute.xlu0 %3647
  %3649 = vrot.lane.b32.xlu0 %v2993, 86
  %v3650 = vpop.permute.xlu0 %3649
  %3651 = vrot.lane.b32.xlu0 %v2994, 86
  %v3652 = vpop.permute.xlu0 %3651
  %3653 = vrot.lane.b32.xlu0 %v2995, 86
  %v3654 = vpop.permute.xlu0 %3653
  %3655 = vrot.lane.b32.xlu0 %v2996, 86
  %v3656 = vpop.permute.xlu0 %3655
  %3657 = vrot.lane.b32.xlu0 %v2997, 86
  %v3658 = vpop.permute.xlu0 %3657
  %3659 = vrot.lane.b32.xlu0 %v2998, 86
  %v3660 = vpop.permute.xlu0 %3659
  %3661 = vrot.lane.b32.xlu0 %v2999, 86
  %v3662 = vpop.permute.xlu0 %3661
  %3663 = vrot.lane.b32.xlu0 %v3000, 86
  %v3664 = vpop.permute.xlu0 %3663
  %3665 = vrot.lane.b32.xlu0 %v3001, 86
  %v3666 = vpop.permute.xlu0 %3665
  %3667 = vrot.lane.b32.xlu0 %v3002, 86
  %v3668 = vpop.permute.xlu0 %3667
  %3669 = vrot.lane.b32.xlu0 %v3003, 86
  %v3670 = vpop.permute.xlu0 %3669
  %3671 = vrot.lane.b32.xlu0 %v3004, 86
  %v3672 = vpop.permute.xlu0 %3671
  %3673 = vrot.lane.b32.xlu0 %v3005, 86
  %v3674 = vpop.permute.xlu0 %3673
  %3675 = vrot.lane.b32.xlu0 %v3006, 86
  %v3676 = vpop.permute.xlu0 %3675
  %3677 = vrot.lane.b32.xlu0 %v3007, 86
  %v3678 = vpop.permute.xlu0 %3677
  %3679 = vrot.lane.b32.xlu0 %v3008, 86
  %v3680 = vpop.permute.xlu0 %3679
  %3681 = vrot.lane.b32.xlu0 %v3009, 86
  %v3682 = vpop.permute.xlu0 %3681
  %3683 = vrot.lane.b32.xlu0 %v3010, 86
  %v3684 = vpop.permute.xlu0 %3683
  %3685 = vrot.lane.b32.xlu0 %v3011, 86
  %v3686 = vpop.permute.xlu0 %3685
  %3687 = vrot.lane.b32.xlu0 %v3012, 86
  %v3688 = vpop.permute.xlu0 %3687
  %3689 = vrot.lane.b32.xlu0 %v3013, 86
  %v3690 = vpop.permute.xlu0 %3689
  %3691 = vrot.lane.b32.xlu0 %v3014, 86
  %v3692 = vpop.permute.xlu0 %3691
  %3693 = vrot.lane.b32.xlu0 %v3015, 86
  %v3694 = vpop.permute.xlu0 %3693
  %3695 = vrot.lane.b32.xlu0 %v3016, 86
  %v3696 = vpop.permute.xlu0 %3695
  %3697 = vrot.lane.b32.xlu0 %v3017, 86
  %v3698 = vpop.permute.xlu0 %3697
  %3699 = vrot.lane.b32.xlu0 %v3018, 86
  %v3700 = vpop.permute.xlu0 %3699
  %3701 = vrot.lane.b32.xlu0 %v3019, 86
  %v3702 = vpop.permute.xlu0 %3701
  %3703 = vrot.lane.b32.xlu0 %v3020, 86
  %v3704 = vpop.permute.xlu0 %3703
  %3705 = vrot.lane.b32.xlu0 %v3021, 86
  %v3706 = vpop.permute.xlu0 %3705
  %3707 = vrot.lane.b32.xlu0 %v3022, 86
  %v3708 = vpop.permute.xlu0 %3707
  %3709 = vrot.lane.b32.xlu0 %v3023, 86
  %v3710 = vpop.permute.xlu0 %3709
  %3711 = vrot.lane.b32.xlu0 %v3024, 86
  %v3712 = vpop.permute.xlu0 %3711
  %3713 = vrot.lane.b32.xlu0 %v3025, 86
  %v3714 = vpop.permute.xlu0 %3713
  %3715 = vrot.lane.b32.xlu0 %v3026, 86
  %v3716 = vpop.permute.xlu0 %3715
  %3717 = vrot.lane.b32.xlu0 %v3027, 86
  %v3718 = vpop.permute.xlu0 %3717
  %3719 = vrot.lane.b32.xlu0 %v3028, 86
  %v3720 = vpop.permute.xlu0 %3719
  %3721 = vrot.lane.b32.xlu0 %v3029, 86
  %v3722 = vpop.permute.xlu0 %3721
  %3723 = vrot.lane.b32.xlu0 %v3030, 86
  %v3724 = vpop.permute.xlu0 %3723
  %3725 = vrot.lane.b32.xlu0 %v3031, 86
  %v3726 = vpop.permute.xlu0 %3725
  %3727 = vrot.lane.b32.xlu0 %v3032, 86
  %v3728 = vpop.permute.xlu0 %3727
  %3729 = vrot.lane.b32.xlu0 %v3033, 86
  %v3730 = vpop.permute.xlu0 %3729
  %3731 = vrot.lane.b32.xlu0 %v3034, 86
  %v3732 = vpop.permute.xlu0 %3731
  %3733 = vrot.lane.b32.xlu0 %v3035, 86
  %v3734 = vpop.permute.xlu0 %3733
  %3735 = vrot.lane.b32.xlu0 %v3036, 86
  %v3736 = vpop.permute.xlu0 %3735
  %vm3837 = vcmask 351232
  %v3838 = vsel %vm3837, %v2436, %v3138
  %v3839 = vsel %vm3837, %v2437, %v3140
  %v3840 = vsel %vm3837, %v2438, %v3142
  %v3841 = vsel %vm3837, %v2439, %v3144
  %v3842 = vsel %vm3837, %v2440, %v3146
  %v3843 = vsel %vm3837, %v2441, %v3148
  %v3844 = vsel %vm3837, %v2442, %v3150
  %v3845 = vsel %vm3837, %v2443, %v3152
  %v3846 = vsel %vm3837, %v2444, %v3154
  %v3847 = vsel %vm3837, %v2445, %v3156
  %v3848 = vsel %vm3837, %v2446, %v3158
  %v3849 = vsel %vm3837, %v2447, %v3160
  %v3850 = vsel %vm3837, %v2448, %v3162
  %v3851 = vsel %vm3837, %v2449, %v3164
  %v3852 = vsel %vm3837, %v2450, %v3166
  %v3853 = vsel %vm3837, %v2451, %v3168
  %v3854 = vsel %vm3837, %v2452, %v3170
  %v3855 = vsel %vm3837, %v2453, %v3172
  %v3856 = vsel %vm3837, %v2454, %v3174
  %v3857 = vsel %vm3837, %v2455, %v3176
  %v3858 = vsel %vm3837, %v2456, %v3178
  %v3859 = vsel %vm3837, %v2457, %v3180
  %v3860 = vsel %vm3837, %v2458, %v3182
  %v3861 = vsel %vm3837, %v2459, %v3184
  %v3862 = vsel %vm3837, %v2460, %v3186
  %v3863 = vsel %vm3837, %v2461, %v3188
  %v3864 = vsel %vm3837, %v2462, %v3190
  %v3865 = vsel %vm3837, %v2463, %v3192
  %v3866 = vsel %vm3837, %v2464, %v3194
  %v3867 = vsel %vm3837, %v2465, %v3196
  %v3868 = vsel %vm3837, %v2466, %v3198
  %v3869 = vsel %vm3837, %v2467, %v3200
  %v3870 = vsel %vm3837, %v2468, %v3202
  %v3871 = vsel %vm3837, %v2469, %v3204
  %v3872 = vsel %vm3837, %v2470, %v3206
  %v3873 = vsel %vm3837, %v2471, %v3208
  %v3874 = vsel %vm3837, %v2472, %v3210
  %v3875 = vsel %vm3837, %v2473, %v3212
  %v3876 = vsel %vm3837, %v2474, %v3214
  %v3877 = vsel %vm3837, %v2475, %v3216
  %v3878 = vsel %vm3837, %v2476, %v3218
  %v3879 = vsel %vm3837, %v2477, %v3220
  %v3880 = vsel %vm3837, %v2478, %v3222
  %v3881 = vsel %vm3837, %v2479, %v3224
  %v3882 = vsel %vm3837, %v2480, %v3226
  %v3883 = vsel %vm3837, %v2481, %v3228
  %v3884 = vsel %vm3837, %v2482, %v3230
  %v3885 = vsel %vm3837, %v2483, %v3232
  %v3886 = vsel %vm3837, %v2484, %v3234
  %v3887 = vsel %vm3837, %v2485, %v3236
  %v3888 = vsel %vm3837, %v2486, %v3238
  %v3889 = vsel %vm3837, %v2487, %v3240
  %v3890 = vsel %vm3837, %v2488, %v3242
  %v3891 = vsel %vm3837, %v2489, %v3244
  %v3892 = vsel %vm3837, %v2490, %v3246
  %v3893 = vsel %vm3837, %v2491, %v3248
  %v3894 = vsel %vm3837, %v2492, %v3250
  %v3895 = vsel %vm3837, %v2493, %v3252
  %v3896 = vsel %vm3837, %v2494, %v3254
  %v3897 = vsel %vm3837, %v2495, %v3256
  %v3898 = vsel %vm3837, %v2496, %v3258
  %v3899 = vsel %vm3837, %v2497, %v3260
  %v3900 = vsel %vm3837, %v2498, %v3262
  %v3901 = vsel %vm3837, %v2499, %v3264
  %v3902 = vsel %vm3837, %v2500, %v3266
  %v3903 = vsel %vm3837, %v2501, %v3268
  %v3904 = vsel %vm3837, %v2502, %v3270
  %v3905 = vsel %vm3837, %v2503, %v3272
  %v3906 = vsel %vm3837, %v2504, %v3274
  %v3907 = vsel %vm3837, %v2505, %v3276
  %v3908 = vsel %vm3837, %v2506, %v3278
  %v3909 = vsel %vm3837, %v2507, %v3280
  %v3910 = vsel %vm3837, %v2508, %v3282
  %v3911 = vsel %vm3837, %v2509, %v3284
  %v3912 = vsel %vm3837, %v2510, %v3286
  %v3913 = vsel %vm3837, %v2511, %v3288
  %v3914 = vsel %vm3837, %v2512, %v3290
  %v3915 = vsel %vm3837, %v2513, %v3292
  %v3916 = vsel %vm3837, %v2514, %v3294
  %v3917 = vsel %vm3837, %v2515, %v3296
  %v3918 = vsel %vm3837, %v2516, %v3298
  %v3919 = vsel %vm3837, %v2517, %v3300
  %v3920 = vsel %vm3837, %v2518, %v3302
  %v3921 = vsel %vm3837, %v2519, %v3304
  %v3922 = vsel %vm3837, %v2520, %v3306
  %v3923 = vsel %vm3837, %v2521, %v3308
  %v3924 = vsel %vm3837, %v2522, %v3310
  %v3925 = vsel %vm3837, %v2523, %v3312
  %v3926 = vsel %vm3837, %v2524, %v3314
  %v3927 = vsel %vm3837, %v2525, %v3316
  %v3928 = vsel %vm3837, %v2526, %v3318
  %v3929 = vsel %vm3837, %v2527, %v3320
  %v3930 = vsel %vm3837, %v2528, %v3322
  %v3931 = vsel %vm3837, %v2529, %v3324
  %v3932 = vsel %vm3837, %v2530, %v3326
  %v3933 = vsel %vm3837, %v2531, %v3328
  %v3934 = vsel %vm3837, %v2532, %v3330
  %v3935 = vsel %vm3837, %v2533, %v3332
  %v3936 = vsel %vm3837, %v2534, %v3334
  %v3937 = vsel %vm3837, %v2535, %v3336
  %vm3938 = vcmask 703488
  %v3939 = vsel %vm3938, %v3838, %v3538
  %v3940 = vsel %vm3938, %v3839, %v3540
  %v3941 = vsel %vm3938, %v3840, %v3542
  %v3942 = vsel %vm3938, %v3841, %v3544
  %v3943 = vsel %vm3938, %v3842, %v3546
  %v3944 = vsel %vm3938, %v3843, %v3548
  %v3945 = vsel %vm3938, %v3844, %v3550
  %v3946 = vsel %vm3938, %v3845, %v3552
  %v3947 = vsel %vm3938, %v3846, %v3554
  %v3948 = vsel %vm3938, %v3847, %v3556
  %v3949 = vsel %vm3938, %v3848, %v3558
  %v3950 = vsel %vm3938, %v3849, %v3560
  %v3951 = vsel %vm3938, %v3850, %v3562
  %v3952 = vsel %vm3938, %v3851, %v3564
  %v3953 = vsel %vm3938, %v3852, %v3566
  %v3954 = vsel %vm3938, %v3853, %v3568
  %v3955 = vsel %vm3938, %v3854, %v3570
  %v3956 = vsel %vm3938, %v3855, %v3572
  %v3957 = vsel %vm3938, %v3856, %v3574
  %v3958 = vsel %vm3938, %v3857, %v3576
  %v3959 = vsel %vm3938, %v3858, %v3578
  %v3960 = vsel %vm3938, %v3859, %v3580
  %v3961 = vsel %vm3938, %v3860, %v3582
  %v3962 = vsel %vm3938, %v3861, %v3584
  %v3963 = vsel %vm3938, %v3862, %v3586
  %v3964 = vsel %vm3938, %v3863, %v3588
  %v3965 = vsel %vm3938, %v3864, %v3590
  %v3966 = vsel %vm3938, %v3865, %v3592
  %v3967 = vsel %vm3938, %v3866, %v3594
  %v3968 = vsel %vm3938, %v3867, %v3596
  %v3969 = vsel %vm3938, %v3868, %v3598
  %v3970 = vsel %vm3938, %v3869, %v3600
  %v3971 = vsel %vm3938, %v3870, %v3602
  %v3972 = vsel %vm3938, %v3871, %v3604
  %v3973 = vsel %vm3938, %v3872, %v3606
  %v3974 = vsel %vm3938, %v3873, %v3608
  %v3975 = vsel %vm3938, %v3874, %v3610
  %v3976 = vsel %vm3938, %v3875, %v3612
  %v3977 = vsel %vm3938, %v3876, %v3614
  %v3978 = vsel %vm3938, %v3877, %v3616
  %v3979 = vsel %vm3938, %v3878, %v3618
  %v3980 = vsel %vm3938, %v3879, %v3620
  %v3981 = vsel %vm3938, %v3880, %v3622
  %v3982 = vsel %vm3938, %v3881, %v3624
  %v3983 = vsel %vm3938, %v3882, %v3626
  %v3984 = vsel %vm3938, %v3883, %v3628
  %v3985 = vsel %vm3938, %v3884, %v3630
  %v3986 = vsel %vm3938, %v3885, %v3632
  %v3987 = vsel %vm3938, %v3886, %v3634
  %v3988 = vsel %vm3938, %v3887, %v3636
  %v3989 = vsel %vm3938, %v3888, %v3638
  %v3990 = vsel %vm3938, %v3889, %v3640
  %v3991 = vsel %vm3938, %v3890, %v3642
  %v3992 = vsel %vm3938, %v3891, %v3644
  %v3993 = vsel %vm3938, %v3892, %v3646
  %v3994 = vsel %vm3938, %v3893, %v3648
  %v3995 = vsel %vm3938, %v3894, %v3650
  %v3996 = vsel %vm3938, %v3895, %v3652
  %v3997 = vsel %vm3938, %v3896, %v3654
  %v3998 = vsel %vm3938, %v3897, %v3656
  %v3999 = vsel %vm3938, %v3898, %v3658
  %v4000 = vsel %vm3938, %v3899, %v3660
  %v4001 = vsel %vm3938, %v3900, %v3662
  %v4002 = vsel %vm3938, %v3901, %v3664
  %v4003 = vsel %vm3938, %v3902, %v3666
  %v4004 = vsel %vm3938, %v3903, %v3668
  %v4005 = vsel %vm3938, %v3904, %v3670
  %v4006 = vsel %vm3938, %v3905, %v3672
  %v4007 = vsel %vm3938, %v3906, %v3674
  %v4008 = vsel %vm3938, %v3907, %v3676
  %v4009 = vsel %vm3938, %v3908, %v3678
  %v4010 = vsel %vm3938, %v3909, %v3680
  %v4011 = vsel %vm3938, %v3910, %v3682
  %v4012 = vsel %vm3938, %v3911, %v3684
  %v4013 = vsel %vm3938, %v3912, %v3686
  %v4014 = vsel %vm3938, %v3913, %v3688
  %v4015 = vsel %vm3938, %v3914, %v3690
  %v4016 = vsel %vm3938, %v3915, %v3692
  %v4017 = vsel %vm3938, %v3916, %v3694
  %v4018 = vsel %vm3938, %v3917, %v3696
  %v4019 = vsel %vm3938, %v3918, %v3698
  %v4020 = vsel %vm3938, %v3919, %v3700
  %v4021 = vsel %vm3938, %v3920, %v3702
  %v4022 = vsel %vm3938, %v3921, %v3704
  %v4023 = vsel %vm3938, %v3922, %v3706
  %v4024 = vsel %vm3938, %v3923, %v3708
  %v4025 = vsel %vm3938, %v3924, %v3710
  %v4026 = vsel %vm3938, %v3925, %v3712
  %v4027 = vsel %vm3938, %v3926, %v3714
  %v4028 = vsel %vm3938, %v3927, %v3716
  %v4029 = vsel %vm3938, %v3928, %v3718
  %v4030 = vsel %vm3938, %v3929, %v3720
  %v4031 = vsel %vm3938, %v3930, %v3722
  %v4032 = vsel %vm3938, %v3931, %v3724
  %v4033 = vsel %vm3938, %v3932, %v3726
  %v4034 = vsel %vm3938, %v3933, %v3728
  %v4035 = vsel %vm3938, %v3934, %v3730
  %v4036 = vsel %vm3938, %v3935, %v3732
  %v4037 = vsel %vm3938, %v3936, %v3734
  %v4038 = vsel %vm3938, %v3937, %v3736
  %v4039 = vpack.c.bf16 %v3940, %v3939
  %v4040 = vpack.c.bf16 %v3540, %v3538
  %v4041 = vpack.c.bf16 %v3942, %v3941
  %v4042 = vpack.c.bf16 %v3544, %v3542
  %v4043 = vpack.c.bf16 %v3944, %v3943
  %v4044 = vpack.c.bf16 %v3548, %v3546
  %v4045 = vpack.c.bf16 %v3946, %v3945
  %v4046 = vpack.c.bf16 %v3552, %v3550
  %v4047 = vpack.c.bf16 %v3948, %v3947
  %v4048 = vpack.c.bf16 %v3556, %v3554
  %v4049 = vpack.c.bf16 %v3950, %v3949
  %v4050 = vpack.c.bf16 %v3560, %v3558
  %v4051 = vpack.c.bf16 %v3952, %v3951
  %v4052 = vpack.c.bf16 %v3564, %v3562
  %v4053 = vpack.c.bf16 %v3954, %v3953
  %v4054 = vpack.c.bf16 %v3568, %v3566
  %v4055 = vpack.c.bf16 %v3956, %v3955
  %v4056 = vpack.c.bf16 %v3572, %v3570
  %v4057 = vpack.c.bf16 %v3958, %v3957
  %v4058 = vpack.c.bf16 %v3576, %v3574
  %v4059 = vpack.c.bf16 %v3960, %v3959
  %v4060 = vpack.c.bf16 %v3580, %v3578
  %v4061 = vpack.c.bf16 %v3962, %v3961
  %v4062 = vpack.c.bf16 %v3584, %v3582
  %v4063 = vpack.c.bf16 %v3964, %v3963
  %v4064 = vpack.c.bf16 %v3588, %v3586
  %v4065 = vpack.c.bf16 %v3966, %v3965
  %v4066 = vpack.c.bf16 %v3592, %v3590
  %v4067 = vpack.c.bf16 %v3968, %v3967
  %v4068 = vpack.c.bf16 %v3596, %v3594
  %v4069 = vpack.c.bf16 %v3970, %v3969
  %v4070 = vpack.c.bf16 %v3600, %v3598
  %v4071 = vpack.c.bf16 %v3972, %v3971
  %v4072 = vpack.c.bf16 %v3604, %v3602
  %v4073 = vpack.c.bf16 %v3974, %v3973
  %v4074 = vpack.c.bf16 %v3608, %v3606
  %v4075 = vpack.c.bf16 %v3976, %v3975
  %v4076 = vpack.c.bf16 %v3612, %v3610
  %v4077 = vpack.c.bf16 %v3978, %v3977
  %v4078 = vpack.c.bf16 %v3616, %v3614
  %v4079 = vpack.c.bf16 %v3980, %v3979
  %v4080 = vpack.c.bf16 %v3620, %v3618
  %v4081 = vpack.c.bf16 %v3982, %v3981
  %v4082 = vpack.c.bf16 %v3624, %v3622
  %v4083 = vpack.c.bf16 %v3984, %v3983
  %v4084 = vpack.c.bf16 %v3628, %v3626
  %v4085 = vpack.c.bf16 %v3986, %v3985
  %v4086 = vpack.c.bf16 %v3632, %v3630
  %v4087 = vpack.c.bf16 %v3988, %v3987
  %v4088 = vpack.c.bf16 %v3636, %v3634
  %v4089 = vpack.c.bf16 %v3990, %v3989
  %v4090 = vpack.c.bf16 %v3640, %v3638
  %v4091 = vpack.c.bf16 %v3992, %v3991
  %v4092 = vpack.c.bf16 %v3644, %v3642
  %v4093 = vpack.c.bf16 %v3994, %v3993
  %v4094 = vpack.c.bf16 %v3648, %v3646
  %v4095 = vpack.c.bf16 %v3996, %v3995
  %v4096 = vpack.c.bf16 %v3652, %v3650
  %v4097 = vpack.c.bf16 %v3998, %v3997
  %v4098 = vpack.c.bf16 %v3656, %v3654
  %v4099 = vpack.c.bf16 %v4000, %v3999
  %v4100 = vpack.c.bf16 %v3660, %v3658
  %v4101 = vpack.c.bf16 %v4002, %v4001
  %v4102 = vpack.c.bf16 %v3664, %v3662
  %v4103 = vpack.c.bf16 %v4004, %v4003
  %v4104 = vpack.c.bf16 %v3668, %v3666
  %v4105 = vpack.c.bf16 %v4006, %v4005
  %v4106 = vpack.c.bf16 %v3672, %v3670
  %v4107 = vpack.c.bf16 %v4008, %v4007
  %v4108 = vpack.c.bf16 %v3676, %v3674
  %v4109 = vpack.c.bf16 %v4010, %v4009
  %v4110 = vpack.c.bf16 %v3680, %v3678
  %v4111 = vpack.c.bf16 %v4012, %v4011
  %v4112 = vpack.c.bf16 %v3684, %v3682
  %v4113 = vpack.c.bf16 %v4014, %v4013
  %v4114 = vpack.c.bf16 %v3688, %v3686
  %v4115 = vpack.c.bf16 %v4016, %v4015
  %v4116 = vpack.c.bf16 %v3692, %v3690
  %v4117 = vpack.c.bf16 %v4018, %v4017
  %v4118 = vpack.c.bf16 %v3696, %v3694
  %v4119 = vpack.c.bf16 %v4020, %v4019
  %v4120 = vpack.c.bf16 %v3700, %v3698
  %v4121 = vpack.c.bf16 %v4022, %v4021
  %v4122 = vpack.c.bf16 %v3704, %v3702
  %v4123 = vpack.c.bf16 %v4024, %v4023
  %v4124 = vpack.c.bf16 %v3708, %v3706
  %v4125 = vpack.c.bf16 %v4026, %v4025
  %v4126 = vpack.c.bf16 %v3712, %v3710
  %v4127 = vpack.c.bf16 %v4028, %v4027
  %v4128 = vpack.c.bf16 %v3716, %v3714
  %v4129 = vpack.c.bf16 %v4030, %v4029
  %v4130 = vpack.c.bf16 %v3720, %v3718
  %v4131 = vpack.c.bf16 %v4032, %v4031
  %v4132 = vpack.c.bf16 %v3724, %v3722
  %v4133 = vpack.c.bf16 %v4034, %v4033
  %v4134 = vpack.c.bf16 %v3728, %v3726
  %v4135 = vpack.c.bf16 %v4036, %v4035
  %v4136 = vpack.c.bf16 %v3732, %v3730
  %v4137 = vpack.c.bf16 %v4038, %v4037
  %v4138 = vpack.c.bf16 %v3736, %v3734
  %v4139 = vld [vmem:[%s1] sm:$0xf]
  %v4140 = vld [vmem:[%s1 + $0x4] sm:$0xf]
  %v4141 = vld [vmem:[%s1 + $0x8] sm:$0xf]
  %v4142 = vld [vmem:[%s1 + $0xc] sm:$0xf]
  %v4143 = vld [vmem:[%s1 + $0x10] sm:$0xf]
  %v4144 = vld [vmem:[%s1 + $0x14] sm:$0xf]
  %v4145 = vld [vmem:[%s1 + $0x18] sm:$0xf]
  %v4146 = vld [vmem:[%s1 + $0x1c] sm:$0xf]
  %v4147 = vld [vmem:[%s1 + $0x20] sm:$0xf]
  %v4148 = vld [vmem:[%s1 + $0x24] sm:$0xf]
  %v4149 = vld [vmem:[%s1 + $0x28] sm:$0xf]
  %v4150 = vld [vmem:[%s1 + $0x2c] sm:$0xf]
  %v4151 = vld [vmem:[%s1 + $0x30] sm:$0xf]
  %v4152 = vld [vmem:[%s1 + $0x34] sm:$0xf]
  %v4153 = vld [vmem:[%s1 + $0x38] sm:$0xf]
  %v4154 = vld [vmem:[%s1 + $0x3c] sm:$0xf]
  %v4155 = vld [vmem:[%s1 + $0x40] sm:$0x1]
  %v4156 = vld [vmem:[%s2] sm:$0x1]
  %v4158 = vlaneseq
  %v4159 = vshrl.u32 %v4158, 7
  %v4160 = vsub.s32 0, %v4159
  %v4161 = vrot.slane %v4156, %v4160
  %v4180 = vunpack.c.l.b16 %v4139
  %v4181 = vunpack.c.l.b16 %v4140
  %v4182 = vunpack.c.l.b16 %v4141
  %v4183 = vunpack.c.l.b16 %v4142
  %v4184 = vunpack.c.l.b16 %v4143
  %v4185 = vunpack.c.l.b16 %v4144
  %v4186 = vunpack.c.l.b16 %v4145
  %v4187 = vunpack.c.l.b16 %v4146
  %v4188 = vunpack.c.l.b16 %v4147
  %v4189 = vunpack.c.l.b16 %v4148
  %v4190 = vunpack.c.l.b16 %v4149
  %v4191 = vunpack.c.l.b16 %v4150
  %v4192 = vunpack.c.l.b16 %v4151
  %v4193 = vunpack.c.l.b16 %v4152
  %v4194 = vunpack.c.l.b16 %v4153
  %v4195 = vunpack.c.l.b16 %v4154
  %v4196 = vunpack.c.l.b16 %v4155
  %v4197 = vpack.c.b16 %v4181, %v4180
  %v4198 = vpack.c.b16 %v4183, %v4182
  %v4199 = vpack.c.b16 %v4185, %v4184
  %v4200 = vpack.c.b16 %v4187, %v4186
  %v4201 = vpack.c.b16 %v4189, %v4188
  %v4202 = vpack.c.b16 %v4191, %v4190
  %v4203 = vpack.c.b16 %v4193, %v4192
  %v4204 = vpack.c.b16 %v4195, %v4194
  %v4205 = vpack.c.b16 %v4196, %v4196
  %vm4214 = vcmask 7168
  %v4216 = vsel %vm4214, %v4040, 0
  %v4219 = vsel %vm4214, %v4042, 0
  %v4222 = vsel %vm4214, %v4044, 0
  %v4225 = vsel %vm4214, %v4046, 0
  %v4228 = vsel %vm4214, %v4048, 0
  %v4231 = vsel %vm4214, %v4050, 0
  %v4234 = vsel %vm4214, %v4052, 0
  %v4237 = vsel %vm4214, %v4054, 0
  %v4240 = vsel %vm4214, %v4056, 0
  %v4243 = vsel %vm4214, %v4058, 0
  %v4246 = vsel %vm4214, %v4060, 0
  %v4249 = vsel %vm4214, %v4062, 0
  %v4252 = vsel %vm4214, %v4064, 0
  %v4255 = vsel %vm4214, %v4066, 0
  %v4258 = vsel %vm4214, %v4068, 0
  %v4261 = vsel %vm4214, %v4070, 0
  %v4264 = vsel %vm4214, %v4072, 0
  %v4267 = vsel %vm4214, %v4074, 0
  %v4270 = vsel %vm4214, %v4076, 0
  %v4273 = vsel %vm4214, %v4078, 0
  %v4276 = vsel %vm4214, %v4080, 0
  %v4279 = vsel %vm4214, %v4082, 0
  %v4282 = vsel %vm4214, %v4084, 0
  %v4285 = vsel %vm4214, %v4086, 0
  %v4288 = vsel %vm4214, %v4088, 0
  %v4291 = vsel %vm4214, %v4090, 0
  %v4294 = vsel %vm4214, %v4092, 0
  %v4297 = vsel %vm4214, %v4094, 0
  %v4300 = vsel %vm4214, %v4096, 0
  %v4303 = vsel %vm4214, %v4098, 0
  %v4306 = vsel %vm4214, %v4100, 0
  %v4309 = vsel %vm4214, %v4102, 0
  %v4312 = vsel %vm4214, %v4104, 0
  %v4315 = vsel %vm4214, %v4106, 0
  %v4318 = vsel %vm4214, %v4108, 0
  %v4321 = vsel %vm4214, %v4110, 0
  %v4324 = vsel %vm4214, %v4112, 0
  %v4327 = vsel %vm4214, %v4114, 0
  %v4330 = vsel %vm4214, %v4116, 0
  %v4333 = vsel %vm4214, %v4118, 0
  %v4336 = vsel %vm4214, %v4120, 0
  %v4339 = vsel %vm4214, %v4122, 0
  %v4342 = vsel %vm4214, %v4124, 0
  %v4345 = vsel %vm4214, %v4126, 0
  %v4348 = vsel %vm4214, %v4128, 0
  %v4351 = vsel %vm4214, %v4130, 0
  %v4354 = vsel %vm4214, %v4132, 0
  %v4357 = vsel %vm4214, %v4134, 0
  %v4360 = vsel %vm4214, %v4136, 0
  %v4363 = vsel %vm4214, %v4138, 0
  %vm4365 = vcmask 1040384
  %v4366 = vsel 0, 4294967295, 65535
  %v4367 = vsel %vm4365, %v4366, 0
  %v4369 = vand.u32 %v4205, %v4367
  %4371 = vmatprep.subr.bf16.mxu0 0
  %4372 = vmatpush1.bf16.msra.mxu0 %v4197
  %4373 = vmatprep.subr.bf16.mxu0 0
  %4374 = vmatpush1.bf16.msra.mxu0 %v4198
  %4375 = vmatprep.subr.bf16.mxu0 0
  %4376 = vmatpush1.bf16.msra.mxu0 %v4199
  %4377 = vmatprep.subr.bf16.mxu0 0
  %4378 = vmatpush1.bf16.msra.mxu0 %v4200
  %4379 = vmatprep.subr.bf16.mxu0 0
  %4380 = vmatpush1.bf16.msra.mxu0 %v4201
  %4381 = vmatprep.subr.bf16.mxu0 0
  %4382 = vmatpush1.bf16.msra.mxu0 %v4202
  %4383 = vmatprep.subr.bf16.mxu0 0
  %4384 = vmatpush1.bf16.msra.mxu0 %v4203
  %4385 = vmatprep.subr.bf16.mxu0 0
  %4386 = vmatpush1.bf16.msra.mxu0 %v4204
  %4387 = vmatprep.subr.bf16.mxu0 0
  %4388 = vmatpush1.bf16.msra.mxu0 %v4369
  %4389 = vmatprep.subr.bf16.mxu0 0
  %4390 = vmatpush1.bf16.msra.mxu0 0
  %4391 = vmatprep.subr.bf16.mxu0 0
  %4392 = vmatpush1.bf16.msra.mxu0 0
  %4393 = vmatprep.subr.bf16.mxu0 0
  %4394 = vmatpush1.bf16.msra.mxu0 0
  %4395 = vmatprep.subr.bf16.mxu0 0
  %4396 = vmatpush1.bf16.msra.mxu0 0
  %4397 = vmatprep.subr.bf16.mxu0 0
  %4398 = vmatpush1.bf16.msra.mxu0 0
  %4399 = vmatprep.subr.bf16.mxu0 0
  %4400 = vmatpush1.bf16.msra.mxu0 0
  %4401 = vmatprep.subr.bf16.mxu0 0
  %4402 = vmatpush1.bf16.msra.mxu0 0
  %4403 = vmatprep.mubr.bf16.mxu0 %v4216
  %4404 = vmatmul.mubr.bf16.gmra.mrb[0].mxu0 %v4039
  %v4405 = vpop.f32.mrb[0].mxu0
  %v4406 = vadd.f32 %v4161, %v4405
  %v4407 = vpop.f32.mrb[0].mxu0
  %v4408 = vpop.f32.mrb[0].mxu0
  %v4409 = vadd.f32 %v4161, %v4408
  %v4410 = vpop.f32.mrb[0].mxu0
  %4411 = vmatprep.mubr.bf16.mxu0 %v4219
  %4412 = vmatmul.mubr.bf16.gmra.mrb[0].mxu0 %v4041
  %v4413 = vpop.f32.mrb[0].mxu0
  %v4414 = vadd.f32 %v4161, %v4413
  %v4415 = vpop.f32.mrb[0].mxu0
  %v4416 = vpop.f32.mrb[0].mxu0
  %v4417 = vadd.f32 %v4161, %v4416
  %v4418 = vpop.f32.mrb[0].mxu0
  %4419 = vmatprep.mubr.bf16.mxu0 %v4222
  %4420 = vmatmul.mubr.bf16.gmra.mrb[0].mxu0 %v4043
  %v4421 = vpop.f32.mrb[0].mxu0
  %v4422 = vadd.f32 %v4161, %v4421
  %v4423 = vpop.f32.mrb[0].mxu0
  %v4424 = vpop.f32.mrb[0].mxu0
  %v4425 = vadd.f32 %v4161, %v4424
  %v4426 = vpop.f32.mrb[0].mxu0
  %4427 = vmatprep.mubr.bf16.mxu0 %v4225
  %4428 = vmatmul.mubr.bf16.gmra.mrb[0].mxu0 %v4045
  %v4429 = vpop.f32.mrb[0].mxu0
  %v4430 = vadd.f32 %v4161, %v4429
  %v4431 = vpop.f32.mrb[0].mxu0
  %v4432 = vpop.f32.mrb[0].mxu0
  %v4433 = vadd.f32 %v4161, %v4432
  %v4434 = vpop.f32.mrb[0].mxu0
  %4435 = vmatprep.mubr.bf16.mxu0 %v4228
  %4436 = vmatmul.mubr.bf16.gmra.mrb[0].mxu0 %v4047
  %v4437 = vpop.f32.mrb[0].mxu0
  %v4438 = vadd.f32 %v4161, %v4437
  %v4439 = vpop.f32.mrb[0].mxu0
  %v4440 = vpop.f32.mrb[0].mxu0
  %v4441 = vadd.f32 %v4161, %v4440
  %v4442 = vpop.f32.mrb[0].mxu0
  %4443 = vmatprep.mubr.bf16.mxu0 %v4231
  %4444 = vmatmul.mubr.bf16.gmra.mrb[0].mxu0 %v4049
  %v4445 = vpop.f32.mrb[0].mxu0
  %v4446 = vadd.f32 %v4161, %v4445
  %v4447 = vpop.f32.mrb[0].mxu0
  %v4448 = vpop.f32.mrb[0].mxu0
  %v4449 = vadd.f32 %v4161, %v4448
  %v4450 = vpop.f32.mrb[0].mxu0
  %4451 = vmatprep.mubr.bf16.mxu0 %v4234
  %4452 = vmatmul.mubr.bf16.gmra.mrb[0].mxu0 %v4051
  %v4453 = vpop.f32.mrb[0].mxu0
  %v4454 = vadd.f32 %v4161, %v4453
  %v4455 = vpop.f32.mrb[0].mxu0
  %v4456 = vpop.f32.mrb[0].mxu0
  %v4457 = vadd.f32 %v4161, %v4456
  %v4458 = vpop.f32.mrb[0].mxu0
  %4459 = vmatprep.mubr.bf16.mxu0 %v4237
  %4460 = vmatmul.mubr.bf16.gmra.mrb[0].mxu0 %v4053
  %v4461 = vpop.f32.mrb[0].mxu0
  %v4462 = vadd.f32 %v4161, %v4461
  %v4463 = vpop.f32.mrb[0].mxu0
  %v4464 = vpop.f32.mrb[0].mxu0
  %v4465 = vadd.f32 %v4161, %v4464
  %v4466 = vpop.f32.mrb[0].mxu0
  %4467 = vmatprep.mubr.bf16.mxu0 %v4240
  %4468 = vmatmul.mubr.bf16.gmra.mrb[0].mxu0 %v4055
  %v4469 = vpop.f32.mrb[0].mxu0
  %v4470 = vadd.f32 %v4161, %v4469
  %v4471 = vpop.f32.mrb[0].mxu0
  %v4472 = vpop.f32.mrb[0].mxu0
  %v4473 = vadd.f32 %v4161, %v4472
  %v4474 = vpop.f32.mrb[0].mxu0
  %4475 = vmatprep.mubr.bf16.mxu0 %v4243
  %4476 = vmatmul.mubr.bf16.gmra.mrb[0].mxu0 %v4057
  %v4477 = vpop.f32.mrb[0].mxu0
  %v4478 = vadd.f32 %v4161, %v4477
  %v4479 = vpop.f32.mrb[0].mxu0
  %v4480 = vpop.f32.mrb[0].mxu0
  %v4481 = vadd.f32 %v4161, %v4480
  %v4482 = vpop.f32.mrb[0].mxu0
  %4483 = vmatprep.mubr.bf16.mxu0 %v4246
  %4484 = vmatmul.mubr.bf16.gmra.mrb[0].mxu0 %v4059
  %v4485 = vpop.f32.mrb[0].mxu0
  %v4486 = vadd.f32 %v4161, %v4485
  %v4487 = vpop.f32.mrb[0].mxu0
  %v4488 = vpop.f32.mrb[0].mxu0
  %v4489 = vadd.f32 %v4161, %v4488
  %v4490 = vpop.f32.mrb[0].mxu0
  %4491 = vmatprep.mubr.bf16.mxu0 %v4249
  %4492 = vmatmul.mubr.bf16.gmra.mrb[0].mxu0 %v4061
  %v4493 = vpop.f32.mrb[0].mxu0
  %v4494 = vadd.f32 %v4161, %v4493
  %v4495 = vpop.f32.mrb[0].mxu0
  %v4496 = vpop.f32.mrb[0].mxu0
  %v4497 = vadd.f32 %v4161, %v4496
  %v4498 = vpop.f32.mrb[0].mxu0
  %4499 = vmatprep.mubr.bf16.mxu0 %v4252
  %4500 = vmatmul.mubr.bf16.gmra.mrb[0].mxu0 %v4063
  %v4501 = vpop.f32.mrb[0].mxu0
  %v4502 = vadd.f32 %v4161, %v4501
  %v4503 = vpop.f32.mrb[0].mxu0
  %v4504 = vpop.f32.mrb[0].mxu0
  %v4505 = vadd.f32 %v4161, %v4504
  %v4506 = vpop.f32.mrb[0].mxu0
  %4507 = vmatprep.mubr.bf16.mxu0 %v4255
  %4508 = vmatmul.mubr.bf16.gmra.mrb[0].mxu0 %v4065
  %v4509 = vpop.f32.mrb[0].mxu0
  %v4510 = vadd.f32 %v4161, %v4509
  %v4511 = vpop.f32.mrb[0].mxu0
  %v4512 = vpop.f32.mrb[0].mxu0
  %v4513 = vadd.f32 %v4161, %v4512
  %v4514 = vpop.f32.mrb[0].mxu0
  %4515 = vmatprep.mubr.bf16.mxu0 %v4258
  %4516 = vmatmul.mubr.bf16.gmra.mrb[0].mxu0 %v4067
  %v4517 = vpop.f32.mrb[0].mxu0
  %v4518 = vadd.f32 %v4161, %v4517
  %v4519 = vpop.f32.mrb[0].mxu0
  %v4520 = vpop.f32.mrb[0].mxu0
  %v4521 = vadd.f32 %v4161, %v4520
  %v4522 = vpop.f32.mrb[0].mxu0
  %4523 = vmatprep.mubr.bf16.mxu0 %v4261
  %4524 = vmatmul.mubr.bf16.gmra.mrb[0].mxu0 %v4069
  %v4525 = vpop.f32.mrb[0].mxu0
  %v4526 = vadd.f32 %v4161, %v4525
  %v4527 = vpop.f32.mrb[0].mxu0
  %v4528 = vpop.f32.mrb[0].mxu0
  %v4529 = vadd.f32 %v4161, %v4528
  %v4530 = vpop.f32.mrb[0].mxu0
  %4531 = vmatprep.mubr.bf16.mxu0 %v4264
  %4532 = vmatmul.mubr.bf16.gmra.mrb[0].mxu0 %v4071
  %v4533 = vpop.f32.mrb[0].mxu0
  %v4534 = vadd.f32 %v4161, %v4533
  %v4535 = vpop.f32.mrb[0].mxu0
  %v4536 = vpop.f32.mrb[0].mxu0
  %v4537 = vadd.f32 %v4161, %v4536
  %v4538 = vpop.f32.mrb[0].mxu0
  %4539 = vmatprep.mubr.bf16.mxu0 %v4267
  %4540 = vmatmul.mubr.bf16.gmra.mrb[0].mxu0 %v4073
  %v4541 = vpop.f32.mrb[0].mxu0
  %v4542 = vadd.f32 %v4161, %v4541
  %v4543 = vpop.f32.mrb[0].mxu0
  %v4544 = vpop.f32.mrb[0].mxu0
  %v4545 = vadd.f32 %v4161, %v4544
  %v4546 = vpop.f32.mrb[0].mxu0
  %4547 = vmatprep.mubr.bf16.mxu0 %v4270
  %4548 = vmatmul.mubr.bf16.gmra.mrb[0].mxu0 %v4075
  %v4549 = vpop.f32.mrb[0].mxu0
  %v4550 = vadd.f32 %v4161, %v4549
  %v4551 = vpop.f32.mrb[0].mxu0
  %v4552 = vpop.f32.mrb[0].mxu0
  %v4553 = vadd.f32 %v4161, %v4552
  %v4554 = vpop.f32.mrb[0].mxu0
  %4555 = vmatprep.mubr.bf16.mxu0 %v4273
  %4556 = vmatmul.mubr.bf16.gmra.mrb[0].mxu0 %v4077
  %v4557 = vpop.f32.mrb[0].mxu0
  %v4558 = vadd.f32 %v4161, %v4557
  %v4559 = vpop.f32.mrb[0].mxu0
  %v4560 = vpop.f32.mrb[0].mxu0
  %v4561 = vadd.f32 %v4161, %v4560
  %v4562 = vpop.f32.mrb[0].mxu0
  %4563 = vmatprep.mubr.bf16.mxu0 %v4276
  %4564 = vmatmul.mubr.bf16.gmra.mrb[0].mxu0 %v4079
  %v4565 = vpop.f32.mrb[0].mxu0
  %v4566 = vadd.f32 %v4161, %v4565
  %v4567 = vpop.f32.mrb[0].mxu0
  %v4568 = vpop.f32.mrb[0].mxu0
  %v4569 = vadd.f32 %v4161, %v4568
  %v4570 = vpop.f32.mrb[0].mxu0
  %4571 = vmatprep.mubr.bf16.mxu0 %v4279
  %4572 = vmatmul.mubr.bf16.gmra.mrb[0].mxu0 %v4081
  %v4573 = vpop.f32.mrb[0].mxu0
  %v4574 = vadd.f32 %v4161, %v4573
  %v4575 = vpop.f32.mrb[0].mxu0
  %v4576 = vpop.f32.mrb[0].mxu0
  %v4577 = vadd.f32 %v4161, %v4576
  %v4578 = vpop.f32.mrb[0].mxu0
  %4579 = vmatprep.mubr.bf16.mxu0 %v4282
  %4580 = vmatmul.mubr.bf16.gmra.mrb[0].mxu0 %v4083
  %v4581 = vpop.f32.mrb[0].mxu0
  %v4582 = vadd.f32 %v4161, %v4581
  %v4583 = vpop.f32.mrb[0].mxu0
  %v4584 = vpop.f32.mrb[0].mxu0
  %v4585 = vadd.f32 %v4161, %v4584
  %v4586 = vpop.f32.mrb[0].mxu0
  %4587 = vmatprep.mubr.bf16.mxu0 %v4285
  %4588 = vmatmul.mubr.bf16.gmra.mrb[0].mxu0 %v4085
  %v4589 = vpop.f32.mrb[0].mxu0
  %v4590 = vadd.f32 %v4161, %v4589
  %v4591 = vpop.f32.mrb[0].mxu0
  %v4592 = vpop.f32.mrb[0].mxu0
  %v4593 = vadd.f32 %v4161, %v4592
  %v4594 = vpop.f32.mrb[0].mxu0
  %4595 = vmatprep.mubr.bf16.mxu0 %v4288
  %4596 = vmatmul.mubr.bf16.gmra.mrb[0].mxu0 %v4087
  %v4597 = vpop.f32.mrb[0].mxu0
  %v4598 = vadd.f32 %v4161, %v4597
  %v4599 = vpop.f32.mrb[0].mxu0
  %v4600 = vpop.f32.mrb[0].mxu0
  %v4601 = vadd.f32 %v4161, %v4600
  %v4602 = vpop.f32.mrb[0].mxu0
  %4603 = vmatprep.mubr.bf16.mxu0 %v4291
  %4604 = vmatmul.mubr.bf16.gmra.mrb[0].mxu0 %v4089
  %v4605 = vpop.f32.mrb[0].mxu0
  %v4606 = vadd.f32 %v4161, %v4605
  %v4607 = vpop.f32.mrb[0].mxu0
  %v4608 = vpop.f32.mrb[0].mxu0
  %v4609 = vadd.f32 %v4161, %v4608
  %v4610 = vpop.f32.mrb[0].mxu0
  %4611 = vmatprep.mubr.bf16.mxu0 %v4294
  %4612 = vmatmul.mubr.bf16.gmra.mrb[0].mxu0 %v4091
  %v4613 = vpop.f32.mrb[0].mxu0
  %v4614 = vadd.f32 %v4161, %v4613
  %v4615 = vpop.f32.mrb[0].mxu0
  %v4616 = vpop.f32.mrb[0].mxu0
  %v4617 = vadd.f32 %v4161, %v4616
  %v4618 = vpop.f32.mrb[0].mxu0
  %4619 = vmatprep.mubr.bf16.mxu0 %v4297
  %4620 = vmatmul.mubr.bf16.gmra.mrb[0].mxu0 %v4093
  %v4621 = vpop.f32.mrb[0].mxu0
  %v4622 = vadd.f32 %v4161, %v4621
  %v4623 = vpop.f32.mrb[0].mxu0
  %v4624 = vpop.f32.mrb[0].mxu0
  %v4625 = vadd.f32 %v4161, %v4624
  %v4626 = vpop.f32.mrb[0].mxu0
  %4627 = vmatprep.mubr.bf16.mxu0 %v4300
  %4628 = vmatmul.mubr.bf16.gmra.mrb[0].mxu0 %v4095
  %v4629 = vpop.f32.mrb[0].mxu0
  %v4630 = vadd.f32 %v4161, %v4629
  %v4631 = vpop.f32.mrb[0].mxu0
  %v4632 = vpop.f32.mrb[0].mxu0
  %v4633 = vadd.f32 %v4161, %v4632
  %v4634 = vpop.f32.mrb[0].mxu0
  %4635 = vmatprep.mubr.bf16.mxu0 %v4303
  %4636 = vmatmul.mubr.bf16.gmra.mrb[0].mxu0 %v4097
  %v4637 = vpop.f32.mrb[0].mxu0
  %v4638 = vadd.f32 %v4161, %v4637
  %v4639 = vpop.f32.mrb[0].mxu0
  %v4640 = vpop.f32.mrb[0].mxu0
  %v4641 = vadd.f32 %v4161, %v4640
  %v4642 = vpop.f32.mrb[0].mxu0
  %4643 = vmatprep.mubr.bf16.mxu0 %v4306
  %4644 = vmatmul.mubr.bf16.gmra.mrb[0].mxu0 %v4099
  %v4645 = vpop.f32.mrb[0].mxu0
  %v4646 = vadd.f32 %v4161, %v4645
  %v4647 = vpop.f32.mrb[0].mxu0
  %v4648 = vpop.f32.mrb[0].mxu0
  %v4649 = vadd.f32 %v4161, %v4648
  %v4650 = vpop.f32.mrb[0].mxu0
  %4651 = vmatprep.mubr.bf16.mxu0 %v4309
  %4652 = vmatmul.mubr.bf16.gmra.mrb[0].mxu0 %v4101
  %v4653 = vpop.f32.mrb[0].mxu0
  %v4654 = vadd.f32 %v4161, %v4653
  %v4655 = vpop.f32.mrb[0].mxu0
  %v4656 = vpop.f32.mrb[0].mxu0
  %v4657 = vadd.f32 %v4161, %v4656
  %v4658 = vpop.f32.mrb[0].mxu0
  %4659 = vmatprep.mubr.bf16.mxu0 %v4312
  %4660 = vmatmul.mubr.bf16.gmra.mrb[0].mxu0 %v4103
  %v4661 = vpop.f32.mrb[0].mxu0
  %v4662 = vadd.f32 %v4161, %v4661
  %v4663 = vpop.f32.mrb[0].mxu0
  %v4664 = vpop.f32.mrb[0].mxu0
  %v4665 = vadd.f32 %v4161, %v4664
  %v4666 = vpop.f32.mrb[0].mxu0
  %4667 = vmatprep.mubr.bf16.mxu0 %v4315
  %4668 = vmatmul.mubr.bf16.gmra.mrb[0].mxu0 %v4105
  %v4669 = vpop.f32.mrb[0].mxu0
  %v4670 = vadd.f32 %v4161, %v4669
  %v4671 = vpop.f32.mrb[0].mxu0
  %v4672 = vpop.f32.mrb[0].mxu0
  %v4673 = vadd.f32 %v4161, %v4672
  %v4674 = vpop.f32.mrb[0].mxu0
  %4675 = vmatprep.mubr.bf16.mxu0 %v4318
  %4676 = vmatmul.mubr.bf16.gmra.mrb[0].mxu0 %v4107
  %v4677 = vpop.f32.mrb[0].mxu0
  %v4678 = vadd.f32 %v4161, %v4677
  %v4679 = vpop.f32.mrb[0].mxu0
  %v4680 = vpop.f32.mrb[0].mxu0
  %v4681 = vadd.f32 %v4161, %v4680
  %v4682 = vpop.f32.mrb[0].mxu0
  %4683 = vmatprep.mubr.bf16.mxu0 %v4321
  %4684 = vmatmul.mubr.bf16.gmra.mrb[0].mxu0 %v4109
  %v4685 = vpop.f32.mrb[0].mxu0
  %v4686 = vadd.f32 %v4161, %v4685
  %v4687 = vpop.f32.mrb[0].mxu0
  %v4688 = vpop.f32.mrb[0].mxu0
  %v4689 = vadd.f32 %v4161, %v4688
  %v4690 = vpop.f32.mrb[0].mxu0
  %4691 = vmatprep.mubr.bf16.mxu0 %v4324
  %4692 = vmatmul.mubr.bf16.gmra.mrb[0].mxu0 %v4111
  %v4693 = vpop.f32.mrb[0].mxu0
  %v4694 = vadd.f32 %v4161, %v4693
  %v4695 = vpop.f32.mrb[0].mxu0
  %v4696 = vpop.f32.mrb[0].mxu0
  %v4697 = vadd.f32 %v4161, %v4696
  %v4698 = vpop.f32.mrb[0].mxu0
  %4699 = vmatprep.mubr.bf16.mxu0 %v4327
  %4700 = vmatmul.mubr.bf16.gmra.mrb[0].mxu0 %v4113
  %v4701 = vpop.f32.mrb[0].mxu0
  %v4702 = vadd.f32 %v4161, %v4701
  %v4703 = vpop.f32.mrb[0].mxu0
  %v4704 = vpop.f32.mrb[0].mxu0
  %v4705 = vadd.f32 %v4161, %v4704
  %v4706 = vpop.f32.mrb[0].mxu0
  %4707 = vmatprep.mubr.bf16.mxu0 %v4330
  %4708 = vmatmul.mubr.bf16.gmra.mrb[0].mxu0 %v4115
  %v4709 = vpop.f32.mrb[0].mxu0
  %v4710 = vadd.f32 %v4161, %v4709
  %v4711 = vpop.f32.mrb[0].mxu0
  %v4712 = vpop.f32.mrb[0].mxu0
  %v4713 = vadd.f32 %v4161, %v4712
  %v4714 = vpop.f32.mrb[0].mxu0
  %4715 = vmatprep.mubr.bf16.mxu0 %v4333
  %4716 = vmatmul.mubr.bf16.gmra.mrb[0].mxu0 %v4117
  %v4717 = vpop.f32.mrb[0].mxu0
  %v4718 = vadd.f32 %v4161, %v4717
  %v4719 = vpop.f32.mrb[0].mxu0
  %v4720 = vpop.f32.mrb[0].mxu0
  %v4721 = vadd.f32 %v4161, %v4720
  %v4722 = vpop.f32.mrb[0].mxu0
  %4723 = vmatprep.mubr.bf16.mxu0 %v4336
  %4724 = vmatmul.mubr.bf16.gmra.mrb[0].mxu0 %v4119
  %v4725 = vpop.f32.mrb[0].mxu0
  %v4726 = vadd.f32 %v4161, %v4725
  %v4727 = vpop.f32.mrb[0].mxu0
  %v4728 = vpop.f32.mrb[0].mxu0
  %v4729 = vadd.f32 %v4161, %v4728
  %v4730 = vpop.f32.mrb[0].mxu0
  %4731 = vmatprep.mubr.bf16.mxu0 %v4339
  %4732 = vmatmul.mubr.bf16.gmra.mrb[0].mxu0 %v4121
  %v4733 = vpop.f32.mrb[0].mxu0
  %v4734 = vadd.f32 %v4161, %v4733
  %v4735 = vpop.f32.mrb[0].mxu0
  %v4736 = vpop.f32.mrb[0].mxu0
  %v4737 = vadd.f32 %v4161, %v4736
  %v4738 = vpop.f32.mrb[0].mxu0
  %4739 = vmatprep.mubr.bf16.mxu0 %v4342
  %4740 = vmatmul.mubr.bf16.gmra.mrb[0].mxu0 %v4123
  %v4741 = vpop.f32.mrb[0].mxu0
  %v4742 = vadd.f32 %v4161, %v4741
  %v4743 = vpop.f32.mrb[0].mxu0
  %v4744 = vpop.f32.mrb[0].mxu0
  %v4745 = vadd.f32 %v4161, %v4744
  %v4746 = vpop.f32.mrb[0].mxu0
  %4747 = vmatprep.mubr.bf16.mxu0 %v4345
  %4748 = vmatmul.mubr.bf16.gmra.mrb[0].mxu0 %v4125
  %v4749 = vpop.f32.mrb[0].mxu0
  %v4750 = vadd.f32 %v4161, %v4749
  %v4751 = vpop.f32.mrb[0].mxu0
  %v4752 = vpop.f32.mrb[0].mxu0
  %v4753 = vadd.f32 %v4161, %v4752
  %v4754 = vpop.f32.mrb[0].mxu0
  %4755 = vmatprep.mubr.bf16.mxu0 %v4348
  %4756 = vmatmul.mubr.bf16.gmra.mrb[0].mxu0 %v4127
  %v4757 = vpop.f32.mrb[0].mxu0
  %v4758 = vadd.f32 %v4161, %v4757
  %v4759 = vpop.f32.mrb[0].mxu0
  %v4760 = vpop.f32.mrb[0].mxu0
  %v4761 = vadd.f32 %v4161, %v4760
  %v4762 = vpop.f32.mrb[0].mxu0
  %4763 = vmatprep.mubr.bf16.mxu0 %v4351
  %4764 = vmatmul.mubr.bf16.gmra.mrb[0].mxu0 %v4129
  %v4765 = vpop.f32.mrb[0].mxu0
  %v4766 = vadd.f32 %v4161, %v4765
  %v4767 = vpop.f32.mrb[0].mxu0
  %v4768 = vpop.f32.mrb[0].mxu0
  %v4769 = vadd.f32 %v4161, %v4768
  %v4770 = vpop.f32.mrb[0].mxu0
  %4771 = vmatprep.mubr.bf16.mxu0 %v4354
  %4772 = vmatmul.mubr.bf16.gmra.mrb[0].mxu0 %v4131
  %v4773 = vpop.f32.mrb[0].mxu0
  %v4774 = vadd.f32 %v4161, %v4773
  %v4775 = vpop.f32.mrb[0].mxu0
  %v4776 = vpop.f32.mrb[0].mxu0
  %v4777 = vadd.f32 %v4161, %v4776
  %v4778 = vpop.f32.mrb[0].mxu0
  %4779 = vmatprep.mubr.bf16.mxu0 %v4357
  %4780 = vmatmul.mubr.bf16.gmra.mrb[0].mxu0 %v4133
  %v4781 = vpop.f32.mrb[0].mxu0
  %v4782 = vadd.f32 %v4161, %v4781
  %v4783 = vpop.f32.mrb[0].mxu0
  %v4784 = vpop.f32.mrb[0].mxu0
  %v4785 = vadd.f32 %v4161, %v4784
  %v4786 = vpop.f32.mrb[0].mxu0
  %4787 = vmatprep.mubr.bf16.mxu0 %v4360
  %4788 = vmatmul.mubr.bf16.gmra.mrb[0].mxu0 %v4135
  %v4789 = vpop.f32.mrb[0].mxu0
  %v4790 = vadd.f32 %v4161, %v4789
  %v4791 = vpop.f32.mrb[0].mxu0
  %v4792 = vpop.f32.mrb[0].mxu0
  %v4793 = vadd.f32 %v4161, %v4792
  %v4794 = vpop.f32.mrb[0].mxu0
  %4795 = vmatprep.mubr.bf16.mxu0 %v4363
  %4796 = vmatmul.mubr.bf16.gmra.mrb[0].mxu0 %v4137
  %v4797 = vpop.f32.mrb[0].mxu0
  %v4798 = vadd.f32 %v4161, %v4797
  %v4799 = vpop.f32.mrb[0].mxu0
  %v4800 = vpop.f32.mrb[0].mxu0
  %v4801 = vadd.f32 %v4161, %v4800
  %v4802 = vpop.f32.mrb[0].mxu0
  %4803 = vdwg.mxu0
  %v4804 = vmax.f32 %v4406, 0.0
  %v4805 = vmax.f32 %v4409, 0.0
  %v4806 = vmax.f32 %v4414, 0.0
  %v4807 = vmax.f32 %v4417, 0.0
  %v4808 = vmax.f32 %v4422, 0.0
  %v4809 = vmax.f32 %v4425, 0.0
  %v4810 = vmax.f32 %v4430, 0.0
  %v4811 = vmax.f32 %v4433, 0.0
  %v4812 = vmax.f32 %v4438, 0.0
  %v4813 = vmax.f32 %v4441, 0.0
  %v4814 = vmax.f32 %v4446, 0.0
  %v4815 = vmax.f32 %v4449, 0.0
  %v4816 = vmax.f32 %v4454, 0.0
  %v4817 = vmax.f32 %v4457, 0.0
  %v4818 = vmax.f32 %v4462, 0.0
  %v4819 = vmax.f32 %v4465, 0.0
  %v4820 = vmax.f32 %v4470, 0.0
  %v4821 = vmax.f32 %v4473, 0.0
  %v4822 = vmax.f32 %v4478, 0.0
  %v4823 = vmax.f32 %v4481, 0.0
  %v4824 = vmax.f32 %v4486, 0.0
  %v4825 = vmax.f32 %v4489, 0.0
  %v4826 = vmax.f32 %v4494, 0.0
  %v4827 = vmax.f32 %v4497, 0.0
  %v4828 = vmax.f32 %v4502, 0.0
  %v4829 = vmax.f32 %v4505, 0.0
  %v4830 = vmax.f32 %v4510, 0.0
  %v4831 = vmax.f32 %v4513, 0.0
  %v4832 = vmax.f32 %v4518, 0.0
  %v4833 = vmax.f32 %v4521, 0.0
  %v4834 = vmax.f32 %v4526, 0.0
  %v4835 = vmax.f32 %v4529, 0.0
  %v4836 = vmax.f32 %v4534, 0.0
  %v4837 = vmax.f32 %v4537, 0.0
  %v4838 = vmax.f32 %v4542, 0.0
  %v4839 = vmax.f32 %v4545, 0.0
  %v4840 = vmax.f32 %v4550, 0.0
  %v4841 = vmax.f32 %v4553, 0.0
  %v4842 = vmax.f32 %v4558, 0.0
  %v4843 = vmax.f32 %v4561, 0.0
  %v4844 = vmax.f32 %v4566, 0.0
  %v4845 = vmax.f32 %v4569, 0.0
  %v4846 = vmax.f32 %v4574, 0.0
  %v4847 = vmax.f32 %v4577, 0.0
  %v4848 = vmax.f32 %v4582, 0.0
  %v4849 = vmax.f32 %v4585, 0.0
  %v4850 = vmax.f32 %v4590, 0.0
  %v4851 = vmax.f32 %v4593, 0.0
  %v4852 = vmax.f32 %v4598, 0.0
  %v4853 = vmax.f32 %v4601, 0.0
  %v4854 = vmax.f32 %v4606, 0.0
  %v4855 = vmax.f32 %v4609, 0.0
  %v4856 = vmax.f32 %v4614, 0.0
  %v4857 = vmax.f32 %v4617, 0.0
  %v4858 = vmax.f32 %v4622, 0.0
  %v4859 = vmax.f32 %v4625, 0.0
  %v4860 = vmax.f32 %v4630, 0.0
  %v4861 = vmax.f32 %v4633, 0.0
  %v4862 = vmax.f32 %v4638, 0.0
  %v4863 = vmax.f32 %v4641, 0.0
  %v4864 = vmax.f32 %v4646, 0.0
  %v4865 = vmax.f32 %v4649, 0.0
  %v4866 = vmax.f32 %v4654, 0.0
  %v4867 = vmax.f32 %v4657, 0.0
  %v4868 = vmax.f32 %v4662, 0.0
  %v4869 = vmax.f32 %v4665, 0.0
  %v4870 = vmax.f32 %v4670, 0.0
  %v4871 = vmax.f32 %v4673, 0.0
  %v4872 = vmax.f32 %v4678, 0.0
  %v4873 = vmax.f32 %v4681, 0.0
  %v4874 = vmax.f32 %v4686, 0.0
  %v4875 = vmax.f32 %v4689, 0.0
  %v4876 = vmax.f32 %v4694, 0.0
  %v4877 = vmax.f32 %v4697, 0.0
  %v4878 = vmax.f32 %v4702, 0.0
  %v4879 = vmax.f32 %v4705, 0.0
  %v4880 = vmax.f32 %v4710, 0.0
  %v4881 = vmax.f32 %v4713, 0.0
  %v4882 = vmax.f32 %v4718, 0.0
  %v4883 = vmax.f32 %v4721, 0.0
  %v4884 = vmax.f32 %v4726, 0.0
  %v4885 = vmax.f32 %v4729, 0.0
  %v4886 = vmax.f32 %v4734, 0.0
  %v4887 = vmax.f32 %v4737, 0.0
  %v4888 = vmax.f32 %v4742, 0.0
  %v4889 = vmax.f32 %v4745, 0.0
  %v4890 = vmax.f32 %v4750, 0.0
  %v4891 = vmax.f32 %v4753, 0.0
  %v4892 = vmax.f32 %v4758, 0.0
  %v4893 = vmax.f32 %v4761, 0.0
  %v4894 = vmax.f32 %v4766, 0.0
  %v4895 = vmax.f32 %v4769, 0.0
  %v4896 = vmax.f32 %v4774, 0.0
  %v4897 = vmax.f32 %v4777, 0.0
  %v4898 = vmax.f32 %v4782, 0.0
  %v4899 = vmax.f32 %v4785, 0.0
  %v4900 = vmax.f32 %v4790, 0.0
  %v4901 = vmax.f32 %v4793, 0.0
  %v4902 = vmax.f32 %v4798, 0.0
  %v4903 = vmax.f32 %v4801, 0.0
  %v4904 = vrot.slane %v4804, 7
  %v4905 = vrot.slane %v4805, 7
  %v4906 = vrot.slane %v4806, 7
  %v4907 = vrot.slane %v4807, 7
  %v4908 = vrot.slane %v4808, 7
  %v4909 = vrot.slane %v4809, 7
  %v4910 = vrot.slane %v4810, 7
  %v4911 = vrot.slane %v4811, 7
  %v4912 = vrot.slane %v4812, 7
  %v4913 = vrot.slane %v4813, 7
  %v4914 = vrot.slane %v4814, 7
  %v4915 = vrot.slane %v4815, 7
  %v4916 = vrot.slane %v4816, 7
  %v4917 = vrot.slane %v4817, 7
  %v4918 = vrot.slane %v4818, 7
  %v4919 = vrot.slane %v4819, 7
  %v4920 = vrot.slane %v4820, 7
  %v4921 = vrot.slane %v4821, 7
  %v4922 = vrot.slane %v4822, 7
  %v4923 = vrot.slane %v4823, 7
  %v4924 = vrot.slane %v4824, 7
  %v4925 = vrot.slane %v4825, 7
  %v4926 = vrot.slane %v4826, 7
  %v4927 = vrot.slane %v4827, 7
  %v4928 = vrot.slane %v4828, 7
  %v4929 = vrot.slane %v4829, 7
  %v4930 = vrot.slane %v4830, 7
  %v4931 = vrot.slane %v4831, 7
  %v4932 = vrot.slane %v4832, 7
  %v4933 = vrot.slane %v4833, 7
  %v4934 = vrot.slane %v4834, 7
  %v4935 = vrot.slane %v4835, 7
  %v4936 = vrot.slane %v4836, 7
  %v4937 = vrot.slane %v4837, 7
  %v4938 = vrot.slane %v4838, 7
  %v4939 = vrot.slane %v4839, 7
  %v4940 = vrot.slane %v4840, 7
  %v4941 = vrot.slane %v4841, 7
  %v4942 = vrot.slane %v4842, 7
  %v4943 = vrot.slane %v4843, 7
  %v4944 = vrot.slane %v4844, 7
  %v4945 = vrot.slane %v4845, 7
  %v4946 = vrot.slane %v4846, 7
  %v4947 = vrot.slane %v4847, 7
  %v4948 = vrot.slane %v4848, 7
  %v4949 = vrot.slane %v4849, 7
  %v4950 = vrot.slane %v4850, 7
  %v4951 = vrot.slane %v4851, 7
  %v4952 = vrot.slane %v4852, 7
  %v4953 = vrot.slane %v4853, 7
  %v4954 = vrot.slane %v4854, 7
  %v4955 = vrot.slane %v4855, 7
  %v4956 = vrot.slane %v4856, 7
  %v4957 = vrot.slane %v4857, 7
  %v4958 = vrot.slane %v4858, 7
  %v4959 = vrot.slane %v4859, 7
  %v4960 = vrot.slane %v4860, 7
  %v4961 = vrot.slane %v4861, 7
  %v4962 = vrot.slane %v4862, 7
  %v4963 = vrot.slane %v4863, 7
  %v4964 = vrot.slane %v4864, 7
  %v4965 = vrot.slane %v4865, 7
  %v4966 = vrot.slane %v4866, 7
  %v4967 = vrot.slane %v4867, 7
  %v4968 = vrot.slane %v4868, 7
  %v4969 = vrot.slane %v4869, 7
  %v4970 = vrot.slane %v4870, 7
  %v4971 = vrot.slane %v4871, 7
  %v4972 = vrot.slane %v4872, 7
  %v4973 = vrot.slane %v4873, 7
  %v4974 = vrot.slane %v4874, 7
  %v4975 = vrot.slane %v4875, 7
  %v4976 = vrot.slane %v4876, 7
  %v4977 = vrot.slane %v4877, 7
  %v4978 = vrot.slane %v4878, 7
  %v4979 = vrot.slane %v4879, 7
  %v4980 = vrot.slane %v4880, 7
  %v4981 = vrot.slane %v4881, 7
  %v4982 = vrot.slane %v4882, 7
  %v4983 = vrot.slane %v4883, 7
  %v4984 = vrot.slane %v4884, 7
  %v4985 = vrot.slane %v4885, 7
  %v4986 = vrot.slane %v4886, 7
  %v4987 = vrot.slane %v4887, 7
  %v4988 = vrot.slane %v4888, 7
  %v4989 = vrot.slane %v4889, 7
  %v4990 = vrot.slane %v4890, 7
  %v4991 = vrot.slane %v4891, 7
  %v4992 = vrot.slane %v4892, 7
  %v4993 = vrot.slane %v4893, 7
  %v4994 = vrot.slane %v4894, 7
  %v4995 = vrot.slane %v4895, 7
  %v4996 = vrot.slane %v4896, 7
  %v4997 = vrot.slane %v4897, 7
  %v4998 = vrot.slane %v4898, 7
  %v4999 = vrot.slane %v4899, 7
  %v5000 = vrot.slane %v4900, 7
  %v5001 = vrot.slane %v4901, 7
  %v5002 = vrot.slane %v4902, 7
  %v5003 = vrot.slane %v4903, 7
  %v5004 = vsel %vm2135, %v5002, %v5003
  %v5005 = vsel %vm2135, %v5001, %v5002
  %v5006 = vsel %vm2135, %v5000, %v5001
  %v5007 = vsel %vm2135, %v4999, %v5000
  %v5008 = vsel %vm2135, %v4998, %v4999
  %v5009 = vsel %vm2135, %v4997, %v4998
  %v5010 = vsel %vm2135, %v4996, %v4997
  %v5011 = vsel %vm2135, %v4995, %v4996
  %v5012 = vsel %vm2135, %v4994, %v4995
  %v5013 = vsel %vm2135, %v4993, %v4994
  %v5014 = vsel %vm2135, %v4992, %v4993
  %v5015 = vsel %vm2135, %v4991, %v4992
  %v5016 = vsel %vm2135, %v4990, %v4991
  %v5017 = vsel %vm2135, %v4989, %v4990
  %v5018 = vsel %vm2135, %v4988, %v4989
  %v5019 = vsel %vm2135, %v4987, %v4988
  %v5020 = vsel %vm2135, %v4986, %v4987
  %v5021 = vsel %vm2135, %v4985, %v4986
  %v5022 = vsel %vm2135, %v4984, %v4985
  %v5023 = vsel %vm2135, %v4983, %v4984
  %v5024 = vsel %vm2135, %v4982, %v4983
  %v5025 = vsel %vm2135, %v4981, %v4982
  %v5026 = vsel %vm2135, %v4980, %v4981
  %v5027 = vsel %vm2135, %v4979, %v4980
  %v5028 = vsel %vm2135, %v4978, %v4979
  %v5029 = vsel %vm2135, %v4977, %v4978
  %v5030 = vsel %vm2135, %v4976, %v4977
  %v5031 = vsel %vm2135, %v4975, %v4976
  %v5032 = vsel %vm2135, %v4974, %v4975
  %v5033 = vsel %vm2135, %v4973, %v4974
  %v5034 = vsel %vm2135, %v4972, %v4973
  %v5035 = vsel %vm2135, %v4971, %v4972
  %v5036 = vsel %vm2135, %v4970, %v4971
  %v5037 = vsel %vm2135, %v4969, %v4970
  %v5038 = vsel %vm2135, %v4968, %v4969
  %v5039 = vsel %vm2135, %v4967, %v4968
  %v5040 = vsel %vm2135, %v4966, %v4967
  %v5041 = vsel %vm2135, %v4965, %v4966
  %v5042 = vsel %vm2135, %v4964, %v4965
  %v5043 = vsel %vm2135, %v4963, %v4964
  %v5044 = vsel %vm2135, %v4962, %v4963
  %v5045 = vsel %vm2135, %v4961, %v4962
  %v5046 = vsel %vm2135, %v4960, %v4961
  %v5047 = vsel %vm2135, %v4959, %v4960
  %v5048 = vsel %vm2135, %v4958, %v4959
  %v5049 = vsel %vm2135, %v4957, %v4958
  %v5050 = vsel %vm2135, %v4956, %v4957
  %v5051 = vsel %vm2135, %v4955, %v4956
  %v5052 = vsel %vm2135, %v4954, %v4955
  %v5053 = vsel %vm2135, %v4953, %v4954
  %v5054 = vsel %vm2135, %v4952, %v4953
  %v5055 = vsel %vm2135, %v4951, %v4952
  %v5056 = vsel %vm2135, %v4950, %v4951
  %v5057 = vsel %vm2135, %v4949, %v4950
  %v5058 = vsel %vm2135, %v4948, %v4949
  %v5059 = vsel %vm2135, %v4947, %v4948
  %v5060 = vsel %vm2135, %v4946, %v4947
  %v5061 = vsel %vm2135, %v4945, %v4946
  %v5062 = vsel %vm2135, %v4944, %v4945
  %v5063 = vsel %vm2135, %v4943, %v4944
  %v5064 = vsel %vm2135, %v4942, %v4943
  %v5065 = vsel %vm2135, %v4941, %v4942
  %v5066 = vsel %vm2135, %v4940, %v4941
  %v5067 = vsel %vm2135, %v4939, %v4940
  %v5068 = vsel %vm2135, %v4938, %v4939
  %v5069 = vsel %vm2135, %v4937, %v4938
  %v5070 = vsel %vm2135, %v4936, %v4937
  %v5071 = vsel %vm2135, %v4935, %v4936
  %v5072 = vsel %vm2135, %v4934, %v4935
  %v5073 = vsel %vm2135, %v4933, %v4934
  %v5074 = vsel %vm2135, %v4932, %v4933
  %v5075 = vsel %vm2135, %v4931, %v4932
  %v5076 = vsel %vm2135, %v4930, %v4931
  %v5077 = vsel %vm2135, %v4929, %v4930
  %v5078 = vsel %vm2135, %v4928, %v4929
  %v5079 = vsel %vm2135, %v4927, %v4928
  %v5080 = vsel %vm2135, %v4926, %v4927
  %v5081 = vsel %vm2135, %v4925, %v4926
  %v5082 = vsel %vm2135, %v4924, %v4925
  %v5083 = vsel %vm2135, %v4923, %v4924
  %v5084 = vsel %vm2135, %v4922, %v4923
  %v5085 = vsel %vm2135, %v4921, %v4922
  %v5086 = vsel %vm2135, %v4920, %v4921
  %v5087 = vsel %vm2135, %v4919, %v4920
  %v5088 = vsel %vm2135, %v4918, %v4919
  %v5089 = vsel %vm2135, %v4917, %v4918
  %v5090 = vsel %vm2135, %v4916, %v4917
  %v5091 = vsel %vm2135, %v4915, %v4916
  %v5092 = vsel %vm2135, %v4914, %v4915
  %v5093 = vsel %vm2135, %v4913, %v4914
  %v5094 = vsel %vm2135, %v4912, %v4913
  %v5095 = vsel %vm2135, %v4911, %v4912
  %v5096 = vsel %vm2135, %v4910, %v4911
  %v5097 = vsel %vm2135, %v4909, %v4910
  %v5098 = vsel %vm2135, %v4908, %v4909
  %v5099 = vsel %vm2135, %v4907, %v4908
  %v5100 = vsel %vm2135, %v4906, %v4907
  %v5101 = vsel %vm2135, %v4905, %v4906
  %v5102 = vsel %vm2135, %v4904, %v4905
  %v5103 = vsel %vm2135, %v5003, %v4904
  %v5104 = vsel %vm2336, %v5103, 0.0
  %v5105 = vsel %vm2337, %v5102, 0.0
  %v5106 = vsel %vm2338, %v5101, 0.0
  %v5107 = vsel %vm2339, %v5100, 0.0
  %v5108 = vsel %vm2340, %v5099, 0.0
  %v5109 = vsel %vm2341, %v5098, 0.0
  %v5110 = vsel %vm2342, %v5097, 0.0
  %v5111 = vsel %vm2343, %v5096, 0.0
  %v5112 = vsel %vm2344, %v5095, 0.0
  %v5113 = vsel %vm2345, %v5094, 0.0
  %v5114 = vsel %vm2346, %v5093, 0.0
  %v5115 = vsel %vm2347, %v5092, 0.0
  %v5116 = vsel %vm2348, %v5091, 0.0
  %v5117 = vsel %vm2349, %v5090, 0.0
  %v5118 = vsel %vm2350, %v5089, 0.0
  %v5119 = vsel %vm2351, %v5088, 0.0
  %v5120 = vsel %vm2352, %v5087, 0.0
  %v5121 = vsel %vm2353, %v5086, 0.0
  %v5122 = vsel %vm2354, %v5085, 0.0
  %v5123 = vsel %vm2355, %v5084, 0.0
  %v5124 = vsel %vm2356, %v5083, 0.0
  %v5125 = vsel %vm2357, %v5082, 0.0
  %v5126 = vsel %vm2358, %v5081, 0.0
  %v5127 = vsel %vm2359, %v5080, 0.0
  %v5128 = vsel %vm2360, %v5079, 0.0
  %v5129 = vsel %vm2361, %v5078, 0.0
  %v5130 = vsel %vm2362, %v5077, 0.0
  %v5131 = vsel %vm2363, %v5076, 0.0
  %v5132 = vsel %vm2364, %v5075, 0.0
  %v5133 = vsel %vm2365, %v5074, 0.0
  %v5134 = vsel %vm2366, %v5073, 0.0
  %v5135 = vsel %vm2367, %v5072, 0.0
  %v5136 = vsel %vm2368, %v5071, 0.0
  %v5137 = vsel %vm2369, %v5070, 0.0
  %v5138 = vsel %vm2370, %v5069, 0.0
  %v5139 = vsel %vm2371, %v5068, 0.0
  %v5140 = vsel %vm2372, %v5067, 0.0
  %v5141 = vsel %vm2373, %v5066, 0.0
  %v5142 = vsel %vm2374, %v5065, 0.0
  %v5143 = vsel %vm2375, %v5064, 0.0
  %v5144 = vsel %vm2376, %v5063, 0.0
  %v5145 = vsel %vm2377, %v5062, 0.0
  %v5146 = vsel %vm2378, %v5061, 0.0
  %v5147 = vsel %vm2379, %v5060, 0.0
  %v5148 = vsel %vm2380, %v5059, 0.0
  %v5149 = vsel %vm2381, %v5058, 0.0
  %v5150 = vsel %vm2382, %v5057, 0.0
  %v5151 = vsel %vm2383, %v5056, 0.0
  %v5152 = vsel %vm2384, %v5055, 0.0
  %v5153 = vsel %vm2385, %v5054, 0.0
  %v5154 = vsel %vm2386, %v5053, 0.0
  %v5155 = vsel %vm2387, %v5052, 0.0
  %v5156 = vsel %vm2388, %v5051, 0.0
  %v5157 = vsel %vm2389, %v5050, 0.0
  %v5158 = vsel %vm2390, %v5049, 0.0
  %v5159 = vsel %vm2391, %v5048, 0.0
  %v5160 = vsel %vm2392, %v5047, 0.0
  %v5161 = vsel %vm2393, %v5046, 0.0
  %v5162 = vsel %vm2394, %v5045, 0.0
  %v5163 = vsel %vm2395, %v5044, 0.0
  %v5164 = vsel %vm2396, %v5043, 0.0
  %v5165 = vsel %vm2397, %v5042, 0.0
  %v5166 = vsel %vm2398, %v5041, 0.0
  %v5167 = vsel %vm2399, %v5040, 0.0
  %v5168 = vsel %vm2400, %v5039, 0.0
  %v5169 = vsel %vm2401, %v5038, 0.0
  %v5170 = vsel %vm2402, %v5037, 0.0
  %v5171 = vsel %vm2403, %v5036, 0.0
  %v5172 = vsel %vm2404, %v5035, 0.0
  %v5173 = vsel %vm2405, %v5034, 0.0
  %v5174 = vsel %vm2406, %v5033, 0.0
  %v5175 = vsel %vm2407, %v5032, 0.0
  %v5176 = vsel %vm2408, %v5031, 0.0
  %v5177 = vsel %vm2409, %v5030, 0.0
  %v5178 = vsel %vm2410, %v5029, 0.0
  %v5179 = vsel %vm2411, %v5028, 0.0
  %v5180 = vsel %vm2412, %v5027, 0.0
  %v5181 = vsel %vm2413, %v5026, 0.0
  %v5182 = vsel %vm2414, %v5025, 0.0
  %v5183 = vsel %vm2415, %v5024, 0.0
  %v5184 = vsel %vm2416, %v5023, 0.0
  %v5185 = vsel %vm2417, %v5022, 0.0
  %v5186 = vsel %vm2418, %v5021, 0.0
  %v5187 = vsel %vm2419, %v5020, 0.0
  %v5188 = vsel %vm2420, %v5019, 0.0
  %v5189 = vsel %vm2421, %v5018, 0.0
  %v5190 = vsel %vm2422, %v5017, 0.0
  %v5191 = vsel %vm2423, %v5016, 0.0
  %v5192 = vsel %vm2424, %v5015, 0.0
  %v5193 = vsel %vm2425, %v5014, 0.0
  %v5194 = vsel %vm2426, %v5013, 0.0
  %v5195 = vsel %vm2427, %v5012, 0.0
  %v5196 = vsel %vm2428, %v5011, 0.0
  %v5197 = vsel %vm2429, %v5010, 0.0
  %v5198 = vsel %vm2430, %v5009, 0.0
  %v5199 = vsel %vm2431, %v5008, 0.0
  %v5200 = vsel %vm2432, %v5007, 0.0
  %v5201 = vsel %vm2433, %v5006, 0.0
  %v5202 = vsel %vm2434, %v5005, 0.0
  %v5203 = vsel %vm2435, %v5004, 0.0
  %v5204 = vrot.slane %v4804, 1
  %v5205 = vrot.slane %v4805, 1
  %v5206 = vrot.slane %v4806, 1
  %v5207 = vrot.slane %v4807, 1
  %v5208 = vrot.slane %v4808, 1
  %v5209 = vrot.slane %v4809, 1
  %v5210 = vrot.slane %v4810, 1
  %v5211 = vrot.slane %v4811, 1
  %v5212 = vrot.slane %v4812, 1
  %v5213 = vrot.slane %v4813, 1
  %v5214 = vrot.slane %v4814, 1
  %v5215 = vrot.slane %v4815, 1
  %v5216 = vrot.slane %v4816, 1
  %v5217 = vrot.slane %v4817, 1
  %v5218 = vrot.slane %v4818, 1
  %v5219 = vrot.slane %v4819, 1
  %v5220 = vrot.slane %v4820, 1
  %v5221 = vrot.slane %v4821, 1
  %v5222 = vrot.slane %v4822, 1
  %v5223 = vrot.slane %v4823, 1
  %v5224 = vrot.slane %v4824, 1
  %v5225 = vrot.slane %v4825, 1
  %v5226 = vrot.slane %v4826, 1
  %v5227 = vrot.slane %v4827, 1
  %v5228 = vrot.slane %v4828, 1
  %v5229 = vrot.slane %v4829, 1
  %v5230 = vrot.slane %v4830, 1
  %v5231 = vrot.slane %v4831, 1
  %v5232 = vrot.slane %v4832, 1
  %v5233 = vrot.slane %v4833, 1
  %v5234 = vrot.slane %v4834, 1
  %v5235 = vrot.slane %v4835, 1
  %v5236 = vrot.slane %v4836, 1
  %v5237 = vrot.slane %v4837, 1
  %v5238 = vrot.slane %v4838, 1
  %v5239 = vrot.slane %v4839, 1
  %v5240 = vrot.slane %v4840, 1
  %v5241 = vrot.slane %v4841, 1
  %v5242 = vrot.slane %v4842, 1
  %v5243 = vrot.slane %v4843, 1
  %v5244 = vrot.slane %v4844, 1
  %v5245 = vrot.slane %v4845, 1
  %v5246 = vrot.slane %v4846, 1
  %v5247 = vrot.slane %v4847, 1
  %v5248 = vrot.slane %v4848, 1
  %v5249 = vrot.slane %v4849, 1
  %v5250 = vrot.slane %v4850, 1
  %v5251 = vrot.slane %v4851, 1
  %v5252 = vrot.slane %v4852, 1
  %v5253 = vrot.slane %v4853, 1
  %v5254 = vrot.slane %v4854, 1
  %v5255 = vrot.slane %v4855, 1
  %v5256 = vrot.slane %v4856, 1
  %v5257 = vrot.slane %v4857, 1
  %v5258 = vrot.slane %v4858, 1
  %v5259 = vrot.slane %v4859, 1
  %v5260 = vrot.slane %v4860, 1
  %v5261 = vrot.slane %v4861, 1
  %v5262 = vrot.slane %v4862, 1
  %v5263 = vrot.slane %v4863, 1
  %v5264 = vrot.slane %v4864, 1
  %v5265 = vrot.slane %v4865, 1
  %v5266 = vrot.slane %v4866, 1
  %v5267 = vrot.slane %v4867, 1
  %v5268 = vrot.slane %v4868, 1
  %v5269 = vrot.slane %v4869, 1
  %v5270 = vrot.slane %v4870, 1
  %v5271 = vrot.slane %v4871, 1
  %v5272 = vrot.slane %v4872, 1
  %v5273 = vrot.slane %v4873, 1
  %v5274 = vrot.slane %v4874, 1
  %v5275 = vrot.slane %v4875, 1
  %v5276 = vrot.slane %v4876, 1
  %v5277 = vrot.slane %v4877, 1
  %v5278 = vrot.slane %v4878, 1
  %v5279 = vrot.slane %v4879, 1
  %v5280 = vrot.slane %v4880, 1
  %v5281 = vrot.slane %v4881, 1
  %v5282 = vrot.slane %v4882, 1
  %v5283 = vrot.slane %v4883, 1
  %v5284 = vrot.slane %v4884, 1
  %v5285 = vrot.slane %v4885, 1
  %v5286 = vrot.slane %v4886, 1
  %v5287 = vrot.slane %v4887, 1
  %v5288 = vrot.slane %v4888, 1
  %v5289 = vrot.slane %v4889, 1
  %v5290 = vrot.slane %v4890, 1
  %v5291 = vrot.slane %v4891, 1
  %v5292 = vrot.slane %v4892, 1
  %v5293 = vrot.slane %v4893, 1
  %v5294 = vrot.slane %v4894, 1
  %v5295 = vrot.slane %v4895, 1
  %v5296 = vrot.slane %v4896, 1
  %v5297 = vrot.slane %v4897, 1
  %v5298 = vrot.slane %v4898, 1
  %v5299 = vrot.slane %v4899, 1
  %v5300 = vrot.slane %v4900, 1
  %v5301 = vrot.slane %v4901, 1
  %v5302 = vrot.slane %v4902, 1
  %v5303 = vrot.slane %v4903, 1
  %v5304 = vsel %vm2636, %v5302, %v5303
  %v5305 = vsel %vm2636, %v5301, %v5302
  %v5306 = vsel %vm2636, %v5300, %v5301
  %v5307 = vsel %vm2636, %v5299, %v5300
  %v5308 = vsel %vm2636, %v5298, %v5299
  %v5309 = vsel %vm2636, %v5297, %v5298
  %v5310 = vsel %vm2636, %v5296, %v5297
  %v5311 = vsel %vm2636, %v5295, %v5296
  %v5312 = vsel %vm2636, %v5294, %v5295
  %v5313 = vsel %vm2636, %v5293, %v5294
  %v5314 = vsel %vm2636, %v5292, %v5293
  %v5315 = vsel %vm2636, %v5291, %v5292
  %v5316 = vsel %vm2636, %v5290, %v5291
  %v5317 = vsel %vm2636, %v5289, %v5290
  %v5318 = vsel %vm2636, %v5288, %v5289
  %v5319 = vsel %vm2636, %v5287, %v5288
  %v5320 = vsel %vm2636, %v5286, %v5287
  %v5321 = vsel %vm2636, %v5285, %v5286
  %v5322 = vsel %vm2636, %v5284, %v5285
  %v5323 = vsel %vm2636, %v5283, %v5284
  %v5324 = vsel %vm2636, %v5282, %v5283
  %v5325 = vsel %vm2636, %v5281, %v5282
  %v5326 = vsel %vm2636, %v5280, %v5281
  %v5327 = vsel %vm2636, %v5279, %v5280
  %v5328 = vsel %vm2636, %v5278, %v5279
  %v5329 = vsel %vm2636, %v5277, %v5278
  %v5330 = vsel %vm2636, %v5276, %v5277
  %v5331 = vsel %vm2636, %v5275, %v5276
  %v5332 = vsel %vm2636, %v5274, %v5275
  %v5333 = vsel %vm2636, %v5273, %v5274
  %v5334 = vsel %vm2636, %v5272, %v5273
  %v5335 = vsel %vm2636, %v5271, %v5272
  %v5336 = vsel %vm2636, %v5270, %v5271
  %v5337 = vsel %vm2636, %v5269, %v5270
  %v5338 = vsel %vm2636, %v5268, %v5269
  %v5339 = vsel %vm2636, %v5267, %v5268
  %v5340 = vsel %vm2636, %v5266, %v5267
  %v5341 = vsel %vm2636, %v5265, %v5266
  %v5342 = vsel %vm2636, %v5264, %v5265
  %v5343 = vsel %vm2636, %v5263, %v5264
  %v5344 = vsel %vm2636, %v5262, %v5263
  %v5345 = vsel %vm2636, %v5261, %v5262
  %v5346 = vsel %vm2636, %v5260, %v5261
  %v5347 = vsel %vm2636, %v5259, %v5260
  %v5348 = vsel %vm2636, %v5258, %v5259
  %v5349 = vsel %vm2636, %v5257, %v5258
  %v5350 = vsel %vm2636, %v5256, %v5257
  %v5351 = vsel %vm2636, %v5255, %v5256
  %v5352 = vsel %vm2636, %v5254, %v5255
  %v5353 = vsel %vm2636, %v5253, %v5254
  %v5354 = vsel %vm2636, %v5252, %v5253
  %v5355 = vsel %vm2636, %v5251, %v5252
  %v5356 = vsel %vm2636, %v5250, %v5251
  %v5357 = vsel %vm2636, %v5249, %v5250
  %v5358 = vsel %vm2636, %v5248, %v5249
  %v5359 = vsel %vm2636, %v5247, %v5248
  %v5360 = vsel %vm2636, %v5246, %v5247
  %v5361 = vsel %vm2636, %v5245, %v5246
  %v5362 = vsel %vm2636, %v5244, %v5245
  %v5363 = vsel %vm2636, %v5243, %v5244
  %v5364 = vsel %vm2636, %v5242, %v5243
  %v5365 = vsel %vm2636, %v5241, %v5242
  %v5366 = vsel %vm2636, %v5240, %v5241
  %v5367 = vsel %vm2636, %v5239, %v5240
  %v5368 = vsel %vm2636, %v5238, %v5239
  %v5369 = vsel %vm2636, %v5237, %v5238
  %v5370 = vsel %vm2636, %v5236, %v5237
  %v5371 = vsel %vm2636, %v5235, %v5236
  %v5372 = vsel %vm2636, %v5234, %v5235
  %v5373 = vsel %vm2636, %v5233, %v5234
  %v5374 = vsel %vm2636, %v5232, %v5233
  %v5375 = vsel %vm2636, %v5231, %v5232
  %v5376 = vsel %vm2636, %v5230, %v5231
  %v5377 = vsel %vm2636, %v5229, %v5230
  %v5378 = vsel %vm2636, %v5228, %v5229
  %v5379 = vsel %vm2636, %v5227, %v5228
  %v5380 = vsel %vm2636, %v5226, %v5227
  %v5381 = vsel %vm2636, %v5225, %v5226
  %v5382 = vsel %vm2636, %v5224, %v5225
  %v5383 = vsel %vm2636, %v5223, %v5224
  %v5384 = vsel %vm2636, %v5222, %v5223
  %v5385 = vsel %vm2636, %v5221, %v5222
  %v5386 = vsel %vm2636, %v5220, %v5221
  %v5387 = vsel %vm2636, %v5219, %v5220
  %v5388 = vsel %vm2636, %v5218, %v5219
  %v5389 = vsel %vm2636, %v5217, %v5218
  %v5390 = vsel %vm2636, %v5216, %v5217
  %v5391 = vsel %vm2636, %v5215, %v5216
  %v5392 = vsel %vm2636, %v5214, %v5215
  %v5393 = vsel %vm2636, %v5213, %v5214
  %v5394 = vsel %vm2636, %v5212, %v5213
  %v5395 = vsel %vm2636, %v5211, %v5212
  %v5396 = vsel %vm2636, %v5210, %v5211
  %v5397 = vsel %vm2636, %v5209, %v5210
  %v5398 = vsel %vm2636, %v5208, %v5209
  %v5399 = vsel %vm2636, %v5207, %v5208
  %v5400 = vsel %vm2636, %v5206, %v5207
  %v5401 = vsel %vm2636, %v5205, %v5206
  %v5402 = vsel %vm2636, %v5204, %v5205
  %v5403 = vsel %vm2636, %v5303, %v5204
  %v5404 = vsel %vm2837, %v5402, 0.0
  %v5405 = vsel %vm2838, %v5401, 0.0
  %v5406 = vsel %vm2839, %v5400, 0.0
  %v5407 = vsel %vm2840, %v5399, 0.0
  %v5408 = vsel %vm2841, %v5398, 0.0
  %v5409 = vsel %vm2842, %v5397, 0.0
  %v5410 = vsel %vm2843, %v5396, 0.0
  %v5411 = vsel %vm2844, %v5395, 0.0
  %v5412 = vsel %vm2845, %v5394, 0.0
  %v5413 = vsel %vm2846, %v5393, 0.0
  %v5414 = vsel %vm2847, %v5392, 0.0
  %v5415 = vsel %vm2848, %v5391, 0.0
  %v5416 = vsel %vm2849, %v5390, 0.0
  %v5417 = vsel %vm2850, %v5389, 0.0
  %v5418 = vsel %vm2851, %v5388, 0.0
  %v5419 = vsel %vm2852, %v5387, 0.0
  %v5420 = vsel %vm2853, %v5386, 0.0
  %v5421 = vsel %vm2854, %v5385, 0.0
  %v5422 = vsel %vm2855, %v5384, 0.0
  %v5423 = vsel %vm2856, %v5383, 0.0
  %v5424 = vsel %vm2857, %v5382, 0.0
  %v5425 = vsel %vm2858, %v5381, 0.0
  %v5426 = vsel %vm2859, %v5380, 0.0
  %v5427 = vsel %vm2860, %v5379, 0.0
  %v5428 = vsel %vm2861, %v5378, 0.0
  %v5429 = vsel %vm2862, %v5377, 0.0
  %v5430 = vsel %vm2863, %v5376, 0.0
  %v5431 = vsel %vm2864, %v5375, 0.0
  %v5432 = vsel %vm2865, %v5374, 0.0
  %v5433 = vsel %vm2866, %v5373, 0.0
  %v5434 = vsel %vm2867, %v5372, 0.0
  %v5435 = vsel %vm2868, %v5371, 0.0
  %v5436 = vsel %vm2869, %v5370, 0.0
  %v5437 = vsel %vm2870, %v5369, 0.0
  %v5438 = vsel %vm2871, %v5368, 0.0
  %v5439 = vsel %vm2872, %v5367, 0.0
  %v5440 = vsel %vm2873, %v5366, 0.0
  %v5441 = vsel %vm2874, %v5365, 0.0
  %v5442 = vsel %vm2875, %v5364, 0.0
  %v5443 = vsel %vm2876, %v5363, 0.0
  %v5444 = vsel %vm2877, %v5362, 0.0
  %v5445 = vsel %vm2878, %v5361, 0.0
  %v5446 = vsel %vm2879, %v5360, 0.0
  %v5447 = vsel %vm2880, %v5359, 0.0
  %v5448 = vsel %vm2881, %v5358, 0.0
  %v5449 = vsel %vm2882, %v5357, 0.0
  %v5450 = vsel %vm2883, %v5356, 0.0
  %v5451 = vsel %vm2884, %v5355, 0.0
  %v5452 = vsel %vm2885, %v5354, 0.0
  %v5453 = vsel %vm2886, %v5353, 0.0
  %v5454 = vsel %vm2887, %v5352, 0.0
  %v5455 = vsel %vm2888, %v5351, 0.0
  %v5456 = vsel %vm2889, %v5350, 0.0
  %v5457 = vsel %vm2890, %v5349, 0.0
  %v5458 = vsel %vm2891, %v5348, 0.0
  %v5459 = vsel %vm2892, %v5347, 0.0
  %v5460 = vsel %vm2893, %v5346, 0.0
  %v5461 = vsel %vm2894, %v5345, 0.0
  %v5462 = vsel %vm2895, %v5344, 0.0
  %v5463 = vsel %vm2896, %v5343, 0.0
  %v5464 = vsel %vm2897, %v5342, 0.0
  %v5465 = vsel %vm2898, %v5341, 0.0
  %v5466 = vsel %vm2899, %v5340, 0.0
  %v5467 = vsel %vm2900, %v5339, 0.0
  %v5468 = vsel %vm2901, %v5338, 0.0
  %v5469 = vsel %vm2902, %v5337, 0.0
  %v5470 = vsel %vm2903, %v5336, 0.0
  %v5471 = vsel %vm2904, %v5335, 0.0
  %v5472 = vsel %vm2905, %v5334, 0.0
  %v5473 = vsel %vm2906, %v5333, 0.0
  %v5474 = vsel %vm2907, %v5332, 0.0
  %v5475 = vsel %vm2908, %v5331, 0.0
  %v5476 = vsel %vm2909, %v5330, 0.0
  %v5477 = vsel %vm2910, %v5329, 0.0
  %v5478 = vsel %vm2911, %v5328, 0.0
  %v5479 = vsel %vm2912, %v5327, 0.0
  %v5480 = vsel %vm2913, %v5326, 0.0
  %v5481 = vsel %vm2914, %v5325, 0.0
  %v5482 = vsel %vm2915, %v5324, 0.0
  %v5483 = vsel %vm2916, %v5323, 0.0
  %v5484 = vsel %vm2917, %v5322, 0.0
  %v5485 = vsel %vm2918, %v5321, 0.0
  %v5486 = vsel %vm2919, %v5320, 0.0
  %v5487 = vsel %vm2920, %v5319, 0.0
  %v5488 = vsel %vm2921, %v5318, 0.0
  %v5489 = vsel %vm2922, %v5317, 0.0
  %v5490 = vsel %vm2923, %v5316, 0.0
  %v5491 = vsel %vm2924, %v5315, 0.0
  %v5492 = vsel %vm2925, %v5314, 0.0
  %v5493 = vsel %vm2926, %v5313, 0.0
  %v5494 = vsel %vm2927, %v5312, 0.0
  %v5495 = vsel %vm2928, %v5311, 0.0
  %v5496 = vsel %vm2929, %v5310, 0.0
  %v5497 = vsel %vm2930, %v5309, 0.0
  %v5498 = vsel %vm2931, %v5308, 0.0
  %v5499 = vsel %vm2932, %v5307, 0.0
  %v5500 = vsel %vm2933, %v5306, 0.0
  %v5501 = vsel %vm2934, %v5305, 0.0
  %v5502 = vsel %vm2935, %v5304, 0.0
  %v5503 = vsel %vm2936, %v5403, 0.0
  %5604 = vrot.lane.b32.xlu0 %v4804, 16
  %v5605 = vpop.permute.xlu0 %5604
  %5606 = vrot.lane.b32.xlu0 %v4805, 16
  %v5607 = vpop.permute.xlu0 %5606
  %5608 = vrot.lane.b32.xlu0 %v4806, 16
  %v5609 = vpop.permute.xlu0 %5608
  %5610 = vrot.lane.b32.xlu0 %v4807, 16
  %v5611 = vpop.permute.xlu0 %5610
  %5612 = vrot.lane.b32.xlu0 %v4808, 16
  %v5613 = vpop.permute.xlu0 %5612
  %5614 = vrot.lane.b32.xlu0 %v4809, 16
  %v5615 = vpop.permute.xlu0 %5614
  %5616 = vrot.lane.b32.xlu0 %v4810, 16
  %v5617 = vpop.permute.xlu0 %5616
  %5618 = vrot.lane.b32.xlu0 %v4811, 16
  %v5619 = vpop.permute.xlu0 %5618
  %5620 = vrot.lane.b32.xlu0 %v4812, 16
  %v5621 = vpop.permute.xlu0 %5620
  %5622 = vrot.lane.b32.xlu0 %v4813, 16
  %v5623 = vpop.permute.xlu0 %5622
  %5624 = vrot.lane.b32.xlu0 %v4814, 16
  %v5625 = vpop.permute.xlu0 %5624
  %5626 = vrot.lane.b32.xlu0 %v4815, 16
  %v5627 = vpop.permute.xlu0 %5626
  %5628 = vrot.lane.b32.xlu0 %v4816, 16
  %v5629 = vpop.permute.xlu0 %5628
  %5630 = vrot.lane.b32.xlu0 %v4817, 16
  %v5631 = vpop.permute.xlu0 %5630
  %5632 = vrot.lane.b32.xlu0 %v4818, 16
  %v5633 = vpop.permute.xlu0 %5632
  %5634 = vrot.lane.b32.xlu0 %v4819, 16
  %v5635 = vpop.permute.xlu0 %5634
  %5636 = vrot.lane.b32.xlu0 %v4820, 16
  %v5637 = vpop.permute.xlu0 %5636
  %5638 = vrot.lane.b32.xlu0 %v4821, 16
  %v5639 = vpop.permute.xlu0 %5638
  %5640 = vrot.lane.b32.xlu0 %v4822, 16
  %v5641 = vpop.permute.xlu0 %5640
  %5642 = vrot.lane.b32.xlu0 %v4823, 16
  %v5643 = vpop.permute.xlu0 %5642
  %5644 = vrot.lane.b32.xlu0 %v4824, 16
  %v5645 = vpop.permute.xlu0 %5644
  %5646 = vrot.lane.b32.xlu0 %v4825, 16
  %v5647 = vpop.permute.xlu0 %5646
  %5648 = vrot.lane.b32.xlu0 %v4826, 16
  %v5649 = vpop.permute.xlu0 %5648
  %5650 = vrot.lane.b32.xlu0 %v4827, 16
  %v5651 = vpop.permute.xlu0 %5650
  %5652 = vrot.lane.b32.xlu0 %v4828, 16
  %v5653 = vpop.permute.xlu0 %5652
  %5654 = vrot.lane.b32.xlu0 %v4829, 16
  %v5655 = vpop.permute.xlu0 %5654
  %5656 = vrot.lane.b32.xlu0 %v4830, 16
  %v5657 = vpop.permute.xlu0 %5656
  %5658 = vrot.lane.b32.xlu0 %v4831, 16
  %v5659 = vpop.permute.xlu0 %5658
  %5660 = vrot.lane.b32.xlu0 %v4832, 16
  %v5661 = vpop.permute.xlu0 %5660
  %5662 = vrot.lane.b32.xlu0 %v4833, 16
  %v5663 = vpop.permute.xlu0 %5662
  %5664 = vrot.lane.b32.xlu0 %v4834, 16
  %v5665 = vpop.permute.xlu0 %5664
  %5666 = vrot.lane.b32.xlu0 %v4835, 16
  %v5667 = vpop.permute.xlu0 %5666
  %5668 = vrot.lane.b32.xlu0 %v4836, 16
  %v5669 = vpop.permute.xlu0 %5668
  %5670 = vrot.lane.b32.xlu0 %v4837, 16
  %v5671 = vpop.permute.xlu0 %5670
  %5672 = vrot.lane.b32.xlu0 %v4838, 16
  %v5673 = vpop.permute.xlu0 %5672
  %5674 = vrot.lane.b32.xlu0 %v4839, 16
  %v5675 = vpop.permute.xlu0 %5674
  %5676 = vrot.lane.b32.xlu0 %v4840, 16
  %v5677 = vpop.permute.xlu0 %5676
  %5678 = vrot.lane.b32.xlu0 %v4841, 16
  %v5679 = vpop.permute.xlu0 %5678
  %5680 = vrot.lane.b32.xlu0 %v4842, 16
  %v5681 = vpop.permute.xlu0 %5680
  %5682 = vrot.lane.b32.xlu0 %v4843, 16
  %v5683 = vpop.permute.xlu0 %5682
  %5684 = vrot.lane.b32.xlu0 %v4844, 16
  %v5685 = vpop.permute.xlu0 %5684
  %5686 = vrot.lane.b32.xlu0 %v4845, 16
  %v5687 = vpop.permute.xlu0 %5686
  %5688 = vrot.lane.b32.xlu0 %v4846, 16
  %v5689 = vpop.permute.xlu0 %5688
  %5690 = vrot.lane.b32.xlu0 %v4847, 16
  %v5691 = vpop.permute.xlu0 %5690
  %5692 = vrot.lane.b32.xlu0 %v4848, 16
  %v5693 = vpop.permute.xlu0 %5692
  %5694 = vrot.lane.b32.xlu0 %v4849, 16
  %v5695 = vpop.permute.xlu0 %5694
  %5696 = vrot.lane.b32.xlu0 %v4850, 16
  %v5697 = vpop.permute.xlu0 %5696
  %5698 = vrot.lane.b32.xlu0 %v4851, 16
  %v5699 = vpop.permute.xlu0 %5698
  %5700 = vrot.lane.b32.xlu0 %v4852, 16
  %v5701 = vpop.permute.xlu0 %5700
  %5702 = vrot.lane.b32.xlu0 %v4853, 16
  %v5703 = vpop.permute.xlu0 %5702
  %5704 = vrot.lane.b32.xlu0 %v4854, 16
  %v5705 = vpop.permute.xlu0 %5704
  %5706 = vrot.lane.b32.xlu0 %v4855, 16
  %v5707 = vpop.permute.xlu0 %5706
  %5708 = vrot.lane.b32.xlu0 %v4856, 16
  %v5709 = vpop.permute.xlu0 %5708
  %5710 = vrot.lane.b32.xlu0 %v4857, 16
  %v5711 = vpop.permute.xlu0 %5710
  %5712 = vrot.lane.b32.xlu0 %v4858, 16
  %v5713 = vpop.permute.xlu0 %5712
  %5714 = vrot.lane.b32.xlu0 %v4859, 16
  %v5715 = vpop.permute.xlu0 %5714
  %5716 = vrot.lane.b32.xlu0 %v4860, 16
  %v5717 = vpop.permute.xlu0 %5716
  %5718 = vrot.lane.b32.xlu0 %v4861, 16
  %v5719 = vpop.permute.xlu0 %5718
  %5720 = vrot.lane.b32.xlu0 %v4862, 16
  %v5721 = vpop.permute.xlu0 %5720
  %5722 = vrot.lane.b32.xlu0 %v4863, 16
  %v5723 = vpop.permute.xlu0 %5722
  %5724 = vrot.lane.b32.xlu0 %v4864, 16
  %v5725 = vpop.permute.xlu0 %5724
  %5726 = vrot.lane.b32.xlu0 %v4865, 16
  %v5727 = vpop.permute.xlu0 %5726
  %5728 = vrot.lane.b32.xlu0 %v4866, 16
  %v5729 = vpop.permute.xlu0 %5728
  %5730 = vrot.lane.b32.xlu0 %v4867, 16
  %v5731 = vpop.permute.xlu0 %5730
  %5732 = vrot.lane.b32.xlu0 %v4868, 16
  %v5733 = vpop.permute.xlu0 %5732
  %5734 = vrot.lane.b32.xlu0 %v4869, 16
  %v5735 = vpop.permute.xlu0 %5734
  %5736 = vrot.lane.b32.xlu0 %v4870, 16
  %v5737 = vpop.permute.xlu0 %5736
  %5738 = vrot.lane.b32.xlu0 %v4871, 16
  %v5739 = vpop.permute.xlu0 %5738
  %5740 = vrot.lane.b32.xlu0 %v4872, 16
  %v5741 = vpop.permute.xlu0 %5740
  %5742 = vrot.lane.b32.xlu0 %v4873, 16
  %v5743 = vpop.permute.xlu0 %5742
  %5744 = vrot.lane.b32.xlu0 %v4874, 16
  %v5745 = vpop.permute.xlu0 %5744
  %5746 = vrot.lane.b32.xlu0 %v4875, 16
  %v5747 = vpop.permute.xlu0 %5746
  %5748 = vrot.lane.b32.xlu0 %v4876, 16
  %v5749 = vpop.permute.xlu0 %5748
  %5750 = vrot.lane.b32.xlu0 %v4877, 16
  %v5751 = vpop.permute.xlu0 %5750
  %5752 = vrot.lane.b32.xlu0 %v4878, 16
  %v5753 = vpop.permute.xlu0 %5752
  %5754 = vrot.lane.b32.xlu0 %v4879, 16
  %v5755 = vpop.permute.xlu0 %5754
  %5756 = vrot.lane.b32.xlu0 %v4880, 16
  %v5757 = vpop.permute.xlu0 %5756
  %5758 = vrot.lane.b32.xlu0 %v4881, 16
  %v5759 = vpop.permute.xlu0 %5758
  %5760 = vrot.lane.b32.xlu0 %v4882, 16
  %v5761 = vpop.permute.xlu0 %5760
  %5762 = vrot.lane.b32.xlu0 %v4883, 16
  %v5763 = vpop.permute.xlu0 %5762
  %5764 = vrot.lane.b32.xlu0 %v4884, 16
  %v5765 = vpop.permute.xlu0 %5764
  %5766 = vrot.lane.b32.xlu0 %v4885, 16
  %v5767 = vpop.permute.xlu0 %5766
  %5768 = vrot.lane.b32.xlu0 %v4886, 16
  %v5769 = vpop.permute.xlu0 %5768
  %5770 = vrot.lane.b32.xlu0 %v4887, 16
  %v5771 = vpop.permute.xlu0 %5770
  %5772 = vrot.lane.b32.xlu0 %v4888, 16
  %v5773 = vpop.permute.xlu0 %5772
  %5774 = vrot.lane.b32.xlu0 %v4889, 16
  %v5775 = vpop.permute.xlu0 %5774
  %5776 = vrot.lane.b32.xlu0 %v4890, 16
  %v5777 = vpop.permute.xlu0 %5776
  %5778 = vrot.lane.b32.xlu0 %v4891, 16
  %v5779 = vpop.permute.xlu0 %5778
  %5780 = vrot.lane.b32.xlu0 %v4892, 16
  %v5781 = vpop.permute.xlu0 %5780
  %5782 = vrot.lane.b32.xlu0 %v4893, 16
  %v5783 = vpop.permute.xlu0 %5782
  %5784 = vrot.lane.b32.xlu0 %v4894, 16
  %v5785 = vpop.permute.xlu0 %5784
  %5786 = vrot.lane.b32.xlu0 %v4895, 16
  %v5787 = vpop.permute.xlu0 %5786
  %5788 = vrot.lane.b32.xlu0 %v4896, 16
  %v5789 = vpop.permute.xlu0 %5788
  %5790 = vrot.lane.b32.xlu0 %v4897, 16
  %v5791 = vpop.permute.xlu0 %5790
  %5792 = vrot.lane.b32.xlu0 %v4898, 16
  %v5793 = vpop.permute.xlu0 %5792
  %5794 = vrot.lane.b32.xlu0 %v4899, 16
  %v5795 = vpop.permute.xlu0 %5794
  %5796 = vrot.lane.b32.xlu0 %v4900, 16
  %v5797 = vpop.permute.xlu0 %5796
  %5798 = vrot.lane.b32.xlu0 %v4901, 16
  %v5799 = vpop.permute.xlu0 %5798
  %5800 = vrot.lane.b32.xlu0 %v4902, 16
  %v5801 = vpop.permute.xlu0 %5800
  %5802 = vrot.lane.b32.xlu0 %v4903, 16
  %v5803 = vpop.permute.xlu0 %5802
  %6004 = vrot.lane.b32.xlu0 %v5404, 32
  %v6005 = vpop.permute.xlu0 %6004
  %6006 = vrot.lane.b32.xlu0 %v5405, 32
  %v6007 = vpop.permute.xlu0 %6006
  %6008 = vrot.lane.b32.xlu0 %v5406, 32
  %v6009 = vpop.permute.xlu0 %6008
  %6010 = vrot.lane.b32.xlu0 %v5407, 32
  %v6011 = vpop.permute.xlu0 %6010
  %6012 = vrot.lane.b32.xlu0 %v5408, 32
  %v6013 = vpop.permute.xlu0 %6012
  %6014 = vrot.lane.b32.xlu0 %v5409, 32
  %v6015 = vpop.permute.xlu0 %6014
  %6016 = vrot.lane.b32.xlu0 %v5410, 32
  %v6017 = vpop.permute.xlu0 %6016
  %6018 = vrot.lane.b32.xlu0 %v5411, 32
  %v6019 = vpop.permute.xlu0 %6018
  %6020 = vrot.lane.b32.xlu0 %v5412, 32
  %v6021 = vpop.permute.xlu0 %6020
  %6022 = vrot.lane.b32.xlu0 %v5413, 32
  %v6023 = vpop.permute.xlu0 %6022
  %6024 = vrot.lane.b32.xlu0 %v5414, 32
  %v6025 = vpop.permute.xlu0 %6024
  %6026 = vrot.lane.b32.xlu0 %v5415, 32
  %v6027 = vpop.permute.xlu0 %6026
  %6028 = vrot.lane.b32.xlu0 %v5416, 32
  %v6029 = vpop.permute.xlu0 %6028
  %6030 = vrot.lane.b32.xlu0 %v5417, 32
  %v6031 = vpop.permute.xlu0 %6030
  %6032 = vrot.lane.b32.xlu0 %v5418, 32
  %v6033 = vpop.permute.xlu0 %6032
  %6034 = vrot.lane.b32.xlu0 %v5419, 32
  %v6035 = vpop.permute.xlu0 %6034
  %6036 = vrot.lane.b32.xlu0 %v5420, 32
  %v6037 = vpop.permute.xlu0 %6036
  %6038 = vrot.lane.b32.xlu0 %v5421, 32
  %v6039 = vpop.permute.xlu0 %6038
  %6040 = vrot.lane.b32.xlu0 %v5422, 32
  %v6041 = vpop.permute.xlu0 %6040
  %6042 = vrot.lane.b32.xlu0 %v5423, 32
  %v6043 = vpop.permute.xlu0 %6042
  %6044 = vrot.lane.b32.xlu0 %v5424, 32
  %v6045 = vpop.permute.xlu0 %6044
  %6046 = vrot.lane.b32.xlu0 %v5425, 32
  %v6047 = vpop.permute.xlu0 %6046
  %6048 = vrot.lane.b32.xlu0 %v5426, 32
  %v6049 = vpop.permute.xlu0 %6048
  %6050 = vrot.lane.b32.xlu0 %v5427, 32
  %v6051 = vpop.permute.xlu0 %6050
  %6052 = vrot.lane.b32.xlu0 %v5428, 32
  %v6053 = vpop.permute.xlu0 %6052
  %6054 = vrot.lane.b32.xlu0 %v5429, 32
  %v6055 = vpop.permute.xlu0 %6054
  %6056 = vrot.lane.b32.xlu0 %v5430, 32
  %v6057 = vpop.permute.xlu0 %6056
  %6058 = vrot.lane.b32.xlu0 %v5431, 32
  %v6059 = vpop.permute.xlu0 %6058
  %6060 = vrot.lane.b32.xlu0 %v5432, 32
  %v6061 = vpop.permute.xlu0 %6060
  %6062 = vrot.lane.b32.xlu0 %v5433, 32
  %v6063 = vpop.permute.xlu0 %6062
  %6064 = vrot.lane.b32.xlu0 %v5434, 32
  %v6065 = vpop.permute.xlu0 %6064
  %6066 = vrot.lane.b32.xlu0 %v5435, 32
  %v6067 = vpop.permute.xlu0 %6066
  %6068 = vrot.lane.b32.xlu0 %v5436, 32
  %v6069 = vpop.permute.xlu0 %6068
  %6070 = vrot.lane.b32.xlu0 %v5437, 32
  %v6071 = vpop.permute.xlu0 %6070
  %6072 = vrot.lane.b32.xlu0 %v5438, 32
  %v6073 = vpop.permute.xlu0 %6072
  %6074 = vrot.lane.b32.xlu0 %v5439, 32
  %v6075 = vpop.permute.xlu0 %6074
  %6076 = vrot.lane.b32.xlu0 %v5440, 32
  %v6077 = vpop.permute.xlu0 %6076
  %6078 = vrot.lane.b32.xlu0 %v5441, 32
  %v6079 = vpop.permute.xlu0 %6078
  %6080 = vrot.lane.b32.xlu0 %v5442, 32
  %v6081 = vpop.permute.xlu0 %6080
  %6082 = vrot.lane.b32.xlu0 %v5443, 32
  %v6083 = vpop.permute.xlu0 %6082
  %6084 = vrot.lane.b32.xlu0 %v5444, 32
  %v6085 = vpop.permute.xlu0 %6084
  %6086 = vrot.lane.b32.xlu0 %v5445, 32
  %v6087 = vpop.permute.xlu0 %6086
  %6088 = vrot.lane.b32.xlu0 %v5446, 32
  %v6089 = vpop.permute.xlu0 %6088
  %6090 = vrot.lane.b32.xlu0 %v5447, 32
  %v6091 = vpop.permute.xlu0 %6090
  %6092 = vrot.lane.b32.xlu0 %v5448, 32
  %v6093 = vpop.permute.xlu0 %6092
  %6094 = vrot.lane.b32.xlu0 %v5449, 32
  %v6095 = vpop.permute.xlu0 %6094
  %6096 = vrot.lane.b32.xlu0 %v5450, 32
  %v6097 = vpop.permute.xlu0 %6096
  %6098 = vrot.lane.b32.xlu0 %v5451, 32
  %v6099 = vpop.permute.xlu0 %6098
  %6100 = vrot.lane.b32.xlu0 %v5452, 32
  %v6101 = vpop.permute.xlu0 %6100
  %6102 = vrot.lane.b32.xlu0 %v5453, 32
  %v6103 = vpop.permute.xlu0 %6102
  %6104 = vrot.lane.b32.xlu0 %v5454, 32
  %v6105 = vpop.permute.xlu0 %6104
  %6106 = vrot.lane.b32.xlu0 %v5455, 32
  %v6107 = vpop.permute.xlu0 %6106
  %6108 = vrot.lane.b32.xlu0 %v5456, 32
  %v6109 = vpop.permute.xlu0 %6108
  %6110 = vrot.lane.b32.xlu0 %v5457, 32
  %v6111 = vpop.permute.xlu0 %6110
  %6112 = vrot.lane.b32.xlu0 %v5458, 32
  %v6113 = vpop.permute.xlu0 %6112
  %6114 = vrot.lane.b32.xlu0 %v5459, 32
  %v6115 = vpop.permute.xlu0 %6114
  %6116 = vrot.lane.b32.xlu0 %v5460, 32
  %v6117 = vpop.permute.xlu0 %6116
  %6118 = vrot.lane.b32.xlu0 %v5461, 32
  %v6119 = vpop.permute.xlu0 %6118
  %6120 = vrot.lane.b32.xlu0 %v5462, 32
  %v6121 = vpop.permute.xlu0 %6120
  %6122 = vrot.lane.b32.xlu0 %v5463, 32
  %v6123 = vpop.permute.xlu0 %6122
  %6124 = vrot.lane.b32.xlu0 %v5464, 32
  %v6125 = vpop.permute.xlu0 %6124
  %6126 = vrot.lane.b32.xlu0 %v5465, 32
  %v6127 = vpop.permute.xlu0 %6126
  %6128 = vrot.lane.b32.xlu0 %v5466, 32
  %v6129 = vpop.permute.xlu0 %6128
  %6130 = vrot.lane.b32.xlu0 %v5467, 32
  %v6131 = vpop.permute.xlu0 %6130
  %6132 = vrot.lane.b32.xlu0 %v5468, 32
  %v6133 = vpop.permute.xlu0 %6132
  %6134 = vrot.lane.b32.xlu0 %v5469, 32
  %v6135 = vpop.permute.xlu0 %6134
  %6136 = vrot.lane.b32.xlu0 %v5470, 32
  %v6137 = vpop.permute.xlu0 %6136
  %6138 = vrot.lane.b32.xlu0 %v5471, 32
  %v6139 = vpop.permute.xlu0 %6138
  %6140 = vrot.lane.b32.xlu0 %v5472, 32
  %v6141 = vpop.permute.xlu0 %6140
  %6142 = vrot.lane.b32.xlu0 %v5473, 32
  %v6143 = vpop.permute.xlu0 %6142
  %6144 = vrot.lane.b32.xlu0 %v5474, 32
  %v6145 = vpop.permute.xlu0 %6144
  %6146 = vrot.lane.b32.xlu0 %v5475, 32
  %v6147 = vpop.permute.xlu0 %6146
  %6148 = vrot.lane.b32.xlu0 %v5476, 32
  %v6149 = vpop.permute.xlu0 %6148
  %6150 = vrot.lane.b32.xlu0 %v5477, 32
  %v6151 = vpop.permute.xlu0 %6150
  %6152 = vrot.lane.b32.xlu0 %v5478, 32
  %v6153 = vpop.permute.xlu0 %6152
  %6154 = vrot.lane.b32.xlu0 %v5479, 32
  %v6155 = vpop.permute.xlu0 %6154
  %6156 = vrot.lane.b32.xlu0 %v5480, 32
  %v6157 = vpop.permute.xlu0 %6156
  %6158 = vrot.lane.b32.xlu0 %v5481, 32
  %v6159 = vpop.permute.xlu0 %6158
  %6160 = vrot.lane.b32.xlu0 %v5482, 32
  %v6161 = vpop.permute.xlu0 %6160
  %6162 = vrot.lane.b32.xlu0 %v5483, 32
  %v6163 = vpop.permute.xlu0 %6162
  %6164 = vrot.lane.b32.xlu0 %v5484, 32
  %v6165 = vpop.permute.xlu0 %6164
  %6166 = vrot.lane.b32.xlu0 %v5485, 32
  %v6167 = vpop.permute.xlu0 %6166
  %6168 = vrot.lane.b32.xlu0 %v5486, 32
  %v6169 = vpop.permute.xlu0 %6168
  %6170 = vrot.lane.b32.xlu0 %v5487, 32
  %v6171 = vpop.permute.xlu0 %6170
  %6172 = vrot.lane.b32.xlu0 %v5488, 32
  %v6173 = vpop.permute.xlu0 %6172
  %6174 = vrot.lane.b32.xlu0 %v5489, 32
  %v6175 = vpop.permute.xlu0 %6174
  %6176 = vrot.lane.b32.xlu0 %v5490, 32
  %v6177 = vpop.permute.xlu0 %6176
  %6178 = vrot.lane.b32.xlu0 %v5491, 32
  %v6179 = vpop.permute.xlu0 %6178
  %6180 = vrot.lane.b32.xlu0 %v5492, 32
  %v6181 = vpop.permute.xlu0 %6180
  %6182 = vrot.lane.b32.xlu0 %v5493, 32
  %v6183 = vpop.permute.xlu0 %6182
  %6184 = vrot.lane.b32.xlu0 %v5494, 32
  %v6185 = vpop.permute.xlu0 %6184
  %6186 = vrot.lane.b32.xlu0 %v5495, 32
  %v6187 = vpop.permute.xlu0 %6186
  %6188 = vrot.lane.b32.xlu0 %v5496, 32
  %v6189 = vpop.permute.xlu0 %6188
  %6190 = vrot.lane.b32.xlu0 %v5497, 32
  %v6191 = vpop.permute.xlu0 %6190
  %6192 = vrot.lane.b32.xlu0 %v5498, 32
  %v6193 = vpop.permute.xlu0 %6192
  %6194 = vrot.lane.b32.xlu0 %v5499, 32
  %v6195 = vpop.permute.xlu0 %6194
  %6196 = vrot.lane.b32.xlu0 %v5500, 32
  %v6197 = vpop.permute.xlu0 %6196
  %6198 = vrot.lane.b32.xlu0 %v5501, 32
  %v6199 = vpop.permute.xlu0 %6198
  %6200 = vrot.lane.b32.xlu0 %v5502, 32
  %v6201 = vpop.permute.xlu0 %6200
  %6202 = vrot.lane.b32.xlu0 %v5503, 32
  %v6203 = vpop.permute.xlu0 %6202
  %vm6304 = vcmask 130048
  %v6305 = vsel %vm6304, %v5104, %v5605
  %v6306 = vsel %vm6304, %v5105, %v5607
  %v6307 = vsel %vm6304, %v5106, %v5609
  %v6308 = vsel %vm6304, %v5107, %v5611
  %v6309 = vsel %vm6304, %v5108, %v5613
  %v6310 = vsel %vm6304, %v5109, %v5615
  %v6311 = vsel %vm6304, %v5110, %v5617
  %v6312 = vsel %vm6304, %v5111, %v5619
  %v6313 = vsel %vm6304, %v5112, %v5621
  %v6314 = vsel %vm6304, %v5113, %v5623
  %v6315 = vsel %vm6304, %v5114, %v5625
  %v6316 = vsel %vm6304, %v5115, %v5627
  %v6317 = vsel %vm6304, %v5116, %v5629
  %v6318 = vsel %vm6304, %v5117, %v5631
  %v6319 = vsel %vm6304, %v5118, %v5633
  %v6320 = vsel %vm6304, %v5119, %v5635
  %v6321 = vsel %vm6304, %v5120, %v5637
  %v6322 = vsel %vm6304, %v5121, %v5639
  %v6323 = vsel %vm6304, %v5122, %v5641
  %v6324 = vsel %vm6304, %v5123, %v5643
  %v6325 = vsel %vm6304, %v5124, %v5645
  %v6326 = vsel %vm6304, %v5125, %v5647
  %v6327 = vsel %vm6304, %v5126, %v5649
  %v6328 = vsel %vm6304, %v5127, %v5651
  %v6329 = vsel %vm6304, %v5128, %v5653
  %v6330 = vsel %vm6304, %v5129, %v5655
  %v6331 = vsel %vm6304, %v5130, %v5657
  %v6332 = vsel %vm6304, %v5131, %v5659
  %v6333 = vsel %vm6304, %v5132, %v5661
  %v6334 = vsel %vm6304, %v5133, %v5663
  %v6335 = vsel %vm6304, %v5134, %v5665
  %v6336 = vsel %vm6304, %v5135, %v5667
  %v6337 = vsel %vm6304, %v5136, %v5669
  %v6338 = vsel %vm6304, %v5137, %v5671
  %v6339 = vsel %vm6304, %v5138, %v5673
  %v6340 = vsel %vm6304, %v5139, %v5675
  %v6341 = vsel %vm6304, %v5140, %v5677
  %v6342 = vsel %vm6304, %v5141, %v5679
  %v6343 = vsel %vm6304, %v5142, %v5681
  %v6344 = vsel %vm6304, %v5143, %v5683
  %v6345 = vsel %vm6304, %v5144, %v5685
  %v6346 = vsel %vm6304, %v5145, %v5687
  %v6347 = vsel %vm6304, %v5146, %v5689
  %v6348 = vsel %vm6304, %v5147, %v5691
  %v6349 = vsel %vm6304, %v5148, %v5693
  %v6350 = vsel %vm6304, %v5149, %v5695
  %v6351 = vsel %vm6304, %v5150, %v5697
  %v6352 = vsel %vm6304, %v5151, %v5699
  %v6353 = vsel %vm6304, %v5152, %v5701
  %v6354 = vsel %vm6304, %v5153, %v5703
  %v6355 = vsel %vm6304, %v5154, %v5705
  %v6356 = vsel %vm6304, %v5155, %v5707
  %v6357 = vsel %vm6304, %v5156, %v5709
  %v6358 = vsel %vm6304, %v5157, %v5711
  %v6359 = vsel %vm6304, %v5158, %v5713
  %v6360 = vsel %vm6304, %v5159, %v5715
  %v6361 = vsel %vm6304, %v5160, %v5717
  %v6362 = vsel %vm6304, %v5161, %v5719
  %v6363 = vsel %vm6304, %v5162, %v5721
  %v6364 = vsel %vm6304, %v5163, %v5723
  %v6365 = vsel %vm6304, %v5164, %v5725
  %v6366 = vsel %vm6304, %v5165, %v5727
  %v6367 = vsel %vm6304, %v5166, %v5729
  %v6368 = vsel %vm6304, %v5167, %v5731
  %v6369 = vsel %vm6304, %v5168, %v5733
  %v6370 = vsel %vm6304, %v5169, %v5735
  %v6371 = vsel %vm6304, %v5170, %v5737
  %v6372 = vsel %vm6304, %v5171, %v5739
  %v6373 = vsel %vm6304, %v5172, %v5741
  %v6374 = vsel %vm6304, %v5173, %v5743
  %v6375 = vsel %vm6304, %v5174, %v5745
  %v6376 = vsel %vm6304, %v5175, %v5747
  %v6377 = vsel %vm6304, %v5176, %v5749
  %v6378 = vsel %vm6304, %v5177, %v5751
  %v6379 = vsel %vm6304, %v5178, %v5753
  %v6380 = vsel %vm6304, %v5179, %v5755
  %v6381 = vsel %vm6304, %v5180, %v5757
  %v6382 = vsel %vm6304, %v5181, %v5759
  %v6383 = vsel %vm6304, %v5182, %v5761
  %v6384 = vsel %vm6304, %v5183, %v5763
  %v6385 = vsel %vm6304, %v5184, %v5765
  %v6386 = vsel %vm6304, %v5185, %v5767
  %v6387 = vsel %vm6304, %v5186, %v5769
  %v6388 = vsel %vm6304, %v5187, %v5771
  %v6389 = vsel %vm6304, %v5188, %v5773
  %v6390 = vsel %vm6304, %v5189, %v5775
  %v6391 = vsel %vm6304, %v5190, %v5777
  %v6392 = vsel %vm6304, %v5191, %v5779
  %v6393 = vsel %vm6304, %v5192, %v5781
  %v6394 = vsel %vm6304, %v5193, %v5783
  %v6395 = vsel %vm6304, %v5194, %v5785
  %v6396 = vsel %vm6304, %v5195, %v5787
  %v6397 = vsel %vm6304, %v5196, %v5789
  %v6398 = vsel %vm6304, %v5197, %v5791
  %v6399 = vsel %vm6304, %v5198, %v5793
  %v6400 = vsel %vm6304, %v5199, %v5795
  %v6401 = vsel %vm6304, %v5200, %v5797
  %v6402 = vsel %vm6304, %v5201, %v5799
  %v6403 = vsel %vm6304, %v5202, %v5801
  %v6404 = vsel %vm6304, %v5203, %v5803
  %vm6405 = vcmask 261120
  %v6406 = vsel %vm6405, %v6305, %v6005
  %v6407 = vsel %vm6405, %v6306, %v6007
  %v6408 = vsel %vm6405, %v6307, %v6009
  %v6409 = vsel %vm6405, %v6308, %v6011
  %v6410 = vsel %vm6405, %v6309, %v6013
  %v6411 = vsel %vm6405, %v6310, %v6015
  %v6412 = vsel %vm6405, %v6311, %v6017
  %v6413 = vsel %vm6405, %v6312, %v6019
  %v6414 = vsel %vm6405, %v6313, %v6021
  %v6415 = vsel %vm6405, %v6314, %v6023
  %v6416 = vsel %vm6405, %v6315, %v6025
  %v6417 = vsel %vm6405, %v6316, %v6027
  %v6418 = vsel %vm6405, %v6317, %v6029
  %v6419 = vsel %vm6405, %v6318, %v6031
  %v6420 = vsel %vm6405, %v6319, %v6033
  %v6421 = vsel %vm6405, %v6320, %v6035
  %v6422 = vsel %vm6405, %v6321, %v6037
  %v6423 = vsel %vm6405, %v6322, %v6039
  %v6424 = vsel %vm6405, %v6323, %v6041
  %v6425 = vsel %vm6405, %v6324, %v6043
  %v6426 = vsel %vm6405, %v6325, %v6045
  %v6427 = vsel %vm6405, %v6326, %v6047
  %v6428 = vsel %vm6405, %v6327, %v6049
  %v6429 = vsel %vm6405, %v6328, %v6051
  %v6430 = vsel %vm6405, %v6329, %v6053
  %v6431 = vsel %vm6405, %v6330, %v6055
  %v6432 = vsel %vm6405, %v6331, %v6057
  %v6433 = vsel %vm6405, %v6332, %v6059
  %v6434 = vsel %vm6405, %v6333, %v6061
  %v6435 = vsel %vm6405, %v6334, %v6063
  %v6436 = vsel %vm6405, %v6335, %v6065
  %v6437 = vsel %vm6405, %v6336, %v6067
  %v6438 = vsel %vm6405, %v6337, %v6069
  %v6439 = vsel %vm6405, %v6338, %v6071
  %v6440 = vsel %vm6405, %v6339, %v6073
  %v6441 = vsel %vm6405, %v6340, %v6075
  %v6442 = vsel %vm6405, %v6341, %v6077
  %v6443 = vsel %vm6405, %v6342, %v6079
  %v6444 = vsel %vm6405, %v6343, %v6081
  %v6445 = vsel %vm6405, %v6344, %v6083
  %v6446 = vsel %vm6405, %v6345, %v6085
  %v6447 = vsel %vm6405, %v6346, %v6087
  %v6448 = vsel %vm6405, %v6347, %v6089
  %v6449 = vsel %vm6405, %v6348, %v6091
  %v6450 = vsel %vm6405, %v6349, %v6093
  %v6451 = vsel %vm6405, %v6350, %v6095
  %v6452 = vsel %vm6405, %v6351, %v6097
  %v6453 = vsel %vm6405, %v6352, %v6099
  %v6454 = vsel %vm6405, %v6353, %v6101
  %v6455 = vsel %vm6405, %v6354, %v6103
  %v6456 = vsel %vm6405, %v6355, %v6105
  %v6457 = vsel %vm6405, %v6356, %v6107
  %v6458 = vsel %vm6405, %v6357, %v6109
  %v6459 = vsel %vm6405, %v6358, %v6111
  %v6460 = vsel %vm6405, %v6359, %v6113
  %v6461 = vsel %vm6405, %v6360, %v6115
  %v6462 = vsel %vm6405, %v6361, %v6117
  %v6463 = vsel %vm6405, %v6362, %v6119
  %v6464 = vsel %vm6405, %v6363, %v6121
  %v6465 = vsel %vm6405, %v6364, %v6123
  %v6466 = vsel %vm6405, %v6365, %v6125
  %v6467 = vsel %vm6405, %v6366, %v6127
  %v6468 = vsel %vm6405, %v6367, %v6129
  %v6469 = vsel %vm6405, %v6368, %v6131
  %v6470 = vsel %vm6405, %v6369, %v6133
  %v6471 = vsel %vm6405, %v6370, %v6135
  %v6472 = vsel %vm6405, %v6371, %v6137
  %v6473 = vsel %vm6405, %v6372, %v6139
  %v6474 = vsel %vm6405, %v6373, %v6141
  %v6475 = vsel %vm6405, %v6374, %v6143
  %v6476 = vsel %vm6405, %v6375, %v6145
  %v6477 = vsel %vm6405, %v6376, %v6147
  %v6478 = vsel %vm6405, %v6377, %v6149
  %v6479 = vsel %vm6405, %v6378, %v6151
  %v6480 = vsel %vm6405, %v6379, %v6153
  %v6481 = vsel %vm6405, %v6380, %v6155
  %v6482 = vsel %vm6405, %v6381, %v6157
  %v6483 = vsel %vm6405, %v6382, %v6159
  %v6484 = vsel %vm6405, %v6383, %v6161
  %v6485 = vsel %vm6405, %v6384, %v6163
  %v6486 = vsel %vm6405, %v6385, %v6165
  %v6487 = vsel %vm6405, %v6386, %v6167
  %v6488 = vsel %vm6405, %v6387, %v6169
  %v6489 = vsel %vm6405, %v6388, %v6171
  %v6490 = vsel %vm6405, %v6389, %v6173
  %v6491 = vsel %vm6405, %v6390, %v6175
  %v6492 = vsel %vm6405, %v6391, %v6177
  %v6493 = vsel %vm6405, %v6392, %v6179
  %v6494 = vsel %vm6405, %v6393, %v6181
  %v6495 = vsel %vm6405, %v6394, %v6183
  %v6496 = vsel %vm6405, %v6395, %v6185
  %v6497 = vsel %vm6405, %v6396, %v6187
  %v6498 = vsel %vm6405, %v6397, %v6189
  %v6499 = vsel %vm6405, %v6398, %v6191
  %v6500 = vsel %vm6405, %v6399, %v6193
  %v6501 = vsel %vm6405, %v6400, %v6195
  %v6502 = vsel %vm6405, %v6401, %v6197
  %v6503 = vsel %vm6405, %v6402, %v6199
  %v6504 = vsel %vm6405, %v6403, %v6201
  %v6505 = vsel %vm6405, %v6404, %v6203
  %v6506 = vpack.c.bf16 %v6407, %v6406
  %v6507 = vpack.c.bf16 %v6409, %v6408
  %v6508 = vpack.c.bf16 %v6411, %v6410
  %v6509 = vpack.c.bf16 %v6413, %v6412
  %v6510 = vpack.c.bf16 %v6415, %v6414
  %v6511 = vpack.c.bf16 %v6417, %v6416
  %v6512 = vpack.c.bf16 %v6419, %v6418
  %v6513 = vpack.c.bf16 %v6421, %v6420
  %v6514 = vpack.c.bf16 %v6423, %v6422
  %v6515 = vpack.c.bf16 %v6425, %v6424
  %v6516 = vpack.c.bf16 %v6427, %v6426
  %v6517 = vpack.c.bf16 %v6429, %v6428
  %v6518 = vpack.c.bf16 %v6431, %v6430
  %v6519 = vpack.c.bf16 %v6433, %v6432
  %v6520 = vpack.c.bf16 %v6435, %v6434
  %v6521 = vpack.c.bf16 %v6437, %v6436
  %v6522 = vpack.c.bf16 %v6439, %v6438
  %v6523 = vpack.c.bf16 %v6441, %v6440
  %v6524 = vpack.c.bf16 %v6443, %v6442
  %v6525 = vpack.c.bf16 %v6445, %v6444
  %v6526 = vpack.c.bf16 %v6447, %v6446
  %v6527 = vpack.c.bf16 %v6449, %v6448
  %v6528 = vpack.c.bf16 %v6451, %v6450
  %v6529 = vpack.c.bf16 %v6453, %v6452
  %v6530 = vpack.c.bf16 %v6455, %v6454
  %v6531 = vpack.c.bf16 %v6457, %v6456
  %v6532 = vpack.c.bf16 %v6459, %v6458
  %v6533 = vpack.c.bf16 %v6461, %v6460
  %v6534 = vpack.c.bf16 %v6463, %v6462
  %v6535 = vpack.c.bf16 %v6465, %v6464
  %v6536 = vpack.c.bf16 %v6467, %v6466
  %v6537 = vpack.c.bf16 %v6469, %v6468
  %v6538 = vpack.c.bf16 %v6471, %v6470
  %v6539 = vpack.c.bf16 %v6473, %v6472
  %v6540 = vpack.c.bf16 %v6475, %v6474
  %v6541 = vpack.c.bf16 %v6477, %v6476
  %v6542 = vpack.c.bf16 %v6479, %v6478
  %v6543 = vpack.c.bf16 %v6481, %v6480
  %v6544 = vpack.c.bf16 %v6483, %v6482
  %v6545 = vpack.c.bf16 %v6485, %v6484
  %v6546 = vpack.c.bf16 %v6487, %v6486
  %v6547 = vpack.c.bf16 %v6489, %v6488
  %v6548 = vpack.c.bf16 %v6491, %v6490
  %v6549 = vpack.c.bf16 %v6493, %v6492
  %v6550 = vpack.c.bf16 %v6495, %v6494
  %v6551 = vpack.c.bf16 %v6497, %v6496
  %v6552 = vpack.c.bf16 %v6499, %v6498
  %v6553 = vpack.c.bf16 %v6501, %v6500
  %v6554 = vpack.c.bf16 %v6503, %v6502
  %v6555 = vpack.c.bf16 %v6505, %v6504
  %v6556 = vld [vmem:[%s3] sm:$0xf]
  %v6557 = vld [vmem:[%s3 + $0x4] sm:$0xf]
  %v6558 = vld [vmem:[%s3 + $0x8] sm:$0xf]
  %v6559 = vld [vmem:[%s3 + $0xc] sm:$0xf]
  %v6560 = vld [vmem:[%s3 + $0x10] sm:$0xf]
  %v6561 = vld [vmem:[%s3 + $0x14] sm:$0xf]
  %v6562 = vld [vmem:[%s4] sm:$0x1]
  %v6564 = vlaneseq
  %v6565 = vshrl.u32 %v6564, 7
  %v6566 = vsub.s32 0, %v6565
  %v6567 = vrot.slane %v6562, %v6566
  %v6575 = vunpack.c.l.b16 %v6556
  %v6576 = vunpack.c.l.b16 %v6557
  %v6577 = vunpack.c.l.b16 %v6558
  %v6578 = vunpack.c.l.b16 %v6559
  %v6579 = vunpack.c.l.b16 %v6560
  %v6580 = vunpack.c.l.b16 %v6561
  %v6581 = vpack.c.b16 %v6576, %v6575
  %v6582 = vpack.c.b16 %v6578, %v6577
  %v6583 = vpack.c.b16 %v6580, %v6579
  %vm6587 = vcmask 392192
  %v6589 = vsel %vm6587, %v6506, 0
  %v6592 = vsel %vm6587, %v6507, 0
  %v6595 = vsel %vm6587, %v6508, 0
  %v6598 = vsel %vm6587, %v6509, 0
  %v6601 = vsel %vm6587, %v6510, 0
  %v6604 = vsel %vm6587, %v6511, 0
  %v6607 = vsel %vm6587, %v6512, 0
  %v6610 = vsel %vm6587, %v6513, 0
  %v6613 = vsel %vm6587, %v6514, 0
  %v6616 = vsel %vm6587, %v6515, 0
  %v6619 = vsel %vm6587, %v6516, 0
  %v6622 = vsel %vm6587, %v6517, 0
  %v6625 = vsel %vm6587, %v6518, 0
  %v6628 = vsel %vm6587, %v6519, 0
  %v6631 = vsel %vm6587, %v6520, 0
  %v6634 = vsel %vm6587, %v6521, 0
  %v6637 = vsel %vm6587, %v6522, 0
  %v6640 = vsel %vm6587, %v6523, 0
  %v6643 = vsel %vm6587, %v6524, 0
  %v6646 = vsel %vm6587, %v6525, 0
  %v6649 = vsel %vm6587, %v6526, 0
  %v6652 = vsel %vm6587, %v6527, 0
  %v6655 = vsel %vm6587, %v6528, 0
  %v6658 = vsel %vm6587, %v6529, 0
  %v6661 = vsel %vm6587, %v6530, 0
  %v6664 = vsel %vm6587, %v6531, 0
  %v6667 = vsel %vm6587, %v6532, 0
  %v6670 = vsel %vm6587, %v6533, 0
  %v6673 = vsel %vm6587, %v6534, 0
  %v6676 = vsel %vm6587, %v6535, 0
  %v6679 = vsel %vm6587, %v6536, 0
  %v6682 = vsel %vm6587, %v6537, 0
  %v6685 = vsel %vm6587, %v6538, 0
  %v6688 = vsel %vm6587, %v6539, 0
  %v6691 = vsel %vm6587, %v6540, 0
  %v6694 = vsel %vm6587, %v6541, 0
  %v6697 = vsel %vm6587, %v6542, 0
  %v6700 = vsel %vm6587, %v6543, 0
  %v6703 = vsel %vm6587, %v6544, 0
  %v6706 = vsel %vm6587, %v6545, 0
  %v6709 = vsel %vm6587, %v6546, 0
  %v6712 = vsel %vm6587, %v6547, 0
  %v6715 = vsel %vm6587, %v6548, 0
  %v6718 = vsel %vm6587, %v6549, 0
  %v6721 = vsel %vm6587, %v6550, 0
  %v6724 = vsel %vm6587, %v6551, 0
  %v6727 = vsel %vm6587, %v6552, 0
  %v6730 = vsel %vm6587, %v6553, 0
  %v6733 = vsel %vm6587, %v6554, 0
  %v6736 = vsel %vm6587, %v6555, 0
  %6738 = vmatprep.subr.bf16.mxu0 0
  %6739 = vmatpush1.bf16.msra.mxu0 %v6581
  %6740 = vmatprep.subr.bf16.mxu0 0
  %6741 = vmatpush1.bf16.msra.mxu0 %v6582
  %6742 = vmatprep.subr.bf16.mxu0 0
  %6743 = vmatpush1.bf16.msra.mxu0 %v6583
  %6744 = vmatprep.subr.bf16.mxu0 0
  %6745 = vmatpush1.bf16.msra.mxu0 0
  %6746 = vmatprep.subr.bf16.mxu0 0
  %6747 = vmatpush1.bf16.msra.mxu0 0
  %6748 = vmatprep.subr.bf16.mxu0 0
  %6749 = vmatpush1.bf16.msra.mxu0 0
  %6750 = vmatprep.subr.bf16.mxu0 0
  %6751 = vmatpush1.bf16.msra.mxu0 0
  %6752 = vmatprep.subr.bf16.mxu0 0
  %6753 = vmatpush1.bf16.msra.mxu0 0
  %6754 = vmatprep.subr.bf16.mxu0 0
  %6755 = vmatpush1.bf16.msra.mxu0 0
  %6756 = vmatprep.subr.bf16.mxu0 0
  %6757 = vmatpush1.bf16.msra.mxu0 0
  %6758 = vmatprep.subr.bf16.mxu0 0
  %6759 = vmatpush1.bf16.msra.mxu0 0
  %6760 = vmatprep.subr.bf16.mxu0 0
  %6761 = vmatpush1.bf16.msra.mxu0 0
  %6762 = vmatprep.subr.bf16.mxu0 0
  %6763 = vmatpush1.bf16.msra.mxu0 0
  %6764 = vmatprep.subr.bf16.mxu0 0
  %6765 = vmatpush1.bf16.msra.mxu0 0
  %6766 = vmatprep.subr.bf16.mxu0 0
  %6767 = vmatpush1.bf16.msra.mxu0 0
  %6768 = vmatprep.subr.bf16.mxu0 0
  %6769 = vmatpush1.bf16.msra.mxu0 0
  %6770 = vmatprep.mubr.bf16.mxu0 0
  %6771 = vmatmul.mubr.bf16.gmra.mrb[0].mxu0 %v6589
  %v6772 = vpop.f32.mrb[0].mxu0
  %v6773 = vadd.f32 %v6567, %v6772
  %v6774 = vpop.f32.mrb[0].mxu0
  %v6775 = vpop.f32.mrb[0].mxu0
  %v6776 = vadd.f32 %v6567, %v6775
  %v6777 = vpop.f32.mrb[0].mxu0
  %6778 = vmatprep.mubr.bf16.mxu0 0
  %6779 = vmatmul.mubr.bf16.gmra.mrb[0].mxu0 %v6592
  %v6780 = vpop.f32.mrb[0].mxu0
  %v6781 = vadd.f32 %v6567, %v6780
  %v6782 = vpop.f32.mrb[0].mxu0
  %v6783 = vpop.f32.mrb[0].mxu0
  %v6784 = vadd.f32 %v6567, %v6783
  %v6785 = vpop.f32.mrb[0].mxu0
  %6786 = vmatprep.mubr.bf16.mxu0 0
  %6787 = vmatmul.mubr.bf16.gmra.mrb[0].mxu0 %v6595
  %v6788 = vpop.f32.mrb[0].mxu0
  %v6789 = vadd.f32 %v6567, %v6788
  %v6790 = vpop.f32.mrb[0].mxu0
  %v6791 = vpop.f32.mrb[0].mxu0
  %v6792 = vadd.f32 %v6567, %v6791
  %v6793 = vpop.f32.mrb[0].mxu0
  %6794 = vmatprep.mubr.bf16.mxu0 0
  %6795 = vmatmul.mubr.bf16.gmra.mrb[0].mxu0 %v6598
  %v6796 = vpop.f32.mrb[0].mxu0
  %v6797 = vadd.f32 %v6567, %v6796
  %v6798 = vpop.f32.mrb[0].mxu0
  %v6799 = vpop.f32.mrb[0].mxu0
  %v6800 = vadd.f32 %v6567, %v6799
  %v6801 = vpop.f32.mrb[0].mxu0
  %6802 = vmatprep.mubr.bf16.mxu0 0
  %6803 = vmatmul.mubr.bf16.gmra.mrb[0].mxu0 %v6601
  %v6804 = vpop.f32.mrb[0].mxu0
  %v6805 = vadd.f32 %v6567, %v6804
  %v6806 = vpop.f32.mrb[0].mxu0
  %v6807 = vpop.f32.mrb[0].mxu0
  %v6808 = vadd.f32 %v6567, %v6807
  %v6809 = vpop.f32.mrb[0].mxu0
  %6810 = vmatprep.mubr.bf16.mxu0 0
  %6811 = vmatmul.mubr.bf16.gmra.mrb[0].mxu0 %v6604
  %v6812 = vpop.f32.mrb[0].mxu0
  %v6813 = vadd.f32 %v6567, %v6812
  %v6814 = vpop.f32.mrb[0].mxu0
  %v6815 = vpop.f32.mrb[0].mxu0
  %v6816 = vadd.f32 %v6567, %v6815
  %v6817 = vpop.f32.mrb[0].mxu0
  %6818 = vmatprep.mubr.bf16.mxu0 0
  %6819 = vmatmul.mubr.bf16.gmra.mrb[0].mxu0 %v6607
  %v6820 = vpop.f32.mrb[0].mxu0
  %v6821 = vadd.f32 %v6567, %v6820
  %v6822 = vpop.f32.mrb[0].mxu0
  %v6823 = vpop.f32.mrb[0].mxu0
  %v6824 = vadd.f32 %v6567, %v6823
  %v6825 = vpop.f32.mrb[0].mxu0
  %6826 = vmatprep.mubr.bf16.mxu0 0
  %6827 = vmatmul.mubr.bf16.gmra.mrb[0].mxu0 %v6610
  %v6828 = vpop.f32.mrb[0].mxu0
  %v6829 = vadd.f32 %v6567, %v6828
  %v6830 = vpop.f32.mrb[0].mxu0
  %v6831 = vpop.f32.mrb[0].mxu0
  %v6832 = vadd.f32 %v6567, %v6831
  %v6833 = vpop.f32.mrb[0].mxu0
  %6834 = vmatprep.mubr.bf16.mxu0 0
  %6835 = vmatmul.mubr.bf16.gmra.mrb[0].mxu0 %v6613
  %v6836 = vpop.f32.mrb[0].mxu0
  %v6837 = vadd.f32 %v6567, %v6836
  %v6838 = vpop.f32.mrb[0].mxu0
  %v6839 = vpop.f32.mrb[0].mxu0
  %v6840 = vadd.f32 %v6567, %v6839
  %v6841 = vpop.f32.mrb[0].mxu0
  %6842 = vmatprep.mubr.bf16.mxu0 0
  %6843 = vmatmul.mubr.bf16.gmra.mrb[0].mxu0 %v6616
  %v6844 = vpop.f32.mrb[0].mxu0
  %v6845 = vadd.f32 %v6567, %v6844
  %v6846 = vpop.f32.mrb[0].mxu0
  %v6847 = vpop.f32.mrb[0].mxu0
  %v6848 = vadd.f32 %v6567, %v6847
  %v6849 = vpop.f32.mrb[0].mxu0
  %6850 = vmatprep.mubr.bf16.mxu0 0
  %6851 = vmatmul.mubr.bf16.gmra.mrb[0].mxu0 %v6619
  %v6852 = vpop.f32.mrb[0].mxu0
  %v6853 = vadd.f32 %v6567, %v6852
  %v6854 = vpop.f32.mrb[0].mxu0
  %v6855 = vpop.f32.mrb[0].mxu0
  %v6856 = vadd.f32 %v6567, %v6855
  %v6857 = vpop.f32.mrb[0].mxu0
  %6858 = vmatprep.mubr.bf16.mxu0 0
  %6859 = vmatmul.mubr.bf16.gmra.mrb[0].mxu0 %v6622
  %v6860 = vpop.f32.mrb[0].mxu0
  %v6861 = vadd.f32 %v6567, %v6860
  %v6862 = vpop.f32.mrb[0].mxu0
  %v6863 = vpop.f32.mrb[0].mxu0
  %v6864 = vadd.f32 %v6567, %v6863
  %v6865 = vpop.f32.mrb[0].mxu0
  %6866 = vmatprep.mubr.bf16.mxu0 0
  %6867 = vmatmul.mubr.bf16.gmra.mrb[0].mxu0 %v6625
  %v6868 = vpop.f32.mrb[0].mxu0
  %v6869 = vadd.f32 %v6567, %v6868
  %v6870 = vpop.f32.mrb[0].mxu0
  %v6871 = vpop.f32.mrb[0].mxu0
  %v6872 = vadd.f32 %v6567, %v6871
  %v6873 = vpop.f32.mrb[0].mxu0
  %6874 = vmatprep.mubr.bf16.mxu0 0
  %6875 = vmatmul.mubr.bf16.gmra.mrb[0].mxu0 %v6628
  %v6876 = vpop.f32.mrb[0].mxu0
  %v6877 = vadd.f32 %v6567, %v6876
  %v6878 = vpop.f32.mrb[0].mxu0
  %v6879 = vpop.f32.mrb[0].mxu0
  %v6880 = vadd.f32 %v6567, %v6879
  %v6881 = vpop.f32.mrb[0].mxu0
  %6882 = vmatprep.mubr.bf16.mxu0 0
  %6883 = vmatmul.mubr.bf16.gmra.mrb[0].mxu0 %v6631
  %v6884 = vpop.f32.mrb[0].mxu0
  %v6885 = vadd.f32 %v6567, %v6884
  %v6886 = vpop.f32.mrb[0].mxu0
  %v6887 = vpop.f32.mrb[0].mxu0
  %v6888 = vadd.f32 %v6567, %v6887
  %v6889 = vpop.f32.mrb[0].mxu0
  %6890 = vmatprep.mubr.bf16.mxu0 0
  %6891 = vmatmul.mubr.bf16.gmra.mrb[0].mxu0 %v6634
  %v6892 = vpop.f32.mrb[0].mxu0
  %v6893 = vadd.f32 %v6567, %v6892
  %v6894 = vpop.f32.mrb[0].mxu0
  %v6895 = vpop.f32.mrb[0].mxu0
  %v6896 = vadd.f32 %v6567, %v6895
  %v6897 = vpop.f32.mrb[0].mxu0
  %6898 = vmatprep.mubr.bf16.mxu0 0
  %6899 = vmatmul.mubr.bf16.gmra.mrb[0].mxu0 %v6637
  %v6900 = vpop.f32.mrb[0].mxu0
  %v6901 = vadd.f32 %v6567, %v6900
  %v6902 = vpop.f32.mrb[0].mxu0
  %v6903 = vpop.f32.mrb[0].mxu0
  %v6904 = vadd.f32 %v6567, %v6903
  %v6905 = vpop.f32.mrb[0].mxu0
  %6906 = vmatprep.mubr.bf16.mxu0 0
  %6907 = vmatmul.mubr.bf16.gmra.mrb[0].mxu0 %v6640
  %v6908 = vpop.f32.mrb[0].mxu0
  %v6909 = vadd.f32 %v6567, %v6908
  %v6910 = vpop.f32.mrb[0].mxu0
  %v6911 = vpop.f32.mrb[0].mxu0
  %v6912 = vadd.f32 %v6567, %v6911
  %v6913 = vpop.f32.mrb[0].mxu0
  %6914 = vmatprep.mubr.bf16.mxu0 0
  %6915 = vmatmul.mubr.bf16.gmra.mrb[0].mxu0 %v6643
  %v6916 = vpop.f32.mrb[0].mxu0
  %v6917 = vadd.f32 %v6567, %v6916
  %v6918 = vpop.f32.mrb[0].mxu0
  %v6919 = vpop.f32.mrb[0].mxu0
  %v6920 = vadd.f32 %v6567, %v6919
  %v6921 = vpop.f32.mrb[0].mxu0
  %6922 = vmatprep.mubr.bf16.mxu0 0
  %6923 = vmatmul.mubr.bf16.gmra.mrb[0].mxu0 %v6646
  %v6924 = vpop.f32.mrb[0].mxu0
  %v6925 = vadd.f32 %v6567, %v6924
  %v6926 = vpop.f32.mrb[0].mxu0
  %v6927 = vpop.f32.mrb[0].mxu0
  %v6928 = vadd.f32 %v6567, %v6927
  %v6929 = vpop.f32.mrb[0].mxu0
  %6930 = vmatprep.mubr.bf16.mxu0 0
  %6931 = vmatmul.mubr.bf16.gmra.mrb[0].mxu0 %v6649
  %v6932 = vpop.f32.mrb[0].mxu0
  %v6933 = vadd.f32 %v6567, %v6932
  %v6934 = vpop.f32.mrb[0].mxu0
  %v6935 = vpop.f32.mrb[0].mxu0
  %v6936 = vadd.f32 %v6567, %v6935
  %v6937 = vpop.f32.mrb[0].mxu0
  %6938 = vmatprep.mubr.bf16.mxu0 0
  %6939 = vmatmul.mubr.bf16.gmra.mrb[0].mxu0 %v6652
  %v6940 = vpop.f32.mrb[0].mxu0
  %v6941 = vadd.f32 %v6567, %v6940
  %v6942 = vpop.f32.mrb[0].mxu0
  %v6943 = vpop.f32.mrb[0].mxu0
  %v6944 = vadd.f32 %v6567, %v6943
  %v6945 = vpop.f32.mrb[0].mxu0
  %6946 = vmatprep.mubr.bf16.mxu0 0
  %6947 = vmatmul.mubr.bf16.gmra.mrb[0].mxu0 %v6655
  %v6948 = vpop.f32.mrb[0].mxu0
  %v6949 = vadd.f32 %v6567, %v6948
  %v6950 = vpop.f32.mrb[0].mxu0
  %v6951 = vpop.f32.mrb[0].mxu0
  %v6952 = vadd.f32 %v6567, %v6951
  %v6953 = vpop.f32.mrb[0].mxu0
  %6954 = vmatprep.mubr.bf16.mxu0 0
  %6955 = vmatmul.mubr.bf16.gmra.mrb[0].mxu0 %v6658
  %v6956 = vpop.f32.mrb[0].mxu0
  %v6957 = vadd.f32 %v6567, %v6956
  %v6958 = vpop.f32.mrb[0].mxu0
  %v6959 = vpop.f32.mrb[0].mxu0
  %v6960 = vadd.f32 %v6567, %v6959
  %v6961 = vpop.f32.mrb[0].mxu0
  %6962 = vmatprep.mubr.bf16.mxu0 0
  %6963 = vmatmul.mubr.bf16.gmra.mrb[0].mxu0 %v6661
  %v6964 = vpop.f32.mrb[0].mxu0
  %v6965 = vadd.f32 %v6567, %v6964
  %v6966 = vpop.f32.mrb[0].mxu0
  %v6967 = vpop.f32.mrb[0].mxu0
  %v6968 = vadd.f32 %v6567, %v6967
  %v6969 = vpop.f32.mrb[0].mxu0
  %6970 = vmatprep.mubr.bf16.mxu0 0
  %6971 = vmatmul.mubr.bf16.gmra.mrb[0].mxu0 %v6664
  %v6972 = vpop.f32.mrb[0].mxu0
  %v6973 = vadd.f32 %v6567, %v6972
  %v6974 = vpop.f32.mrb[0].mxu0
  %v6975 = vpop.f32.mrb[0].mxu0
  %v6976 = vadd.f32 %v6567, %v6975
  %v6977 = vpop.f32.mrb[0].mxu0
  %6978 = vmatprep.mubr.bf16.mxu0 0
  %6979 = vmatmul.mubr.bf16.gmra.mrb[0].mxu0 %v6667
  %v6980 = vpop.f32.mrb[0].mxu0
  %v6981 = vadd.f32 %v6567, %v6980
  %v6982 = vpop.f32.mrb[0].mxu0
  %v6983 = vpop.f32.mrb[0].mxu0
  %v6984 = vadd.f32 %v6567, %v6983
  %v6985 = vpop.f32.mrb[0].mxu0
  %6986 = vmatprep.mubr.bf16.mxu0 0
  %6987 = vmatmul.mubr.bf16.gmra.mrb[0].mxu0 %v6670
  %v6988 = vpop.f32.mrb[0].mxu0
  %v6989 = vadd.f32 %v6567, %v6988
  %v6990 = vpop.f32.mrb[0].mxu0
  %v6991 = vpop.f32.mrb[0].mxu0
  %v6992 = vadd.f32 %v6567, %v6991
  %v6993 = vpop.f32.mrb[0].mxu0
  %6994 = vmatprep.mubr.bf16.mxu0 0
  %6995 = vmatmul.mubr.bf16.gmra.mrb[0].mxu0 %v6673
  %v6996 = vpop.f32.mrb[0].mxu0
  %v6997 = vadd.f32 %v6567, %v6996
  %v6998 = vpop.f32.mrb[0].mxu0
  %v6999 = vpop.f32.mrb[0].mxu0
  %v7000 = vadd.f32 %v6567, %v6999
  %v7001 = vpop.f32.mrb[0].mxu0
  %7002 = vmatprep.mubr.bf16.mxu0 0
  %7003 = vmatmul.mubr.bf16.gmra.mrb[0].mxu0 %v6676
  %v7004 = vpop.f32.mrb[0].mxu0
  %v7005 = vadd.f32 %v6567, %v7004
  %v7006 = vpop.f32.mrb[0].mxu0
  %v7007 = vpop.f32.mrb[0].mxu0
  %v7008 = vadd.f32 %v6567, %v7007
  %v7009 = vpop.f32.mrb[0].mxu0
  %7010 = vmatprep.mubr.bf16.mxu0 0
  %7011 = vmatmul.mubr.bf16.gmra.mrb[0].mxu0 %v6679
  %v7012 = vpop.f32.mrb[0].mxu0
  %v7013 = vadd.f32 %v6567, %v7012
  %v7014 = vpop.f32.mrb[0].mxu0
  %v7015 = vpop.f32.mrb[0].mxu0
  %v7016 = vadd.f32 %v6567, %v7015
  %v7017 = vpop.f32.mrb[0].mxu0
  %7018 = vmatprep.mubr.bf16.mxu0 0
  %7019 = vmatmul.mubr.bf16.gmra.mrb[0].mxu0 %v6682
  %v7020 = vpop.f32.mrb[0].mxu0
  %v7021 = vadd.f32 %v6567, %v7020
  %v7022 = vpop.f32.mrb[0].mxu0
  %v7023 = vpop.f32.mrb[0].mxu0
  %v7024 = vadd.f32 %v6567, %v7023
  %v7025 = vpop.f32.mrb[0].mxu0
  %7026 = vmatprep.mubr.bf16.mxu0 0
  %7027 = vmatmul.mubr.bf16.gmra.mrb[0].mxu0 %v6685
  %v7028 = vpop.f32.mrb[0].mxu0
  %v7029 = vadd.f32 %v6567, %v7028
  %v7030 = vpop.f32.mrb[0].mxu0
  %v7031 = vpop.f32.mrb[0].mxu0
  %v7032 = vadd.f32 %v6567, %v7031
  %v7033 = vpop.f32.mrb[0].mxu0
  %7034 = vmatprep.mubr.bf16.mxu0 0
  %7035 = vmatmul.mubr.bf16.gmra.mrb[0].mxu0 %v6688
  %v7036 = vpop.f32.mrb[0].mxu0
  %v7037 = vadd.f32 %v6567, %v7036
  %v7038 = vpop.f32.mrb[0].mxu0
  %v7039 = vpop.f32.mrb[0].mxu0
  %v7040 = vadd.f32 %v6567, %v7039
  %v7041 = vpop.f32.mrb[0].mxu0
  %7042 = vmatprep.mubr.bf16.mxu0 0
  %7043 = vmatmul.mubr.bf16.gmra.mrb[0].mxu0 %v6691
  %v7044 = vpop.f32.mrb[0].mxu0
  %v7045 = vadd.f32 %v6567, %v7044
  %v7046 = vpop.f32.mrb[0].mxu0
  %v7047 = vpop.f32.mrb[0].mxu0
  %v7048 = vadd.f32 %v6567, %v7047
  %v7049 = vpop.f32.mrb[0].mxu0
  %7050 = vmatprep.mubr.bf16.mxu0 0
  %7051 = vmatmul.mubr.bf16.gmra.mrb[0].mxu0 %v6694
  %v7052 = vpop.f32.mrb[0].mxu0
  %v7053 = vadd.f32 %v6567, %v7052
  %v7054 = vpop.f32.mrb[0].mxu0
  %v7055 = vpop.f32.mrb[0].mxu0
  %v7056 = vadd.f32 %v6567, %v7055
  %v7057 = vpop.f32.mrb[0].mxu0
  %7058 = vmatprep.mubr.bf16.mxu0 0
  %7059 = vmatmul.mubr.bf16.gmra.mrb[0].mxu0 %v6697
  %v7060 = vpop.f32.mrb[0].mxu0
  %v7061 = vadd.f32 %v6567, %v7060
  %v7062 = vpop.f32.mrb[0].mxu0
  %v7063 = vpop.f32.mrb[0].mxu0
  %v7064 = vadd.f32 %v6567, %v7063
  %v7065 = vpop.f32.mrb[0].mxu0
  %7066 = vmatprep.mubr.bf16.mxu0 0
  %7067 = vmatmul.mubr.bf16.gmra.mrb[0].mxu0 %v6700
  %v7068 = vpop.f32.mrb[0].mxu0
  %v7069 = vadd.f32 %v6567, %v7068
  %v7070 = vpop.f32.mrb[0].mxu0
  %v7071 = vpop.f32.mrb[0].mxu0
  %v7072 = vadd.f32 %v6567, %v7071
  %v7073 = vpop.f32.mrb[0].mxu0
  %7074 = vmatprep.mubr.bf16.mxu0 0
  %7075 = vmatmul.mubr.bf16.gmra.mrb[0].mxu0 %v6703
  %v7076 = vpop.f32.mrb[0].mxu0
  %v7077 = vadd.f32 %v6567, %v7076
  %v7078 = vpop.f32.mrb[0].mxu0
  %v7079 = vpop.f32.mrb[0].mxu0
  %v7080 = vadd.f32 %v6567, %v7079
  %v7081 = vpop.f32.mrb[0].mxu0
  %7082 = vmatprep.mubr.bf16.mxu0 0
  %7083 = vmatmul.mubr.bf16.gmra.mrb[0].mxu0 %v6706
  %v7084 = vpop.f32.mrb[0].mxu0
  %v7085 = vadd.f32 %v6567, %v7084
  %v7086 = vpop.f32.mrb[0].mxu0
  %v7087 = vpop.f32.mrb[0].mxu0
  %v7088 = vadd.f32 %v6567, %v7087
  %v7089 = vpop.f32.mrb[0].mxu0
  %7090 = vmatprep.mubr.bf16.mxu0 0
  %7091 = vmatmul.mubr.bf16.gmra.mrb[0].mxu0 %v6709
  %v7092 = vpop.f32.mrb[0].mxu0
  %v7093 = vadd.f32 %v6567, %v7092
  %v7094 = vpop.f32.mrb[0].mxu0
  %v7095 = vpop.f32.mrb[0].mxu0
  %v7096 = vadd.f32 %v6567, %v7095
  %v7097 = vpop.f32.mrb[0].mxu0
  %7098 = vmatprep.mubr.bf16.mxu0 0
  %7099 = vmatmul.mubr.bf16.gmra.mrb[0].mxu0 %v6712
  %v7100 = vpop.f32.mrb[0].mxu0
  %v7101 = vadd.f32 %v6567, %v7100
  %v7102 = vpop.f32.mrb[0].mxu0
  %v7103 = vpop.f32.mrb[0].mxu0
  %v7104 = vadd.f32 %v6567, %v7103
  %v7105 = vpop.f32.mrb[0].mxu0
  %7106 = vmatprep.mubr.bf16.mxu0 0
  %7107 = vmatmul.mubr.bf16.gmra.mrb[0].mxu0 %v6715
  %v7108 = vpop.f32.mrb[0].mxu0
  %v7109 = vadd.f32 %v6567, %v7108
  %v7110 = vpop.f32.mrb[0].mxu0
  %v7111 = vpop.f32.mrb[0].mxu0
  %v7112 = vadd.f32 %v6567, %v7111
  %v7113 = vpop.f32.mrb[0].mxu0
  %7114 = vmatprep.mubr.bf16.mxu0 0
  %7115 = vmatmul.mubr.bf16.gmra.mrb[0].mxu0 %v6718
  %v7116 = vpop.f32.mrb[0].mxu0
  %v7117 = vadd.f32 %v6567, %v7116
  %v7118 = vpop.f32.mrb[0].mxu0
  %v7119 = vpop.f32.mrb[0].mxu0
  %v7120 = vadd.f32 %v6567, %v7119
  %v7121 = vpop.f32.mrb[0].mxu0
  %7122 = vmatprep.mubr.bf16.mxu0 0
  %7123 = vmatmul.mubr.bf16.gmra.mrb[0].mxu0 %v6721
  %v7124 = vpop.f32.mrb[0].mxu0
  %v7125 = vadd.f32 %v6567, %v7124
  %v7126 = vpop.f32.mrb[0].mxu0
  %v7127 = vpop.f32.mrb[0].mxu0
  %v7128 = vadd.f32 %v6567, %v7127
  %v7129 = vpop.f32.mrb[0].mxu0
  %7130 = vmatprep.mubr.bf16.mxu0 0
  %7131 = vmatmul.mubr.bf16.gmra.mrb[0].mxu0 %v6724
  %v7132 = vpop.f32.mrb[0].mxu0
  %v7133 = vadd.f32 %v6567, %v7132
  %v7134 = vpop.f32.mrb[0].mxu0
  %v7135 = vpop.f32.mrb[0].mxu0
  %v7136 = vadd.f32 %v6567, %v7135
  %v7137 = vpop.f32.mrb[0].mxu0
  %7138 = vmatprep.mubr.bf16.mxu0 0
  %7139 = vmatmul.mubr.bf16.gmra.mrb[0].mxu0 %v6727
  %v7140 = vpop.f32.mrb[0].mxu0
  %v7141 = vadd.f32 %v6567, %v7140
  %v7142 = vpop.f32.mrb[0].mxu0
  %v7143 = vpop.f32.mrb[0].mxu0
  %v7144 = vadd.f32 %v6567, %v7143
  %v7145 = vpop.f32.mrb[0].mxu0
  %7146 = vmatprep.mubr.bf16.mxu0 0
  %7147 = vmatmul.mubr.bf16.gmra.mrb[0].mxu0 %v6730
  %v7148 = vpop.f32.mrb[0].mxu0
  %v7149 = vadd.f32 %v6567, %v7148
  %v7150 = vpop.f32.mrb[0].mxu0
  %v7151 = vpop.f32.mrb[0].mxu0
  %v7152 = vadd.f32 %v6567, %v7151
  %v7153 = vpop.f32.mrb[0].mxu0
  %7154 = vmatprep.mubr.bf16.mxu0 0
  %7155 = vmatmul.mubr.bf16.gmra.mrb[0].mxu0 %v6733
  %v7156 = vpop.f32.mrb[0].mxu0
  %v7157 = vadd.f32 %v6567, %v7156
  %v7158 = vpop.f32.mrb[0].mxu0
  %v7159 = vpop.f32.mrb[0].mxu0
  %v7160 = vadd.f32 %v6567, %v7159
  %v7161 = vpop.f32.mrb[0].mxu0
  %7162 = vmatprep.mubr.bf16.mxu0 0
  %7163 = vmatmul.mubr.bf16.gmra.mrb[0].mxu0 %v6736
  %v7164 = vpop.f32.mrb[0].mxu0
  %v7165 = vadd.f32 %v6567, %v7164
  %v7166 = vpop.f32.mrb[0].mxu0
  %v7167 = vpop.f32.mrb[0].mxu0
  %v7168 = vadd.f32 %v6567, %v7167
  %v7169 = vpop.f32.mrb[0].mxu0
  %7170 = vdwg.mxu0
  %v7171 = vmax.f32 %v6773, 0.0
  %v7172 = vmax.f32 %v6776, 0.0
  %v7173 = vmax.f32 %v6781, 0.0
  %v7174 = vmax.f32 %v6784, 0.0
  %v7175 = vmax.f32 %v6789, 0.0
  %v7176 = vmax.f32 %v6792, 0.0
  %v7177 = vmax.f32 %v6797, 0.0
  %v7178 = vmax.f32 %v6800, 0.0
  %v7179 = vmax.f32 %v6805, 0.0
  %v7180 = vmax.f32 %v6808, 0.0
  %v7181 = vmax.f32 %v6813, 0.0
  %v7182 = vmax.f32 %v6816, 0.0
  %v7183 = vmax.f32 %v6821, 0.0
  %v7184 = vmax.f32 %v6824, 0.0
  %v7185 = vmax.f32 %v6829, 0.0
  %v7186 = vmax.f32 %v6832, 0.0
  %v7187 = vmax.f32 %v6837, 0.0
  %v7188 = vmax.f32 %v6840, 0.0
  %v7189 = vmax.f32 %v6845, 0.0
  %v7190 = vmax.f32 %v6848, 0.0
  %v7191 = vmax.f32 %v6853, 0.0
  %v7192 = vmax.f32 %v6856, 0.0
  %v7193 = vmax.f32 %v6861, 0.0
  %v7194 = vmax.f32 %v6864, 0.0
  %v7195 = vmax.f32 %v6869, 0.0
  %v7196 = vmax.f32 %v6872, 0.0
  %v7197 = vmax.f32 %v6877, 0.0
  %v7198 = vmax.f32 %v6880, 0.0
  %v7199 = vmax.f32 %v6885, 0.0
  %v7200 = vmax.f32 %v6888, 0.0
  %v7201 = vmax.f32 %v6893, 0.0
  %v7202 = vmax.f32 %v6896, 0.0
  %v7203 = vmax.f32 %v6901, 0.0
  %v7204 = vmax.f32 %v6904, 0.0
  %v7205 = vmax.f32 %v6909, 0.0
  %v7206 = vmax.f32 %v6912, 0.0
  %v7207 = vmax.f32 %v6917, 0.0
  %v7208 = vmax.f32 %v6920, 0.0
  %v7209 = vmax.f32 %v6925, 0.0
  %v7210 = vmax.f32 %v6928, 0.0
  %v7211 = vmax.f32 %v6933, 0.0
  %v7212 = vmax.f32 %v6936, 0.0
  %v7213 = vmax.f32 %v6941, 0.0
  %v7214 = vmax.f32 %v6944, 0.0
  %v7215 = vmax.f32 %v6949, 0.0
  %v7216 = vmax.f32 %v6952, 0.0
  %v7217 = vmax.f32 %v6957, 0.0
  %v7218 = vmax.f32 %v6960, 0.0
  %v7219 = vmax.f32 %v6965, 0.0
  %v7220 = vmax.f32 %v6968, 0.0
  %v7221 = vmax.f32 %v6973, 0.0
  %v7222 = vmax.f32 %v6976, 0.0
  %v7223 = vmax.f32 %v6981, 0.0
  %v7224 = vmax.f32 %v6984, 0.0
  %v7225 = vmax.f32 %v6989, 0.0
  %v7226 = vmax.f32 %v6992, 0.0
  %v7227 = vmax.f32 %v6997, 0.0
  %v7228 = vmax.f32 %v7000, 0.0
  %v7229 = vmax.f32 %v7005, 0.0
  %v7230 = vmax.f32 %v7008, 0.0
  %v7231 = vmax.f32 %v7013, 0.0
  %v7232 = vmax.f32 %v7016, 0.0
  %v7233 = vmax.f32 %v7021, 0.0
  %v7234 = vmax.f32 %v7024, 0.0
  %v7235 = vmax.f32 %v7029, 0.0
  %v7236 = vmax.f32 %v7032, 0.0
  %v7237 = vmax.f32 %v7037, 0.0
  %v7238 = vmax.f32 %v7040, 0.0
  %v7239 = vmax.f32 %v7045, 0.0
  %v7240 = vmax.f32 %v7048, 0.0
  %v7241 = vmax.f32 %v7053, 0.0
  %v7242 = vmax.f32 %v7056, 0.0
  %v7243 = vmax.f32 %v7061, 0.0
  %v7244 = vmax.f32 %v7064, 0.0
  %v7245 = vmax.f32 %v7069, 0.0
  %v7246 = vmax.f32 %v7072, 0.0
  %v7247 = vmax.f32 %v7077, 0.0
  %v7248 = vmax.f32 %v7080, 0.0
  %v7249 = vmax.f32 %v7085, 0.0
  %v7250 = vmax.f32 %v7088, 0.0
  %v7251 = vmax.f32 %v7093, 0.0
  %v7252 = vmax.f32 %v7096, 0.0
  %v7253 = vmax.f32 %v7101, 0.0
  %v7254 = vmax.f32 %v7104, 0.0
  %v7255 = vmax.f32 %v7109, 0.0
  %v7256 = vmax.f32 %v7112, 0.0
  %v7257 = vmax.f32 %v7117, 0.0
  %v7258 = vmax.f32 %v7120, 0.0
  %v7259 = vmax.f32 %v7125, 0.0
  %v7260 = vmax.f32 %v7128, 0.0
  %v7261 = vmax.f32 %v7133, 0.0
  %v7262 = vmax.f32 %v7136, 0.0
  %v7263 = vmax.f32 %v7141, 0.0
  %v7264 = vmax.f32 %v7144, 0.0
  %v7265 = vmax.f32 %v7149, 0.0
  %v7266 = vmax.f32 %v7152, 0.0
  %v7267 = vmax.f32 %v7157, 0.0
  %v7268 = vmax.f32 %v7160, 0.0
  %v7269 = vmax.f32 %v7165, 0.0
  %v7270 = vmax.f32 %v7168, 0.0
  %v7271 = vrot.slane %v7171, 7
  %v7272 = vrot.slane %v7172, 7
  %v7273 = vrot.slane %v7173, 7
  %v7274 = vrot.slane %v7174, 7
  %v7275 = vrot.slane %v7175, 7
  %v7276 = vrot.slane %v7176, 7
  %v7277 = vrot.slane %v7177, 7
  %v7278 = vrot.slane %v7178, 7
  %v7279 = vrot.slane %v7179, 7
  %v7280 = vrot.slane %v7180, 7
  %v7281 = vrot.slane %v7181, 7
  %v7282 = vrot.slane %v7182, 7
  %v7283 = vrot.slane %v7183, 7
  %v7284 = vrot.slane %v7184, 7
  %v7285 = vrot.slane %v7185, 7
  %v7286 = vrot.slane %v7186, 7
  %v7287 = vrot.slane %v7187, 7
  %v7288 = vrot.slane %v7188, 7
  %v7289 = vrot.slane %v7189, 7
  %v7290 = vrot.slane %v7190, 7
  %v7291 = vrot.slane %v7191, 7
  %v7292 = vrot.slane %v7192, 7
  %v7293 = vrot.slane %v7193, 7
  %v7294 = vrot.slane %v7194, 7
  %v7295 = vrot.slane %v7195, 7
  %v7296 = vrot.slane %v7196, 7
  %v7297 = vrot.slane %v7197, 7
  %v7298 = vrot.slane %v7198, 7
  %v7299 = vrot.slane %v7199, 7
  %v7300 = vrot.slane %v7200, 7
  %v7301 = vrot.slane %v7201, 7
  %v7302 = vrot.slane %v7202, 7
  %v7303 = vrot.slane %v7203, 7
  %v7304 = vrot.slane %v7204, 7
  %v7305 = vrot.slane %v7205, 7
  %v7306 = vrot.slane %v7206, 7
  %v7307 = vrot.slane %v7207, 7
  %v7308 = vrot.slane %v7208, 7
  %v7309 = vrot.slane %v7209, 7
  %v7310 = vrot.slane %v7210, 7
  %v7311 = vrot.slane %v7211, 7
  %v7312 = vrot.slane %v7212, 7
  %v7313 = vrot.slane %v7213, 7
  %v7314 = vrot.slane %v7214, 7
  %v7315 = vrot.slane %v7215, 7
  %v7316 = vrot.slane %v7216, 7
  %v7317 = vrot.slane %v7217, 7
  %v7318 = vrot.slane %v7218, 7
  %v7319 = vrot.slane %v7219, 7
  %v7320 = vrot.slane %v7220, 7
  %v7321 = vrot.slane %v7221, 7
  %v7322 = vrot.slane %v7222, 7
  %v7323 = vrot.slane %v7223, 7
  %v7324 = vrot.slane %v7224, 7
  %v7325 = vrot.slane %v7225, 7
  %v7326 = vrot.slane %v7226, 7
  %v7327 = vrot.slane %v7227, 7
  %v7328 = vrot.slane %v7228, 7
  %v7329 = vrot.slane %v7229, 7
  %v7330 = vrot.slane %v7230, 7
  %v7331 = vrot.slane %v7231, 7
  %v7332 = vrot.slane %v7232, 7
  %v7333 = vrot.slane %v7233, 7
  %v7334 = vrot.slane %v7234, 7
  %v7335 = vrot.slane %v7235, 7
  %v7336 = vrot.slane %v7236, 7
  %v7337 = vrot.slane %v7237, 7
  %v7338 = vrot.slane %v7238, 7
  %v7339 = vrot.slane %v7239, 7
  %v7340 = vrot.slane %v7240, 7
  %v7341 = vrot.slane %v7241, 7
  %v7342 = vrot.slane %v7242, 7
  %v7343 = vrot.slane %v7243, 7
  %v7344 = vrot.slane %v7244, 7
  %v7345 = vrot.slane %v7245, 7
  %v7346 = vrot.slane %v7246, 7
  %v7347 = vrot.slane %v7247, 7
  %v7348 = vrot.slane %v7248, 7
  %v7349 = vrot.slane %v7249, 7
  %v7350 = vrot.slane %v7250, 7
  %v7351 = vrot.slane %v7251, 7
  %v7352 = vrot.slane %v7252, 7
  %v7353 = vrot.slane %v7253, 7
  %v7354 = vrot.slane %v7254, 7
  %v7355 = vrot.slane %v7255, 7
  %v7356 = vrot.slane %v7256, 7
  %v7357 = vrot.slane %v7257, 7
  %v7358 = vrot.slane %v7258, 7
  %v7359 = vrot.slane %v7259, 7
  %v7360 = vrot.slane %v7260, 7
  %v7361 = vrot.slane %v7261, 7
  %v7362 = vrot.slane %v7262, 7
  %v7363 = vrot.slane %v7263, 7
  %v7364 = vrot.slane %v7264, 7
  %v7365 = vrot.slane %v7265, 7
  %v7366 = vrot.slane %v7266, 7
  %v7367 = vrot.slane %v7267, 7
  %v7368 = vrot.slane %v7268, 7
  %v7369 = vrot.slane %v7269, 7
  %v7370 = vrot.slane %v7270, 7
  %v7371 = vsel %vm2135, %v7369, %v7370
  %v7372 = vsel %vm2135, %v7368, %v7369
  %v7373 = vsel %vm2135, %v7367, %v7368
  %v7374 = vsel %vm2135, %v7366, %v7367
  %v7375 = vsel %vm2135, %v7365, %v7366
  %v7376 = vsel %vm2135, %v7364, %v7365
  %v7377 = vsel %vm2135, %v7363, %v7364
  %v7378 = vsel %vm2135, %v7362, %v7363
  %v7379 = vsel %vm2135, %v7361, %v7362
  %v7380 = vsel %vm2135, %v7360, %v7361
  %v7381 = vsel %vm2135, %v7359, %v7360
  %v7382 = vsel %vm2135, %v7358, %v7359
  %v7383 = vsel %vm2135, %v7357, %v7358
  %v7384 = vsel %vm2135, %v7356, %v7357
  %v7385 = vsel %vm2135, %v7355, %v7356
  %v7386 = vsel %vm2135, %v7354, %v7355
  %v7387 = vsel %vm2135, %v7353, %v7354
  %v7388 = vsel %vm2135, %v7352, %v7353
  %v7389 = vsel %vm2135, %v7351, %v7352
  %v7390 = vsel %vm2135, %v7350, %v7351
  %v7391 = vsel %vm2135, %v7349, %v7350
  %v7392 = vsel %vm2135, %v7348, %v7349
  %v7393 = vsel %vm2135, %v7347, %v7348
  %v7394 = vsel %vm2135, %v7346, %v7347
  %v7395 = vsel %vm2135, %v7345, %v7346
  %v7396 = vsel %vm2135, %v7344, %v7345
  %v7397 = vsel %vm2135, %v7343, %v7344
  %v7398 = vsel %vm2135, %v7342, %v7343
  %v7399 = vsel %vm2135, %v7341, %v7342
  %v7400 = vsel %vm2135, %v7340, %v7341
  %v7401 = vsel %vm2135, %v7339, %v7340
  %v7402 = vsel %vm2135, %v7338, %v7339
  %v7403 = vsel %vm2135, %v7337, %v7338
  %v7404 = vsel %vm2135, %v7336, %v7337
  %v7405 = vsel %vm2135, %v7335, %v7336
  %v7406 = vsel %vm2135, %v7334, %v7335
  %v7407 = vsel %vm2135, %v7333, %v7334
  %v7408 = vsel %vm2135, %v7332, %v7333
  %v7409 = vsel %vm2135, %v7331, %v7332
  %v7410 = vsel %vm2135, %v7330, %v7331
  %v7411 = vsel %vm2135, %v7329, %v7330
  %v7412 = vsel %vm2135, %v7328, %v7329
  %v7413 = vsel %vm2135, %v7327, %v7328
  %v7414 = vsel %vm2135, %v7326, %v7327
  %v7415 = vsel %vm2135, %v7325, %v7326
  %v7416 = vsel %vm2135, %v7324, %v7325
  %v7417 = vsel %vm2135, %v7323, %v7324
  %v7418 = vsel %vm2135, %v7322, %v7323
  %v7419 = vsel %vm2135, %v7321, %v7322
  %v7420 = vsel %vm2135, %v7320, %v7321
  %v7421 = vsel %vm2135, %v7319, %v7320
  %v7422 = vsel %vm2135, %v7318, %v7319
  %v7423 = vsel %vm2135, %v7317, %v7318
  %v7424 = vsel %vm2135, %v7316, %v7317
  %v7425 = vsel %vm2135, %v7315, %v7316
  %v7426 = vsel %vm2135, %v7314, %v7315
  %v7427 = vsel %vm2135, %v7313, %v7314
  %v7428 = vsel %vm2135, %v7312, %v7313
  %v7429 = vsel %vm2135, %v7311, %v7312
  %v7430 = vsel %vm2135, %v7310, %v7311
  %v7431 = vsel %vm2135, %v7309, %v7310
  %v7432 = vsel %vm2135, %v7308, %v7309
  %v7433 = vsel %vm2135, %v7307, %v7308
  %v7434 = vsel %vm2135, %v7306, %v7307
  %v7435 = vsel %vm2135, %v7305, %v7306
  %v7436 = vsel %vm2135, %v7304, %v7305
  %v7437 = vsel %vm2135, %v7303, %v7304
  %v7438 = vsel %vm2135, %v7302, %v7303
  %v7439 = vsel %vm2135, %v7301, %v7302
  %v7440 = vsel %vm2135, %v7300, %v7301
  %v7441 = vsel %vm2135, %v7299, %v7300
  %v7442 = vsel %vm2135, %v7298, %v7299
  %v7443 = vsel %vm2135, %v7297, %v7298
  %v7444 = vsel %vm2135, %v7296, %v7297
  %v7445 = vsel %vm2135, %v7295, %v7296
  %v7446 = vsel %vm2135, %v7294, %v7295
  %v7447 = vsel %vm2135, %v7293, %v7294
  %v7448 = vsel %vm2135, %v7292, %v7293
  %v7449 = vsel %vm2135, %v7291, %v7292
  %v7450 = vsel %vm2135, %v7290, %v7291
  %v7451 = vsel %vm2135, %v7289, %v7290
  %v7452 = vsel %vm2135, %v7288, %v7289
  %v7453 = vsel %vm2135, %v7287, %v7288
  %v7454 = vsel %vm2135, %v7286, %v7287
  %v7455 = vsel %vm2135, %v7285, %v7286
  %v7456 = vsel %vm2135, %v7284, %v7285
  %v7457 = vsel %vm2135, %v7283, %v7284
  %v7458 = vsel %vm2135, %v7282, %v7283
  %v7459 = vsel %vm2135, %v7281, %v7282
  %v7460 = vsel %vm2135, %v7280, %v7281
  %v7461 = vsel %vm2135, %v7279, %v7280
  %v7462 = vsel %vm2135, %v7278, %v7279
  %v7463 = vsel %vm2135, %v7277, %v7278
  %v7464 = vsel %vm2135, %v7276, %v7277
  %v7465 = vsel %vm2135, %v7275, %v7276
  %v7466 = vsel %vm2135, %v7274, %v7275
  %v7467 = vsel %vm2135, %v7273, %v7274
  %v7468 = vsel %vm2135, %v7272, %v7273
  %v7469 = vsel %vm2135, %v7271, %v7272
  %v7470 = vsel %vm2135, %v7370, %v7271
  %v7471 = vsel %vm2336, %v7470, 0.0
  %v7472 = vsel %vm2337, %v7469, 0.0
  %v7473 = vsel %vm2338, %v7468, 0.0
  %v7474 = vsel %vm2339, %v7467, 0.0
  %v7475 = vsel %vm2340, %v7466, 0.0
  %v7476 = vsel %vm2341, %v7465, 0.0
  %v7477 = vsel %vm2342, %v7464, 0.0
  %v7478 = vsel %vm2343, %v7463, 0.0
  %v7479 = vsel %vm2344, %v7462, 0.0
  %v7480 = vsel %vm2345, %v7461, 0.0
  %v7481 = vsel %vm2346, %v7460, 0.0
  %v7482 = vsel %vm2347, %v7459, 0.0
  %v7483 = vsel %vm2348, %v7458, 0.0
  %v7484 = vsel %vm2349, %v7457, 0.0
  %v7485 = vsel %vm2350, %v7456, 0.0
  %v7486 = vsel %vm2351, %v7455, 0.0
  %v7487 = vsel %vm2352, %v7454, 0.0
  %v7488 = vsel %vm2353, %v7453, 0.0
  %v7489 = vsel %vm2354, %v7452, 0.0
  %v7490 = vsel %vm2355, %v7451, 0.0
  %v7491 = vsel %vm2356, %v7450, 0.0
  %v7492 = vsel %vm2357, %v7449, 0.0
  %v7493 = vsel %vm2358, %v7448, 0.0
  %v7494 = vsel %vm2359, %v7447, 0.0
  %v7495 = vsel %vm2360, %v7446, 0.0
  %v7496 = vsel %vm2361, %v7445, 0.0
  %v7497 = vsel %vm2362, %v7444, 0.0
  %v7498 = vsel %vm2363, %v7443, 0.0
  %v7499 = vsel %vm2364, %v7442, 0.0
  %v7500 = vsel %vm2365, %v7441, 0.0
  %v7501 = vsel %vm2366, %v7440, 0.0
  %v7502 = vsel %vm2367, %v7439, 0.0
  %v7503 = vsel %vm2368, %v7438, 0.0
  %v7504 = vsel %vm2369, %v7437, 0.0
  %v7505 = vsel %vm2370, %v7436, 0.0
  %v7506 = vsel %vm2371, %v7435, 0.0
  %v7507 = vsel %vm2372, %v7434, 0.0
  %v7508 = vsel %vm2373, %v7433, 0.0
  %v7509 = vsel %vm2374, %v7432, 0.0
  %v7510 = vsel %vm2375, %v7431, 0.0
  %v7511 = vsel %vm2376, %v7430, 0.0
  %v7512 = vsel %vm2377, %v7429, 0.0
  %v7513 = vsel %vm2378, %v7428, 0.0
  %v7514 = vsel %vm2379, %v7427, 0.0
  %v7515 = vsel %vm2380, %v7426, 0.0
  %v7516 = vsel %vm2381, %v7425, 0.0
  %v7517 = vsel %vm2382, %v7424, 0.0
  %v7518 = vsel %vm2383, %v7423, 0.0
  %v7519 = vsel %vm2384, %v7422, 0.0
  %v7520 = vsel %vm2385, %v7421, 0.0
  %v7521 = vsel %vm2386, %v7420, 0.0
  %v7522 = vsel %vm2387, %v7419, 0.0
  %v7523 = vsel %vm2388, %v7418, 0.0
  %v7524 = vsel %vm2389, %v7417, 0.0
  %v7525 = vsel %vm2390, %v7416, 0.0
  %v7526 = vsel %vm2391, %v7415, 0.0
  %v7527 = vsel %vm2392, %v7414, 0.0
  %v7528 = vsel %vm2393, %v7413, 0.0
  %v7529 = vsel %vm2394, %v7412, 0.0
  %v7530 = vsel %vm2395, %v7411, 0.0
  %v7531 = vsel %vm2396, %v7410, 0.0
  %v7532 = vsel %vm2397, %v7409, 0.0
  %v7533 = vsel %vm2398, %v7408, 0.0
  %v7534 = vsel %vm2399, %v7407, 0.0
  %v7535 = vsel %vm2400, %v7406, 0.0
  %v7536 = vsel %vm2401, %v7405, 0.0
  %v7537 = vsel %vm2402, %v7404, 0.0
  %v7538 = vsel %vm2403, %v7403, 0.0
  %v7539 = vsel %vm2404, %v7402, 0.0
  %v7540 = vsel %vm2405, %v7401, 0.0
  %v7541 = vsel %vm2406, %v7400, 0.0
  %v7542 = vsel %vm2407, %v7399, 0.0
  %v7543 = vsel %vm2408, %v7398, 0.0
  %v7544 = vsel %vm2409, %v7397, 0.0
  %v7545 = vsel %vm2410, %v7396, 0.0
  %v7546 = vsel %vm2411, %v7395, 0.0
  %v7547 = vsel %vm2412, %v7394, 0.0
  %v7548 = vsel %vm2413, %v7393, 0.0
  %v7549 = vsel %vm2414, %v7392, 0.0
  %v7550 = vsel %vm2415, %v7391, 0.0
  %v7551 = vsel %vm2416, %v7390, 0.0
  %v7552 = vsel %vm2417, %v7389, 0.0
  %v7553 = vsel %vm2418, %v7388, 0.0
  %v7554 = vsel %vm2419, %v7387, 0.0
  %v7555 = vsel %vm2420, %v7386, 0.0
  %v7556 = vsel %vm2421, %v7385, 0.0
  %v7557 = vsel %vm2422, %v7384, 0.0
  %v7558 = vsel %vm2423, %v7383, 0.0
  %v7559 = vsel %vm2424, %v7382, 0.0
  %v7560 = vsel %vm2425, %v7381, 0.0
  %v7561 = vsel %vm2426, %v7380, 0.0
  %v7562 = vsel %vm2427, %v7379, 0.0
  %v7563 = vsel %vm2428, %v7378, 0.0
  %v7564 = vsel %vm2429, %v7377, 0.0
  %v7565 = vsel %vm2430, %v7376, 0.0
  %v7566 = vsel %vm2431, %v7375, 0.0
  %v7567 = vsel %vm2432, %v7374, 0.0
  %v7568 = vsel %vm2433, %v7373, 0.0
  %v7569 = vsel %vm2434, %v7372, 0.0
  %v7570 = vsel %vm2435, %v7371, 0.0
  %v7571 = vrot.slane %v7171, 1
  %v7572 = vrot.slane %v7172, 1
  %v7573 = vrot.slane %v7173, 1
  %v7574 = vrot.slane %v7174, 1
  %v7575 = vrot.slane %v7175, 1
  %v7576 = vrot.slane %v7176, 1
  %v7577 = vrot.slane %v7177, 1
  %v7578 = vrot.slane %v7178, 1
  %v7579 = vrot.slane %v7179, 1
  %v7580 = vrot.slane %v7180, 1
  %v7581 = vrot.slane %v7181, 1
  %v7582 = vrot.slane %v7182, 1
  %v7583 = vrot.slane %v7183, 1
  %v7584 = vrot.slane %v7184, 1
  %v7585 = vrot.slane %v7185, 1
  %v7586 = vrot.slane %v7186, 1
  %v7587 = vrot.slane %v7187, 1
  %v7588 = vrot.slane %v7188, 1
  %v7589 = vrot.slane %v7189, 1
  %v7590 = vrot.slane %v7190, 1
  %v7591 = vrot.slane %v7191, 1
  %v7592 = vrot.slane %v7192, 1
  %v7593 = vrot.slane %v7193, 1
  %v7594 = vrot.slane %v7194, 1
  %v7595 = vrot.slane %v7195, 1
  %v7596 = vrot.slane %v7196, 1
  %v7597 = vrot.slane %v7197, 1
  %v7598 = vrot.slane %v7198, 1
  %v7599 = vrot.slane %v7199, 1
  %v7600 = vrot.slane %v7200, 1
  %v7601 = vrot.slane %v7201, 1
  %v7602 = vrot.slane %v7202, 1
  %v7603 = vrot.slane %v7203, 1
  %v7604 = vrot.slane %v7204, 1
  %v7605 = vrot.slane %v7205, 1
  %v7606 = vrot.slane %v7206, 1
  %v7607 = vrot.slane %v7207, 1
  %v7608 = vrot.slane %v7208, 1
  %v7609 = vrot.slane %v7209, 1
  %v7610 = vrot.slane %v7210, 1
  %v7611 = vrot.slane %v7211, 1
  %v7612 = vrot.slane %v7212, 1
  %v7613 = vrot.slane %v7213, 1
  %v7614 = vrot.slane %v7214, 1
  %v7615 = vrot.slane %v7215, 1
  %v7616 = vrot.slane %v7216, 1
  %v7617 = vrot.slane %v7217, 1
  %v7618 = vrot.slane %v7218, 1
  %v7619 = vrot.slane %v7219, 1
  %v7620 = vrot.slane %v7220, 1
  %v7621 = vrot.slane %v7221, 1
  %v7622 = vrot.slane %v7222, 1
  %v7623 = vrot.slane %v7223, 1
  %v7624 = vrot.slane %v7224, 1
  %v7625 = vrot.slane %v7225, 1
  %v7626 = vrot.slane %v7226, 1
  %v7627 = vrot.slane %v7227, 1
  %v7628 = vrot.slane %v7228, 1
  %v7629 = vrot.slane %v7229, 1
  %v7630 = vrot.slane %v7230, 1
  %v7631 = vrot.slane %v7231, 1
  %v7632 = vrot.slane %v7232, 1
  %v7633 = vrot.slane %v7233, 1
  %v7634 = vrot.slane %v7234, 1
  %v7635 = vrot.slane %v7235, 1
  %v7636 = vrot.slane %v7236, 1
  %v7637 = vrot.slane %v7237, 1
  %v7638 = vrot.slane %v7238, 1
  %v7639 = vrot.slane %v7239, 1
  %v7640 = vrot.slane %v7240, 1
  %v7641 = vrot.slane %v7241, 1
  %v7642 = vrot.slane %v7242, 1
  %v7643 = vrot.slane %v7243, 1
  %v7644 = vrot.slane %v7244, 1
  %v7645 = vrot.slane %v7245, 1
  %v7646 = vrot.slane %v7246, 1
  %v7647 = vrot.slane %v7247, 1
  %v7648 = vrot.slane %v7248, 1
  %v7649 = vrot.slane %v7249, 1
  %v7650 = vrot.slane %v7250, 1
  %v7651 = vrot.slane %v7251, 1
  %v7652 = vrot.slane %v7252, 1
  %v7653 = vrot.slane %v7253, 1
  %v7654 = vrot.slane %v7254, 1
  %v7655 = vrot.slane %v7255, 1
  %v7656 = vrot.slane %v7256, 1
  %v7657 = vrot.slane %v7257, 1
  %v7658 = vrot.slane %v7258, 1
  %v7659 = vrot.slane %v7259, 1
  %v7660 = vrot.slane %v7260, 1
  %v7661 = vrot.slane %v7261, 1
  %v7662 = vrot.slane %v7262, 1
  %v7663 = vrot.slane %v7263, 1
  %v7664 = vrot.slane %v7264, 1
  %v7665 = vrot.slane %v7265, 1
  %v7666 = vrot.slane %v7266, 1
  %v7667 = vrot.slane %v7267, 1
  %v7668 = vrot.slane %v7268, 1
  %v7669 = vrot.slane %v7269, 1
  %v7670 = vrot.slane %v7270, 1
  %v7671 = vsel %vm2636, %v7669, %v7670
  %v7672 = vsel %vm2636, %v7668, %v7669
  %v7673 = vsel %vm2636, %v7667, %v7668
  %v7674 = vsel %vm2636, %v7666, %v7667
  %v7675 = vsel %vm2636, %v7665, %v7666
  %v7676 = vsel %vm2636, %v7664, %v7665
  %v7677 = vsel %vm2636, %v7663, %v7664
  %v7678 = vsel %vm2636, %v7662, %v7663
  %v7679 = vsel %vm2636, %v7661, %v7662
  %v7680 = vsel %vm2636, %v7660, %v7661
  %v7681 = vsel %vm2636, %v7659, %v7660
  %v7682 = vsel %vm2636, %v7658, %v7659
  %v7683 = vsel %vm2636, %v7657, %v7658
  %v7684 = vsel %vm2636, %v7656, %v7657
  %v7685 = vsel %vm2636, %v7655, %v7656
  %v7686 = vsel %vm2636, %v7654, %v7655
  %v7687 = vsel %vm2636, %v7653, %v7654
  %v7688 = vsel %vm2636, %v7652, %v7653
  %v7689 = vsel %vm2636, %v7651, %v7652
  %v7690 = vsel %vm2636, %v7650, %v7651
  %v7691 = vsel %vm2636, %v7649, %v7650
  %v7692 = vsel %vm2636, %v7648, %v7649
  %v7693 = vsel %vm2636, %v7647, %v7648
  %v7694 = vsel %vm2636, %v7646, %v7647
  %v7695 = vsel %vm2636, %v7645, %v7646
  %v7696 = vsel %vm2636, %v7644, %v7645
  %v7697 = vsel %vm2636, %v7643, %v7644
  %v7698 = vsel %vm2636, %v7642, %v7643
  %v7699 = vsel %vm2636, %v7641, %v7642
  %v7700 = vsel %vm2636, %v7640, %v7641
  %v7701 = vsel %vm2636, %v7639, %v7640
  %v7702 = vsel %vm2636, %v7638, %v7639
  %v7703 = vsel %vm2636, %v7637, %v7638
  %v7704 = vsel %vm2636, %v7636, %v7637
  %v7705 = vsel %vm2636, %v7635, %v7636
  %v7706 = vsel %vm2636, %v7634, %v7635
  %v7707 = vsel %vm2636, %v7633, %v7634
  %v7708 = vsel %vm2636, %v7632, %v7633
  %v7709 = vsel %vm2636, %v7631, %v7632
  %v7710 = vsel %vm2636, %v7630, %v7631
  %v7711 = vsel %vm2636, %v7629, %v7630
  %v7712 = vsel %vm2636, %v7628, %v7629
  %v7713 = vsel %vm2636, %v7627, %v7628
  %v7714 = vsel %vm2636, %v7626, %v7627
  %v7715 = vsel %vm2636, %v7625, %v7626
  %v7716 = vsel %vm2636, %v7624, %v7625
  %v7717 = vsel %vm2636, %v7623, %v7624
  %v7718 = vsel %vm2636, %v7622, %v7623
  %v7719 = vsel %vm2636, %v7621, %v7622
  %v7720 = vsel %vm2636, %v7620, %v7621
  %v7721 = vsel %vm2636, %v7619, %v7620
  %v7722 = vsel %vm2636, %v7618, %v7619
  %v7723 = vsel %vm2636, %v7617, %v7618
  %v7724 = vsel %vm2636, %v7616, %v7617
  %v7725 = vsel %vm2636, %v7615, %v7616
  %v7726 = vsel %vm2636, %v7614, %v7615
  %v7727 = vsel %vm2636, %v7613, %v7614
  %v7728 = vsel %vm2636, %v7612, %v7613
  %v7729 = vsel %vm2636, %v7611, %v7612
  %v7730 = vsel %vm2636, %v7610, %v7611
  %v7731 = vsel %vm2636, %v7609, %v7610
  %v7732 = vsel %vm2636, %v7608, %v7609
  %v7733 = vsel %vm2636, %v7607, %v7608
  %v7734 = vsel %vm2636, %v7606, %v7607
  %v7735 = vsel %vm2636, %v7605, %v7606
  %v7736 = vsel %vm2636, %v7604, %v7605
  %v7737 = vsel %vm2636, %v7603, %v7604
  %v7738 = vsel %vm2636, %v7602, %v7603
  %v7739 = vsel %vm2636, %v7601, %v7602
  %v7740 = vsel %vm2636, %v7600, %v7601
  %v7741 = vsel %vm2636, %v7599, %v7600
  %v7742 = vsel %vm2636, %v7598, %v7599
  %v7743 = vsel %vm2636, %v7597, %v7598
  %v7744 = vsel %vm2636, %v7596, %v7597
  %v7745 = vsel %vm2636, %v7595, %v7596
  %v7746 = vsel %vm2636, %v7594, %v7595
  %v7747 = vsel %vm2636, %v7593, %v7594
  %v7748 = vsel %vm2636, %v7592, %v7593
  %v7749 = vsel %vm2636, %v7591, %v7592
  %v7750 = vsel %vm2636, %v7590, %v7591
  %v7751 = vsel %vm2636, %v7589, %v7590
  %v7752 = vsel %vm2636, %v7588, %v7589
  %v7753 = vsel %vm2636, %v7587, %v7588
  %v7754 = vsel %vm2636, %v7586, %v7587
  %v7755 = vsel %vm2636, %v7585, %v7586
  %v7756 = vsel %vm2636, %v7584, %v7585
  %v7757 = vsel %vm2636, %v7583, %v7584
  %v7758 = vsel %vm2636, %v7582, %v7583
  %v7759 = vsel %vm2636, %v7581, %v7582
  %v7760 = vsel %vm2636, %v7580, %v7581
  %v7761 = vsel %vm2636, %v7579, %v7580
  %v7762 = vsel %vm2636, %v7578, %v7579
  %v7763 = vsel %vm2636, %v7577, %v7578
  %v7764 = vsel %vm2636, %v7576, %v7577
  %v7765 = vsel %vm2636, %v7575, %v7576
  %v7766 = vsel %vm2636, %v7574, %v7575
  %v7767 = vsel %vm2636, %v7573, %v7574
  %v7768 = vsel %vm2636, %v7572, %v7573
  %v7769 = vsel %vm2636, %v7571, %v7572
  %v7770 = vsel %vm2636, %v7670, %v7571
  %v7771 = vsel %vm2837, %v7769, 0.0
  %v7772 = vsel %vm2838, %v7768, 0.0
  %v7773 = vsel %vm2839, %v7767, 0.0
  %v7774 = vsel %vm2840, %v7766, 0.0
  %v7775 = vsel %vm2841, %v7765, 0.0
  %v7776 = vsel %vm2842, %v7764, 0.0
  %v7777 = vsel %vm2843, %v7763, 0.0
  %v7778 = vsel %vm2844, %v7762, 0.0
  %v7779 = vsel %vm2845, %v7761, 0.0
  %v7780 = vsel %vm2846, %v7760, 0.0
  %v7781 = vsel %vm2847, %v7759, 0.0
  %v7782 = vsel %vm2848, %v7758, 0.0
  %v7783 = vsel %vm2849, %v7757, 0.0
  %v7784 = vsel %vm2850, %v7756, 0.0
  %v7785 = vsel %vm2851, %v7755, 0.0
  %v7786 = vsel %vm2852, %v7754, 0.0
  %v7787 = vsel %vm2853, %v7753, 0.0
  %v7788 = vsel %vm2854, %v7752, 0.0
  %v7789 = vsel %vm2855, %v7751, 0.0
  %v7790 = vsel %vm2856, %v7750, 0.0
  %v7791 = vsel %vm2857, %v7749, 0.0
  %v7792 = vsel %vm2858, %v7748, 0.0
  %v7793 = vsel %vm2859, %v7747, 0.0
  %v7794 = vsel %vm2860, %v7746, 0.0
  %v7795 = vsel %vm2861, %v7745, 0.0
  %v7796 = vsel %vm2862, %v7744, 0.0
  %v7797 = vsel %vm2863, %v7743, 0.0
  %v7798 = vsel %vm2864, %v7742, 0.0
  %v7799 = vsel %vm2865, %v7741, 0.0
  %v7800 = vsel %vm2866, %v7740, 0.0
  %v7801 = vsel %vm2867, %v7739, 0.0
  %v7802 = vsel %vm2868, %v7738, 0.0
  %v7803 = vsel %vm2869, %v7737, 0.0
  %v7804 = vsel %vm2870, %v7736, 0.0
  %v7805 = vsel %vm2871, %v7735, 0.0
  %v7806 = vsel %vm2872, %v7734, 0.0
  %v7807 = vsel %vm2873, %v7733, 0.0
  %v7808 = vsel %vm2874, %v7732, 0.0
  %v7809 = vsel %vm2875, %v7731, 0.0
  %v7810 = vsel %vm2876, %v7730, 0.0
  %v7811 = vsel %vm2877, %v7729, 0.0
  %v7812 = vsel %vm2878, %v7728, 0.0
  %v7813 = vsel %vm2879, %v7727, 0.0
  %v7814 = vsel %vm2880, %v7726, 0.0
  %v7815 = vsel %vm2881, %v7725, 0.0
  %v7816 = vsel %vm2882, %v7724, 0.0
  %v7817 = vsel %vm2883, %v7723, 0.0
  %v7818 = vsel %vm2884, %v7722, 0.0
  %v7819 = vsel %vm2885, %v7721, 0.0
  %v7820 = vsel %vm2886, %v7720, 0.0
  %v7821 = vsel %vm2887, %v7719, 0.0
  %v7822 = vsel %vm2888, %v7718, 0.0
  %v7823 = vsel %vm2889, %v7717, 0.0
  %v7824 = vsel %vm2890, %v7716, 0.0
  %v7825 = vsel %vm2891, %v7715, 0.0
  %v7826 = vsel %vm2892, %v7714, 0.0
  %v7827 = vsel %vm2893, %v7713, 0.0
  %v7828 = vsel %vm2894, %v7712, 0.0
  %v7829 = vsel %vm2895, %v7711, 0.0
  %v7830 = vsel %vm2896, %v7710, 0.0
  %v7831 = vsel %vm2897, %v7709, 0.0
  %v7832 = vsel %vm2898, %v7708, 0.0
  %v7833 = vsel %vm2899, %v7707, 0.0
  %v7834 = vsel %vm2900, %v7706, 0.0
  %v7835 = vsel %vm2901, %v7705, 0.0
  %v7836 = vsel %vm2902, %v7704, 0.0
  %v7837 = vsel %vm2903, %v7703, 0.0
  %v7838 = vsel %vm2904, %v7702, 0.0
  %v7839 = vsel %vm2905, %v7701, 0.0
  %v7840 = vsel %vm2906, %v7700, 0.0
  %v7841 = vsel %vm2907, %v7699, 0.0
  %v7842 = vsel %vm2908, %v7698, 0.0
  %v7843 = vsel %vm2909, %v7697, 0.0
  %v7844 = vsel %vm2910, %v7696, 0.0
  %v7845 = vsel %vm2911, %v7695, 0.0
  %v7846 = vsel %vm2912, %v7694, 0.0
  %v7847 = vsel %vm2913, %v7693, 0.0
  %v7848 = vsel %vm2914, %v7692, 0.0
  %v7849 = vsel %vm2915, %v7691, 0.0
  %v7850 = vsel %vm2916, %v7690, 0.0
  %v7851 = vsel %vm2917, %v7689, 0.0
  %v7852 = vsel %vm2918, %v7688, 0.0
  %v7853 = vsel %vm2919, %v7687, 0.0
  %v7854 = vsel %vm2920, %v7686, 0.0
  %v7855 = vsel %vm2921, %v7685, 0.0
  %v7856 = vsel %vm2922, %v7684, 0.0
  %v7857 = vsel %vm2923, %v7683, 0.0
  %v7858 = vsel %vm2924, %v7682, 0.0
  %v7859 = vsel %vm2925, %v7681, 0.0
  %v7860 = vsel %vm2926, %v7680, 0.0
  %v7861 = vsel %vm2927, %v7679, 0.0
  %v7862 = vsel %vm2928, %v7678, 0.0
  %v7863 = vsel %vm2929, %v7677, 0.0
  %v7864 = vsel %vm2930, %v7676, 0.0
  %v7865 = vsel %vm2931, %v7675, 0.0
  %v7866 = vsel %vm2932, %v7674, 0.0
  %v7867 = vsel %vm2933, %v7673, 0.0
  %v7868 = vsel %vm2934, %v7672, 0.0
  %v7869 = vsel %vm2935, %v7671, 0.0
  %v7870 = vsel %vm2936, %v7770, 0.0
  %7971 = vrot.lane.b32.xlu0 %v7171, 32
  %v7972 = vpop.permute.xlu0 %7971
  %7973 = vrot.lane.b32.xlu0 %v7172, 32
  %v7974 = vpop.permute.xlu0 %7973
  %7975 = vrot.lane.b32.xlu0 %v7173, 32
  %v7976 = vpop.permute.xlu0 %7975
  %7977 = vrot.lane.b32.xlu0 %v7174, 32
  %v7978 = vpop.permute.xlu0 %7977
  %7979 = vrot.lane.b32.xlu0 %v7175, 32
  %v7980 = vpop.permute.xlu0 %7979
  %7981 = vrot.lane.b32.xlu0 %v7176, 32
  %v7982 = vpop.permute.xlu0 %7981
  %7983 = vrot.lane.b32.xlu0 %v7177, 32
  %v7984 = vpop.permute.xlu0 %7983
  %7985 = vrot.lane.b32.xlu0 %v7178, 32
  %v7986 = vpop.permute.xlu0 %7985
  %7987 = vrot.lane.b32.xlu0 %v7179, 32
  %v7988 = vpop.permute.xlu0 %7987
  %7989 = vrot.lane.b32.xlu0 %v7180, 32
  %v7990 = vpop.permute.xlu0 %7989
  %7991 = vrot.lane.b32.xlu0 %v7181, 32
  %v7992 = vpop.permute.xlu0 %7991
  %7993 = vrot.lane.b32.xlu0 %v7182, 32
  %v7994 = vpop.permute.xlu0 %7993
  %7995 = vrot.lane.b32.xlu0 %v7183, 32
  %v7996 = vpop.permute.xlu0 %7995
  %7997 = vrot.lane.b32.xlu0 %v7184, 32
  %v7998 = vpop.permute.xlu0 %7997
  %7999 = vrot.lane.b32.xlu0 %v7185, 32
  %v8000 = vpop.permute.xlu0 %7999
  %8001 = vrot.lane.b32.xlu0 %v7186, 32
  %v8002 = vpop.permute.xlu0 %8001
  %8003 = vrot.lane.b32.xlu0 %v7187, 32
  %v8004 = vpop.permute.xlu0 %8003
  %8005 = vrot.lane.b32.xlu0 %v7188, 32
  %v8006 = vpop.permute.xlu0 %8005
  %8007 = vrot.lane.b32.xlu0 %v7189, 32
  %v8008 = vpop.permute.xlu0 %8007
  %8009 = vrot.lane.b32.xlu0 %v7190, 32
  %v8010 = vpop.permute.xlu0 %8009
  %8011 = vrot.lane.b32.xlu0 %v7191, 32
  %v8012 = vpop.permute.xlu0 %8011
  %8013 = vrot.lane.b32.xlu0 %v7192, 32
  %v8014 = vpop.permute.xlu0 %8013
  %8015 = vrot.lane.b32.xlu0 %v7193, 32
  %v8016 = vpop.permute.xlu0 %8015
  %8017 = vrot.lane.b32.xlu0 %v7194, 32
  %v8018 = vpop.permute.xlu0 %8017
  %8019 = vrot.lane.b32.xlu0 %v7195, 32
  %v8020 = vpop.permute.xlu0 %8019
  %8021 = vrot.lane.b32.xlu0 %v7196, 32
  %v8022 = vpop.permute.xlu0 %8021
  %8023 = vrot.lane.b32.xlu0 %v7197, 32
  %v8024 = vpop.permute.xlu0 %8023
  %8025 = vrot.lane.b32.xlu0 %v7198, 32
  %v8026 = vpop.permute.xlu0 %8025
  %8027 = vrot.lane.b32.xlu0 %v7199, 32
  %v8028 = vpop.permute.xlu0 %8027
  %8029 = vrot.lane.b32.xlu0 %v7200, 32
  %v8030 = vpop.permute.xlu0 %8029
  %8031 = vrot.lane.b32.xlu0 %v7201, 32
  %v8032 = vpop.permute.xlu0 %8031
  %8033 = vrot.lane.b32.xlu0 %v7202, 32
  %v8034 = vpop.permute.xlu0 %8033
  %8035 = vrot.lane.b32.xlu0 %v7203, 32
  %v8036 = vpop.permute.xlu0 %8035
  %8037 = vrot.lane.b32.xlu0 %v7204, 32
  %v8038 = vpop.permute.xlu0 %8037
  %8039 = vrot.lane.b32.xlu0 %v7205, 32
  %v8040 = vpop.permute.xlu0 %8039
  %8041 = vrot.lane.b32.xlu0 %v7206, 32
  %v8042 = vpop.permute.xlu0 %8041
  %8043 = vrot.lane.b32.xlu0 %v7207, 32
  %v8044 = vpop.permute.xlu0 %8043
  %8045 = vrot.lane.b32.xlu0 %v7208, 32
  %v8046 = vpop.permute.xlu0 %8045
  %8047 = vrot.lane.b32.xlu0 %v7209, 32
  %v8048 = vpop.permute.xlu0 %8047
  %8049 = vrot.lane.b32.xlu0 %v7210, 32
  %v8050 = vpop.permute.xlu0 %8049
  %8051 = vrot.lane.b32.xlu0 %v7211, 32
  %v8052 = vpop.permute.xlu0 %8051
  %8053 = vrot.lane.b32.xlu0 %v7212, 32
  %v8054 = vpop.permute.xlu0 %8053
  %8055 = vrot.lane.b32.xlu0 %v7213, 32
  %v8056 = vpop.permute.xlu0 %8055
  %8057 = vrot.lane.b32.xlu0 %v7214, 32
  %v8058 = vpop.permute.xlu0 %8057
  %8059 = vrot.lane.b32.xlu0 %v7215, 32
  %v8060 = vpop.permute.xlu0 %8059
  %8061 = vrot.lane.b32.xlu0 %v7216, 32
  %v8062 = vpop.permute.xlu0 %8061
  %8063 = vrot.lane.b32.xlu0 %v7217, 32
  %v8064 = vpop.permute.xlu0 %8063
  %8065 = vrot.lane.b32.xlu0 %v7218, 32
  %v8066 = vpop.permute.xlu0 %8065
  %8067 = vrot.lane.b32.xlu0 %v7219, 32
  %v8068 = vpop.permute.xlu0 %8067
  %8069 = vrot.lane.b32.xlu0 %v7220, 32
  %v8070 = vpop.permute.xlu0 %8069
  %8071 = vrot.lane.b32.xlu0 %v7221, 32
  %v8072 = vpop.permute.xlu0 %8071
  %8073 = vrot.lane.b32.xlu0 %v7222, 32
  %v8074 = vpop.permute.xlu0 %8073
  %8075 = vrot.lane.b32.xlu0 %v7223, 32
  %v8076 = vpop.permute.xlu0 %8075
  %8077 = vrot.lane.b32.xlu0 %v7224, 32
  %v8078 = vpop.permute.xlu0 %8077
  %8079 = vrot.lane.b32.xlu0 %v7225, 32
  %v8080 = vpop.permute.xlu0 %8079
  %8081 = vrot.lane.b32.xlu0 %v7226, 32
  %v8082 = vpop.permute.xlu0 %8081
  %8083 = vrot.lane.b32.xlu0 %v7227, 32
  %v8084 = vpop.permute.xlu0 %8083
  %8085 = vrot.lane.b32.xlu0 %v7228, 32
  %v8086 = vpop.permute.xlu0 %8085
  %8087 = vrot.lane.b32.xlu0 %v7229, 32
  %v8088 = vpop.permute.xlu0 %8087
  %8089 = vrot.lane.b32.xlu0 %v7230, 32
  %v8090 = vpop.permute.xlu0 %8089
  %8091 = vrot.lane.b32.xlu0 %v7231, 32
  %v8092 = vpop.permute.xlu0 %8091
  %8093 = vrot.lane.b32.xlu0 %v7232, 32
  %v8094 = vpop.permute.xlu0 %8093
  %8095 = vrot.lane.b32.xlu0 %v7233, 32
  %v8096 = vpop.permute.xlu0 %8095
  %8097 = vrot.lane.b32.xlu0 %v7234, 32
  %v8098 = vpop.permute.xlu0 %8097
  %8099 = vrot.lane.b32.xlu0 %v7235, 32
  %v8100 = vpop.permute.xlu0 %8099
  %8101 = vrot.lane.b32.xlu0 %v7236, 32
  %v8102 = vpop.permute.xlu0 %8101
  %8103 = vrot.lane.b32.xlu0 %v7237, 32
  %v8104 = vpop.permute.xlu0 %8103
  %8105 = vrot.lane.b32.xlu0 %v7238, 32
  %v8106 = vpop.permute.xlu0 %8105
  %8107 = vrot.lane.b32.xlu0 %v7239, 32
  %v8108 = vpop.permute.xlu0 %8107
  %8109 = vrot.lane.b32.xlu0 %v7240, 32
  %v8110 = vpop.permute.xlu0 %8109
  %8111 = vrot.lane.b32.xlu0 %v7241, 32
  %v8112 = vpop.permute.xlu0 %8111
  %8113 = vrot.lane.b32.xlu0 %v7242, 32
  %v8114 = vpop.permute.xlu0 %8113
  %8115 = vrot.lane.b32.xlu0 %v7243, 32
  %v8116 = vpop.permute.xlu0 %8115
  %8117 = vrot.lane.b32.xlu0 %v7244, 32
  %v8118 = vpop.permute.xlu0 %8117
  %8119 = vrot.lane.b32.xlu0 %v7245, 32
  %v8120 = vpop.permute.xlu0 %8119
  %8121 = vrot.lane.b32.xlu0 %v7246, 32
  %v8122 = vpop.permute.xlu0 %8121
  %8123 = vrot.lane.b32.xlu0 %v7247, 32
  %v8124 = vpop.permute.xlu0 %8123
  %8125 = vrot.lane.b32.xlu0 %v7248, 32
  %v8126 = vpop.permute.xlu0 %8125
  %8127 = vrot.lane.b32.xlu0 %v7249, 32
  %v8128 = vpop.permute.xlu0 %8127
  %8129 = vrot.lane.b32.xlu0 %v7250, 32
  %v8130 = vpop.permute.xlu0 %8129
  %8131 = vrot.lane.b32.xlu0 %v7251, 32
  %v8132 = vpop.permute.xlu0 %8131
  %8133 = vrot.lane.b32.xlu0 %v7252, 32
  %v8134 = vpop.permute.xlu0 %8133
  %8135 = vrot.lane.b32.xlu0 %v7253, 32
  %v8136 = vpop.permute.xlu0 %8135
  %8137 = vrot.lane.b32.xlu0 %v7254, 32
  %v8138 = vpop.permute.xlu0 %8137
  %8139 = vrot.lane.b32.xlu0 %v7255, 32
  %v8140 = vpop.permute.xlu0 %8139
  %8141 = vrot.lane.b32.xlu0 %v7256, 32
  %v8142 = vpop.permute.xlu0 %8141
  %8143 = vrot.lane.b32.xlu0 %v7257, 32
  %v8144 = vpop.permute.xlu0 %8143
  %8145 = vrot.lane.b32.xlu0 %v7258, 32
  %v8146 = vpop.permute.xlu0 %8145
  %8147 = vrot.lane.b32.xlu0 %v7259, 32
  %v8148 = vpop.permute.xlu0 %8147
  %8149 = vrot.lane.b32.xlu0 %v7260, 32
  %v8150 = vpop.permute.xlu0 %8149
  %8151 = vrot.lane.b32.xlu0 %v7261, 32
  %v8152 = vpop.permute.xlu0 %8151
  %8153 = vrot.lane.b32.xlu0 %v7262, 32
  %v8154 = vpop.permute.xlu0 %8153
  %8155 = vrot.lane.b32.xlu0 %v7263, 32
  %v8156 = vpop.permute.xlu0 %8155
  %8157 = vrot.lane.b32.xlu0 %v7264, 32
  %v8158 = vpop.permute.xlu0 %8157
  %8159 = vrot.lane.b32.xlu0 %v7265, 32
  %v8160 = vpop.permute.xlu0 %8159
  %8161 = vrot.lane.b32.xlu0 %v7266, 32
  %v8162 = vpop.permute.xlu0 %8161
  %8163 = vrot.lane.b32.xlu0 %v7267, 32
  %v8164 = vpop.permute.xlu0 %8163
  %8165 = vrot.lane.b32.xlu0 %v7268, 32
  %v8166 = vpop.permute.xlu0 %8165
  %8167 = vrot.lane.b32.xlu0 %v7269, 32
  %v8168 = vpop.permute.xlu0 %8167
  %8169 = vrot.lane.b32.xlu0 %v7270, 32
  %v8170 = vpop.permute.xlu0 %8169
  %8371 = vrot.lane.b32.xlu0 %v7771, 64
  %v8372 = vpop.permute.xlu0 %8371
  %8373 = vrot.lane.b32.xlu0 %v7772, 64
  %v8374 = vpop.permute.xlu0 %8373
  %8375 = vrot.lane.b32.xlu0 %v7773, 64
  %v8376 = vpop.permute.xlu0 %8375
  %8377 = vrot.lane.b32.xlu0 %v7774, 64
  %v8378 = vpop.permute.xlu0 %8377
  %8379 = vrot.lane.b32.xlu0 %v7775, 64
  %v8380 = vpop.permute.xlu0 %8379
  %8381 = vrot.lane.b32.xlu0 %v7776, 64
  %v8382 = vpop.permute.xlu0 %8381
  %8383 = vrot.lane.b32.xlu0 %v7777, 64
  %v8384 = vpop.permute.xlu0 %8383
  %8385 = vrot.lane.b32.xlu0 %v7778, 64
  %v8386 = vpop.permute.xlu0 %8385
  %8387 = vrot.lane.b32.xlu0 %v7779, 64
  %v8388 = vpop.permute.xlu0 %8387
  %8389 = vrot.lane.b32.xlu0 %v7780, 64
  %v8390 = vpop.permute.xlu0 %8389
  %8391 = vrot.lane.b32.xlu0 %v7781, 64
  %v8392 = vpop.permute.xlu0 %8391
  %8393 = vrot.lane.b32.xlu0 %v7782, 64
  %v8394 = vpop.permute.xlu0 %8393
  %8395 = vrot.lane.b32.xlu0 %v7783, 64
  %v8396 = vpop.permute.xlu0 %8395
  %8397 = vrot.lane.b32.xlu0 %v7784, 64
  %v8398 = vpop.permute.xlu0 %8397
  %8399 = vrot.lane.b32.xlu0 %v7785, 64
  %v8400 = vpop.permute.xlu0 %8399
  %8401 = vrot.lane.b32.xlu0 %v7786, 64
  %v8402 = vpop.permute.xlu0 %8401
  %8403 = vrot.lane.b32.xlu0 %v7787, 64
  %v8404 = vpop.permute.xlu0 %8403
  %8405 = vrot.lane.b32.xlu0 %v7788, 64
  %v8406 = vpop.permute.xlu0 %8405
  %8407 = vrot.lane.b32.xlu0 %v7789, 64
  %v8408 = vpop.permute.xlu0 %8407
  %8409 = vrot.lane.b32.xlu0 %v7790, 64
  %v8410 = vpop.permute.xlu0 %8409
  %8411 = vrot.lane.b32.xlu0 %v7791, 64
  %v8412 = vpop.permute.xlu0 %8411
  %8413 = vrot.lane.b32.xlu0 %v7792, 64
  %v8414 = vpop.permute.xlu0 %8413
  %8415 = vrot.lane.b32.xlu0 %v7793, 64
  %v8416 = vpop.permute.xlu0 %8415
  %8417 = vrot.lane.b32.xlu0 %v7794, 64
  %v8418 = vpop.permute.xlu0 %8417
  %8419 = vrot.lane.b32.xlu0 %v7795, 64
  %v8420 = vpop.permute.xlu0 %8419
  %8421 = vrot.lane.b32.xlu0 %v7796, 64
  %v8422 = vpop.permute.xlu0 %8421
  %8423 = vrot.lane.b32.xlu0 %v7797, 64
  %v8424 = vpop.permute.xlu0 %8423
  %8425 = vrot.lane.b32.xlu0 %v7798, 64
  %v8426 = vpop.permute.xlu0 %8425
  %8427 = vrot.lane.b32.xlu0 %v7799, 64
  %v8428 = vpop.permute.xlu0 %8427
  %8429 = vrot.lane.b32.xlu0 %v7800, 64
  %v8430 = vpop.permute.xlu0 %8429
  %8431 = vrot.lane.b32.xlu0 %v7801, 64
  %v8432 = vpop.permute.xlu0 %8431
  %8433 = vrot.lane.b32.xlu0 %v7802, 64
  %v8434 = vpop.permute.xlu0 %8433
  %8435 = vrot.lane.b32.xlu0 %v7803, 64
  %v8436 = vpop.permute.xlu0 %8435
  %8437 = vrot.lane.b32.xlu0 %v7804, 64
  %v8438 = vpop.permute.xlu0 %8437
  %8439 = vrot.lane.b32.xlu0 %v7805, 64
  %v8440 = vpop.permute.xlu0 %8439
  %8441 = vrot.lane.b32.xlu0 %v7806, 64
  %v8442 = vpop.permute.xlu0 %8441
  %8443 = vrot.lane.b32.xlu0 %v7807, 64
  %v8444 = vpop.permute.xlu0 %8443
  %8445 = vrot.lane.b32.xlu0 %v7808, 64
  %v8446 = vpop.permute.xlu0 %8445
  %8447 = vrot.lane.b32.xlu0 %v7809, 64
  %v8448 = vpop.permute.xlu0 %8447
  %8449 = vrot.lane.b32.xlu0 %v7810, 64
  %v8450 = vpop.permute.xlu0 %8449
  %8451 = vrot.lane.b32.xlu0 %v7811, 64
  %v8452 = vpop.permute.xlu0 %8451
  %8453 = vrot.lane.b32.xlu0 %v7812, 64
  %v8454 = vpop.permute.xlu0 %8453
  %8455 = vrot.lane.b32.xlu0 %v7813, 64
  %v8456 = vpop.permute.xlu0 %8455
  %8457 = vrot.lane.b32.xlu0 %v7814, 64
  %v8458 = vpop.permute.xlu0 %8457
  %8459 = vrot.lane.b32.xlu0 %v7815, 64
  %v8460 = vpop.permute.xlu0 %8459
  %8461 = vrot.lane.b32.xlu0 %v7816, 64
  %v8462 = vpop.permute.xlu0 %8461
  %8463 = vrot.lane.b32.xlu0 %v7817, 64
  %v8464 = vpop.permute.xlu0 %8463
  %8465 = vrot.lane.b32.xlu0 %v7818, 64
  %v8466 = vpop.permute.xlu0 %8465
  %8467 = vrot.lane.b32.xlu0 %v7819, 64
  %v8468 = vpop.permute.xlu0 %8467
  %8469 = vrot.lane.b32.xlu0 %v7820, 64
  %v8470 = vpop.permute.xlu0 %8469
  %8471 = vrot.lane.b32.xlu0 %v7821, 64
  %v8472 = vpop.permute.xlu0 %8471
  %8473 = vrot.lane.b32.xlu0 %v7822, 64
  %v8474 = vpop.permute.xlu0 %8473
  %8475 = vrot.lane.b32.xlu0 %v7823, 64
  %v8476 = vpop.permute.xlu0 %8475
  %8477 = vrot.lane.b32.xlu0 %v7824, 64
  %v8478 = vpop.permute.xlu0 %8477
  %8479 = vrot.lane.b32.xlu0 %v7825, 64
  %v8480 = vpop.permute.xlu0 %8479
  %8481 = vrot.lane.b32.xlu0 %v7826, 64
  %v8482 = vpop.permute.xlu0 %8481
  %8483 = vrot.lane.b32.xlu0 %v7827, 64
  %v8484 = vpop.permute.xlu0 %8483
  %8485 = vrot.lane.b32.xlu0 %v7828, 64
  %v8486 = vpop.permute.xlu0 %8485
  %8487 = vrot.lane.b32.xlu0 %v7829, 64
  %v8488 = vpop.permute.xlu0 %8487
  %8489 = vrot.lane.b32.xlu0 %v7830, 64
  %v8490 = vpop.permute.xlu0 %8489
  %8491 = vrot.lane.b32.xlu0 %v7831, 64
  %v8492 = vpop.permute.xlu0 %8491
  %8493 = vrot.lane.b32.xlu0 %v7832, 64
  %v8494 = vpop.permute.xlu0 %8493
  %8495 = vrot.lane.b32.xlu0 %v7833, 64
  %v8496 = vpop.permute.xlu0 %8495
  %8497 = vrot.lane.b32.xlu0 %v7834, 64
  %v8498 = vpop.permute.xlu0 %8497
  %8499 = vrot.lane.b32.xlu0 %v7835, 64
  %v8500 = vpop.permute.xlu0 %8499
  %8501 = vrot.lane.b32.xlu0 %v7836, 64
  %v8502 = vpop.permute.xlu0 %8501
  %8503 = vrot.lane.b32.xlu0 %v7837, 64
  %v8504 = vpop.permute.xlu0 %8503
  %8505 = vrot.lane.b32.xlu0 %v7838, 64
  %v8506 = vpop.permute.xlu0 %8505
  %8507 = vrot.lane.b32.xlu0 %v7839, 64
  %v8508 = vpop.permute.xlu0 %8507
  %8509 = vrot.lane.b32.xlu0 %v7840, 64
  %v8510 = vpop.permute.xlu0 %8509
  %8511 = vrot.lane.b32.xlu0 %v7841, 64
  %v8512 = vpop.permute.xlu0 %8511
  %8513 = vrot.lane.b32.xlu0 %v7842, 64
  %v8514 = vpop.permute.xlu0 %8513
  %8515 = vrot.lane.b32.xlu0 %v7843, 64
  %v8516 = vpop.permute.xlu0 %8515
  %8517 = vrot.lane.b32.xlu0 %v7844, 64
  %v8518 = vpop.permute.xlu0 %8517
  %8519 = vrot.lane.b32.xlu0 %v7845, 64
  %v8520 = vpop.permute.xlu0 %8519
  %8521 = vrot.lane.b32.xlu0 %v7846, 64
  %v8522 = vpop.permute.xlu0 %8521
  %8523 = vrot.lane.b32.xlu0 %v7847, 64
  %v8524 = vpop.permute.xlu0 %8523
  %8525 = vrot.lane.b32.xlu0 %v7848, 64
  %v8526 = vpop.permute.xlu0 %8525
  %8527 = vrot.lane.b32.xlu0 %v7849, 64
  %v8528 = vpop.permute.xlu0 %8527
  %8529 = vrot.lane.b32.xlu0 %v7850, 64
  %v8530 = vpop.permute.xlu0 %8529
  %8531 = vrot.lane.b32.xlu0 %v7851, 64
  %v8532 = vpop.permute.xlu0 %8531
  %8533 = vrot.lane.b32.xlu0 %v7852, 64
  %v8534 = vpop.permute.xlu0 %8533
  %8535 = vrot.lane.b32.xlu0 %v7853, 64
  %v8536 = vpop.permute.xlu0 %8535
  %8537 = vrot.lane.b32.xlu0 %v7854, 64
  %v8538 = vpop.permute.xlu0 %8537
  %8539 = vrot.lane.b32.xlu0 %v7855, 64
  %v8540 = vpop.permute.xlu0 %8539
  %8541 = vrot.lane.b32.xlu0 %v7856, 64
  %v8542 = vpop.permute.xlu0 %8541
  %8543 = vrot.lane.b32.xlu0 %v7857, 64
  %v8544 = vpop.permute.xlu0 %8543
  %8545 = vrot.lane.b32.xlu0 %v7858, 64
  %v8546 = vpop.permute.xlu0 %8545
  %8547 = vrot.lane.b32.xlu0 %v7859, 64
  %v8548 = vpop.permute.xlu0 %8547
  %8549 = vrot.lane.b32.xlu0 %v7860, 64
  %v8550 = vpop.permute.xlu0 %8549
  %8551 = vrot.lane.b32.xlu0 %v7861, 64
  %v8552 = vpop.permute.xlu0 %8551
  %8553 = vrot.lane.b32.xlu0 %v7862, 64
  %v8554 = vpop.permute.xlu0 %8553
  %8555 = vrot.lane.b32.xlu0 %v7863, 64
  %v8556 = vpop.permute.xlu0 %8555
  %8557 = vrot.lane.b32.xlu0 %v7864, 64
  %v8558 = vpop.permute.xlu0 %8557
  %8559 = vrot.lane.b32.xlu0 %v7865, 64
  %v8560 = vpop.permute.xlu0 %8559
  %8561 = vrot.lane.b32.xlu0 %v7866, 64
  %v8562 = vpop.permute.xlu0 %8561
  %8563 = vrot.lane.b32.xlu0 %v7867, 64
  %v8564 = vpop.permute.xlu0 %8563
  %8565 = vrot.lane.b32.xlu0 %v7868, 64
  %v8566 = vpop.permute.xlu0 %8565
  %8567 = vrot.lane.b32.xlu0 %v7869, 64
  %v8568 = vpop.permute.xlu0 %8567
  %8569 = vrot.lane.b32.xlu0 %v7870, 64
  %v8570 = vpop.permute.xlu0 %8569
  %v8671 = vsel %vm6405, %v7471, %v7972
  %v8672 = vsel %vm6405, %v7472, %v7974
  %v8673 = vsel %vm6405, %v7473, %v7976
  %v8674 = vsel %vm6405, %v7474, %v7978
  %v8675 = vsel %vm6405, %v7475, %v7980
  %v8676 = vsel %vm6405, %v7476, %v7982
  %v8677 = vsel %vm6405, %v7477, %v7984
  %v8678 = vsel %vm6405, %v7478, %v7986
  %v8679 = vsel %vm6405, %v7479, %v7988
  %v8680 = vsel %vm6405, %v7480, %v7990
  %v8681 = vsel %vm6405, %v7481, %v7992
  %v8682 = vsel %vm6405, %v7482, %v7994
  %v8683 = vsel %vm6405, %v7483, %v7996
  %v8684 = vsel %vm6405, %v7484, %v7998
  %v8685 = vsel %vm6405, %v7485, %v8000
  %v8686 = vsel %vm6405, %v7486, %v8002
  %v8687 = vsel %vm6405, %v7487, %v8004
  %v8688 = vsel %vm6405, %v7488, %v8006
  %v8689 = vsel %vm6405, %v7489, %v8008
  %v8690 = vsel %vm6405, %v7490, %v8010
  %v8691 = vsel %vm6405, %v7491, %v8012
  %v8692 = vsel %vm6405, %v7492, %v8014
  %v8693 = vsel %vm6405, %v7493, %v8016
  %v8694 = vsel %vm6405, %v7494, %v8018
  %v8695 = vsel %vm6405, %v7495, %v8020
  %v8696 = vsel %vm6405, %v7496, %v8022
  %v8697 = vsel %vm6405, %v7497, %v8024
  %v8698 = vsel %vm6405, %v7498, %v8026
  %v8699 = vsel %vm6405, %v7499, %v8028
  %v8700 = vsel %vm6405, %v7500, %v8030
  %v8701 = vsel %vm6405, %v7501, %v8032
  %v8702 = vsel %vm6405, %v7502, %v8034
  %v8703 = vsel %vm6405, %v7503, %v8036
  %v8704 = vsel %vm6405, %v7504, %v8038
  %v8705 = vsel %vm6405, %v7505, %v8040
  %v8706 = vsel %vm6405, %v7506, %v8042
  %v8707 = vsel %vm6405, %v7507, %v8044
  %v8708 = vsel %vm6405, %v7508, %v8046
  %v8709 = vsel %vm6405, %v7509, %v8048
  %v8710 = vsel %vm6405, %v7510, %v8050
  %v8711 = vsel %vm6405, %v7511, %v8052
  %v8712 = vsel %vm6405, %v7512, %v8054
  %v8713 = vsel %vm6405, %v7513, %v8056
  %v8714 = vsel %vm6405, %v7514, %v8058
  %v8715 = vsel %vm6405, %v7515, %v8060
  %v8716 = vsel %vm6405, %v7516, %v8062
  %v8717 = vsel %vm6405, %v7517, %v8064
  %v8718 = vsel %vm6405, %v7518, %v8066
  %v8719 = vsel %vm6405, %v7519, %v8068
  %v8720 = vsel %vm6405, %v7520, %v8070
  %v8721 = vsel %vm6405, %v7521, %v8072
  %v8722 = vsel %vm6405, %v7522, %v8074
  %v8723 = vsel %vm6405, %v7523, %v8076
  %v8724 = vsel %vm6405, %v7524, %v8078
  %v8725 = vsel %vm6405, %v7525, %v8080
  %v8726 = vsel %vm6405, %v7526, %v8082
  %v8727 = vsel %vm6405, %v7527, %v8084
  %v8728 = vsel %vm6405, %v7528, %v8086
  %v8729 = vsel %vm6405, %v7529, %v8088
  %v8730 = vsel %vm6405, %v7530, %v8090
  %v8731 = vsel %vm6405, %v7531, %v8092
  %v8732 = vsel %vm6405, %v7532, %v8094
  %v8733 = vsel %vm6405, %v7533, %v8096
  %v8734 = vsel %vm6405, %v7534, %v8098
  %v8735 = vsel %vm6405, %v7535, %v8100
  %v8736 = vsel %vm6405, %v7536, %v8102
  %v8737 = vsel %vm6405, %v7537, %v8104
  %v8738 = vsel %vm6405, %v7538, %v8106
  %v8739 = vsel %vm6405, %v7539, %v8108
  %v8740 = vsel %vm6405, %v7540, %v8110
  %v8741 = vsel %vm6405, %v7541, %v8112
  %v8742 = vsel %vm6405, %v7542, %v8114
  %v8743 = vsel %vm6405, %v7543, %v8116
  %v8744 = vsel %vm6405, %v7544, %v8118
  %v8745 = vsel %vm6405, %v7545, %v8120
  %v8746 = vsel %vm6405, %v7546, %v8122
  %v8747 = vsel %vm6405, %v7547, %v8124
  %v8748 = vsel %vm6405, %v7548, %v8126
  %v8749 = vsel %vm6405, %v7549, %v8128
  %v8750 = vsel %vm6405, %v7550, %v8130
  %v8751 = vsel %vm6405, %v7551, %v8132
  %v8752 = vsel %vm6405, %v7552, %v8134
  %v8753 = vsel %vm6405, %v7553, %v8136
  %v8754 = vsel %vm6405, %v7554, %v8138
  %v8755 = vsel %vm6405, %v7555, %v8140
  %v8756 = vsel %vm6405, %v7556, %v8142
  %v8757 = vsel %vm6405, %v7557, %v8144
  %v8758 = vsel %vm6405, %v7558, %v8146
  %v8759 = vsel %vm6405, %v7559, %v8148
  %v8760 = vsel %vm6405, %v7560, %v8150
  %v8761 = vsel %vm6405, %v7561, %v8152
  %v8762 = vsel %vm6405, %v7562, %v8154
  %v8763 = vsel %vm6405, %v7563, %v8156
  %v8764 = vsel %vm6405, %v7564, %v8158
  %v8765 = vsel %vm6405, %v7565, %v8160
  %v8766 = vsel %vm6405, %v7566, %v8162
  %v8767 = vsel %vm6405, %v7567, %v8164
  %v8768 = vsel %vm6405, %v7568, %v8166
  %v8769 = vsel %vm6405, %v7569, %v8168
  %v8770 = vsel %vm6405, %v7570, %v8170
  %vm8771 = vcmask 523264
  %v8772 = vsel %vm8771, %v8671, %v8372
  %v8773 = vsel %vm8771, %v8672, %v8374
  %v8774 = vsel %vm8771, %v8673, %v8376
  %v8775 = vsel %vm8771, %v8674, %v8378
  %v8776 = vsel %vm8771, %v8675, %v8380
  %v8777 = vsel %vm8771, %v8676, %v8382
  %v8778 = vsel %vm8771, %v8677, %v8384
  %v8779 = vsel %vm8771, %v8678, %v8386
  %v8780 = vsel %vm8771, %v8679, %v8388
  %v8781 = vsel %vm8771, %v8680, %v8390
  %v8782 = vsel %vm8771, %v8681, %v8392
  %v8783 = vsel %vm8771, %v8682, %v8394
  %v8784 = vsel %vm8771, %v8683, %v8396
  %v8785 = vsel %vm8771, %v8684, %v8398
  %v8786 = vsel %vm8771, %v8685, %v8400
  %v8787 = vsel %vm8771, %v8686, %v8402
  %v8788 = vsel %vm8771, %v8687, %v8404
  %v8789 = vsel %vm8771, %v8688, %v8406
  %v8790 = vsel %vm8771, %v8689, %v8408
  %v8791 = vsel %vm8771, %v8690, %v8410
  %v8792 = vsel %vm8771, %v8691, %v8412
  %v8793 = vsel %vm8771, %v8692, %v8414
  %v8794 = vsel %vm8771, %v8693, %v8416
  %v8795 = vsel %vm8771, %v8694, %v8418
  %v8796 = vsel %vm8771, %v8695, %v8420
  %v8797 = vsel %vm8771, %v8696, %v8422
  %v8798 = vsel %vm8771, %v8697, %v8424
  %v8799 = vsel %vm8771, %v8698, %v8426
  %v8800 = vsel %vm8771, %v8699, %v8428
  %v8801 = vsel %vm8771, %v8700, %v8430
  %v8802 = vsel %vm8771, %v8701, %v8432
  %v8803 = vsel %vm8771, %v8702, %v8434
  %v8804 = vsel %vm8771, %v8703, %v8436
  %v8805 = vsel %vm8771, %v8704, %v8438
  %v8806 = vsel %vm8771, %v8705, %v8440
  %v8807 = vsel %vm8771, %v8706, %v8442
  %v8808 = vsel %vm8771, %v8707, %v8444
  %v8809 = vsel %vm8771, %v8708, %v8446
  %v8810 = vsel %vm8771, %v8709, %v8448
  %v8811 = vsel %vm8771, %v8710, %v8450
  %v8812 = vsel %vm8771, %v8711, %v8452
  %v8813 = vsel %vm8771, %v8712, %v8454
  %v8814 = vsel %vm8771, %v8713, %v8456
  %v8815 = vsel %vm8771, %v8714, %v8458
  %v8816 = vsel %vm8771, %v8715, %v8460
  %v8817 = vsel %vm8771, %v8716, %v8462
  %v8818 = vsel %vm8771, %v8717, %v8464
  %v8819 = vsel %vm8771, %v8718, %v8466
  %v8820 = vsel %vm8771, %v8719, %v8468
  %v8821 = vsel %vm8771, %v8720, %v8470
  %v8822 = vsel %vm8771, %v8721, %v8472
  %v8823 = vsel %vm8771, %v8722, %v8474
  %v8824 = vsel %vm8771, %v8723, %v8476
  %v8825 = vsel %vm8771, %v8724, %v8478
  %v8826 = vsel %vm8771, %v8725, %v8480
  %v8827 = vsel %vm8771, %v8726, %v8482
  %v8828 = vsel %vm8771, %v8727, %v8484
  %v8829 = vsel %vm8771, %v8728, %v8486
  %v8830 = vsel %vm8771, %v8729, %v8488
  %v8831 = vsel %vm8771, %v8730, %v8490
  %v8832 = vsel %vm8771, %v8731, %v8492
  %v8833 = vsel %vm8771, %v8732, %v8494
  %v8834 = vsel %vm8771, %v8733, %v8496
  %v8835 = vsel %vm8771, %v8734, %v8498
  %v8836 = vsel %vm8771, %v8735, %v8500
  %v8837 = vsel %vm8771, %v8736, %v8502
  %v8838 = vsel %vm8771, %v8737, %v8504
  %v8839 = vsel %vm8771, %v8738, %v8506
  %v8840 = vsel %vm8771, %v8739, %v8508
  %v8841 = vsel %vm8771, %v8740, %v8510
  %v8842 = vsel %vm8771, %v8741, %v8512
  %v8843 = vsel %vm8771, %v8742, %v8514
  %v8844 = vsel %vm8771, %v8743, %v8516
  %v8845 = vsel %vm8771, %v8744, %v8518
  %v8846 = vsel %vm8771, %v8745, %v8520
  %v8847 = vsel %vm8771, %v8746, %v8522
  %v8848 = vsel %vm8771, %v8747, %v8524
  %v8849 = vsel %vm8771, %v8748, %v8526
  %v8850 = vsel %vm8771, %v8749, %v8528
  %v8851 = vsel %vm8771, %v8750, %v8530
  %v8852 = vsel %vm8771, %v8751, %v8532
  %v8853 = vsel %vm8771, %v8752, %v8534
  %v8854 = vsel %vm8771, %v8753, %v8536
  %v8855 = vsel %vm8771, %v8754, %v8538
  %v8856 = vsel %vm8771, %v8755, %v8540
  %v8857 = vsel %vm8771, %v8756, %v8542
  %v8858 = vsel %vm8771, %v8757, %v8544
  %v8859 = vsel %vm8771, %v8758, %v8546
  %v8860 = vsel %vm8771, %v8759, %v8548
  %v8861 = vsel %vm8771, %v8760, %v8550
  %v8862 = vsel %vm8771, %v8761, %v8552
  %v8863 = vsel %vm8771, %v8762, %v8554
  %v8864 = vsel %vm8771, %v8763, %v8556
  %v8865 = vsel %vm8771, %v8764, %v8558
  %v8866 = vsel %vm8771, %v8765, %v8560
  %v8867 = vsel %vm8771, %v8766, %v8562
  %v8868 = vsel %vm8771, %v8767, %v8564
  %v8869 = vsel %vm8771, %v8768, %v8566
  %v8870 = vsel %vm8771, %v8769, %v8568
  %v8871 = vsel %vm8771, %v8770, %v8570
  %v8872 = vpack.c.bf16 %v8773, %v8772
  %v8873 = vpack.c.bf16 %v8775, %v8774
  %v8874 = vpack.c.bf16 %v8777, %v8776
  %v8875 = vpack.c.bf16 %v8779, %v8778
  %v8876 = vpack.c.bf16 %v8781, %v8780
  %v8877 = vpack.c.bf16 %v8783, %v8782
  %v8878 = vpack.c.bf16 %v8785, %v8784
  %v8879 = vpack.c.bf16 %v8787, %v8786
  %v8880 = vpack.c.bf16 %v8789, %v8788
  %v8881 = vpack.c.bf16 %v8791, %v8790
  %v8882 = vpack.c.bf16 %v8793, %v8792
  %v8883 = vpack.c.bf16 %v8795, %v8794
  %v8884 = vpack.c.bf16 %v8797, %v8796
  %v8885 = vpack.c.bf16 %v8799, %v8798
  %v8886 = vpack.c.bf16 %v8801, %v8800
  %v8887 = vpack.c.bf16 %v8803, %v8802
  %v8888 = vpack.c.bf16 %v8805, %v8804
  %v8889 = vpack.c.bf16 %v8807, %v8806
  %v8890 = vpack.c.bf16 %v8809, %v8808
  %v8891 = vpack.c.bf16 %v8811, %v8810
  %v8892 = vpack.c.bf16 %v8813, %v8812
  %v8893 = vpack.c.bf16 %v8815, %v8814
  %v8894 = vpack.c.bf16 %v8817, %v8816
  %v8895 = vpack.c.bf16 %v8819, %v8818
  %v8896 = vpack.c.bf16 %v8821, %v8820
  %v8897 = vpack.c.bf16 %v8823, %v8822
  %v8898 = vpack.c.bf16 %v8825, %v8824
  %v8899 = vpack.c.bf16 %v8827, %v8826
  %v8900 = vpack.c.bf16 %v8829, %v8828
  %v8901 = vpack.c.bf16 %v8831, %v8830
  %v8902 = vpack.c.bf16 %v8833, %v8832
  %v8903 = vpack.c.bf16 %v8835, %v8834
  %v8904 = vpack.c.bf16 %v8837, %v8836
  %v8905 = vpack.c.bf16 %v8839, %v8838
  %v8906 = vpack.c.bf16 %v8841, %v8840
  %v8907 = vpack.c.bf16 %v8843, %v8842
  %v8908 = vpack.c.bf16 %v8845, %v8844
  %v8909 = vpack.c.bf16 %v8847, %v8846
  %v8910 = vpack.c.bf16 %v8849, %v8848
  %v8911 = vpack.c.bf16 %v8851, %v8850
  %v8912 = vpack.c.bf16 %v8853, %v8852
  %v8913 = vpack.c.bf16 %v8855, %v8854
  %v8914 = vpack.c.bf16 %v8857, %v8856
  %v8915 = vpack.c.bf16 %v8859, %v8858
  %v8916 = vpack.c.bf16 %v8861, %v8860
  %v8917 = vpack.c.bf16 %v8863, %v8862
  %v8918 = vpack.c.bf16 %v8865, %v8864
  %v8919 = vpack.c.bf16 %v8867, %v8866
  %v8920 = vpack.c.bf16 %v8869, %v8868
  %v8921 = vpack.c.bf16 %v8871, %v8870
  %v8922 = vld [vmem:[%s5] sm:$0xf]
  %v8923 = vld [vmem:[%s5 + $0x4] sm:$0xf]
  %v8924 = vld [vmem:[%s5 + $0x8] sm:$0xf]
  %v8925 = vld [vmem:[%s5 + $0xc] sm:$0xf]
  %v8926 = vld [vmem:[%s5 + $0x10] sm:$0xf]
  %v8927 = vld [vmem:[%s5 + $0x14] sm:$0xf]
  %v8928 = vld [vmem:[%s5 + $0x18] sm:$0xf]
  %v8929 = vld [vmem:[%s5 + $0x1c] sm:$0xf]
  %v8930 = vld [vmem:[%s5 + $0x20] sm:$0xf]
  %v8931 = vld [vmem:[%s5 + $0x24] sm:$0xf]
  %v8932 = vld [vmem:[%s5 + $0x28] sm:$0xf]
  %v8933 = vld [vmem:[%s5 + $0x2c] sm:$0xf]
  %v8934 = vld [vmem:[%s6] sm:$0x1]
  %v8936 = vlaneseq
  %v8937 = vshrl.u32 %v8936, 7
  %v8938 = vsub.s32 0, %v8937
  %v8939 = vrot.slane %v8934, %v8938
  %v8953 = vunpack.c.l.b16 %v8922
  %v8954 = vunpack.c.l.b16 %v8923
  %v8955 = vunpack.c.l.b16 %v8924
  %v8956 = vunpack.c.l.b16 %v8925
  %v8957 = vunpack.c.l.b16 %v8926
  %v8958 = vunpack.c.l.b16 %v8927
  %v8959 = vunpack.c.l.b16 %v8928
  %v8960 = vunpack.c.l.b16 %v8929
  %v8961 = vunpack.c.l.b16 %v8930
  %v8962 = vunpack.c.l.b16 %v8931
  %v8963 = vunpack.c.l.b16 %v8932
  %v8964 = vunpack.c.l.b16 %v8933
  %v8965 = vpack.c.b16 %v8954, %v8953
  %v8966 = vpack.c.b16 %v8956, %v8955
  %v8967 = vpack.c.b16 %v8958, %v8957
  %v8968 = vpack.c.b16 %v8960, %v8959
  %v8969 = vpack.c.b16 %v8962, %v8961
  %v8970 = vpack.c.b16 %v8964, %v8963
  %vm8977 = vcmask 785408
  %v8979 = vsel %vm8977, %v8872, 0
  %v8982 = vsel %vm8977, %v8873, 0
  %v8985 = vsel %vm8977, %v8874, 0
  %v8988 = vsel %vm8977, %v8875, 0
  %v8991 = vsel %vm8977, %v8876, 0
  %v8994 = vsel %vm8977, %v8877, 0
  %v8997 = vsel %vm8977, %v8878, 0
  %v9000 = vsel %vm8977, %v8879, 0
  %v9003 = vsel %vm8977, %v8880, 0
  %v9006 = vsel %vm8977, %v8881, 0
  %v9009 = vsel %vm8977, %v8882, 0
  %v9012 = vsel %vm8977, %v8883, 0
  %v9015 = vsel %vm8977, %v8884, 0
  %v9018 = vsel %vm8977, %v8885, 0
  %v9021 = vsel %vm8977, %v8886, 0
  %v9024 = vsel %vm8977, %v8887, 0
  %v9027 = vsel %vm8977, %v8888, 0
  %v9030 = vsel %vm8977, %v8889, 0
  %v9033 = vsel %vm8977, %v8890, 0
  %v9036 = vsel %vm8977, %v8891, 0
  %v9039 = vsel %vm8977, %v8892, 0
  %v9042 = vsel %vm8977, %v8893, 0
  %v9045 = vsel %vm8977, %v8894, 0
  %v9048 = vsel %vm8977, %v8895, 0
  %v9051 = vsel %vm8977, %v8896, 0
  %v9054 = vsel %vm8977, %v8897, 0
  %v9057 = vsel %vm8977, %v8898, 0
  %v9060 = vsel %vm8977, %v8899, 0
  %v9063 = vsel %vm8977, %v8900, 0
  %v9066 = vsel %vm8977, %v8901, 0
  %v9069 = vsel %vm8977, %v8902, 0
  %v9072 = vsel %vm8977, %v8903, 0
  %v9075 = vsel %vm8977, %v8904, 0
  %v9078 = vsel %vm8977, %v8905, 0
  %v9081 = vsel %vm8977, %v8906, 0
  %v9084 = vsel %vm8977, %v8907, 0
  %v9087 = vsel %vm8977, %v8908, 0
  %v9090 = vsel %vm8977, %v8909, 0
  %v9093 = vsel %vm8977, %v8910, 0
  %v9096 = vsel %vm8977, %v8911, 0
  %v9099 = vsel %vm8977, %v8912, 0
  %v9102 = vsel %vm8977, %v8913, 0
  %v9105 = vsel %vm8977, %v8914, 0
  %v9108 = vsel %vm8977, %v8915, 0
  %v9111 = vsel %vm8977, %v8916, 0
  %v9114 = vsel %vm8977, %v8917, 0
  %v9117 = vsel %vm8977, %v8918, 0
  %v9120 = vsel %vm8977, %v8919, 0
  %v9123 = vsel %vm8977, %v8920, 0
  %v9126 = vsel %vm8977, %v8921, 0
  %9128 = vmatprep.subr.bf16.mxu0 0
  %9129 = vmatpush1.bf16.msra.mxu0 %v8965
  %9130 = vmatprep.subr.bf16.mxu0 0
  %9131 = vmatpush1.bf16.msra.mxu0 %v8966
  %9132 = vmatprep.subr.bf16.mxu0 0
  %9133 = vmatpush1.bf16.msra.mxu0 %v8967
  %9134 = vmatprep.subr.bf16.mxu0 0
  %9135 = vmatpush1.bf16.msra.mxu0 %v8968
  %9136 = vmatprep.subr.bf16.mxu0 0
  %9137 = vmatpush1.bf16.msra.mxu0 %v8969
  %9138 = vmatprep.subr.bf16.mxu0 0
  %9139 = vmatpush1.bf16.msra.mxu0 %v8970
  %9140 = vmatprep.subr.bf16.mxu0 0
  %9141 = vmatpush1.bf16.msra.mxu0 0
  %9142 = vmatprep.subr.bf16.mxu0 0
  %9143 = vmatpush1.bf16.msra.mxu0 0
  %9144 = vmatprep.subr.bf16.mxu0 0
  %9145 = vmatpush1.bf16.msra.mxu0 0
  %9146 = vmatprep.subr.bf16.mxu0 0
  %9147 = vmatpush1.bf16.msra.mxu0 0
  %9148 = vmatprep.subr.bf16.mxu0 0
  %9149 = vmatpush1.bf16.msra.mxu0 0
  %9150 = vmatprep.subr.bf16.mxu0 0
  %9151 = vmatpush1.bf16.msra.mxu0 0
  %9152 = vmatprep.subr.bf16.mxu0 0
  %9153 = vmatpush1.bf16.msra.mxu0 0
  %9154 = vmatprep.subr.bf16.mxu0 0
  %9155 = vmatpush1.bf16.msra.mxu0 0
  %9156 = vmatprep.subr.bf16.mxu0 0
  %9157 = vmatpush1.bf16.msra.mxu0 0
  %9158 = vmatprep.subr.bf16.mxu0 0
  %9159 = vmatpush1.bf16.msra.mxu0 0
  %9160 = vmatprep.mubr.bf16.mxu0 0
  %9161 = vmatmul.mubr.bf16.gmra.mrb[0].mxu0 %v8979
  %v9162 = vpop.f32.mrb[0].mxu0
  %v9163 = vadd.f32 %v8939, %v9162
  %v9164 = vpop.f32.mrb[0].mxu0
  %v9165 = vpop.f32.mrb[0].mxu0
  %v9166 = vadd.f32 %v8939, %v9165
  %v9167 = vpop.f32.mrb[0].mxu0
  %9168 = vmatprep.mubr.bf16.mxu0 0
  %9169 = vmatmul.mubr.bf16.gmra.mrb[0].mxu0 %v8982
  %v9170 = vpop.f32.mrb[0].mxu0
  %v9171 = vadd.f32 %v8939, %v9170
  %v9172 = vpop.f32.mrb[0].mxu0
  %v9173 = vpop.f32.mrb[0].mxu0
  %v9174 = vadd.f32 %v8939, %v9173
  %v9175 = vpop.f32.mrb[0].mxu0
  %9176 = vmatprep.mubr.bf16.mxu0 0
  %9177 = vmatmul.mubr.bf16.gmra.mrb[0].mxu0 %v8985
  %v9178 = vpop.f32.mrb[0].mxu0
  %v9179 = vadd.f32 %v8939, %v9178
  %v9180 = vpop.f32.mrb[0].mxu0
  %v9181 = vpop.f32.mrb[0].mxu0
  %v9182 = vadd.f32 %v8939, %v9181
  %v9183 = vpop.f32.mrb[0].mxu0
  %9184 = vmatprep.mubr.bf16.mxu0 0
  %9185 = vmatmul.mubr.bf16.gmra.mrb[0].mxu0 %v8988
  %v9186 = vpop.f32.mrb[0].mxu0
  %v9187 = vadd.f32 %v8939, %v9186
  %v9188 = vpop.f32.mrb[0].mxu0
  %v9189 = vpop.f32.mrb[0].mxu0
  %v9190 = vadd.f32 %v8939, %v9189
  %v9191 = vpop.f32.mrb[0].mxu0
  %9192 = vmatprep.mubr.bf16.mxu0 0
  %9193 = vmatmul.mubr.bf16.gmra.mrb[0].mxu0 %v8991
  %v9194 = vpop.f32.mrb[0].mxu0
  %v9195 = vadd.f32 %v8939, %v9194
  %v9196 = vpop.f32.mrb[0].mxu0
  %v9197 = vpop.f32.mrb[0].mxu0
  %v9198 = vadd.f32 %v8939, %v9197
  %v9199 = vpop.f32.mrb[0].mxu0
  %9200 = vmatprep.mubr.bf16.mxu0 0
  %9201 = vmatmul.mubr.bf16.gmra.mrb[0].mxu0 %v8994
  %v9202 = vpop.f32.mrb[0].mxu0
  %v9203 = vadd.f32 %v8939, %v9202
  %v9204 = vpop.f32.mrb[0].mxu0
  %v9205 = vpop.f32.mrb[0].mxu0
  %v9206 = vadd.f32 %v8939, %v9205
  %v9207 = vpop.f32.mrb[0].mxu0
  %9208 = vmatprep.mubr.bf16.mxu0 0
  %9209 = vmatmul.mubr.bf16.gmra.mrb[0].mxu0 %v8997
  %v9210 = vpop.f32.mrb[0].mxu0
  %v9211 = vadd.f32 %v8939, %v9210
  %v9212 = vpop.f32.mrb[0].mxu0
  %v9213 = vpop.f32.mrb[0].mxu0
  %v9214 = vadd.f32 %v8939, %v9213
  %v9215 = vpop.f32.mrb[0].mxu0
  %9216 = vmatprep.mubr.bf16.mxu0 0
  %9217 = vmatmul.mubr.bf16.gmra.mrb[0].mxu0 %v9000
  %v9218 = vpop.f32.mrb[0].mxu0
  %v9219 = vadd.f32 %v8939, %v9218
  %v9220 = vpop.f32.mrb[0].mxu0
  %v9221 = vpop.f32.mrb[0].mxu0
  %v9222 = vadd.f32 %v8939, %v9221
  %v9223 = vpop.f32.mrb[0].mxu0
  %9224 = vmatprep.mubr.bf16.mxu0 0
  %9225 = vmatmul.mubr.bf16.gmra.mrb[0].mxu0 %v9003
  %v9226 = vpop.f32.mrb[0].mxu0
  %v9227 = vadd.f32 %v8939, %v9226
  %v9228 = vpop.f32.mrb[0].mxu0
  %v9229 = vpop.f32.mrb[0].mxu0
  %v9230 = vadd.f32 %v8939, %v9229
  %v9231 = vpop.f32.mrb[0].mxu0
  %9232 = vmatprep.mubr.bf16.mxu0 0
  %9233 = vmatmul.mubr.bf16.gmra.mrb[0].mxu0 %v9006
  %v9234 = vpop.f32.mrb[0].mxu0
  %v9235 = vadd.f32 %v8939, %v9234
  %v9236 = vpop.f32.mrb[0].mxu0
  %v9237 = vpop.f32.mrb[0].mxu0
  %v9238 = vadd.f32 %v8939, %v9237
  %v9239 = vpop.f32.mrb[0].mxu0
  %9240 = vmatprep.mubr.bf16.mxu0 0
  %9241 = vmatmul.mubr.bf16.gmra.mrb[0].mxu0 %v9009
  %v9242 = vpop.f32.mrb[0].mxu0
  %v9243 = vadd.f32 %v8939, %v9242
  %v9244 = vpop.f32.mrb[0].mxu0
  %v9245 = vpop.f32.mrb[0].mxu0
  %v9246 = vadd.f32 %v8939, %v9245
  %v9247 = vpop.f32.mrb[0].mxu0
  %9248 = vmatprep.mubr.bf16.mxu0 0
  %9249 = vmatmul.mubr.bf16.gmra.mrb[0].mxu0 %v9012
  %v9250 = vpop.f32.mrb[0].mxu0
  %v9251 = vadd.f32 %v8939, %v9250
  %v9252 = vpop.f32.mrb[0].mxu0
  %v9253 = vpop.f32.mrb[0].mxu0
  %v9254 = vadd.f32 %v8939, %v9253
  %v9255 = vpop.f32.mrb[0].mxu0
  %9256 = vmatprep.mubr.bf16.mxu0 0
  %9257 = vmatmul.mubr.bf16.gmra.mrb[0].mxu0 %v9015
  %v9258 = vpop.f32.mrb[0].mxu0
  %v9259 = vadd.f32 %v8939, %v9258
  %v9260 = vpop.f32.mrb[0].mxu0
  %v9261 = vpop.f32.mrb[0].mxu0
  %v9262 = vadd.f32 %v8939, %v9261
  %v9263 = vpop.f32.mrb[0].mxu0
  %9264 = vmatprep.mubr.bf16.mxu0 0
  %9265 = vmatmul.mubr.bf16.gmra.mrb[0].mxu0 %v9018
  %v9266 = vpop.f32.mrb[0].mxu0
  %v9267 = vadd.f32 %v8939, %v9266
  %v9268 = vpop.f32.mrb[0].mxu0
  %v9269 = vpop.f32.mrb[0].mxu0
  %v9270 = vadd.f32 %v8939, %v9269
  %v9271 = vpop.f32.mrb[0].mxu0
  %9272 = vmatprep.mubr.bf16.mxu0 0
  %9273 = vmatmul.mubr.bf16.gmra.mrb[0].mxu0 %v9021
  %v9274 = vpop.f32.mrb[0].mxu0
  %v9275 = vadd.f32 %v8939, %v9274
  %v9276 = vpop.f32.mrb[0].mxu0
  %v9277 = vpop.f32.mrb[0].mxu0
  %v9278 = vadd.f32 %v8939, %v9277
  %v9279 = vpop.f32.mrb[0].mxu0
  %9280 = vmatprep.mubr.bf16.mxu0 0
  %9281 = vmatmul.mubr.bf16.gmra.mrb[0].mxu0 %v9024
  %v9282 = vpop.f32.mrb[0].mxu0
  %v9283 = vadd.f32 %v8939, %v9282
  %v9284 = vpop.f32.mrb[0].mxu0
  %v9285 = vpop.f32.mrb[0].mxu0
  %v9286 = vadd.f32 %v8939, %v9285
  %v9287 = vpop.f32.mrb[0].mxu0
  %9288 = vmatprep.mubr.bf16.mxu0 0
  %9289 = vmatmul.mubr.bf16.gmra.mrb[0].mxu0 %v9027
  %v9290 = vpop.f32.mrb[0].mxu0
  %v9291 = vadd.f32 %v8939, %v9290
  %v9292 = vpop.f32.mrb[0].mxu0
  %v9293 = vpop.f32.mrb[0].mxu0
  %v9294 = vadd.f32 %v8939, %v9293
  %v9295 = vpop.f32.mrb[0].mxu0
  %9296 = vmatprep.mubr.bf16.mxu0 0
  %9297 = vmatmul.mubr.bf16.gmra.mrb[0].mxu0 %v9030
  %v9298 = vpop.f32.mrb[0].mxu0
  %v9299 = vadd.f32 %v8939, %v9298
  %v9300 = vpop.f32.mrb[0].mxu0
  %v9301 = vpop.f32.mrb[0].mxu0
  %v9302 = vadd.f32 %v8939, %v9301
  %v9303 = vpop.f32.mrb[0].mxu0
  %9304 = vmatprep.mubr.bf16.mxu0 0
  %9305 = vmatmul.mubr.bf16.gmra.mrb[0].mxu0 %v9033
  %v9306 = vpop.f32.mrb[0].mxu0
  %v9307 = vadd.f32 %v8939, %v9306
  %v9308 = vpop.f32.mrb[0].mxu0
  %v9309 = vpop.f32.mrb[0].mxu0
  %v9310 = vadd.f32 %v8939, %v9309
  %v9311 = vpop.f32.mrb[0].mxu0
  %9312 = vmatprep.mubr.bf16.mxu0 0
  %9313 = vmatmul.mubr.bf16.gmra.mrb[0].mxu0 %v9036
  %v9314 = vpop.f32.mrb[0].mxu0
  %v9315 = vadd.f32 %v8939, %v9314
  %v9316 = vpop.f32.mrb[0].mxu0
  %v9317 = vpop.f32.mrb[0].mxu0
  %v9318 = vadd.f32 %v8939, %v9317
  %v9319 = vpop.f32.mrb[0].mxu0
  %9320 = vmatprep.mubr.bf16.mxu0 0
  %9321 = vmatmul.mubr.bf16.gmra.mrb[0].mxu0 %v9039
  %v9322 = vpop.f32.mrb[0].mxu0
  %v9323 = vadd.f32 %v8939, %v9322
  %v9324 = vpop.f32.mrb[0].mxu0
  %v9325 = vpop.f32.mrb[0].mxu0
  %v9326 = vadd.f32 %v8939, %v9325
  %v9327 = vpop.f32.mrb[0].mxu0
  %9328 = vmatprep.mubr.bf16.mxu0 0
  %9329 = vmatmul.mubr.bf16.gmra.mrb[0].mxu0 %v9042
  %v9330 = vpop.f32.mrb[0].mxu0
  %v9331 = vadd.f32 %v8939, %v9330
  %v9332 = vpop.f32.mrb[0].mxu0
  %v9333 = vpop.f32.mrb[0].mxu0
  %v9334 = vadd.f32 %v8939, %v9333
  %v9335 = vpop.f32.mrb[0].mxu0
  %9336 = vmatprep.mubr.bf16.mxu0 0
  %9337 = vmatmul.mubr.bf16.gmra.mrb[0].mxu0 %v9045
  %v9338 = vpop.f32.mrb[0].mxu0
  %v9339 = vadd.f32 %v8939, %v9338
  %v9340 = vpop.f32.mrb[0].mxu0
  %v9341 = vpop.f32.mrb[0].mxu0
  %v9342 = vadd.f32 %v8939, %v9341
  %v9343 = vpop.f32.mrb[0].mxu0
  %9344 = vmatprep.mubr.bf16.mxu0 0
  %9345 = vmatmul.mubr.bf16.gmra.mrb[0].mxu0 %v9048
  %v9346 = vpop.f32.mrb[0].mxu0
  %v9347 = vadd.f32 %v8939, %v9346
  %v9348 = vpop.f32.mrb[0].mxu0
  %v9349 = vpop.f32.mrb[0].mxu0
  %v9350 = vadd.f32 %v8939, %v9349
  %v9351 = vpop.f32.mrb[0].mxu0
  %9352 = vmatprep.mubr.bf16.mxu0 0
  %9353 = vmatmul.mubr.bf16.gmra.mrb[0].mxu0 %v9051
  %v9354 = vpop.f32.mrb[0].mxu0
  %v9355 = vadd.f32 %v8939, %v9354
  %v9356 = vpop.f32.mrb[0].mxu0
  %v9357 = vpop.f32.mrb[0].mxu0
  %v9358 = vadd.f32 %v8939, %v9357
  %v9359 = vpop.f32.mrb[0].mxu0
  %9360 = vmatprep.mubr.bf16.mxu0 0
  %9361 = vmatmul.mubr.bf16.gmra.mrb[0].mxu0 %v9054
  %v9362 = vpop.f32.mrb[0].mxu0
  %v9363 = vadd.f32 %v8939, %v9362
  %v9364 = vpop.f32.mrb[0].mxu0
  %v9365 = vpop.f32.mrb[0].mxu0
  %v9366 = vadd.f32 %v8939, %v9365
  %v9367 = vpop.f32.mrb[0].mxu0
  %9368 = vmatprep.mubr.bf16.mxu0 0
  %9369 = vmatmul.mubr.bf16.gmra.mrb[0].mxu0 %v9057
  %v9370 = vpop.f32.mrb[0].mxu0
  %v9371 = vadd.f32 %v8939, %v9370
  %v9372 = vpop.f32.mrb[0].mxu0
  %v9373 = vpop.f32.mrb[0].mxu0
  %v9374 = vadd.f32 %v8939, %v9373
  %v9375 = vpop.f32.mrb[0].mxu0
  %9376 = vmatprep.mubr.bf16.mxu0 0
  %9377 = vmatmul.mubr.bf16.gmra.mrb[0].mxu0 %v9060
  %v9378 = vpop.f32.mrb[0].mxu0
  %v9379 = vadd.f32 %v8939, %v9378
  %v9380 = vpop.f32.mrb[0].mxu0
  %v9381 = vpop.f32.mrb[0].mxu0
  %v9382 = vadd.f32 %v8939, %v9381
  %v9383 = vpop.f32.mrb[0].mxu0
  %9384 = vmatprep.mubr.bf16.mxu0 0
  %9385 = vmatmul.mubr.bf16.gmra.mrb[0].mxu0 %v9063
  %v9386 = vpop.f32.mrb[0].mxu0
  %v9387 = vadd.f32 %v8939, %v9386
  %v9388 = vpop.f32.mrb[0].mxu0
  %v9389 = vpop.f32.mrb[0].mxu0
  %v9390 = vadd.f32 %v8939, %v9389
  %v9391 = vpop.f32.mrb[0].mxu0
  %9392 = vmatprep.mubr.bf16.mxu0 0
  %9393 = vmatmul.mubr.bf16.gmra.mrb[0].mxu0 %v9066
  %v9394 = vpop.f32.mrb[0].mxu0
  %v9395 = vadd.f32 %v8939, %v9394
  %v9396 = vpop.f32.mrb[0].mxu0
  %v9397 = vpop.f32.mrb[0].mxu0
  %v9398 = vadd.f32 %v8939, %v9397
  %v9399 = vpop.f32.mrb[0].mxu0
  %9400 = vmatprep.mubr.bf16.mxu0 0
  %9401 = vmatmul.mubr.bf16.gmra.mrb[0].mxu0 %v9069
  %v9402 = vpop.f32.mrb[0].mxu0
  %v9403 = vadd.f32 %v8939, %v9402
  %v9404 = vpop.f32.mrb[0].mxu0
  %v9405 = vpop.f32.mrb[0].mxu0
  %v9406 = vadd.f32 %v8939, %v9405
  %v9407 = vpop.f32.mrb[0].mxu0
  %9408 = vmatprep.mubr.bf16.mxu0 0
  %9409 = vmatmul.mubr.bf16.gmra.mrb[0].mxu0 %v9072
  %v9410 = vpop.f32.mrb[0].mxu0
  %v9411 = vadd.f32 %v8939, %v9410
  %v9412 = vpop.f32.mrb[0].mxu0
  %v9413 = vpop.f32.mrb[0].mxu0
  %v9414 = vadd.f32 %v8939, %v9413
  %v9415 = vpop.f32.mrb[0].mxu0
  %9416 = vmatprep.mubr.bf16.mxu0 0
  %9417 = vmatmul.mubr.bf16.gmra.mrb[0].mxu0 %v9075
  %v9418 = vpop.f32.mrb[0].mxu0
  %v9419 = vadd.f32 %v8939, %v9418
  %v9420 = vpop.f32.mrb[0].mxu0
  %v9421 = vpop.f32.mrb[0].mxu0
  %v9422 = vadd.f32 %v8939, %v9421
  %v9423 = vpop.f32.mrb[0].mxu0
  %9424 = vmatprep.mubr.bf16.mxu0 0
  %9425 = vmatmul.mubr.bf16.gmra.mrb[0].mxu0 %v9078
  %v9426 = vpop.f32.mrb[0].mxu0
  %v9427 = vadd.f32 %v8939, %v9426
  %v9428 = vpop.f32.mrb[0].mxu0
  %v9429 = vpop.f32.mrb[0].mxu0
  %v9430 = vadd.f32 %v8939, %v9429
  %v9431 = vpop.f32.mrb[0].mxu0
  %9432 = vmatprep.mubr.bf16.mxu0 0
  %9433 = vmatmul.mubr.bf16.gmra.mrb[0].mxu0 %v9081
  %v9434 = vpop.f32.mrb[0].mxu0
  %v9435 = vadd.f32 %v8939, %v9434
  %v9436 = vpop.f32.mrb[0].mxu0
  %v9437 = vpop.f32.mrb[0].mxu0
  %v9438 = vadd.f32 %v8939, %v9437
  %v9439 = vpop.f32.mrb[0].mxu0
  %9440 = vmatprep.mubr.bf16.mxu0 0
  %9441 = vmatmul.mubr.bf16.gmra.mrb[0].mxu0 %v9084
  %v9442 = vpop.f32.mrb[0].mxu0
  %v9443 = vadd.f32 %v8939, %v9442
  %v9444 = vpop.f32.mrb[0].mxu0
  %v9445 = vpop.f32.mrb[0].mxu0
  %v9446 = vadd.f32 %v8939, %v9445
  %v9447 = vpop.f32.mrb[0].mxu0
  %9448 = vmatprep.mubr.bf16.mxu0 0
  %9449 = vmatmul.mubr.bf16.gmra.mrb[0].mxu0 %v9087
  %v9450 = vpop.f32.mrb[0].mxu0
  %v9451 = vadd.f32 %v8939, %v9450
  %v9452 = vpop.f32.mrb[0].mxu0
  %v9453 = vpop.f32.mrb[0].mxu0
  %v9454 = vadd.f32 %v8939, %v9453
  %v9455 = vpop.f32.mrb[0].mxu0
  %9456 = vmatprep.mubr.bf16.mxu0 0
  %9457 = vmatmul.mubr.bf16.gmra.mrb[0].mxu0 %v9090
  %v9458 = vpop.f32.mrb[0].mxu0
  %v9459 = vadd.f32 %v8939, %v9458
  %v9460 = vpop.f32.mrb[0].mxu0
  %v9461 = vpop.f32.mrb[0].mxu0
  %v9462 = vadd.f32 %v8939, %v9461
  %v9463 = vpop.f32.mrb[0].mxu0
  %9464 = vmatprep.mubr.bf16.mxu0 0
  %9465 = vmatmul.mubr.bf16.gmra.mrb[0].mxu0 %v9093
  %v9466 = vpop.f32.mrb[0].mxu0
  %v9467 = vadd.f32 %v8939, %v9466
  %v9468 = vpop.f32.mrb[0].mxu0
  %v9469 = vpop.f32.mrb[0].mxu0
  %v9470 = vadd.f32 %v8939, %v9469
  %v9471 = vpop.f32.mrb[0].mxu0
  %9472 = vmatprep.mubr.bf16.mxu0 0
  %9473 = vmatmul.mubr.bf16.gmra.mrb[0].mxu0 %v9096
  %v9474 = vpop.f32.mrb[0].mxu0
  %v9475 = vadd.f32 %v8939, %v9474
  %v9476 = vpop.f32.mrb[0].mxu0
  %v9477 = vpop.f32.mrb[0].mxu0
  %v9478 = vadd.f32 %v8939, %v9477
  %v9479 = vpop.f32.mrb[0].mxu0
  %9480 = vmatprep.mubr.bf16.mxu0 0
  %9481 = vmatmul.mubr.bf16.gmra.mrb[0].mxu0 %v9099
  %v9482 = vpop.f32.mrb[0].mxu0
  %v9483 = vadd.f32 %v8939, %v9482
  %v9484 = vpop.f32.mrb[0].mxu0
  %v9485 = vpop.f32.mrb[0].mxu0
  %v9486 = vadd.f32 %v8939, %v9485
  %v9487 = vpop.f32.mrb[0].mxu0
  %9488 = vmatprep.mubr.bf16.mxu0 0
  %9489 = vmatmul.mubr.bf16.gmra.mrb[0].mxu0 %v9102
  %v9490 = vpop.f32.mrb[0].mxu0
  %v9491 = vadd.f32 %v8939, %v9490
  %v9492 = vpop.f32.mrb[0].mxu0
  %v9493 = vpop.f32.mrb[0].mxu0
  %v9494 = vadd.f32 %v8939, %v9493
  %v9495 = vpop.f32.mrb[0].mxu0
  %9496 = vmatprep.mubr.bf16.mxu0 0
  %9497 = vmatmul.mubr.bf16.gmra.mrb[0].mxu0 %v9105
  %v9498 = vpop.f32.mrb[0].mxu0
  %v9499 = vadd.f32 %v8939, %v9498
  %v9500 = vpop.f32.mrb[0].mxu0
  %v9501 = vpop.f32.mrb[0].mxu0
  %v9502 = vadd.f32 %v8939, %v9501
  %v9503 = vpop.f32.mrb[0].mxu0
  %9504 = vmatprep.mubr.bf16.mxu0 0
  %9505 = vmatmul.mubr.bf16.gmra.mrb[0].mxu0 %v9108
  %v9506 = vpop.f32.mrb[0].mxu0
  %v9507 = vadd.f32 %v8939, %v9506
  %v9508 = vpop.f32.mrb[0].mxu0
  %v9509 = vpop.f32.mrb[0].mxu0
  %v9510 = vadd.f32 %v8939, %v9509
  %v9511 = vpop.f32.mrb[0].mxu0
  %9512 = vmatprep.mubr.bf16.mxu0 0
  %9513 = vmatmul.mubr.bf16.gmra.mrb[0].mxu0 %v9111
  %v9514 = vpop.f32.mrb[0].mxu0
  %v9515 = vadd.f32 %v8939, %v9514
  %v9516 = vpop.f32.mrb[0].mxu0
  %v9517 = vpop.f32.mrb[0].mxu0
  %v9518 = vadd.f32 %v8939, %v9517
  %v9519 = vpop.f32.mrb[0].mxu0
  %9520 = vmatprep.mubr.bf16.mxu0 0
  %9521 = vmatmul.mubr.bf16.gmra.mrb[0].mxu0 %v9114
  %v9522 = vpop.f32.mrb[0].mxu0
  %v9523 = vadd.f32 %v8939, %v9522
  %v9524 = vpop.f32.mrb[0].mxu0
  %v9525 = vpop.f32.mrb[0].mxu0
  %v9526 = vadd.f32 %v8939, %v9525
  %v9527 = vpop.f32.mrb[0].mxu0
  %9528 = vmatprep.mubr.bf16.mxu0 0
  %9529 = vmatmul.mubr.bf16.gmra.mrb[0].mxu0 %v9117
  %v9530 = vpop.f32.mrb[0].mxu0
  %v9531 = vadd.f32 %v8939, %v9530
  %v9532 = vpop.f32.mrb[0].mxu0
  %v9533 = vpop.f32.mrb[0].mxu0
  %v9534 = vadd.f32 %v8939, %v9533
  %v9535 = vpop.f32.mrb[0].mxu0
  %9536 = vmatprep.mubr.bf16.mxu0 0
  %9537 = vmatmul.mubr.bf16.gmra.mrb[0].mxu0 %v9120
  %v9538 = vpop.f32.mrb[0].mxu0
  %v9539 = vadd.f32 %v8939, %v9538
  %v9540 = vpop.f32.mrb[0].mxu0
  %v9541 = vpop.f32.mrb[0].mxu0
  %v9542 = vadd.f32 %v8939, %v9541
  %v9543 = vpop.f32.mrb[0].mxu0
  %9544 = vmatprep.mubr.bf16.mxu0 0
  %9545 = vmatmul.mubr.bf16.gmra.mrb[0].mxu0 %v9123
  %v9546 = vpop.f32.mrb[0].mxu0
  %v9547 = vadd.f32 %v8939, %v9546
  %v9548 = vpop.f32.mrb[0].mxu0
  %v9549 = vpop.f32.mrb[0].mxu0
  %v9550 = vadd.f32 %v8939, %v9549
  %v9551 = vpop.f32.mrb[0].mxu0
  %9552 = vmatprep.mubr.bf16.mxu0 0
  %9553 = vmatmul.mubr.bf16.gmra.mrb[0].mxu0 %v9126
  %v9554 = vpop.f32.mrb[0].mxu0
  %v9555 = vadd.f32 %v8939, %v9554
  %v9556 = vpop.f32.mrb[0].mxu0
  %v9557 = vpop.f32.mrb[0].mxu0
  %v9558 = vadd.f32 %v8939, %v9557
  %v9559 = vpop.f32.mrb[0].mxu0
  %9560 = vdwg.mxu0
  %v9561 = vmax.f32 %v9163, 0.0
  %v9562 = vmax.f32 %v9166, 0.0
  %v9563 = vmax.f32 %v9171, 0.0
  %v9564 = vmax.f32 %v9174, 0.0
  %v9565 = vmax.f32 %v9179, 0.0
  %v9566 = vmax.f32 %v9182, 0.0
  %v9567 = vmax.f32 %v9187, 0.0
  %v9568 = vmax.f32 %v9190, 0.0
  %v9569 = vmax.f32 %v9195, 0.0
  %v9570 = vmax.f32 %v9198, 0.0
  %v9571 = vmax.f32 %v9203, 0.0
  %v9572 = vmax.f32 %v9206, 0.0
  %v9573 = vmax.f32 %v9211, 0.0
  %v9574 = vmax.f32 %v9214, 0.0
  %v9575 = vmax.f32 %v9219, 0.0
  %v9576 = vmax.f32 %v9222, 0.0
  %v9577 = vmax.f32 %v9227, 0.0
  %v9578 = vmax.f32 %v9230, 0.0
  %v9579 = vmax.f32 %v9235, 0.0
  %v9580 = vmax.f32 %v9238, 0.0
  %v9581 = vmax.f32 %v9243, 0.0
  %v9582 = vmax.f32 %v9246, 0.0
  %v9583 = vmax.f32 %v9251, 0.0
  %v9584 = vmax.f32 %v9254, 0.0
  %v9585 = vmax.f32 %v9259, 0.0
  %v9586 = vmax.f32 %v9262, 0.0
  %v9587 = vmax.f32 %v9267, 0.0
  %v9588 = vmax.f32 %v9270, 0.0
  %v9589 = vmax.f32 %v9275, 0.0
  %v9590 = vmax.f32 %v9278, 0.0
  %v9591 = vmax.f32 %v9283, 0.0
  %v9592 = vmax.f32 %v9286, 0.0
  %v9593 = vmax.f32 %v9291, 0.0
  %v9594 = vmax.f32 %v9294, 0.0
  %v9595 = vmax.f32 %v9299, 0.0
  %v9596 = vmax.f32 %v9302, 0.0
  %v9597 = vmax.f32 %v9307, 0.0
  %v9598 = vmax.f32 %v9310, 0.0
  %v9599 = vmax.f32 %v9315, 0.0
  %v9600 = vmax.f32 %v9318, 0.0
  %v9601 = vmax.f32 %v9323, 0.0
  %v9602 = vmax.f32 %v9326, 0.0
  %v9603 = vmax.f32 %v9331, 0.0
  %v9604 = vmax.f32 %v9334, 0.0
  %v9605 = vmax.f32 %v9339, 0.0
  %v9606 = vmax.f32 %v9342, 0.0
  %v9607 = vmax.f32 %v9347, 0.0
  %v9608 = vmax.f32 %v9350, 0.0
  %v9609 = vmax.f32 %v9355, 0.0
  %v9610 = vmax.f32 %v9358, 0.0
  %v9611 = vmax.f32 %v9363, 0.0
  %v9612 = vmax.f32 %v9366, 0.0
  %v9613 = vmax.f32 %v9371, 0.0
  %v9614 = vmax.f32 %v9374, 0.0
  %v9615 = vmax.f32 %v9379, 0.0
  %v9616 = vmax.f32 %v9382, 0.0
  %v9617 = vmax.f32 %v9387, 0.0
  %v9618 = vmax.f32 %v9390, 0.0
  %v9619 = vmax.f32 %v9395, 0.0
  %v9620 = vmax.f32 %v9398, 0.0
  %v9621 = vmax.f32 %v9403, 0.0
  %v9622 = vmax.f32 %v9406, 0.0
  %v9623 = vmax.f32 %v9411, 0.0
  %v9624 = vmax.f32 %v9414, 0.0
  %v9625 = vmax.f32 %v9419, 0.0
  %v9626 = vmax.f32 %v9422, 0.0
  %v9627 = vmax.f32 %v9427, 0.0
  %v9628 = vmax.f32 %v9430, 0.0
  %v9629 = vmax.f32 %v9435, 0.0
  %v9630 = vmax.f32 %v9438, 0.0
  %v9631 = vmax.f32 %v9443, 0.0
  %v9632 = vmax.f32 %v9446, 0.0
  %v9633 = vmax.f32 %v9451, 0.0
  %v9634 = vmax.f32 %v9454, 0.0
  %v9635 = vmax.f32 %v9459, 0.0
  %v9636 = vmax.f32 %v9462, 0.0
  %v9637 = vmax.f32 %v9467, 0.0
  %v9638 = vmax.f32 %v9470, 0.0
  %v9639 = vmax.f32 %v9475, 0.0
  %v9640 = vmax.f32 %v9478, 0.0
  %v9641 = vmax.f32 %v9483, 0.0
  %v9642 = vmax.f32 %v9486, 0.0
  %v9643 = vmax.f32 %v9491, 0.0
  %v9644 = vmax.f32 %v9494, 0.0
  %v9645 = vmax.f32 %v9499, 0.0
  %v9646 = vmax.f32 %v9502, 0.0
  %v9647 = vmax.f32 %v9507, 0.0
  %v9648 = vmax.f32 %v9510, 0.0
  %v9649 = vmax.f32 %v9515, 0.0
  %v9650 = vmax.f32 %v9518, 0.0
  %v9651 = vmax.f32 %v9523, 0.0
  %v9652 = vmax.f32 %v9526, 0.0
  %v9653 = vmax.f32 %v9531, 0.0
  %v9654 = vmax.f32 %v9534, 0.0
  %v9655 = vmax.f32 %v9539, 0.0
  %v9656 = vmax.f32 %v9542, 0.0
  %v9657 = vmax.f32 %v9547, 0.0
  %v9658 = vmax.f32 %v9550, 0.0
  %v9659 = vmax.f32 %v9555, 0.0
  %v9660 = vmax.f32 %v9558, 0.0
  %v9661 = vld [vmem:[%s7] sm:$0xff]
  %v9662 = vld [vmem:[%s7 + $0x8] sm:$0xff]
  %v9663 = vld [vmem:[%s7 + $0x10] sm:$0xff]
  %v9664 = vld [vmem:[%s7 + $0x18] sm:$0xff]
  %v9665 = vld [vmem:[%s7 + $0x20] sm:$0xff]
  %v9666 = vld [vmem:[%s7 + $0x28] sm:$0xff]
  %v9667 = vld [vmem:[%s7 + $0x30] sm:$0xff]
  %v9668 = vld [vmem:[%s7 + $0x38] sm:$0xff]
  %v9669 = vld [vmem:[%s7 + $0x40] sm:$0xff]
  %v9670 = vld [vmem:[%s7 + $0x48] sm:$0xff]
  %v9671 = vld [vmem:[%s7 + $0x50] sm:$0xff]
  %v9672 = vld [vmem:[%s7 + $0x58] sm:$0xff]
  %v9673 = vld [vmem:[%s7 + $0x60] sm:$0xff]
  %v9674 = vld [vmem:[%s7 + $0x68] sm:$0xff]
  %v9675 = vld [vmem:[%s7 + $0x70] sm:$0xff]
  %v9676 = vld [vmem:[%s7 + $0x78] sm:$0xff]
  %v9677 = vld [vmem:[%s7 + $0x80] sm:$0xff]
  %v9678 = vld [vmem:[%s7 + $0x88] sm:$0xff]
  %v9679 = vld [vmem:[%s7 + $0x90] sm:$0xff]
  %v9680 = vld [vmem:[%s7 + $0x98] sm:$0xff]
  %v9681 = vld [vmem:[%s7 + $0xa0] sm:$0xff]
  %v9682 = vld [vmem:[%s7 + $0xa8] sm:$0xff]
  %v9683 = vld [vmem:[%s7 + $0xb0] sm:$0xff]
  %v9684 = vld [vmem:[%s7 + $0xb8] sm:$0xff]
  %v9685 = vld [vmem:[%s7 + $0xc0] sm:$0xff]
  %v9686 = vmul.f32 %v9561, %v9661
  %v9687 = vmul.f32 %v9562, %v9662
  %v9688 = vmul.f32 %v9563, %v9663
  %v9689 = vmul.f32 %v9564, %v9664
  %v9690 = vmul.f32 %v9565, %v9665
  %v9691 = vmul.f32 %v9566, %v9666
  %v9692 = vmul.f32 %v9567, %v9667
  %v9693 = vmul.f32 %v9568, %v9668
  %v9694 = vmul.f32 %v9569, %v9669
  %v9695 = vmul.f32 %v9570, %v9670
  %v9696 = vmul.f32 %v9571, %v9671
  %v9697 = vmul.f32 %v9572, %v9672
  %v9698 = vmul.f32 %v9573, %v9673
  %v9699 = vmul.f32 %v9574, %v9674
  %v9700 = vmul.f32 %v9575, %v9675
  %v9701 = vmul.f32 %v9576, %v9676
  %v9702 = vmul.f32 %v9577, %v9677
  %v9703 = vmul.f32 %v9578, %v9678
  %v9704 = vmul.f32 %v9579, %v9679
  %v9705 = vmul.f32 %v9580, %v9680
  %v9706 = vmul.f32 %v9581, %v9681
  %v9707 = vmul.f32 %v9582, %v9682
  %v9708 = vmul.f32 %v9583, %v9683
  %v9709 = vmul.f32 %v9584, %v9684
  %v9710 = vmul.f32 %v9585, %v9685
  %v9711 = vmul.f32 %v9586, %v9661
  %v9712 = vmul.f32 %v9587, %v9662
  %v9713 = vmul.f32 %v9588, %v9663
  %v9714 = vmul.f32 %v9589, %v9664
  %v9715 = vmul.f32 %v9590, %v9665
  %v9716 = vmul.f32 %v9591, %v9666
  %v9717 = vmul.f32 %v9592, %v9667
  %v9718 = vmul.f32 %v9593, %v9668
  %v9719 = vmul.f32 %v9594, %v9669
  %v9720 = vmul.f32 %v9595, %v9670
  %v9721 = vmul.f32 %v9596, %v9671
  %v9722 = vmul.f32 %v9597, %v9672
  %v9723 = vmul.f32 %v9598, %v9673
  %v9724 = vmul.f32 %v9599, %v9674
  %v9725 = vmul.f32 %v9600, %v9675
  %v9726 = vmul.f32 %v9601, %v9676
  %v9727 = vmul.f32 %v9602, %v9677
  %v9728 = vmul.f32 %v9603, %v9678
  %v9729 = vmul.f32 %v9604, %v9679
  %v9730 = vmul.f32 %v9605, %v9680
  %v9731 = vmul.f32 %v9606, %v9681
  %v9732 = vmul.f32 %v9607, %v9682
  %v9733 = vmul.f32 %v9608, %v9683
  %v9734 = vmul.f32 %v9609, %v9684
  %v9735 = vmul.f32 %v9610, %v9685
  %v9736 = vmul.f32 %v9611, %v9661
  %v9737 = vmul.f32 %v9612, %v9662
  %v9738 = vmul.f32 %v9613, %v9663
  %v9739 = vmul.f32 %v9614, %v9664
  %v9740 = vmul.f32 %v9615, %v9665
  %v9741 = vmul.f32 %v9616, %v9666
  %v9742 = vmul.f32 %v9617, %v9667
  %v9743 = vmul.f32 %v9618, %v9668
  %v9744 = vmul.f32 %v9619, %v9669
  %v9745 = vmul.f32 %v9620, %v9670
  %v9746 = vmul.f32 %v9621, %v9671
  %v9747 = vmul.f32 %v9622, %v9672
  %v9748 = vmul.f32 %v9623, %v9673
  %v9749 = vmul.f32 %v9624, %v9674
  %v9750 = vmul.f32 %v9625, %v9675
  %v9751 = vmul.f32 %v9626, %v9676
  %v9752 = vmul.f32 %v9627, %v9677
  %v9753 = vmul.f32 %v9628, %v9678
  %v9754 = vmul.f32 %v9629, %v9679
  %v9755 = vmul.f32 %v9630, %v9680
  %v9756 = vmul.f32 %v9631, %v9681
  %v9757 = vmul.f32 %v9632, %v9682
  %v9758 = vmul.f32 %v9633, %v9683
  %v9759 = vmul.f32 %v9634, %v9684
  %v9760 = vmul.f32 %v9635, %v9685
  %v9761 = vmul.f32 %v9636, %v9661
  %v9762 = vmul.f32 %v9637, %v9662
  %v9763 = vmul.f32 %v9638, %v9663
  %v9764 = vmul.f32 %v9639, %v9664
  %v9765 = vmul.f32 %v9640, %v9665
  %v9766 = vmul.f32 %v9641, %v9666
  %v9767 = vmul.f32 %v9642, %v9667
  %v9768 = vmul.f32 %v9643, %v9668
  %v9769 = vmul.f32 %v9644, %v9669
  %v9770 = vmul.f32 %v9645, %v9670
  %v9771 = vmul.f32 %v9646, %v9671
  %v9772 = vmul.f32 %v9647, %v9672
  %v9773 = vmul.f32 %v9648, %v9673
  %v9774 = vmul.f32 %v9649, %v9674
  %v9775 = vmul.f32 %v9650, %v9675
  %v9776 = vmul.f32 %v9651, %v9676
  %v9777 = vmul.f32 %v9652, %v9677
  %v9778 = vmul.f32 %v9653, %v9678
  %v9779 = vmul.f32 %v9654, %v9679
  %v9780 = vmul.f32 %v9655, %v9680
  %v9781 = vmul.f32 %v9656, %v9681
  %v9782 = vmul.f32 %v9657, %v9682
  %v9783 = vmul.f32 %v9658, %v9683
  %v9784 = vmul.f32 %v9659, %v9684
  %v9785 = vmul.f32 %v9660, %v9685
  %v9786 = vsel %vm8771, %v9686, 0.0
  %v9787 = vsel %vm8771, %v9687, 0.0
  %v9788 = vadd.f32 %v9786, %v9787
  %v9789 = vsel %vm8771, %v9688, 0.0
  %v9790 = vadd.f32 %v9788, %v9789
  %v9791 = vsel %vm8771, %v9689, 0.0
  %v9792 = vadd.f32 %v9790, %v9791
  %v9793 = vsel %vm8771, %v9690, 0.0
  %v9794 = vadd.f32 %v9792, %v9793
  %v9795 = vsel %vm8771, %v9691, 0.0
  %v9796 = vadd.f32 %v9794, %v9795
  %v9797 = vsel %vm8771, %v9692, 0.0
  %v9798 = vadd.f32 %v9796, %v9797
  %v9799 = vsel %vm8771, %v9693, 0.0
  %v9800 = vadd.f32 %v9798, %v9799
  %v9801 = vsel %vm8771, %v9694, 0.0
  %v9802 = vadd.f32 %v9800, %v9801
  %v9803 = vsel %vm8771, %v9695, 0.0
  %v9804 = vadd.f32 %v9802, %v9803
  %v9805 = vsel %vm8771, %v9696, 0.0
  %v9806 = vadd.f32 %v9804, %v9805
  %v9807 = vsel %vm8771, %v9697, 0.0
  %v9808 = vadd.f32 %v9806, %v9807
  %v9809 = vsel %vm8771, %v9698, 0.0
  %v9810 = vadd.f32 %v9808, %v9809
  %v9811 = vsel %vm8771, %v9699, 0.0
  %v9812 = vadd.f32 %v9810, %v9811
  %v9813 = vsel %vm8771, %v9700, 0.0
  %v9814 = vadd.f32 %v9812, %v9813
  %v9815 = vsel %vm8771, %v9701, 0.0
  %v9816 = vadd.f32 %v9814, %v9815
  %v9817 = vsel %vm8771, %v9702, 0.0
  %v9818 = vadd.f32 %v9816, %v9817
  %v9819 = vsel %vm8771, %v9703, 0.0
  %v9820 = vadd.f32 %v9818, %v9819
  %v9821 = vsel %vm8771, %v9704, 0.0
  %v9822 = vadd.f32 %v9820, %v9821
  %v9823 = vsel %vm8771, %v9705, 0.0
  %v9824 = vadd.f32 %v9822, %v9823
  %v9825 = vsel %vm8771, %v9706, 0.0
  %v9826 = vadd.f32 %v9824, %v9825
  %v9827 = vsel %vm8771, %v9707, 0.0
  %v9828 = vadd.f32 %v9826, %v9827
  %v9829 = vsel %vm8771, %v9708, 0.0
  %v9830 = vadd.f32 %v9828, %v9829
  %v9831 = vsel %vm8771, %v9709, 0.0
  %v9832 = vadd.f32 %v9830, %v9831
  %v9833 = vsel %vm8771, %v9710, 0.0
  %v9834 = vadd.f32 %v9832, %v9833
  %v9835 = vrot.slane %v9834, 4
  %v9836 = vadd.f32 %v9834, %v9835
  %v9837 = vrot.slane %v9836, 2
  %v9838 = vadd.f32 %v9836, %v9837
  %v9839 = vrot.slane %v9838, 1
  %v9840 = vadd.f32 %v9838, %v9839
  %v9841 = vsel %vm8771, %v9711, 0.0
  %v9842 = vsel %vm8771, %v9712, 0.0
  %v9843 = vadd.f32 %v9841, %v9842
  %v9844 = vsel %vm8771, %v9713, 0.0
  %v9845 = vadd.f32 %v9843, %v9844
  %v9846 = vsel %vm8771, %v9714, 0.0
  %v9847 = vadd.f32 %v9845, %v9846
  %v9848 = vsel %vm8771, %v9715, 0.0
  %v9849 = vadd.f32 %v9847, %v9848
  %v9850 = vsel %vm8771, %v9716, 0.0
  %v9851 = vadd.f32 %v9849, %v9850
  %v9852 = vsel %vm8771, %v9717, 0.0
  %v9853 = vadd.f32 %v9851, %v9852
  %v9854 = vsel %vm8771, %v9718, 0.0
  %v9855 = vadd.f32 %v9853, %v9854
  %v9856 = vsel %vm8771, %v9719, 0.0
  %v9857 = vadd.f32 %v9855, %v9856
  %v9858 = vsel %vm8771, %v9720, 0.0
  %v9859 = vadd.f32 %v9857, %v9858
  %v9860 = vsel %vm8771, %v9721, 0.0
  %v9861 = vadd.f32 %v9859, %v9860
  %v9862 = vsel %vm8771, %v9722, 0.0
  %v9863 = vadd.f32 %v9861, %v9862
  %v9864 = vsel %vm8771, %v9723, 0.0
  %v9865 = vadd.f32 %v9863, %v9864
  %v9866 = vsel %vm8771, %v9724, 0.0
  %v9867 = vadd.f32 %v9865, %v9866
  %v9868 = vsel %vm8771, %v9725, 0.0
  %v9869 = vadd.f32 %v9867, %v9868
  %v9870 = vsel %vm8771, %v9726, 0.0
  %v9871 = vadd.f32 %v9869, %v9870
  %v9872 = vsel %vm8771, %v9727, 0.0
  %v9873 = vadd.f32 %v9871, %v9872
  %v9874 = vsel %vm8771, %v9728, 0.0
  %v9875 = vadd.f32 %v9873, %v9874
  %v9876 = vsel %vm8771, %v9729, 0.0
  %v9877 = vadd.f32 %v9875, %v9876
  %v9878 = vsel %vm8771, %v9730, 0.0
  %v9879 = vadd.f32 %v9877, %v9878
  %v9880 = vsel %vm8771, %v9731, 0.0
  %v9881 = vadd.f32 %v9879, %v9880
  %v9882 = vsel %vm8771, %v9732, 0.0
  %v9883 = vadd.f32 %v9881, %v9882
  %v9884 = vsel %vm8771, %v9733, 0.0
  %v9885 = vadd.f32 %v9883, %v9884
  %v9886 = vsel %vm8771, %v9734, 0.0
  %v9887 = vadd.f32 %v9885, %v9886
  %v9888 = vsel %vm8771, %v9735, 0.0
  %v9889 = vadd.f32 %v9887, %v9888
  %v9890 = vrot.slane %v9889, 4
  %v9891 = vadd.f32 %v9889, %v9890
  %v9892 = vrot.slane %v9891, 2
  %v9893 = vadd.f32 %v9891, %v9892
  %v9894 = vrot.slane %v9893, 1
  %v9895 = vadd.f32 %v9893, %v9894
  %v9896 = vsel %vm8771, %v9736, 0.0
  %v9897 = vsel %vm8771, %v9737, 0.0
  %v9898 = vadd.f32 %v9896, %v9897
  %v9899 = vsel %vm8771, %v9738, 0.0
  %v9900 = vadd.f32 %v9898, %v9899
  %v9901 = vsel %vm8771, %v9739, 0.0
  %v9902 = vadd.f32 %v9900, %v9901
  %v9903 = vsel %vm8771, %v9740, 0.0
  %v9904 = vadd.f32 %v9902, %v9903
  %v9905 = vsel %vm8771, %v9741, 0.0
  %v9906 = vadd.f32 %v9904, %v9905
  %v9907 = vsel %vm8771, %v9742, 0.0
  %v9908 = vadd.f32 %v9906, %v9907
  %v9909 = vsel %vm8771, %v9743, 0.0
  %v9910 = vadd.f32 %v9908, %v9909
  %v9911 = vsel %vm8771, %v9744, 0.0
  %v9912 = vadd.f32 %v9910, %v9911
  %v9913 = vsel %vm8771, %v9745, 0.0
  %v9914 = vadd.f32 %v9912, %v9913
  %v9915 = vsel %vm8771, %v9746, 0.0
  %v9916 = vadd.f32 %v9914, %v9915
  %v9917 = vsel %vm8771, %v9747, 0.0
  %v9918 = vadd.f32 %v9916, %v9917
  %v9919 = vsel %vm8771, %v9748, 0.0
  %v9920 = vadd.f32 %v9918, %v9919
  %v9921 = vsel %vm8771, %v9749, 0.0
  %v9922 = vadd.f32 %v9920, %v9921
  %v9923 = vsel %vm8771, %v9750, 0.0
  %v9924 = vadd.f32 %v9922, %v9923
  %v9925 = vsel %vm8771, %v9751, 0.0
  %v9926 = vadd.f32 %v9924, %v9925
  %v9927 = vsel %vm8771, %v9752, 0.0
  %v9928 = vadd.f32 %v9926, %v9927
  %v9929 = vsel %vm8771, %v9753, 0.0
  %v9930 = vadd.f32 %v9928, %v9929
  %v9931 = vsel %vm8771, %v9754, 0.0
  %v9932 = vadd.f32 %v9930, %v9931
  %v9933 = vsel %vm8771, %v9755, 0.0
  %v9934 = vadd.f32 %v9932, %v9933
  %v9935 = vsel %vm8771, %v9756, 0.0
  %v9936 = vadd.f32 %v9934, %v9935
  %v9937 = vsel %vm8771, %v9757, 0.0
  %v9938 = vadd.f32 %v9936, %v9937
  %v9939 = vsel %vm8771, %v9758, 0.0
  %v9940 = vadd.f32 %v9938, %v9939
  %v9941 = vsel %vm8771, %v9759, 0.0
  %v9942 = vadd.f32 %v9940, %v9941
  %v9943 = vsel %vm8771, %v9760, 0.0
  %v9944 = vadd.f32 %v9942, %v9943
  %v9945 = vrot.slane %v9944, 4
  %v9946 = vadd.f32 %v9944, %v9945
  %v9947 = vrot.slane %v9946, 2
  %v9948 = vadd.f32 %v9946, %v9947
  %v9949 = vrot.slane %v9948, 1
  %v9950 = vadd.f32 %v9948, %v9949
  %v9951 = vsel %vm8771, %v9761, 0.0
  %v9952 = vsel %vm8771, %v9762, 0.0
  %v9953 = vadd.f32 %v9951, %v9952
  %v9954 = vsel %vm8771, %v9763, 0.0
  %v9955 = vadd.f32 %v9953, %v9954
  %v9956 = vsel %vm8771, %v9764, 0.0
  %v9957 = vadd.f32 %v9955, %v9956
  %v9958 = vsel %vm8771, %v9765, 0.0
  %v9959 = vadd.f32 %v9957, %v9958
  %v9960 = vsel %vm8771, %v9766, 0.0
  %v9961 = vadd.f32 %v9959, %v9960
  %v9962 = vsel %vm8771, %v9767, 0.0
  %v9963 = vadd.f32 %v9961, %v9962
  %v9964 = vsel %vm8771, %v9768, 0.0
  %v9965 = vadd.f32 %v9963, %v9964
  %v9966 = vsel %vm8771, %v9769, 0.0
  %v9967 = vadd.f32 %v9965, %v9966
  %v9968 = vsel %vm8771, %v9770, 0.0
  %v9969 = vadd.f32 %v9967, %v9968
  %v9970 = vsel %vm8771, %v9771, 0.0
  %v9971 = vadd.f32 %v9969, %v9970
  %v9972 = vsel %vm8771, %v9772, 0.0
  %v9973 = vadd.f32 %v9971, %v9972
  %v9974 = vsel %vm8771, %v9773, 0.0
  %v9975 = vadd.f32 %v9973, %v9974
  %v9976 = vsel %vm8771, %v9774, 0.0
  %v9977 = vadd.f32 %v9975, %v9976
  %v9978 = vsel %vm8771, %v9775, 0.0
  %v9979 = vadd.f32 %v9977, %v9978
  %v9980 = vsel %vm8771, %v9776, 0.0
  %v9981 = vadd.f32 %v9979, %v9980
  %v9982 = vsel %vm8771, %v9777, 0.0
  %v9983 = vadd.f32 %v9981, %v9982
  %v9984 = vsel %vm8771, %v9778, 0.0
  %v9985 = vadd.f32 %v9983, %v9984
  %v9986 = vsel %vm8771, %v9779, 0.0
  %v9987 = vadd.f32 %v9985, %v9986
  %v9988 = vsel %vm8771, %v9780, 0.0
  %v9989 = vadd.f32 %v9987, %v9988
  %v9990 = vsel %vm8771, %v9781, 0.0
  %v9991 = vadd.f32 %v9989, %v9990
  %v9992 = vsel %vm8771, %v9782, 0.0
  %v9993 = vadd.f32 %v9991, %v9992
  %v9994 = vsel %vm8771, %v9783, 0.0
  %v9995 = vadd.f32 %v9993, %v9994
  %v9996 = vsel %vm8771, %v9784, 0.0
  %v9997 = vadd.f32 %v9995, %v9996
  %v9998 = vsel %vm8771, %v9785, 0.0
  %v9999 = vadd.f32 %v9997, %v9998
  %v10000 = vrot.slane %v9999, 4
  %v10001 = vadd.f32 %v9999, %v10000
  %v10002 = vrot.slane %v10001, 2
  %v10003 = vadd.f32 %v10001, %v10002
  %v10004 = vrot.slane %v10003, 1
  %v10005 = vadd.f32 %v10003, %v10004
  %vm10010 = vcmask 1041409
  %v10011 = vsel %vm10010, %v9895, %v9840
  %vm10012 = vcmask 1042434
  %v10013 = vsel %vm10012, %v9950, %v10011
  %vm10014 = vcmask 1043459
  %v10015 = vsel %vm10014, %v10005, %v10013
  %vm10017 = vcmask 519168
  %v10018 = vsel %vm10017, %v10015, 0.0
  %10019 = vadd.xlane.f32.xlu0 %v10018
  %v10020 = vpop.xlane.xlu0 %10019
  %s10021 = sld [smem:[#allocation2]]
  %v10022 = vstv %s10021
  %v10023 = vadd.f32 %v10020, %v10022
  %vm10024 = vcmask 3072
  %10025 = vst.msk [vmem:[%s9] sm:$0xf] %vm10024, %v10023
  // Predicated region
  $region38: #{cnn_forward_pallas.1} parent=0 // pred_check
    _
  $region39: #{cnn_forward_pallas.1} parent=0 // pred_check_branch
    %10027 = sbr.rel (0) target = $region41
  $region40: #{cnn_forward_pallas.1} parent=0 // pred_region
    _
  $region41: #{cnn_forward_pallas.1} parent=0 // pred_fallthru
    _
  // Predicated region
  $region42: #{cnn_forward_pallas.1} parent=0 // pred_check
    _
  $region43: #{cnn_forward_pallas.1} parent=0 // pred_check_branch
    %10029 = sbr.rel (0) target = $region45
  $region44: #{cnn_forward_pallas.1} parent=0 // pred_region
    _
  $region45: #{cnn_forward_pallas.1} parent=0 // pred_fallthru
    _

</llo_original>
